<compile_context>
chip_gen: v7x
topology: tpu7x:2x2x1
jax: 0.10.0
libtpu: 0.0.40
codegen_flags: <defaults>
</compile_context>

<pallas_src>
import jax
import jax.numpy as jnp
from jax import lax
from jax.experimental import pallas as pl
from jax.experimental.pallas import tpu as pltpu

D_MODEL = 32
SEQ_LEN = 8
BATCH = 2
NUM_CROSS = 3      # cross layers per EncoderBlock
NUM_CONV1 = 2      # conv1 layers per EncoderBlock
NUM_BRANCHES = 3   # xlist = [mainX] + 3 cross inputs -> FFN in-channels = 3 * d_model
LN_EPS = 1e-5
SOFTMAX_STABLE = True   # keep the row-max subtraction (set False to shave 9 XLU row-maxes)


# ---------------------------------------------------------------------------
# In-kernel helpers (pure value math, inlined into the fused kernels)
# ---------------------------------------------------------------------------
def _ln_mxu(x, g, b, ones_d, inv_d):
    """LayerNorm with the lane reductions done as ones-vector matmuls (MXU, not XLU)."""
    s1 = jnp.dot(x, ones_d, preferred_element_type=jnp.float32)        # sum(x)
    s2 = jnp.dot(x * x, ones_d, preferred_element_type=jnp.float32)    # sum(x^2)
    mu = s1 * inv_d
    var = jnp.maximum(s2 * inv_d - mu * mu, 0.0)
    return (x - mu) * lax.rsqrt(var + LN_EPS) * g + b


def _elu(x):
    # exp on the clamped value: exact for x <= 0, avoids overflow on the unselected branch.
    return jnp.where(x > 0, x, jnp.exp(jnp.minimum(x, 0.0)) - 1.0)


def _encoder_block(h, cross_bf, br, attn_bias, ones_d, ones_kv,
                   wq_ref, bq_ref, wk_ref, bk_ref, wv_ref, bv_ref, wo_ref, bo_ref,
                   lng_ref, lnb_ref, cw_ref, cb_ref, blng_ref, blnb_ref):
    """One EncoderBlock: NUM_CROSS fused cross-attn layers (+conv1) + last_extro_norm.

    h        : (BL, D) f32 hidden state (query stream).
    cross_bf : (BL, D) bf16 cross input (constant across the block's layers, per spec).
    """
    D = h.shape[-1]
    inv_d = jnp.float32(1.0 / D)
    for j in range(NUM_CROSS):
        # Projections: bf16 operands, f32 accumulation (softmax scale folded into wq/bq).
        q = jnp.dot(h.astype(jnp.bfloat16), wq_ref[br, j],
                    preferred_element_type=jnp.float32) + bq_ref[br, j]
        k = jnp.dot(cross_bf, wk_ref[br, j],
                    preferred_element_type=jnp.float32) + bk_ref[br, j]
        v = jnp.dot(cross_bf, wv_ref[br, j],
                    preferred_element_type=jnp.float32) + bv_ref[br, j]
        # Scores: contract the last dim of q against the last dim of k on the MXU
        # (no explicit k.T -> no XLU transpose / relayout on the critical path).
        s = lax.dot_general(q.astype(jnp.bfloat16), k.astype(jnp.bfloat16),
                            dimension_numbers=(((1,), (1,)), ((), ())),
                            preferred_element_type=jnp.float32) + attn_bias
        if SOFTMAX_STABLE:
            s = s - jnp.max(s, axis=-1, keepdims=True)
        p = jnp.exp(s)
        denom = jnp.dot(p, ones_kv, preferred_element_type=jnp.float32)  # row-sum on MXU
        p = p * pl.reciprocal(denom, approx=True)                        # EUP slot
        att = jnp.dot(p.astype(jnp.bfloat16), v.astype(jnp.bfloat16),
                      preferred_element_type=jnp.float32)
        out = jnp.dot(att.astype(jnp.bfloat16), wo_ref[br, j],
                      preferred_element_type=jnp.float32) + bo_ref[br, j]
        h = _ln_mxu(h + out, lng_ref[br, j], lnb_ref[br, j], ones_d, inv_d)  # res + LN
        if j < NUM_CONV1:                                                    # Conv1d(1)+ELU
            h = _elu(jnp.dot(h.astype(jnp.bfloat16), cw_ref[br, j],
                             preferred_element_type=jnp.float32) + cb_ref[br, j])
    return _ln_mxu(h, blng_ref[br], blnb_ref[br], ones_d, inv_d)             # last_extro_norm


# ---------------------------------------------------------------------------
# Fused kernels
# ---------------------------------------------------------------------------
def _att_encoders_cross_kernel(x_ref, c_ref, bias_ref,
                               wq_ref, bq_ref, wk_ref, bk_ref, wv_ref, bv_ref,
                               wo_ref, bo_ref, lng_ref, lnb_ref, cw_ref, cb_ref,
                               blng_ref, blnb_ref,
                               fw1_ref, fb1_ref, fw2_ref, fb2_ref, ng_ref, nb_ref,
                               o_ref):
    """Whole iscross=True forward for the full (B*L, D) activation slab."""
    BL, D = x_ref.shape
    x_main = x_ref[...].astype(jnp.float32)
    attn_bias = bias_ref[...]                      # block-diagonal per-batch bias (hoisted)
    ones_d = jnp.ones((D, 1), jnp.float32)         # hoisted reduction vectors
    ones_kv = jnp.ones((BL, 1), jnp.float32)
    inv_d = jnp.float32(1.0 / D)

    # The PyTorch concat along the last dim followed by y @ fw1 is algebraically
    #   sum_br  y_br @ fw1[br*D:(br+1)*D, :]
    # -> no lane-axis concat, row slices of fw1 are sublane-aligned, and each branch's
    #    output registers die as soon as it is accumulated.
    acc = jnp.zeros((BL, fw1_ref.shape[1]), jnp.float32)
    for br in range(NUM_BRANCHES):
        cross_bf = c_ref[br].astype(jnp.bfloat16)
        y_br = _encoder_block(x_main, cross_bf, br, attn_bias, ones_d, ones_kv,
                              wq_ref, bq_ref, wk_ref, bk_ref, wv_ref, bv_ref,
                              wo_ref, bo_ref, lng_ref, lnb_ref, cw_ref, cb_ref,
                              blng_ref, blnb_ref)
        acc = acc + jnp.dot(y_br.astype(jnp.bfloat16),
                            fw1_ref[br * D:(br + 1) * D, :],
                            preferred_element_type=jnp.float32)

    # FFN: Conv1d(3D,4D,1) -> ELU -> Conv1d(4D,D,1)  (dropouts are identity)
    h1 = _elu(acc + fb1_ref[...])
    h2 = jnp.dot(h1.astype(jnp.bfloat16), fw2_ref[...],
                 preferred_element_type=jnp.float32) + fb2_ref[...]
    o_ref[...] = _ln_mxu(h2, ng_ref[...], nb_ref[...], ones_d, inv_d).astype(o_ref.dtype)


def _att_encoders_self_kernel(x_ref, bias_ref,
                              wq_ref, bq_ref, wk_ref, bk_ref, wv_ref, bv_ref,
                              wo_ref, bo_ref, lng_ref, lnb_ref, cw_ref, cb_ref,
                              blng_ref, blnb_ref, n1g_ref, n1b_ref, o_ref):
    """iscross=False path: per-branch self-attention block + norm1 (all fused)."""
    NB, BL, D = x_ref.shape
    attn_bias = bias_ref[...]
    ones_d = jnp.ones((D, 1), jnp.float32)
    ones_kv = jnp.ones((BL, 1), jnp.float32)
    inv_d = jnp.float32(1.0 / D)
    for br in range(NUM_BRANCHES):
        x = x_ref[br].astype(jnp.float32)
        h = _encoder_block(x, x.astype(jnp.bfloat16), br, attn_bias, ones_d, ones_kv,
                           wq_ref, bq_ref, wk_ref, bk_ref, wv_ref, bv_ref,
                           wo_ref, bo_ref, lng_ref, lnb_ref, cw_ref, cb_ref,
                           blng_ref, blnb_ref)
        o_ref[br] = _ln_mxu(h, n1g_ref[br], n1b_ref[br], ones_d, inv_d).astype(o_ref.dtype)


# ---------------------------------------------------------------------------
# Wrappers
# ---------------------------------------------------------------------------
def _full_spec(a):
    nd = a.ndim
    return pl.BlockSpec(a.shape, lambda i, _nd=nd: (0,) * _nd)


def _batch_bias(B, L):
    """Additive (B*L, B*L) bias: 0 inside a batch's block, -1e30 elsewhere."""
    idx = jnp.arange(B * L) // L
    return jnp.where(idx[:, None] == idx[None, :], 0.0, -1e30).astype(jnp.float32)


def _prep_weights(params, D):
    """Fold the softmax scale into Wq/bq; cast matmul weights to bf16 (f32 accumulation)."""
    scale = jnp.float32(1.0 / (D ** 0.5))
    w = dict(params)
    w["wq"] = (params["wq"] * scale).astype(jnp.bfloat16)
    w["bq"] = params["bq"] * scale
    for name in ("wk", "wv", "wo", "cw", "fw1", "fw2"):
        w[name] = params[name].astype(jnp.bfloat16)
    return w


def _cost_estimate(BL, D):
    per_layer = 8 * BL * D * D + 4 * BL * BL * D          # q/k/v/o projections + scores + att
    flops = NUM_BRANCHES * (NUM_CROSS * per_layer + NUM_CONV1 * 2 * BL * D * D)
    flops += 2 * BL * (3 * D) * (4 * D) + 2 * BL * (4 * D) * D     # FFN
    transcendentals = NUM_BRANCHES * NUM_CROSS * BL * BL + 10 * BL * D
    return pl.CostEstimate(flops=int(flops), transcendentals=int(transcendentals),
                           bytes_accessed=200_000)


def att_encoders_forward(xlist, params, iscross=True):
    if iscross:
        return _forward_cross(xlist, params)
    return _forward_self(xlist, params)


def _forward_cross(xlist, params):
    B, L, D = xlist[0].shape
    BL = B * L
    assert len(xlist) == NUM_BRANCHES + 1

    w = _prep_weights(params, D)
    x_main = xlist[0].reshape(BL, D)
    x_cross = jnp.stack([x.reshape(BL, D) for x in xlist[1:]], axis=0)   # (NB, BL, D)
    attn_bias = _batch_bias(B, L)

    # The PyTorch loop leaves `ffn` / `norm1` pointing at the last ones fetched.
    k = len(xlist) - 2
    inputs = (x_main, x_cross, attn_bias,
              w["wq"], w["bq"], w["wk"], w["bk"], w["wv"], w["bv"], w["wo"], w["bo"],
              w["ln_g"], w["ln_b"], w["cw"], w["cb"], w["blk_ln_g"], w["blk_ln_b"],
              w["fw1"][k], w["fb1"][k], w["fw2"][k], w["fb2"][k],
              w["n1_g"][k], w["n1_b"][k])

    y = pl.pallas_call(
        _att_encoders_cross_kernel,
        out_shape=jax.ShapeDtypeStruct((BL, D), xlist[0].dtype),
        grid=(1,),
        in_specs=[_full_spec(a) for a in inputs],
        out_specs=pl.BlockSpec((BL, D), lambda i: (0, 0)),
        compiler_params=pltpu.CompilerParams(dimension_semantics=("arbitrary",)),
        cost_estimate=_cost_estimate(BL, D),
    )(*inputs)
    return y.reshape(B, L, D)


def _forward_self(xlist, params):
    B, L, D = xlist[0].shape
    BL = B * L
    assert len(xlist) == NUM_BRANCHES

    w = _prep_weights(params, D)
    xs = jnp.stack([x.reshape(BL, D) for x in xlist], axis=0)            # (NB, BL, D)
    attn_bias = _batch_bias(B, L)

    inputs = (xs, attn_bias,
              w["wq"], w["bq"], w["wk"], w["bk"], w["wv"], w["bv"], w["wo"], w["bo"],
              w["ln_g"], w["ln_b"], w["cw"], w["cb"], w["blk_ln_g"], w["blk_ln_b"],
              w["n1_g"], w["n1_b"])

    out = pl.pallas_call(
        _att_encoders_self_kernel,
        out_shape=jax.ShapeDtypeStruct((NUM_BRANCHES, BL, D), xlist[0].dtype),
        grid=(1,),
        in_specs=[_full_spec(a) for a in inputs],
        out_specs=pl.BlockSpec((NUM_BRANCHES, BL, D), lambda i: (0, 0, 0)),
        compiler_params=pltpu.CompilerParams(dimension_semantics=("arbitrary",)),
        cost_estimate=_cost_estimate(BL, D),
    )(*inputs)
    return [out[i].reshape(B, L, D) for i in range(NUM_BRANCHES)]


# ---------------------------------------------------------------------------
# Deterministic parameter initialization (stacked layout for the fused kernels)
# ---------------------------------------------------------------------------
def init_params(key, d_model):
    D = d_model
    NB, NC, NV = NUM_BRANCHES, NUM_CROSS, NUM_CONV1

    def nrm(k, shape, scale=0.02):
        return scale * jax.random.normal(k, shape, jnp.float32)

    ks = jax.random.split(key, 8)
    return dict(
        wq=nrm(ks[0], (NB, NC, D, D)),
        wk=nrm(ks[1], (NB, NC, D, D)),
        wv=nrm(ks[2], (NB, NC, D, D)),
        wo=nrm(ks[3], (NB, NC, D, D)),
        bq=jnp.zeros((NB, NC, 1, D), jnp.float32),
        bk=jnp.zeros((NB, NC, 1, D), jnp.float32),
        bv=jnp.zeros((NB, NC, 1, D), jnp.float32),
        bo=jnp.zeros((NB, NC, 1, D), jnp.float32),
        ln_g=jnp.ones((NB, NC, 1, D), jnp.float32),
        ln_b=jnp.zeros((NB, NC, 1, D), jnp.float32),
        cw=nrm(ks[4], (NB, NV, D, D)),
        cb=jnp.zeros((NB, NV, 1, D), jnp.float32),
        blk_ln_g=jnp.ones((NB, 1, D), jnp.float32),
        blk_ln_b=jnp.zeros((NB, 1, D), jnp.float32),
        n1_g=jnp.ones((NB, 1, D), jnp.float32),
        n1_b=jnp.zeros((NB, 1, D), jnp.float32),
        fw1=nrm(ks[5], (NB, 3 * D, 4 * D)),
        fb1=jnp.zeros((NB, 1, 4 * D), jnp.float32),
        fw2=nrm(ks[6], (NB, 4 * D, D)),
        fb2=jnp.zeros((NB, 1, D), jnp.float32),
    )


if __name__ == "__main__":
    key = jax.random.PRNGKey(0)
    data_keys = jax.random.split(key, NUM_BRANCHES + 2)
    xlist = [jax.random.normal(data_keys[i], (BATCH, SEQ_LEN, D_MODEL), jnp.float32)
             for i in range(NUM_BRANCHES + 1)]           # [mainX, x1, x2, x3]
    params = init_params(data_keys[-1], D_MODEL)

    # iscross=True path
    y = att_encoders_forward(xlist, params, iscross=True)
    y = jax.block_until_ready(y)
    assert y.shape == (BATCH, SEQ_LEN, D_MODEL) and y.dtype == jnp.float32

    # iscross=False path
    ys = att_encoders_forward(xlist[:NUM_BRANCHES], params, iscross=False)
    ys = jax.block_until_ready(ys)
    assert len(ys) == NUM_BRANCHES
    assert all(z.shape == (BATCH, SEQ_LEN, D_MODEL) and z.dtype == jnp.float32 for z in ys)

    print("KERNEL_OK")
</pallas_src>

<mosaic_0001>
module attributes {stable_mosaic.version = 11 : i64} {
  func.func @_att_encoders_cross_kernel(%arg0: i32, %arg1: memref<16x32xf32, #tpu.memory_space<vmem>>, %arg2: memref<3x16x32xf32, #tpu.memory_space<vmem>>, %arg3: memref<16x16xf32, #tpu.memory_space<vmem>>, %arg4: memref<3x3x32x32xbf16, #tpu.memory_space<vmem>>, %arg5: memref<3x3x1x32xf32, #tpu.memory_space<vmem>>, %arg6: memref<3x3x32x32xbf16, #tpu.memory_space<vmem>>, %arg7: memref<3x3x1x32xf32, #tpu.memory_space<vmem>>, %arg8: memref<3x3x32x32xbf16, #tpu.memory_space<vmem>>, %arg9: memref<3x3x1x32xf32, #tpu.memory_space<vmem>>, %arg10: memref<3x3x32x32xbf16, #tpu.memory_space<vmem>>, %arg11: memref<3x3x1x32xf32, #tpu.memory_space<vmem>>, %arg12: memref<3x3x1x32xf32, #tpu.memory_space<vmem>>, %arg13: memref<3x3x1x32xf32, #tpu.memory_space<vmem>>, %arg14: memref<3x2x32x32xbf16, #tpu.memory_space<vmem>>, %arg15: memref<3x2x1x32xf32, #tpu.memory_space<vmem>>, %arg16: memref<3x1x32xf32, #tpu.memory_space<vmem>>, %arg17: memref<3x1x32xf32, #tpu.memory_space<vmem>>, %arg18: memref<96x128xbf16, #tpu.memory_space<vmem>>, %arg19: memref<1x128xf32, #tpu.memory_space<vmem>>, %arg20: memref<128x32xbf16, #tpu.memory_space<vmem>>, %arg21: memref<1x32xf32, #tpu.memory_space<vmem>>, %arg22: memref<1x32xf32, #tpu.memory_space<vmem>>, %arg23: memref<1x32xf32, #tpu.memory_space<vmem>>, %arg24: memref<16x32xf32, #tpu.memory_space<vmem>>) attributes {dimension_semantics = [#tpu.dimension_semantics<arbitrary>], iteration_bounds = array<i64: 1>, scalar_prefetch = 0 : i64, scratch_operands = 0 : i64, tpu.core_type = #tpu.core_type<tc>, window_params = [{pipeline_mode = #tpu.pipeline_mode<synchronous>, transform_indices = @transform_0, window_bounds = array<i64: 16, 32>}, {pipeline_mode = #tpu.pipeline_mode<synchronous>, transform_indices = @transform_1, window_bounds = array<i64: 3, 16, 32>}, {pipeline_mode = #tpu.pipeline_mode<synchronous>, transform_indices = @transform_2, window_bounds = array<i64: 16, 16>}, {pipeline_mode = #tpu.pipeline_mode<synchronous>, transform_indices = @transform_3, window_bounds = array<i64: 3, 3, 32, 32>}, {pipeline_mode = #tpu.pipeline_mode<synchronous>, transform_indices = @transform_4, window_bounds = array<i64: 3, 3, 1, 32>}, {pipeline_mode = #tpu.pipeline_mode<synchronous>, transform_indices = @transform_5, window_bounds = array<i64: 3, 3, 32, 32>}, {pipeline_mode = #tpu.pipeline_mode<synchronous>, transform_indices = @transform_6, window_bounds = array<i64: 3, 3, 1, 32>}, {pipeline_mode = #tpu.pipeline_mode<synchronous>, transform_indices = @transform_7, window_bounds = array<i64: 3, 3, 32, 32>}, {pipeline_mode = #tpu.pipeline_mode<synchronous>, transform_indices = @transform_8, window_bounds = array<i64: 3, 3, 1, 32>}, {pipeline_mode = #tpu.pipeline_mode<synchronous>, transform_indices = @transform_9, window_bounds = array<i64: 3, 3, 32, 32>}, {pipeline_mode = #tpu.pipeline_mode<synchronous>, transform_indices = @transform_10, window_bounds = array<i64: 3, 3, 1, 32>}, {pipeline_mode = #tpu.pipeline_mode<synchronous>, transform_indices = @transform_11, window_bounds = array<i64: 3, 3, 1, 32>}, {pipeline_mode = #tpu.pipeline_mode<synchronous>, transform_indices = @transform_12, window_bounds = array<i64: 3, 3, 1, 32>}, {pipeline_mode = #tpu.pipeline_mode<synchronous>, transform_indices = @transform_13, window_bounds = array<i64: 3, 2, 32, 32>}, {pipeline_mode = #tpu.pipeline_mode<synchronous>, transform_indices = @transform_14, window_bounds = array<i64: 3, 2, 1, 32>}, {pipeline_mode = #tpu.pipeline_mode<synchronous>, transform_indices = @transform_15, window_bounds = array<i64: 3, 1, 32>}, {pipeline_mode = #tpu.pipeline_mode<synchronous>, transform_indices = @transform_16, window_bounds = array<i64: 3, 1, 32>}, {pipeline_mode = #tpu.pipeline_mode<synchronous>, transform_indices = @transform_17, window_bounds = array<i64: 96, 128>}, {pipeline_mode = #tpu.pipeline_mode<synchronous>, transform_indices = @transform_18, window_bounds = array<i64: 1, 128>}, {pipeline_mode = #tpu.pipeline_mode<synchronous>, transform_indices = @transform_19, window_bounds = array<i64: 128, 32>}, {pipeline_mode = #tpu.pipeline_mode<synchronous>, transform_indices = @transform_20, window_bounds = array<i64: 1, 32>}, {pipeline_mode = #tpu.pipeline_mode<synchronous>, transform_indices = @transform_21, window_bounds = array<i64: 1, 32>}, {pipeline_mode = #tpu.pipeline_mode<synchronous>, transform_indices = @transform_22, window_bounds = array<i64: 1, 32>}, {pipeline_mode = #tpu.pipeline_mode<synchronous>, transform_indices = @transform_23, window_bounds = array<i64: 16, 32>}]} {
    %c0 = arith.constant 0 : index
    %c0_0 = arith.constant 0 : index
    %0 = vector.load %arg1[%c0, %c0_0] : memref<16x32xf32, #tpu.memory_space<vmem>>, vector<16x32xf32>
    %c0_1 = arith.constant 0 : index
    %c0_2 = arith.constant 0 : index
    %1 = vector.load %arg3[%c0_1, %c0_2] : memref<16x16xf32, #tpu.memory_space<vmem>>, vector<16x16xf32>
    %cst = arith.constant 1.000000e+00 : f32
    %2 = vector.broadcast %cst : f32 to vector<32x1xf32>
    %cst_3 = arith.constant 1.000000e+00 : f32
    %3 = vector.broadcast %cst_3 : f32 to vector<16x1xf32>
    %cst_4 = arith.constant 0.000000e+00 : f32
    %4 = vector.broadcast %cst_4 : f32 to vector<16x128xf32>
    %c0_5 = arith.constant 0 : index
    %c0_6 = arith.constant 0 : index
    %c0_7 = arith.constant 0 : index
    %5 = vector.load %arg2[%c0_5, %c0_6, %c0_7] : memref<3x16x32xf32, #tpu.memory_space<vmem>>, vector<1x16x32xf32>
    %6 = vector.shape_cast %5 : vector<1x16x32xf32> to vector<16x32xf32>
    %7 = arith.truncf %6 : vector<16x32xf32> to vector<16x32xbf16>
    %8 = arith.truncf %0 : vector<16x32xf32> to vector<16x32xbf16>
    %c0_8 = arith.constant 0 : index
    %c0_9 = arith.constant 0 : index
    %c0_10 = arith.constant 0 : index
    %c0_11 = arith.constant 0 : index
    %9 = vector.load %arg4[%c0_8, %c0_9, %c0_10, %c0_11] : memref<3x3x32x32xbf16, #tpu.memory_space<vmem>>, vector<1x1x32x32xbf16>
    %10 = vector.shape_cast %9 : vector<1x1x32x32xbf16> to vector<32x32xbf16>
    %cst_12 = arith.constant dense<0.000000e+00> : vector<16x32xf32>
    %11 = tpu.matmul %8, %10, %cst_12 {dimension_numbers = #tpu.dot_dimension_numbers<[1], [0], [0], [1], [0, 0, 1, 1], [], []>} : vector<16x32xbf16>, vector<32x32xbf16>, vector<16x32xf32> -> vector<16x32xf32>
    %c0_13 = arith.constant 0 : index
    %c0_14 = arith.constant 0 : index
    %c0_15 = arith.constant 0 : index
    %c0_16 = arith.constant 0 : index
    %12 = vector.load %arg5[%c0_13, %c0_14, %c0_15, %c0_16] : memref<3x3x1x32xf32, #tpu.memory_space<vmem>>, vector<1x1x1x32xf32>
    %13 = vector.shape_cast %12 : vector<1x1x1x32xf32> to vector<1x32xf32>
    %14 = vector.broadcast %13 : vector<1x32xf32> to vector<16x32xf32>
    %15 = arith.addf %11, %14 : vector<16x32xf32>
    %c0_17 = arith.constant 0 : index
    %c0_18 = arith.constant 0 : index
    %c0_19 = arith.constant 0 : index
    %c0_20 = arith.constant 0 : index
    %16 = vector.load %arg6[%c0_17, %c0_18, %c0_19, %c0_20] : memref<3x3x32x32xbf16, #tpu.memory_space<vmem>>, vector<1x1x32x32xbf16>
    %17 = vector.shape_cast %16 : vector<1x1x32x32xbf16> to vector<32x32xbf16>
    %cst_21 = arith.constant dense<0.000000e+00> : vector<16x32xf32>
    %18 = tpu.matmul %7, %17, %cst_21 {dimension_numbers = #tpu.dot_dimension_numbers<[1], [0], [0], [1], [0, 0, 1, 1], [], []>} : vector<16x32xbf16>, vector<32x32xbf16>, vector<16x32xf32> -> vector<16x32xf32>
    %c0_22 = arith.constant 0 : index
    %c0_23 = arith.constant 0 : index
    %c0_24 = arith.constant 0 : index
    %c0_25 = arith.constant 0 : index
    %19 = vector.load %arg7[%c0_22, %c0_23, %c0_24, %c0_25] : memref<3x3x1x32xf32, #tpu.memory_space<vmem>>, vector<1x1x1x32xf32>
    %20 = vector.shape_cast %19 : vector<1x1x1x32xf32> to vector<1x32xf32>
    %21 = vector.broadcast %20 : vector<1x32xf32> to vector<16x32xf32>
    %22 = arith.addf %18, %21 : vector<16x32xf32>
    %c0_26 = arith.constant 0 : index
    %c0_27 = arith.constant 0 : index
    %c0_28 = arith.constant 0 : index
    %c0_29 = arith.constant 0 : index
    %23 = vector.load %arg8[%c0_26, %c0_27, %c0_28, %c0_29] : memref<3x3x32x32xbf16, #tpu.memory_space<vmem>>, vector<1x1x32x32xbf16>
    %24 = vector.shape_cast %23 : vector<1x1x32x32xbf16> to vector<32x32xbf16>
    %cst_30 = arith.constant dense<0.000000e+00> : vector<16x32xf32>
    %25 = tpu.matmul %7, %24, %cst_30 {dimension_numbers = #tpu.dot_dimension_numbers<[1], [0], [0], [1], [0, 0, 1, 1], [], []>} : vector<16x32xbf16>, vector<32x32xbf16>, vector<16x32xf32> -> vector<16x32xf32>
    %c0_31 = arith.constant 0 : index
    %c0_32 = arith.constant 0 : index
    %c0_33 = arith.constant 0 : index
    %c0_34 = arith.constant 0 : index
    %26 = vector.load %arg9[%c0_31, %c0_32, %c0_33, %c0_34] : memref<3x3x1x32xf32, #tpu.memory_space<vmem>>, vector<1x1x1x32xf32>
    %27 = vector.shape_cast %26 : vector<1x1x1x32xf32> to vector<1x32xf32>
    %28 = vector.broadcast %27 : vector<1x32xf32> to vector<16x32xf32>
    %29 = arith.addf %25, %28 : vector<16x32xf32>
    %30 = arith.truncf %15 : vector<16x32xf32> to vector<16x32xbf16>
    %31 = arith.truncf %22 : vector<16x32xf32> to vector<16x32xbf16>
    %cst_35 = arith.constant dense<0.000000e+00> : vector<16x16xf32>
    %32 = tpu.matmul %30, %31, %cst_35 {dimension_numbers = #tpu.dot_dimension_numbers<[1], [1], [0], [0], [0, 0, 1, 0], [], []>} : vector<16x32xbf16>, vector<16x32xbf16>, vector<16x16xf32> -> vector<16x16xf32>
    %33 = arith.addf %32, %1 : vector<16x16xf32>
    %cst_36 = arith.constant dense<0xFF800000> : vector<16xf32>
    %34 = vector.multi_reduction <maximumf>, %33, %cst_36 [1] : vector<16x16xf32> to vector<16xf32>
    %35 = vector.shape_cast %34 : vector<16xf32> to vector<16x1xf32>
    %36 = vector.broadcast %35 : vector<16x1xf32> to vector<16x16xf32>
    %37 = arith.subf %33, %36 : vector<16x16xf32>
    %38 = math.exp %37 : vector<16x16xf32>
    %cst_37 = arith.constant dense<0.000000e+00> : vector<16x1xf32>
    %39 = tpu.matmul %38, %3, %cst_37 {dimension_numbers = #tpu.dot_dimension_numbers<[1], [0], [0], [1], [0, 0, 1, 1], [], []>} : vector<16x16xf32>, vector<16x1xf32>, vector<16x1xf32> -> vector<16x1xf32>
    %40 = tpu.reciprocal %39 {approx = true} : vector<16x1xf32> -> vector<16x1xf32>
    %41 = vector.broadcast %40 : vector<16x1xf32> to vector<16x16xf32>
    %42 = arith.mulf %38, %41 : vector<16x16xf32>
    %43 = arith.truncf %42 : vector<16x16xf32> to vector<16x16xbf16>
    %44 = arith.truncf %29 : vector<16x32xf32> to vector<16x32xbf16>
    %cst_38 = arith.constant dense<0.000000e+00> : vector<16x32xf32>
    %45 = tpu.matmul %43, %44, %cst_38 {dimension_numbers = #tpu.dot_dimension_numbers<[1], [0], [0], [1], [0, 0, 1, 1], [], []>} : vector<16x16xbf16>, vector<16x32xbf16>, vector<16x32xf32> -> vector<16x32xf32>
    %46 = arith.truncf %45 : vector<16x32xf32> to vector<16x32xbf16>
    %c0_39 = arith.constant 0 : index
    %c0_40 = arith.constant 0 : index
    %c0_41 = arith.constant 0 : index
    %c0_42 = arith.constant 0 : index
    %47 = vector.load %arg10[%c0_39, %c0_40, %c0_41, %c0_42] : memref<3x3x32x32xbf16, #tpu.memory_space<vmem>>, vector<1x1x32x32xbf16>
    %48 = vector.shape_cast %47 : vector<1x1x32x32xbf16> to vector<32x32xbf16>
    %cst_43 = arith.constant dense<0.000000e+00> : vector<16x32xf32>
    %49 = tpu.matmul %46, %48, %cst_43 {dimension_numbers = #tpu.dot_dimension_numbers<[1], [0], [0], [1], [0, 0, 1, 1], [], []>} : vector<16x32xbf16>, vector<32x32xbf16>, vector<16x32xf32> -> vector<16x32xf32>
    %c0_44 = arith.constant 0 : index
    %c0_45 = arith.constant 0 : index
    %c0_46 = arith.constant 0 : index
    %c0_47 = arith.constant 0 : index
    %50 = vector.load %arg11[%c0_44, %c0_45, %c0_46, %c0_47] : memref<3x3x1x32xf32, #tpu.memory_space<vmem>>, vector<1x1x1x32xf32>
    %51 = vector.shape_cast %50 : vector<1x1x1x32xf32> to vector<1x32xf32>
    %52 = vector.broadcast %51 : vector<1x32xf32> to vector<16x32xf32>
    %53 = arith.addf %49, %52 : vector<16x32xf32>
    %54 = arith.addf %0, %53 : vector<16x32xf32>
    %c0_48 = arith.constant 0 : index
    %c0_49 = arith.constant 0 : index
    %c0_50 = arith.constant 0 : index
    %c0_51 = arith.constant 0 : index
    %55 = vector.load %arg12[%c0_48, %c0_49, %c0_50, %c0_51] : memref<3x3x1x32xf32, #tpu.memory_space<vmem>>, vector<1x1x1x32xf32>
    %56 = vector.shape_cast %55 : vector<1x1x1x32xf32> to vector<1x32xf32>
    %c0_52 = arith.constant 0 : index
    %c0_53 = arith.constant 0 : index
    %c0_54 = arith.constant 0 : index
    %c0_55 = arith.constant 0 : index
    %57 = vector.load %arg13[%c0_52, %c0_53, %c0_54, %c0_55] : memref<3x3x1x32xf32, #tpu.memory_space<vmem>>, vector<1x1x1x32xf32>
    %58 = vector.shape_cast %57 : vector<1x1x1x32xf32> to vector<1x32xf32>
    %cst_56 = arith.constant dense<0.000000e+00> : vector<16x1xf32>
    %59 = tpu.matmul %54, %2, %cst_56 {dimension_numbers = #tpu.dot_dimension_numbers<[1], [0], [0], [1], [0, 0, 1, 1], [], []>} : vector<16x32xf32>, vector<32x1xf32>, vector<16x1xf32> -> vector<16x1xf32>
    %60 = arith.mulf %54, %54 : vector<16x32xf32>
    %cst_57 = arith.constant dense<0.000000e+00> : vector<16x1xf32>
    %61 = tpu.matmul %60, %2, %cst_57 {dimension_numbers = #tpu.dot_dimension_numbers<[1], [0], [0], [1], [0, 0, 1, 1], [], []>} : vector<16x32xf32>, vector<32x1xf32>, vector<16x1xf32> -> vector<16x1xf32>
    %cst_58 = arith.constant 3.125000e-02 : f32
    %62 = vector.broadcast %cst_58 : f32 to vector<16x1xf32>
    %63 = arith.mulf %59, %62 : vector<16x1xf32>
    %cst_59 = arith.constant 3.125000e-02 : f32
    %64 = vector.broadcast %cst_59 : f32 to vector<16x1xf32>
    %65 = arith.mulf %61, %64 : vector<16x1xf32>
    %66 = arith.mulf %63, %63 : vector<16x1xf32>
    %67 = arith.subf %65, %66 : vector<16x1xf32>
    %cst_60 = arith.constant 0.000000e+00 : f32
    %68 = vector.broadcast %cst_60 : f32 to vector<16x1xf32>
    %69 = arith.maximumf %67, %68 : vector<16x1xf32>
    %70 = vector.broadcast %63 : vector<16x1xf32> to vector<16x32xf32>
    %71 = arith.subf %54, %70 : vector<16x32xf32>
    %cst_61 = arith.constant 9.99999974E-6 : f32
    %72 = vector.broadcast %cst_61 : f32 to vector<16x1xf32>
    %73 = arith.addf %69, %72 : vector<16x1xf32>
    %74 = math.rsqrt %73 : vector<16x1xf32>
    %75 = vector.broadcast %74 : vector<16x1xf32> to vector<16x32xf32>
    %76 = arith.mulf %71, %75 : vector<16x32xf32>
    %77 = vector.broadcast %56 : vector<1x32xf32> to vector<16x32xf32>
    %78 = arith.mulf %76, %77 : vector<16x32xf32>
    %79 = vector.broadcast %58 : vector<1x32xf32> to vector<16x32xf32>
    %80 = arith.addf %78, %79 : vector<16x32xf32>
    %81 = arith.truncf %80 : vector<16x32xf32> to vector<16x32xbf16>
    %c0_62 = arith.constant 0 : index
    %c0_63 = arith.constant 0 : index
    %c0_64 = arith.constant 0 : index
    %c0_65 = arith.constant 0 : index
    %82 = vector.load %arg14[%c0_62, %c0_63, %c0_64, %c0_65] : memref<3x2x32x32xbf16, #tpu.memory_space<vmem>>, vector<1x1x32x32xbf16>
    %83 = vector.shape_cast %82 : vector<1x1x32x32xbf16> to vector<32x32xbf16>
    %cst_66 = arith.constant dense<0.000000e+00> : vector<16x32xf32>
    %84 = tpu.matmul %81, %83, %cst_66 {dimension_numbers = #tpu.dot_dimension_numbers<[1], [0], [0], [1], [0, 0, 1, 1], [], []>} : vector<16x32xbf16>, vector<32x32xbf16>, vector<16x32xf32> -> vector<16x32xf32>
    %c0_67 = arith.constant 0 : index
    %c0_68 = arith.constant 0 : index
    %c0_69 = arith.constant 0 : index
    %c0_70 = arith.constant 0 : index
    %85 = vector.load %arg15[%c0_67, %c0_68, %c0_69, %c0_70] : memref<3x2x1x32xf32, #tpu.memory_space<vmem>>, vector<1x1x1x32xf32>
    %86 = vector.shape_cast %85 : vector<1x1x1x32xf32> to vector<1x32xf32>
    %87 = vector.broadcast %86 : vector<1x32xf32> to vector<16x32xf32>
    %88 = arith.addf %84, %87 : vector<16x32xf32>
    %cst_71 = arith.constant 0.000000e+00 : f32
    %89 = vector.broadcast %cst_71 : f32 to vector<16x32xf32>
    %90 = arith.cmpf ogt, %88, %89 : vector<16x32xf32>
    %cst_72 = arith.constant 0.000000e+00 : f32
    %91 = vector.broadcast %cst_72 : f32 to vector<16x32xf32>
    %92 = arith.minimumf %88, %91 : vector<16x32xf32>
    %93 = math.exp %92 : vector<16x32xf32>
    %cst_73 = arith.constant 1.000000e+00 : f32
    %94 = vector.broadcast %cst_73 : f32 to vector<16x32xf32>
    %95 = arith.subf %93, %94 : vector<16x32xf32>
    %96 = arith.select %90, %88, %95 : vector<16x32xi1>, vector<16x32xf32>
    %97 = arith.truncf %96 : vector<16x32xf32> to vector<16x32xbf16>
    %c0_74 = arith.constant 0 : index
    %c1 = arith.constant 1 : index
    %c0_75 = arith.constant 0 : index
    %c0_76 = arith.constant 0 : index
    %98 = vector.load %arg4[%c0_74, %c1, %c0_75, %c0_76] : memref<3x3x32x32xbf16, #tpu.memory_space<vmem>>, vector<1x1x32x32xbf16>
    %99 = vector.shape_cast %98 : vector<1x1x32x32xbf16> to vector<32x32xbf16>
    %cst_77 = arith.constant dense<0.000000e+00> : vector<16x32xf32>
    %100 = tpu.matmul %97, %99, %cst_77 {dimension_numbers = #tpu.dot_dimension_numbers<[1], [0], [0], [1], [0, 0, 1, 1], [], []>} : vector<16x32xbf16>, vector<32x32xbf16>, vector<16x32xf32> -> vector<16x32xf32>
    %c0_78 = arith.constant 0 : index
    %c1_79 = arith.constant 1 : index
    %c0_80 = arith.constant 0 : index
    %c0_81 = arith.constant 0 : index
    %101 = vector.load %arg5[%c0_78, %c1_79, %c0_80, %c0_81] : memref<3x3x1x32xf32, #tpu.memory_space<vmem>>, vector<1x1x1x32xf32>
    %102 = vector.shape_cast %101 : vector<1x1x1x32xf32> to vector<1x32xf32>
    %103 = vector.broadcast %102 : vector<1x32xf32> to vector<16x32xf32>
    %104 = arith.addf %100, %103 : vector<16x32xf32>
    %c0_82 = arith.constant 0 : index
    %c1_83 = arith.constant 1 : index
    %c0_84 = arith.constant 0 : index
    %c0_85 = arith.constant 0 : index
    %105 = vector.load %arg6[%c0_82, %c1_83, %c0_84, %c0_85] : memref<3x3x32x32xbf16, #tpu.memory_space<vmem>>, vector<1x1x32x32xbf16>
    %106 = vector.shape_cast %105 : vector<1x1x32x32xbf16> to vector<32x32xbf16>
    %cst_86 = arith.constant dense<0.000000e+00> : vector<16x32xf32>
    %107 = tpu.matmul %7, %106, %cst_86 {dimension_numbers = #tpu.dot_dimension_numbers<[1], [0], [0], [1], [0, 0, 1, 1], [], []>} : vector<16x32xbf16>, vector<32x32xbf16>, vector<16x32xf32> -> vector<16x32xf32>
    %c0_87 = arith.constant 0 : index
    %c1_88 = arith.constant 1 : index
    %c0_89 = arith.constant 0 : index
    %c0_90 = arith.constant 0 : index
    %108 = vector.load %arg7[%c0_87, %c1_88, %c0_89, %c0_90] : memref<3x3x1x32xf32, #tpu.memory_space<vmem>>, vector<1x1x1x32xf32>
    %109 = vector.shape_cast %108 : vector<1x1x1x32xf32> to vector<1x32xf32>
    %110 = vector.broadcast %109 : vector<1x32xf32> to vector<16x32xf32>
    %111 = arith.addf %107, %110 : vector<16x32xf32>
    %c0_91 = arith.constant 0 : index
    %c1_92 = arith.constant 1 : index
    %c0_93 = arith.constant 0 : index
    %c0_94 = arith.constant 0 : index
    %112 = vector.load %arg8[%c0_91, %c1_92, %c0_93, %c0_94] : memref<3x3x32x32xbf16, #tpu.memory_space<vmem>>, vector<1x1x32x32xbf16>
    %113 = vector.shape_cast %112 : vector<1x1x32x32xbf16> to vector<32x32xbf16>
    %cst_95 = arith.constant dense<0.000000e+00> : vector<16x32xf32>
    %114 = tpu.matmul %7, %113, %cst_95 {dimension_numbers = #tpu.dot_dimension_numbers<[1], [0], [0], [1], [0, 0, 1, 1], [], []>} : vector<16x32xbf16>, vector<32x32xbf16>, vector<16x32xf32> -> vector<16x32xf32>
    %c0_96 = arith.constant 0 : index
    %c1_97 = arith.constant 1 : index
    %c0_98 = arith.constant 0 : index
    %c0_99 = arith.constant 0 : index
    %115 = vector.load %arg9[%c0_96, %c1_97, %c0_98, %c0_99] : memref<3x3x1x32xf32, #tpu.memory_space<vmem>>, vector<1x1x1x32xf32>
    %116 = vector.shape_cast %115 : vector<1x1x1x32xf32> to vector<1x32xf32>
    %117 = vector.broadcast %116 : vector<1x32xf32> to vector<16x32xf32>
    %118 = arith.addf %114, %117 : vector<16x32xf32>
    %119 = arith.truncf %104 : vector<16x32xf32> to vector<16x32xbf16>
    %120 = arith.truncf %111 : vector<16x32xf32> to vector<16x32xbf16>
    %cst_100 = arith.constant dense<0.000000e+00> : vector<16x16xf32>
    %121 = tpu.matmul %119, %120, %cst_100 {dimension_numbers = #tpu.dot_dimension_numbers<[1], [1], [0], [0], [0, 0, 1, 0], [], []>} : vector<16x32xbf16>, vector<16x32xbf16>, vector<16x16xf32> -> vector<16x16xf32>
    %122 = arith.addf %121, %1 : vector<16x16xf32>
    %cst_101 = arith.constant dense<0xFF800000> : vector<16xf32>
    %123 = vector.multi_reduction <maximumf>, %122, %cst_101 [1] : vector<16x16xf32> to vector<16xf32>
    %124 = vector.shape_cast %123 : vector<16xf32> to vector<16x1xf32>
    %125 = vector.broadcast %124 : vector<16x1xf32> to vector<16x16xf32>
    %126 = arith.subf %122, %125 : vector<16x16xf32>
    %127 = math.exp %126 : vector<16x16xf32>
    %cst_102 = arith.constant dense<0.000000e+00> : vector<16x1xf32>
    %128 = tpu.matmul %127, %3, %cst_102 {dimension_numbers = #tpu.dot_dimension_numbers<[1], [0], [0], [1], [0, 0, 1, 1], [], []>} : vector<16x16xf32>, vector<16x1xf32>, vector<16x1xf32> -> vector<16x1xf32>
    %129 = tpu.reciprocal %128 {approx = true} : vector<16x1xf32> -> vector<16x1xf32>
    %130 = vector.broadcast %129 : vector<16x1xf32> to vector<16x16xf32>
    %131 = arith.mulf %127, %130 : vector<16x16xf32>
    %132 = arith.truncf %131 : vector<16x16xf32> to vector<16x16xbf16>
    %133 = arith.truncf %118 : vector<16x32xf32> to vector<16x32xbf16>
    %cst_103 = arith.constant dense<0.000000e+00> : vector<16x32xf32>
    %134 = tpu.matmul %132, %133, %cst_103 {dimension_numbers = #tpu.dot_dimension_numbers<[1], [0], [0], [1], [0, 0, 1, 1], [], []>} : vector<16x16xbf16>, vector<16x32xbf16>, vector<16x32xf32> -> vector<16x32xf32>
    %135 = arith.truncf %134 : vector<16x32xf32> to vector<16x32xbf16>
    %c0_104 = arith.constant 0 : index
    %c1_105 = arith.constant 1 : index
    %c0_106 = arith.constant 0 : index
    %c0_107 = arith.constant 0 : index
    %136 = vector.load %arg10[%c0_104, %c1_105, %c0_106, %c0_107] : memref<3x3x32x32xbf16, #tpu.memory_space<vmem>>, vector<1x1x32x32xbf16>
    %137 = vector.shape_cast %136 : vector<1x1x32x32xbf16> to vector<32x32xbf16>
    %cst_108 = arith.constant dense<0.000000e+00> : vector<16x32xf32>
    %138 = tpu.matmul %135, %137, %cst_108 {dimension_numbers = #tpu.dot_dimension_numbers<[1], [0], [0], [1], [0, 0, 1, 1], [], []>} : vector<16x32xbf16>, vector<32x32xbf16>, vector<16x32xf32> -> vector<16x32xf32>
    %c0_109 = arith.constant 0 : index
    %c1_110 = arith.constant 1 : index
    %c0_111 = arith.constant 0 : index
    %c0_112 = arith.constant 0 : index
    %139 = vector.load %arg11[%c0_109, %c1_110, %c0_111, %c0_112] : memref<3x3x1x32xf32, #tpu.memory_space<vmem>>, vector<1x1x1x32xf32>
    %140 = vector.shape_cast %139 : vector<1x1x1x32xf32> to vector<1x32xf32>
    %141 = vector.broadcast %140 : vector<1x32xf32> to vector<16x32xf32>
    %142 = arith.addf %138, %141 : vector<16x32xf32>
    %143 = arith.addf %96, %142 : vector<16x32xf32>
    %c0_113 = arith.constant 0 : index
    %c1_114 = arith.constant 1 : index
    %c0_115 = arith.constant 0 : index
    %c0_116 = arith.constant 0 : index
    %144 = vector.load %arg12[%c0_113, %c1_114, %c0_115, %c0_116] : memref<3x3x1x32xf32, #tpu.memory_space<vmem>>, vector<1x1x1x32xf32>
    %145 = vector.shape_cast %144 : vector<1x1x1x32xf32> to vector<1x32xf32>
    %c0_117 = arith.constant 0 : index
    %c1_118 = arith.constant 1 : index
    %c0_119 = arith.constant 0 : index
    %c0_120 = arith.constant 0 : index
    %146 = vector.load %arg13[%c0_117, %c1_118, %c0_119, %c0_120] : memref<3x3x1x32xf32, #tpu.memory_space<vmem>>, vector<1x1x1x32xf32>
    %147 = vector.shape_cast %146 : vector<1x1x1x32xf32> to vector<1x32xf32>
    %cst_121 = arith.constant dense<0.000000e+00> : vector<16x1xf32>
    %148 = tpu.matmul %143, %2, %cst_121 {dimension_numbers = #tpu.dot_dimension_numbers<[1], [0], [0], [1], [0, 0, 1, 1], [], []>} : vector<16x32xf32>, vector<32x1xf32>, vector<16x1xf32> -> vector<16x1xf32>
    %149 = arith.mulf %143, %143 : vector<16x32xf32>
    %cst_122 = arith.constant dense<0.000000e+00> : vector<16x1xf32>
    %150 = tpu.matmul %149, %2, %cst_122 {dimension_numbers = #tpu.dot_dimension_numbers<[1], [0], [0], [1], [0, 0, 1, 1], [], []>} : vector<16x32xf32>, vector<32x1xf32>, vector<16x1xf32> -> vector<16x1xf32>
    %cst_123 = arith.constant 3.125000e-02 : f32
    %151 = vector.broadcast %cst_123 : f32 to vector<16x1xf32>
    %152 = arith.mulf %148, %151 : vector<16x1xf32>
    %cst_124 = arith.constant 3.125000e-02 : f32
    %153 = vector.broadcast %cst_124 : f32 to vector<16x1xf32>
    %154 = arith.mulf %150, %153 : vector<16x1xf32>
    %155 = arith.mulf %152, %152 : vector<16x1xf32>
    %156 = arith.subf %154, %155 : vector<16x1xf32>
    %cst_125 = arith.constant 0.000000e+00 : f32
    %157 = vector.broadcast %cst_125 : f32 to vector<16x1xf32>
    %158 = arith.maximumf %156, %157 : vector<16x1xf32>
    %159 = vector.broadcast %152 : vector<16x1xf32> to vector<16x32xf32>
    %160 = arith.subf %143, %159 : vector<16x32xf32>
    %cst_126 = arith.constant 9.99999974E-6 : f32
    %161 = vector.broadcast %cst_126 : f32 to vector<16x1xf32>
    %162 = arith.addf %158, %161 : vector<16x1xf32>
    %163 = math.rsqrt %162 : vector<16x1xf32>
    %164 = vector.broadcast %163 : vector<16x1xf32> to vector<16x32xf32>
    %165 = arith.mulf %160, %164 : vector<16x32xf32>
    %166 = vector.broadcast %145 : vector<1x32xf32> to vector<16x32xf32>
    %167 = arith.mulf %165, %166 : vector<16x32xf32>
    %168 = vector.broadcast %147 : vector<1x32xf32> to vector<16x32xf32>
    %169 = arith.addf %167, %168 : vector<16x32xf32>
    %170 = arith.truncf %169 : vector<16x32xf32> to vector<16x32xbf16>
    %c0_127 = arith.constant 0 : index
    %c1_128 = arith.constant 1 : index
    %c0_129 = arith.constant 0 : index
    %c0_130 = arith.constant 0 : index
    %171 = vector.load %arg14[%c0_127, %c1_128, %c0_129, %c0_130] : memref<3x2x32x32xbf16, #tpu.memory_space<vmem>>, vector<1x1x32x32xbf16>
    %172 = vector.shape_cast %171 : vector<1x1x32x32xbf16> to vector<32x32xbf16>
    %cst_131 = arith.constant dense<0.000000e+00> : vector<16x32xf32>
    %173 = tpu.matmul %170, %172, %cst_131 {dimension_numbers = #tpu.dot_dimension_numbers<[1], [0], [0], [1], [0, 0, 1, 1], [], []>} : vector<16x32xbf16>, vector<32x32xbf16>, vector<16x32xf32> -> vector<16x32xf32>
    %c0_132 = arith.constant 0 : index
    %c1_133 = arith.constant 1 : index
    %c0_134 = arith.constant 0 : index
    %c0_135 = arith.constant 0 : index
    %174 = vector.load %arg15[%c0_132, %c1_133, %c0_134, %c0_135] : memref<3x2x1x32xf32, #tpu.memory_space<vmem>>, vector<1x1x1x32xf32>
    %175 = vector.shape_cast %174 : vector<1x1x1x32xf32> to vector<1x32xf32>
    %176 = vector.broadcast %175 : vector<1x32xf32> to vector<16x32xf32>
    %177 = arith.addf %173, %176 : vector<16x32xf32>
    %cst_136 = arith.constant 0.000000e+00 : f32
    %178 = vector.broadcast %cst_136 : f32 to vector<16x32xf32>
    %179 = arith.cmpf ogt, %177, %178 : vector<16x32xf32>
    %cst_137 = arith.constant 0.000000e+00 : f32
    %180 = vector.broadcast %cst_137 : f32 to vector<16x32xf32>
    %181 = arith.minimumf %177, %180 : vector<16x32xf32>
    %182 = math.exp %181 : vector<16x32xf32>
    %cst_138 = arith.constant 1.000000e+00 : f32
    %183 = vector.broadcast %cst_138 : f32 to vector<16x32xf32>
    %184 = arith.subf %182, %183 : vector<16x32xf32>
    %185 = arith.select %179, %177, %184 : vector<16x32xi1>, vector<16x32xf32>
    %186 = arith.truncf %185 : vector<16x32xf32> to vector<16x32xbf16>
    %c0_139 = arith.constant 0 : index
    %c2 = arith.constant 2 : index
    %c0_140 = arith.constant 0 : index
    %c0_141 = arith.constant 0 : index
    %187 = vector.load %arg4[%c0_139, %c2, %c0_140, %c0_141] : memref<3x3x32x32xbf16, #tpu.memory_space<vmem>>, vector<1x1x32x32xbf16>
    %188 = vector.shape_cast %187 : vector<1x1x32x32xbf16> to vector<32x32xbf16>
    %cst_142 = arith.constant dense<0.000000e+00> : vector<16x32xf32>
    %189 = tpu.matmul %186, %188, %cst_142 {dimension_numbers = #tpu.dot_dimension_numbers<[1], [0], [0], [1], [0, 0, 1, 1], [], []>} : vector<16x32xbf16>, vector<32x32xbf16>, vector<16x32xf32> -> vector<16x32xf32>
    %c0_143 = arith.constant 0 : index
    %c2_144 = arith.constant 2 : index
    %c0_145 = arith.constant 0 : index
    %c0_146 = arith.constant 0 : index
    %190 = vector.load %arg5[%c0_143, %c2_144, %c0_145, %c0_146] : memref<3x3x1x32xf32, #tpu.memory_space<vmem>>, vector<1x1x1x32xf32>
    %191 = vector.shape_cast %190 : vector<1x1x1x32xf32> to vector<1x32xf32>
    %192 = vector.broadcast %191 : vector<1x32xf32> to vector<16x32xf32>
    %193 = arith.addf %189, %192 : vector<16x32xf32>
    %c0_147 = arith.constant 0 : index
    %c2_148 = arith.constant 2 : index
    %c0_149 = arith.constant 0 : index
    %c0_150 = arith.constant 0 : index
    %194 = vector.load %arg6[%c0_147, %c2_148, %c0_149, %c0_150] : memref<3x3x32x32xbf16, #tpu.memory_space<vmem>>, vector<1x1x32x32xbf16>
    %195 = vector.shape_cast %194 : vector<1x1x32x32xbf16> to vector<32x32xbf16>
    %cst_151 = arith.constant dense<0.000000e+00> : vector<16x32xf32>
    %196 = tpu.matmul %7, %195, %cst_151 {dimension_numbers = #tpu.dot_dimension_numbers<[1], [0], [0], [1], [0, 0, 1, 1], [], []>} : vector<16x32xbf16>, vector<32x32xbf16>, vector<16x32xf32> -> vector<16x32xf32>
    %c0_152 = arith.constant 0 : index
    %c2_153 = arith.constant 2 : index
    %c0_154 = arith.constant 0 : index
    %c0_155 = arith.constant 0 : index
    %197 = vector.load %arg7[%c0_152, %c2_153, %c0_154, %c0_155] : memref<3x3x1x32xf32, #tpu.memory_space<vmem>>, vector<1x1x1x32xf32>
    %198 = vector.shape_cast %197 : vector<1x1x1x32xf32> to vector<1x32xf32>
    %199 = vector.broadcast %198 : vector<1x32xf32> to vector<16x32xf32>
    %200 = arith.addf %196, %199 : vector<16x32xf32>
    %c0_156 = arith.constant 0 : index
    %c2_157 = arith.constant 2 : index
    %c0_158 = arith.constant 0 : index
    %c0_159 = arith.constant 0 : index
    %201 = vector.load %arg8[%c0_156, %c2_157, %c0_158, %c0_159] : memref<3x3x32x32xbf16, #tpu.memory_space<vmem>>, vector<1x1x32x32xbf16>
    %202 = vector.shape_cast %201 : vector<1x1x32x32xbf16> to vector<32x32xbf16>
    %cst_160 = arith.constant dense<0.000000e+00> : vector<16x32xf32>
    %203 = tpu.matmul %7, %202, %cst_160 {dimension_numbers = #tpu.dot_dimension_numbers<[1], [0], [0], [1], [0, 0, 1, 1], [], []>} : vector<16x32xbf16>, vector<32x32xbf16>, vector<16x32xf32> -> vector<16x32xf32>
    %c0_161 = arith.constant 0 : index
    %c2_162 = arith.constant 2 : index
    %c0_163 = arith.constant 0 : index
    %c0_164 = arith.constant 0 : index
    %204 = vector.load %arg9[%c0_161, %c2_162, %c0_163, %c0_164] : memref<3x3x1x32xf32, #tpu.memory_space<vmem>>, vector<1x1x1x32xf32>
    %205 = vector.shape_cast %204 : vector<1x1x1x32xf32> to vector<1x32xf32>
    %206 = vector.broadcast %205 : vector<1x32xf32> to vector<16x32xf32>
    %207 = arith.addf %203, %206 : vector<16x32xf32>
    %208 = arith.truncf %193 : vector<16x32xf32> to vector<16x32xbf16>
    %209 = arith.truncf %200 : vector<16x32xf32> to vector<16x32xbf16>
    %cst_165 = arith.constant dense<0.000000e+00> : vector<16x16xf32>
    %210 = tpu.matmul %208, %209, %cst_165 {dimension_numbers = #tpu.dot_dimension_numbers<[1], [1], [0], [0], [0, 0, 1, 0], [], []>} : vector<16x32xbf16>, vector<16x32xbf16>, vector<16x16xf32> -> vector<16x16xf32>
    %211 = arith.addf %210, %1 : vector<16x16xf32>
    %cst_166 = arith.constant dense<0xFF800000> : vector<16xf32>
    %212 = vector.multi_reduction <maximumf>, %211, %cst_166 [1] : vector<16x16xf32> to vector<16xf32>
    %213 = vector.shape_cast %212 : vector<16xf32> to vector<16x1xf32>
    %214 = vector.broadcast %213 : vector<16x1xf32> to vector<16x16xf32>
    %215 = arith.subf %211, %214 : vector<16x16xf32>
    %216 = math.exp %215 : vector<16x16xf32>
    %cst_167 = arith.constant dense<0.000000e+00> : vector<16x1xf32>
    %217 = tpu.matmul %216, %3, %cst_167 {dimension_numbers = #tpu.dot_dimension_numbers<[1], [0], [0], [1], [0, 0, 1, 1], [], []>} : vector<16x16xf32>, vector<16x1xf32>, vector<16x1xf32> -> vector<16x1xf32>
    %218 = tpu.reciprocal %217 {approx = true} : vector<16x1xf32> -> vector<16x1xf32>
    %219 = vector.broadcast %218 : vector<16x1xf32> to vector<16x16xf32>
    %220 = arith.mulf %216, %219 : vector<16x16xf32>
    %221 = arith.truncf %220 : vector<16x16xf32> to vector<16x16xbf16>
    %222 = arith.truncf %207 : vector<16x32xf32> to vector<16x32xbf16>
    %cst_168 = arith.constant dense<0.000000e+00> : vector<16x32xf32>
    %223 = tpu.matmul %221, %222, %cst_168 {dimension_numbers = #tpu.dot_dimension_numbers<[1], [0], [0], [1], [0, 0, 1, 1], [], []>} : vector<16x16xbf16>, vector<16x32xbf16>, vector<16x32xf32> -> vector<16x32xf32>
    %224 = arith.truncf %223 : vector<16x32xf32> to vector<16x32xbf16>
    %c0_169 = arith.constant 0 : index
    %c2_170 = arith.constant 2 : index
    %c0_171 = arith.constant 0 : index
    %c0_172 = arith.constant 0 : index
    %225 = vector.load %arg10[%c0_169, %c2_170, %c0_171, %c0_172] : memref<3x3x32x32xbf16, #tpu.memory_space<vmem>>, vector<1x1x32x32xbf16>
    %226 = vector.shape_cast %225 : vector<1x1x32x32xbf16> to vector<32x32xbf16>
    %cst_173 = arith.constant dense<0.000000e+00> : vector<16x32xf32>
    %227 = tpu.matmul %224, %226, %cst_173 {dimension_numbers = #tpu.dot_dimension_numbers<[1], [0], [0], [1], [0, 0, 1, 1], [], []>} : vector<16x32xbf16>, vector<32x32xbf16>, vector<16x32xf32> -> vector<16x32xf32>
    %c0_174 = arith.constant 0 : index
    %c2_175 = arith.constant 2 : index
    %c0_176 = arith.constant 0 : index
    %c0_177 = arith.constant 0 : index
    %228 = vector.load %arg11[%c0_174, %c2_175, %c0_176, %c0_177] : memref<3x3x1x32xf32, #tpu.memory_space<vmem>>, vector<1x1x1x32xf32>
    %229 = vector.shape_cast %228 : vector<1x1x1x32xf32> to vector<1x32xf32>
    %230 = vector.broadcast %229 : vector<1x32xf32> to vector<16x32xf32>
    %231 = arith.addf %227, %230 : vector<16x32xf32>
    %232 = arith.addf %185, %231 : vector<16x32xf32>
    %c0_178 = arith.constant 0 : index
    %c2_179 = arith.constant 2 : index
    %c0_180 = arith.constant 0 : index
    %c0_181 = arith.constant 0 : index
    %233 = vector.load %arg12[%c0_178, %c2_179, %c0_180, %c0_181] : memref<3x3x1x32xf32, #tpu.memory_space<vmem>>, vector<1x1x1x32xf32>
    %234 = vector.shape_cast %233 : vector<1x1x1x32xf32> to vector<1x32xf32>
    %c0_182 = arith.constant 0 : index
    %c2_183 = arith.constant 2 : index
    %c0_184 = arith.constant 0 : index
    %c0_185 = arith.constant 0 : index
    %235 = vector.load %arg13[%c0_182, %c2_183, %c0_184, %c0_185] : memref<3x3x1x32xf32, #tpu.memory_space<vmem>>, vector<1x1x1x32xf32>
    %236 = vector.shape_cast %235 : vector<1x1x1x32xf32> to vector<1x32xf32>
    %cst_186 = arith.constant dense<0.000000e+00> : vector<16x1xf32>
    %237 = tpu.matmul %232, %2, %cst_186 {dimension_numbers = #tpu.dot_dimension_numbers<[1], [0], [0], [1], [0, 0, 1, 1], [], []>} : vector<16x32xf32>, vector<32x1xf32>, vector<16x1xf32> -> vector<16x1xf32>
    %238 = arith.mulf %232, %232 : vector<16x32xf32>
    %cst_187 = arith.constant dense<0.000000e+00> : vector<16x1xf32>
    %239 = tpu.matmul %238, %2, %cst_187 {dimension_numbers = #tpu.dot_dimension_numbers<[1], [0], [0], [1], [0, 0, 1, 1], [], []>} : vector<16x32xf32>, vector<32x1xf32>, vector<16x1xf32> -> vector<16x1xf32>
    %cst_188 = arith.constant 3.125000e-02 : f32
    %240 = vector.broadcast %cst_188 : f32 to vector<16x1xf32>
    %241 = arith.mulf %237, %240 : vector<16x1xf32>
    %cst_189 = arith.constant 3.125000e-02 : f32
    %242 = vector.broadcast %cst_189 : f32 to vector<16x1xf32>
    %243 = arith.mulf %239, %242 : vector<16x1xf32>
    %244 = arith.mulf %241, %241 : vector<16x1xf32>
    %245 = arith.subf %243, %244 : vector<16x1xf32>
    %cst_190 = arith.constant 0.000000e+00 : f32
    %246 = vector.broadcast %cst_190 : f32 to vector<16x1xf32>
    %247 = arith.maximumf %245, %246 : vector<16x1xf32>
    %248 = vector.broadcast %241 : vector<16x1xf32> to vector<16x32xf32>
    %249 = arith.subf %232, %248 : vector<16x32xf32>
    %cst_191 = arith.constant 9.99999974E-6 : f32
    %250 = vector.broadcast %cst_191 : f32 to vector<16x1xf32>
    %251 = arith.addf %247, %250 : vector<16x1xf32>
    %252 = math.rsqrt %251 : vector<16x1xf32>
    %253 = vector.broadcast %252 : vector<16x1xf32> to vector<16x32xf32>
    %254 = arith.mulf %249, %253 : vector<16x32xf32>
    %255 = vector.broadcast %234 : vector<1x32xf32> to vector<16x32xf32>
    %256 = arith.mulf %254, %255 : vector<16x32xf32>
    %257 = vector.broadcast %236 : vector<1x32xf32> to vector<16x32xf32>
    %258 = arith.addf %256, %257 : vector<16x32xf32>
    %c0_192 = arith.constant 0 : index
    %c0_193 = arith.constant 0 : index
    %c0_194 = arith.constant 0 : index
    %259 = vector.load %arg16[%c0_192, %c0_193, %c0_194] : memref<3x1x32xf32, #tpu.memory_space<vmem>>, vector<1x1x32xf32>
    %260 = vector.shape_cast %259 : vector<1x1x32xf32> to vector<1x32xf32>
    %c0_195 = arith.constant 0 : index
    %c0_196 = arith.constant 0 : index
    %c0_197 = arith.constant 0 : index
    %261 = vector.load %arg17[%c0_195, %c0_196, %c0_197] : memref<3x1x32xf32, #tpu.memory_space<vmem>>, vector<1x1x32xf32>
    %262 = vector.shape_cast %261 : vector<1x1x32xf32> to vector<1x32xf32>
    %cst_198 = arith.constant dense<0.000000e+00> : vector<16x1xf32>
    %263 = tpu.matmul %258, %2, %cst_198 {dimension_numbers = #tpu.dot_dimension_numbers<[1], [0], [0], [1], [0, 0, 1, 1], [], []>} : vector<16x32xf32>, vector<32x1xf32>, vector<16x1xf32> -> vector<16x1xf32>
    %264 = arith.mulf %258, %258 : vector<16x32xf32>
    %cst_199 = arith.constant dense<0.000000e+00> : vector<16x1xf32>
    %265 = tpu.matmul %264, %2, %cst_199 {dimension_numbers = #tpu.dot_dimension_numbers<[1], [0], [0], [1], [0, 0, 1, 1], [], []>} : vector<16x32xf32>, vector<32x1xf32>, vector<16x1xf32> -> vector<16x1xf32>
    %cst_200 = arith.constant 3.125000e-02 : f32
    %266 = vector.broadcast %cst_200 : f32 to vector<16x1xf32>
    %267 = arith.mulf %263, %266 : vector<16x1xf32>
    %cst_201 = arith.constant 3.125000e-02 : f32
    %268 = vector.broadcast %cst_201 : f32 to vector<16x1xf32>
    %269 = arith.mulf %265, %268 : vector<16x1xf32>
    %270 = arith.mulf %267, %267 : vector<16x1xf32>
    %271 = arith.subf %269, %270 : vector<16x1xf32>
    %cst_202 = arith.constant 0.000000e+00 : f32
    %272 = vector.broadcast %cst_202 : f32 to vector<16x1xf32>
    %273 = arith.maximumf %271, %272 : vector<16x1xf32>
    %274 = vector.broadcast %267 : vector<16x1xf32> to vector<16x32xf32>
    %275 = arith.subf %258, %274 : vector<16x32xf32>
    %cst_203 = arith.constant 9.99999974E-6 : f32
    %276 = vector.broadcast %cst_203 : f32 to vector<16x1xf32>
    %277 = arith.addf %273, %276 : vector<16x1xf32>
    %278 = math.rsqrt %277 : vector<16x1xf32>
    %279 = vector.broadcast %278 : vector<16x1xf32> to vector<16x32xf32>
    %280 = arith.mulf %275, %279 : vector<16x32xf32>
    %281 = vector.broadcast %260 : vector<1x32xf32> to vector<16x32xf32>
    %282 = arith.mulf %280, %281 : vector<16x32xf32>
    %283 = vector.broadcast %262 : vector<1x32xf32> to vector<16x32xf32>
    %284 = arith.addf %282, %283 : vector<16x32xf32>
    %285 = arith.truncf %284 : vector<16x32xf32> to vector<16x32xbf16>
    %c0_204 = arith.constant 0 : index
    %c0_205 = arith.constant 0 : index
    %286 = vector.load %arg18[%c0_204, %c0_205] : memref<96x128xbf16, #tpu.memory_space<vmem>>, vector<32x128xbf16>
    %cst_206 = arith.constant dense<0.000000e+00> : vector<16x128xf32>
    %287 = tpu.matmul %285, %286, %cst_206 {dimension_numbers = #tpu.dot_dimension_numbers<[1], [0], [0], [1], [0, 0, 1, 1], [], []>} : vector<16x32xbf16>, vector<32x128xbf16>, vector<16x128xf32> -> vector<16x128xf32>
    %288 = arith.addf %4, %287 : vector<16x128xf32>
    %c1_207 = arith.constant 1 : index
    %c0_208 = arith.constant 0 : index
    %c0_209 = arith.constant 0 : index
    %289 = vector.load %arg2[%c1_207, %c0_208, %c0_209] : memref<3x16x32xf32, #tpu.memory_space<vmem>>, vector<1x16x32xf32>
    %290 = vector.shape_cast %289 : vector<1x16x32xf32> to vector<16x32xf32>
    %291 = arith.truncf %290 : vector<16x32xf32> to vector<16x32xbf16>
    %292 = arith.truncf %0 : vector<16x32xf32> to vector<16x32xbf16>
    %c1_210 = arith.constant 1 : index
    %c0_211 = arith.constant 0 : index
    %c0_212 = arith.constant 0 : index
    %c0_213 = arith.constant 0 : index
    %293 = vector.load %arg4[%c1_210, %c0_211, %c0_212, %c0_213] : memref<3x3x32x32xbf16, #tpu.memory_space<vmem>>, vector<1x1x32x32xbf16>
    %294 = vector.shape_cast %293 : vector<1x1x32x32xbf16> to vector<32x32xbf16>
    %cst_214 = arith.constant dense<0.000000e+00> : vector<16x32xf32>
    %295 = tpu.matmul %292, %294, %cst_214 {dimension_numbers = #tpu.dot_dimension_numbers<[1], [0], [0], [1], [0, 0, 1, 1], [], []>} : vector<16x32xbf16>, vector<32x32xbf16>, vector<16x32xf32> -> vector<16x32xf32>
    %c1_215 = arith.constant 1 : index
    %c0_216 = arith.constant 0 : index
    %c0_217 = arith.constant 0 : index
    %c0_218 = arith.constant 0 : index
    %296 = vector.load %arg5[%c1_215, %c0_216, %c0_217, %c0_218] : memref<3x3x1x32xf32, #tpu.memory_space<vmem>>, vector<1x1x1x32xf32>
    %297 = vector.shape_cast %296 : vector<1x1x1x32xf32> to vector<1x32xf32>
    %298 = vector.broadcast %297 : vector<1x32xf32> to vector<16x32xf32>
    %299 = arith.addf %295, %298 : vector<16x32xf32>
    %c1_219 = arith.constant 1 : index
    %c0_220 = arith.constant 0 : index
    %c0_221 = arith.constant 0 : index
    %c0_222 = arith.constant 0 : index
    %300 = vector.load %arg6[%c1_219, %c0_220, %c0_221, %c0_222] : memref<3x3x32x32xbf16, #tpu.memory_space<vmem>>, vector<1x1x32x32xbf16>
    %301 = vector.shape_cast %300 : vector<1x1x32x32xbf16> to vector<32x32xbf16>
    %cst_223 = arith.constant dense<0.000000e+00> : vector<16x32xf32>
    %302 = tpu.matmul %291, %301, %cst_223 {dimension_numbers = #tpu.dot_dimension_numbers<[1], [0], [0], [1], [0, 0, 1, 1], [], []>} : vector<16x32xbf16>, vector<32x32xbf16>, vector<16x32xf32> -> vector<16x32xf32>
    %c1_224 = arith.constant 1 : index
    %c0_225 = arith.constant 0 : index
    %c0_226 = arith.constant 0 : index
    %c0_227 = arith.constant 0 : index
    %303 = vector.load %arg7[%c1_224, %c0_225, %c0_226, %c0_227] : memref<3x3x1x32xf32, #tpu.memory_space<vmem>>, vector<1x1x1x32xf32>
    %304 = vector.shape_cast %303 : vector<1x1x1x32xf32> to vector<1x32xf32>
    %305 = vector.broadcast %304 : vector<1x32xf32> to vector<16x32xf32>
    %306 = arith.addf %302, %305 : vector<16x32xf32>
    %c1_228 = arith.constant 1 : index
    %c0_229 = arith.constant 0 : index
    %c0_230 = arith.constant 0 : index
    %c0_231 = arith.constant 0 : index
    %307 = vector.load %arg8[%c1_228, %c0_229, %c0_230, %c0_231] : memref<3x3x32x32xbf16, #tpu.memory_space<vmem>>, vector<1x1x32x32xbf16>
    %308 = vector.shape_cast %307 : vector<1x1x32x32xbf16> to vector<32x32xbf16>
    %cst_232 = arith.constant dense<0.000000e+00> : vector<16x32xf32>
    %309 = tpu.matmul %291, %308, %cst_232 {dimension_numbers = #tpu.dot_dimension_numbers<[1], [0], [0], [1], [0, 0, 1, 1], [], []>} : vector<16x32xbf16>, vector<32x32xbf16>, vector<16x32xf32> -> vector<16x32xf32>
    %c1_233 = arith.constant 1 : index
    %c0_234 = arith.constant 0 : index
    %c0_235 = arith.constant 0 : index
    %c0_236 = arith.constant 0 : index
    %310 = vector.load %arg9[%c1_233, %c0_234, %c0_235, %c0_236] : memref<3x3x1x32xf32, #tpu.memory_space<vmem>>, vector<1x1x1x32xf32>
    %311 = vector.shape_cast %310 : vector<1x1x1x32xf32> to vector<1x32xf32>
    %312 = vector.broadcast %311 : vector<1x32xf32> to vector<16x32xf32>
    %313 = arith.addf %309, %312 : vector<16x32xf32>
    %314 = arith.truncf %299 : vector<16x32xf32> to vector<16x32xbf16>
    %315 = arith.truncf %306 : vector<16x32xf32> to vector<16x32xbf16>
    %cst_237 = arith.constant dense<0.000000e+00> : vector<16x16xf32>
    %316 = tpu.matmul %314, %315, %cst_237 {dimension_numbers = #tpu.dot_dimension_numbers<[1], [1], [0], [0], [0, 0, 1, 0], [], []>} : vector<16x32xbf16>, vector<16x32xbf16>, vector<16x16xf32> -> vector<16x16xf32>
    %317 = arith.addf %316, %1 : vector<16x16xf32>
    %cst_238 = arith.constant dense<0xFF800000> : vector<16xf32>
    %318 = vector.multi_reduction <maximumf>, %317, %cst_238 [1] : vector<16x16xf32> to vector<16xf32>
    %319 = vector.shape_cast %318 : vector<16xf32> to vector<16x1xf32>
    %320 = vector.broadcast %319 : vector<16x1xf32> to vector<16x16xf32>
    %321 = arith.subf %317, %320 : vector<16x16xf32>
    %322 = math.exp %321 : vector<16x16xf32>
    %cst_239 = arith.constant dense<0.000000e+00> : vector<16x1xf32>
    %323 = tpu.matmul %322, %3, %cst_239 {dimension_numbers = #tpu.dot_dimension_numbers<[1], [0], [0], [1], [0, 0, 1, 1], [], []>} : vector<16x16xf32>, vector<16x1xf32>, vector<16x1xf32> -> vector<16x1xf32>
    %324 = tpu.reciprocal %323 {approx = true} : vector<16x1xf32> -> vector<16x1xf32>
    %325 = vector.broadcast %324 : vector<16x1xf32> to vector<16x16xf32>
    %326 = arith.mulf %322, %325 : vector<16x16xf32>
    %327 = arith.truncf %326 : vector<16x16xf32> to vector<16x16xbf16>
    %328 = arith.truncf %313 : vector<16x32xf32> to vector<16x32xbf16>
    %cst_240 = arith.constant dense<0.000000e+00> : vector<16x32xf32>
    %329 = tpu.matmul %327, %328, %cst_240 {dimension_numbers = #tpu.dot_dimension_numbers<[1], [0], [0], [1], [0, 0, 1, 1], [], []>} : vector<16x16xbf16>, vector<16x32xbf16>, vector<16x32xf32> -> vector<16x32xf32>
    %330 = arith.truncf %329 : vector<16x32xf32> to vector<16x32xbf16>
    %c1_241 = arith.constant 1 : index
    %c0_242 = arith.constant 0 : index
    %c0_243 = arith.constant 0 : index
    %c0_244 = arith.constant 0 : index
    %331 = vector.load %arg10[%c1_241, %c0_242, %c0_243, %c0_244] : memref<3x3x32x32xbf16, #tpu.memory_space<vmem>>, vector<1x1x32x32xbf16>
    %332 = vector.shape_cast %331 : vector<1x1x32x32xbf16> to vector<32x32xbf16>
    %cst_245 = arith.constant dense<0.000000e+00> : vector<16x32xf32>
    %333 = tpu.matmul %330, %332, %cst_245 {dimension_numbers = #tpu.dot_dimension_numbers<[1], [0], [0], [1], [0, 0, 1, 1], [], []>} : vector<16x32xbf16>, vector<32x32xbf16>, vector<16x32xf32> -> vector<16x32xf32>
    %c1_246 = arith.constant 1 : index
    %c0_247 = arith.constant 0 : index
    %c0_248 = arith.constant 0 : index
    %c0_249 = arith.constant 0 : index
    %334 = vector.load %arg11[%c1_246, %c0_247, %c0_248, %c0_249] : memref<3x3x1x32xf32, #tpu.memory_space<vmem>>, vector<1x1x1x32xf32>
    %335 = vector.shape_cast %334 : vector<1x1x1x32xf32> to vector<1x32xf32>
    %336 = vector.broadcast %335 : vector<1x32xf32> to vector<16x32xf32>
    %337 = arith.addf %333, %336 : vector<16x32xf32>
    %338 = arith.addf %0, %337 : vector<16x32xf32>
    %c1_250 = arith.constant 1 : index
    %c0_251 = arith.constant 0 : index
    %c0_252 = arith.constant 0 : index
    %c0_253 = arith.constant 0 : index
    %339 = vector.load %arg12[%c1_250, %c0_251, %c0_252, %c0_253] : memref<3x3x1x32xf32, #tpu.memory_space<vmem>>, vector<1x1x1x32xf32>
    %340 = vector.shape_cast %339 : vector<1x1x1x32xf32> to vector<1x32xf32>
    %c1_254 = arith.constant 1 : index
    %c0_255 = arith.constant 0 : index
    %c0_256 = arith.constant 0 : index
    %c0_257 = arith.constant 0 : index
    %341 = vector.load %arg13[%c1_254, %c0_255, %c0_256, %c0_257] : memref<3x3x1x32xf32, #tpu.memory_space<vmem>>, vector<1x1x1x32xf32>
    %342 = vector.shape_cast %341 : vector<1x1x1x32xf32> to vector<1x32xf32>
    %cst_258 = arith.constant dense<0.000000e+00> : vector<16x1xf32>
    %343 = tpu.matmul %338, %2, %cst_258 {dimension_numbers = #tpu.dot_dimension_numbers<[1], [0], [0], [1], [0, 0, 1, 1], [], []>} : vector<16x32xf32>, vector<32x1xf32>, vector<16x1xf32> -> vector<16x1xf32>
    %344 = arith.mulf %338, %338 : vector<16x32xf32>
    %cst_259 = arith.constant dense<0.000000e+00> : vector<16x1xf32>
    %345 = tpu.matmul %344, %2, %cst_259 {dimension_numbers = #tpu.dot_dimension_numbers<[1], [0], [0], [1], [0, 0, 1, 1], [], []>} : vector<16x32xf32>, vector<32x1xf32>, vector<16x1xf32> -> vector<16x1xf32>
    %cst_260 = arith.constant 3.125000e-02 : f32
    %346 = vector.broadcast %cst_260 : f32 to vector<16x1xf32>
    %347 = arith.mulf %343, %346 : vector<16x1xf32>
    %cst_261 = arith.constant 3.125000e-02 : f32
    %348 = vector.broadcast %cst_261 : f32 to vector<16x1xf32>
    %349 = arith.mulf %345, %348 : vector<16x1xf32>
    %350 = arith.mulf %347, %347 : vector<16x1xf32>
    %351 = arith.subf %349, %350 : vector<16x1xf32>
    %cst_262 = arith.constant 0.000000e+00 : f32
    %352 = vector.broadcast %cst_262 : f32 to vector<16x1xf32>
    %353 = arith.maximumf %351, %352 : vector<16x1xf32>
    %354 = vector.broadcast %347 : vector<16x1xf32> to vector<16x32xf32>
    %355 = arith.subf %338, %354 : vector<16x32xf32>
    %cst_263 = arith.constant 9.99999974E-6 : f32
    %356 = vector.broadcast %cst_263 : f32 to vector<16x1xf32>
    %357 = arith.addf %353, %356 : vector<16x1xf32>
    %358 = math.rsqrt %357 : vector<16x1xf32>
    %359 = vector.broadcast %358 : vector<16x1xf32> to vector<16x32xf32>
    %360 = arith.mulf %355, %359 : vector<16x32xf32>
    %361 = vector.broadcast %340 : vector<1x32xf32> to vector<16x32xf32>
    %362 = arith.mulf %360, %361 : vector<16x32xf32>
    %363 = vector.broadcast %342 : vector<1x32xf32> to vector<16x32xf32>
    %364 = arith.addf %362, %363 : vector<16x32xf32>
    %365 = arith.truncf %364 : vector<16x32xf32> to vector<16x32xbf16>
    %c1_264 = arith.constant 1 : index
    %c0_265 = arith.constant 0 : index
    %c0_266 = arith.constant 0 : index
    %c0_267 = arith.constant 0 : index
    %366 = vector.load %arg14[%c1_264, %c0_265, %c0_266, %c0_267] : memref<3x2x32x32xbf16, #tpu.memory_space<vmem>>, vector<1x1x32x32xbf16>
    %367 = vector.shape_cast %366 : vector<1x1x32x32xbf16> to vector<32x32xbf16>
    %cst_268 = arith.constant dense<0.000000e+00> : vector<16x32xf32>
    %368 = tpu.matmul %365, %367, %cst_268 {dimension_numbers = #tpu.dot_dimension_numbers<[1], [0], [0], [1], [0, 0, 1, 1], [], []>} : vector<16x32xbf16>, vector<32x32xbf16>, vector<16x32xf32> -> vector<16x32xf32>
    %c1_269 = arith.constant 1 : index
    %c0_270 = arith.constant 0 : index
    %c0_271 = arith.constant 0 : index
    %c0_272 = arith.constant 0 : index
    %369 = vector.load %arg15[%c1_269, %c0_270, %c0_271, %c0_272] : memref<3x2x1x32xf32, #tpu.memory_space<vmem>>, vector<1x1x1x32xf32>
    %370 = vector.shape_cast %369 : vector<1x1x1x32xf32> to vector<1x32xf32>
    %371 = vector.broadcast %370 : vector<1x32xf32> to vector<16x32xf32>
    %372 = arith.addf %368, %371 : vector<16x32xf32>
    %cst_273 = arith.constant 0.000000e+00 : f32
    %373 = vector.broadcast %cst_273 : f32 to vector<16x32xf32>
    %374 = arith.cmpf ogt, %372, %373 : vector<16x32xf32>
    %cst_274 = arith.constant 0.000000e+00 : f32
    %375 = vector.broadcast %cst_274 : f32 to vector<16x32xf32>
    %376 = arith.minimumf %372, %375 : vector<16x32xf32>
    %377 = math.exp %376 : vector<16x32xf32>
    %cst_275 = arith.constant 1.000000e+00 : f32
    %378 = vector.broadcast %cst_275 : f32 to vector<16x32xf32>
    %379 = arith.subf %377, %378 : vector<16x32xf32>
    %380 = arith.select %374, %372, %379 : vector<16x32xi1>, vector<16x32xf32>
    %381 = arith.truncf %380 : vector<16x32xf32> to vector<16x32xbf16>
    %c1_276 = arith.constant 1 : index
    %c1_277 = arith.constant 1 : index
    %c0_278 = arith.constant 0 : index
    %c0_279 = arith.constant 0 : index
    %382 = vector.load %arg4[%c1_276, %c1_277, %c0_278, %c0_279] : memref<3x3x32x32xbf16, #tpu.memory_space<vmem>>, vector<1x1x32x32xbf16>
    %383 = vector.shape_cast %382 : vector<1x1x32x32xbf16> to vector<32x32xbf16>
    %cst_280 = arith.constant dense<0.000000e+00> : vector<16x32xf32>
    %384 = tpu.matmul %381, %383, %cst_280 {dimension_numbers = #tpu.dot_dimension_numbers<[1], [0], [0], [1], [0, 0, 1, 1], [], []>} : vector<16x32xbf16>, vector<32x32xbf16>, vector<16x32xf32> -> vector<16x32xf32>
    %c1_281 = arith.constant 1 : index
    %c1_282 = arith.constant 1 : index
    %c0_283 = arith.constant 0 : index
    %c0_284 = arith.constant 0 : index
    %385 = vector.load %arg5[%c1_281, %c1_282, %c0_283, %c0_284] : memref<3x3x1x32xf32, #tpu.memory_space<vmem>>, vector<1x1x1x32xf32>
    %386 = vector.shape_cast %385 : vector<1x1x1x32xf32> to vector<1x32xf32>
    %387 = vector.broadcast %386 : vector<1x32xf32> to vector<16x32xf32>
    %388 = arith.addf %384, %387 : vector<16x32xf32>
    %c1_285 = arith.constant 1 : index
    %c1_286 = arith.constant 1 : index
    %c0_287 = arith.constant 0 : index
    %c0_288 = arith.constant 0 : index
    %389 = vector.load %arg6[%c1_285, %c1_286, %c0_287, %c0_288] : memref<3x3x32x32xbf16, #tpu.memory_space<vmem>>, vector<1x1x32x32xbf16>
    %390 = vector.shape_cast %389 : vector<1x1x32x32xbf16> to vector<32x32xbf16>
    %cst_289 = arith.constant dense<0.000000e+00> : vector<16x32xf32>
    %391 = tpu.matmul %291, %390, %cst_289 {dimension_numbers = #tpu.dot_dimension_numbers<[1], [0], [0], [1], [0, 0, 1, 1], [], []>} : vector<16x32xbf16>, vector<32x32xbf16>, vector<16x32xf32> -> vector<16x32xf32>
    %c1_290 = arith.constant 1 : index
    %c1_291 = arith.constant 1 : index
    %c0_292 = arith.constant 0 : index
    %c0_293 = arith.constant 0 : index
    %392 = vector.load %arg7[%c1_290, %c1_291, %c0_292, %c0_293] : memref<3x3x1x32xf32, #tpu.memory_space<vmem>>, vector<1x1x1x32xf32>
    %393 = vector.shape_cast %392 : vector<1x1x1x32xf32> to vector<1x32xf32>
    %394 = vector.broadcast %393 : vector<1x32xf32> to vector<16x32xf32>
    %395 = arith.addf %391, %394 : vector<16x32xf32>
    %c1_294 = arith.constant 1 : index
    %c1_295 = arith.constant 1 : index
    %c0_296 = arith.constant 0 : index
    %c0_297 = arith.constant 0 : index
    %396 = vector.load %arg8[%c1_294, %c1_295, %c0_296, %c0_297] : memref<3x3x32x32xbf16, #tpu.memory_space<vmem>>, vector<1x1x32x32xbf16>
    %397 = vector.shape_cast %396 : vector<1x1x32x32xbf16> to vector<32x32xbf16>
    %cst_298 = arith.constant dense<0.000000e+00> : vector<16x32xf32>
    %398 = tpu.matmul %291, %397, %cst_298 {dimension_numbers = #tpu.dot_dimension_numbers<[1], [0], [0], [1], [0, 0, 1, 1], [], []>} : vector<16x32xbf16>, vector<32x32xbf16>, vector<16x32xf32> -> vector<16x32xf32>
    %c1_299 = arith.constant 1 : index
    %c1_300 = arith.constant 1 : index
    %c0_301 = arith.constant 0 : index
    %c0_302 = arith.constant 0 : index
    %399 = vector.load %arg9[%c1_299, %c1_300, %c0_301, %c0_302] : memref<3x3x1x32xf32, #tpu.memory_space<vmem>>, vector<1x1x1x32xf32>
    %400 = vector.shape_cast %399 : vector<1x1x1x32xf32> to vector<1x32xf32>
    %401 = vector.broadcast %400 : vector<1x32xf32> to vector<16x32xf32>
    %402 = arith.addf %398, %401 : vector<16x32xf32>
    %403 = arith.truncf %388 : vector<16x32xf32> to vector<16x32xbf16>
    %404 = arith.truncf %395 : vector<16x32xf32> to vector<16x32xbf16>
    %cst_303 = arith.constant dense<0.000000e+00> : vector<16x16xf32>
    %405 = tpu.matmul %403, %404, %cst_303 {dimension_numbers = #tpu.dot_dimension_numbers<[1], [1], [0], [0], [0, 0, 1, 0], [], []>} : vector<16x32xbf16>, vector<16x32xbf16>, vector<16x16xf32> -> vector<16x16xf32>
    %406 = arith.addf %405, %1 : vector<16x16xf32>
    %cst_304 = arith.constant dense<0xFF800000> : vector<16xf32>
    %407 = vector.multi_reduction <maximumf>, %406, %cst_304 [1] : vector<16x16xf32> to vector<16xf32>
    %408 = vector.shape_cast %407 : vector<16xf32> to vector<16x1xf32>
    %409 = vector.broadcast %408 : vector<16x1xf32> to vector<16x16xf32>
    %410 = arith.subf %406, %409 : vector<16x16xf32>
    %411 = math.exp %410 : vector<16x16xf32>
    %cst_305 = arith.constant dense<0.000000e+00> : vector<16x1xf32>
    %412 = tpu.matmul %411, %3, %cst_305 {dimension_numbers = #tpu.dot_dimension_numbers<[1], [0], [0], [1], [0, 0, 1, 1], [], []>} : vector<16x16xf32>, vector<16x1xf32>, vector<16x1xf32> -> vector<16x1xf32>
    %413 = tpu.reciprocal %412 {approx = true} : vector<16x1xf32> -> vector<16x1xf32>
    %414 = vector.broadcast %413 : vector<16x1xf32> to vector<16x16xf32>
    %415 = arith.mulf %411, %414 : vector<16x16xf32>
    %416 = arith.truncf %415 : vector<16x16xf32> to vector<16x16xbf16>
    %417 = arith.truncf %402 : vector<16x32xf32> to vector<16x32xbf16>
    %cst_306 = arith.constant dense<0.000000e+00> : vector<16x32xf32>
    %418 = tpu.matmul %416, %417, %cst_306 {dimension_numbers = #tpu.dot_dimension_numbers<[1], [0], [0], [1], [0, 0, 1, 1], [], []>} : vector<16x16xbf16>, vector<16x32xbf16>, vector<16x32xf32> -> vector<16x32xf32>
    %419 = arith.truncf %418 : vector<16x32xf32> to vector<16x32xbf16>
    %c1_307 = arith.constant 1 : index
    %c1_308 = arith.constant 1 : index
    %c0_309 = arith.constant 0 : index
    %c0_310 = arith.constant 0 : index
    %420 = vector.load %arg10[%c1_307, %c1_308, %c0_309, %c0_310] : memref<3x3x32x32xbf16, #tpu.memory_space<vmem>>, vector<1x1x32x32xbf16>
    %421 = vector.shape_cast %420 : vector<1x1x32x32xbf16> to vector<32x32xbf16>
    %cst_311 = arith.constant dense<0.000000e+00> : vector<16x32xf32>
    %422 = tpu.matmul %419, %421, %cst_311 {dimension_numbers = #tpu.dot_dimension_numbers<[1], [0], [0], [1], [0, 0, 1, 1], [], []>} : vector<16x32xbf16>, vector<32x32xbf16>, vector<16x32xf32> -> vector<16x32xf32>
    %c1_312 = arith.constant 1 : index
    %c1_313 = arith.constant 1 : index
    %c0_314 = arith.constant 0 : index
    %c0_315 = arith.constant 0 : index
    %423 = vector.load %arg11[%c1_312, %c1_313, %c0_314, %c0_315] : memref<3x3x1x32xf32, #tpu.memory_space<vmem>>, vector<1x1x1x32xf32>
    %424 = vector.shape_cast %423 : vector<1x1x1x32xf32> to vector<1x32xf32>
    %425 = vector.broadcast %424 : vector<1x32xf32> to vector<16x32xf32>
    %426 = arith.addf %422, %425 : vector<16x32xf32>
    %427 = arith.addf %380, %426 : vector<16x32xf32>
    %c1_316 = arith.constant 1 : index
    %c1_317 = arith.constant 1 : index
    %c0_318 = arith.constant 0 : index
    %c0_319 = arith.constant 0 : index
    %428 = vector.load %arg12[%c1_316, %c1_317, %c0_318, %c0_319] : memref<3x3x1x32xf32, #tpu.memory_space<vmem>>, vector<1x1x1x32xf32>
    %429 = vector.shape_cast %428 : vector<1x1x1x32xf32> to vector<1x32xf32>
    %c1_320 = arith.constant 1 : index
    %c1_321 = arith.constant 1 : index
    %c0_322 = arith.constant 0 : index
    %c0_323 = arith.constant 0 : index
    %430 = vector.load %arg13[%c1_320, %c1_321, %c0_322, %c0_323] : memref<3x3x1x32xf32, #tpu.memory_space<vmem>>, vector<1x1x1x32xf32>
    %431 = vector.shape_cast %430 : vector<1x1x1x32xf32> to vector<1x32xf32>
    %cst_324 = arith.constant dense<0.000000e+00> : vector<16x1xf32>
    %432 = tpu.matmul %427, %2, %cst_324 {dimension_numbers = #tpu.dot_dimension_numbers<[1], [0], [0], [1], [0, 0, 1, 1], [], []>} : vector<16x32xf32>, vector<32x1xf32>, vector<16x1xf32> -> vector<16x1xf32>
    %433 = arith.mulf %427, %427 : vector<16x32xf32>
    %cst_325 = arith.constant dense<0.000000e+00> : vector<16x1xf32>
    %434 = tpu.matmul %433, %2, %cst_325 {dimension_numbers = #tpu.dot_dimension_numbers<[1], [0], [0], [1], [0, 0, 1, 1], [], []>} : vector<16x32xf32>, vector<32x1xf32>, vector<16x1xf32> -> vector<16x1xf32>
    %cst_326 = arith.constant 3.125000e-02 : f32
    %435 = vector.broadcast %cst_326 : f32 to vector<16x1xf32>
    %436 = arith.mulf %432, %435 : vector<16x1xf32>
    %cst_327 = arith.constant 3.125000e-02 : f32
    %437 = vector.broadcast %cst_327 : f32 to vector<16x1xf32>
    %438 = arith.mulf %434, %437 : vector<16x1xf32>
    %439 = arith.mulf %436, %436 : vector<16x1xf32>
    %440 = arith.subf %438, %439 : vector<16x1xf32>
    %cst_328 = arith.constant 0.000000e+00 : f32
    %441 = vector.broadcast %cst_328 : f32 to vector<16x1xf32>
    %442 = arith.maximumf %440, %441 : vector<16x1xf32>
    %443 = vector.broadcast %436 : vector<16x1xf32> to vector<16x32xf32>
    %444 = arith.subf %427, %443 : vector<16x32xf32>
    %cst_329 = arith.constant 9.99999974E-6 : f32
    %445 = vector.broadcast %cst_329 : f32 to vector<16x1xf32>
    %446 = arith.addf %442, %445 : vector<16x1xf32>
    %447 = math.rsqrt %446 : vector<16x1xf32>
    %448 = vector.broadcast %447 : vector<16x1xf32> to vector<16x32xf32>
    %449 = arith.mulf %444, %448 : vector<16x32xf32>
    %450 = vector.broadcast %429 : vector<1x32xf32> to vector<16x32xf32>
    %451 = arith.mulf %449, %450 : vector<16x32xf32>
    %452 = vector.broadcast %431 : vector<1x32xf32> to vector<16x32xf32>
    %453 = arith.addf %451, %452 : vector<16x32xf32>
    %454 = arith.truncf %453 : vector<16x32xf32> to vector<16x32xbf16>
    %c1_330 = arith.constant 1 : index
    %c1_331 = arith.constant 1 : index
    %c0_332 = arith.constant 0 : index
    %c0_333 = arith.constant 0 : index
    %455 = vector.load %arg14[%c1_330, %c1_331, %c0_332, %c0_333] : memref<3x2x32x32xbf16, #tpu.memory_space<vmem>>, vector<1x1x32x32xbf16>
    %456 = vector.shape_cast %455 : vector<1x1x32x32xbf16> to vector<32x32xbf16>
    %cst_334 = arith.constant dense<0.000000e+00> : vector<16x32xf32>
    %457 = tpu.matmul %454, %456, %cst_334 {dimension_numbers = #tpu.dot_dimension_numbers<[1], [0], [0], [1], [0, 0, 1, 1], [], []>} : vector<16x32xbf16>, vector<32x32xbf16>, vector<16x32xf32> -> vector<16x32xf32>
    %c1_335 = arith.constant 1 : index
    %c1_336 = arith.constant 1 : index
    %c0_337 = arith.constant 0 : index
    %c0_338 = arith.constant 0 : index
    %458 = vector.load %arg15[%c1_335, %c1_336, %c0_337, %c0_338] : memref<3x2x1x32xf32, #tpu.memory_space<vmem>>, vector<1x1x1x32xf32>
    %459 = vector.shape_cast %458 : vector<1x1x1x32xf32> to vector<1x32xf32>
    %460 = vector.broadcast %459 : vector<1x32xf32> to vector<16x32xf32>
    %461 = arith.addf %457, %460 : vector<16x32xf32>
    %cst_339 = arith.constant 0.000000e+00 : f32
    %462 = vector.broadcast %cst_339 : f32 to vector<16x32xf32>
    %463 = arith.cmpf ogt, %461, %462 : vector<16x32xf32>
    %cst_340 = arith.constant 0.000000e+00 : f32
    %464 = vector.broadcast %cst_340 : f32 to vector<16x32xf32>
    %465 = arith.minimumf %461, %464 : vector<16x32xf32>
    %466 = math.exp %465 : vector<16x32xf32>
    %cst_341 = arith.constant 1.000000e+00 : f32
    %467 = vector.broadcast %cst_341 : f32 to vector<16x32xf32>
    %468 = arith.subf %466, %467 : vector<16x32xf32>
    %469 = arith.select %463, %461, %468 : vector<16x32xi1>, vector<16x32xf32>
    %470 = arith.truncf %469 : vector<16x32xf32> to vector<16x32xbf16>
    %c1_342 = arith.constant 1 : index
    %c2_343 = arith.constant 2 : index
    %c0_344 = arith.constant 0 : index
    %c0_345 = arith.constant 0 : index
    %471 = vector.load %arg4[%c1_342, %c2_343, %c0_344, %c0_345] : memref<3x3x32x32xbf16, #tpu.memory_space<vmem>>, vector<1x1x32x32xbf16>
    %472 = vector.shape_cast %471 : vector<1x1x32x32xbf16> to vector<32x32xbf16>
    %cst_346 = arith.constant dense<0.000000e+00> : vector<16x32xf32>
    %473 = tpu.matmul %470, %472, %cst_346 {dimension_numbers = #tpu.dot_dimension_numbers<[1], [0], [0], [1], [0, 0, 1, 1], [], []>} : vector<16x32xbf16>, vector<32x32xbf16>, vector<16x32xf32> -> vector<16x32xf32>
    %c1_347 = arith.constant 1 : index
    %c2_348 = arith.constant 2 : index
    %c0_349 = arith.constant 0 : index
    %c0_350 = arith.constant 0 : index
    %474 = vector.load %arg5[%c1_347, %c2_348, %c0_349, %c0_350] : memref<3x3x1x32xf32, #tpu.memory_space<vmem>>, vector<1x1x1x32xf32>
    %475 = vector.shape_cast %474 : vector<1x1x1x32xf32> to vector<1x32xf32>
    %476 = vector.broadcast %475 : vector<1x32xf32> to vector<16x32xf32>
    %477 = arith.addf %473, %476 : vector<16x32xf32>
    %c1_351 = arith.constant 1 : index
    %c2_352 = arith.constant 2 : index
    %c0_353 = arith.constant 0 : index
    %c0_354 = arith.constant 0 : index
    %478 = vector.load %arg6[%c1_351, %c2_352, %c0_353, %c0_354] : memref<3x3x32x32xbf16, #tpu.memory_space<vmem>>, vector<1x1x32x32xbf16>
    %479 = vector.shape_cast %478 : vector<1x1x32x32xbf16> to vector<32x32xbf16>
    %cst_355 = arith.constant dense<0.000000e+00> : vector<16x32xf32>
    %480 = tpu.matmul %291, %479, %cst_355 {dimension_numbers = #tpu.dot_dimension_numbers<[1], [0], [0], [1], [0, 0, 1, 1], [], []>} : vector<16x32xbf16>, vector<32x32xbf16>, vector<16x32xf32> -> vector<16x32xf32>
    %c1_356 = arith.constant 1 : index
    %c2_357 = arith.constant 2 : index
    %c0_358 = arith.constant 0 : index
    %c0_359 = arith.constant 0 : index
    %481 = vector.load %arg7[%c1_356, %c2_357, %c0_358, %c0_359] : memref<3x3x1x32xf32, #tpu.memory_space<vmem>>, vector<1x1x1x32xf32>
    %482 = vector.shape_cast %481 : vector<1x1x1x32xf32> to vector<1x32xf32>
    %483 = vector.broadcast %482 : vector<1x32xf32> to vector<16x32xf32>
    %484 = arith.addf %480, %483 : vector<16x32xf32>
    %c1_360 = arith.constant 1 : index
    %c2_361 = arith.constant 2 : index
    %c0_362 = arith.constant 0 : index
    %c0_363 = arith.constant 0 : index
    %485 = vector.load %arg8[%c1_360, %c2_361, %c0_362, %c0_363] : memref<3x3x32x32xbf16, #tpu.memory_space<vmem>>, vector<1x1x32x32xbf16>
    %486 = vector.shape_cast %485 : vector<1x1x32x32xbf16> to vector<32x32xbf16>
    %cst_364 = arith.constant dense<0.000000e+00> : vector<16x32xf32>
    %487 = tpu.matmul %291, %486, %cst_364 {dimension_numbers = #tpu.dot_dimension_numbers<[1], [0], [0], [1], [0, 0, 1, 1], [], []>} : vector<16x32xbf16>, vector<32x32xbf16>, vector<16x32xf32> -> vector<16x32xf32>
    %c1_365 = arith.constant 1 : index
    %c2_366 = arith.constant 2 : index
    %c0_367 = arith.constant 0 : index
    %c0_368 = arith.constant 0 : index
    %488 = vector.load %arg9[%c1_365, %c2_366, %c0_367, %c0_368] : memref<3x3x1x32xf32, #tpu.memory_space<vmem>>, vector<1x1x1x32xf32>
    %489 = vector.shape_cast %488 : vector<1x1x1x32xf32> to vector<1x32xf32>
    %490 = vector.broadcast %489 : vector<1x32xf32> to vector<16x32xf32>
    %491 = arith.addf %487, %490 : vector<16x32xf32>
    %492 = arith.truncf %477 : vector<16x32xf32> to vector<16x32xbf16>
    %493 = arith.truncf %484 : vector<16x32xf32> to vector<16x32xbf16>
    %cst_369 = arith.constant dense<0.000000e+00> : vector<16x16xf32>
    %494 = tpu.matmul %492, %493, %cst_369 {dimension_numbers = #tpu.dot_dimension_numbers<[1], [1], [0], [0], [0, 0, 1, 0], [], []>} : vector<16x32xbf16>, vector<16x32xbf16>, vector<16x16xf32> -> vector<16x16xf32>
    %495 = arith.addf %494, %1 : vector<16x16xf32>
    %cst_370 = arith.constant dense<0xFF800000> : vector<16xf32>
    %496 = vector.multi_reduction <maximumf>, %495, %cst_370 [1] : vector<16x16xf32> to vector<16xf32>
    %497 = vector.shape_cast %496 : vector<16xf32> to vector<16x1xf32>
    %498 = vector.broadcast %497 : vector<16x1xf32> to vector<16x16xf32>
    %499 = arith.subf %495, %498 : vector<16x16xf32>
    %500 = math.exp %499 : vector<16x16xf32>
    %cst_371 = arith.constant dense<0.000000e+00> : vector<16x1xf32>
    %501 = tpu.matmul %500, %3, %cst_371 {dimension_numbers = #tpu.dot_dimension_numbers<[1], [0], [0], [1], [0, 0, 1, 1], [], []>} : vector<16x16xf32>, vector<16x1xf32>, vector<16x1xf32> -> vector<16x1xf32>
    %502 = tpu.reciprocal %501 {approx = true} : vector<16x1xf32> -> vector<16x1xf32>
    %503 = vector.broadcast %502 : vector<16x1xf32> to vector<16x16xf32>
    %504 = arith.mulf %500, %503 : vector<16x16xf32>
    %505 = arith.truncf %504 : vector<16x16xf32> to vector<16x16xbf16>
    %506 = arith.truncf %491 : vector<16x32xf32> to vector<16x32xbf16>
    %cst_372 = arith.constant dense<0.000000e+00> : vector<16x32xf32>
    %507 = tpu.matmul %505, %506, %cst_372 {dimension_numbers = #tpu.dot_dimension_numbers<[1], [0], [0], [1], [0, 0, 1, 1], [], []>} : vector<16x16xbf16>, vector<16x32xbf16>, vector<16x32xf32> -> vector<16x32xf32>
    %508 = arith.truncf %507 : vector<16x32xf32> to vector<16x32xbf16>
    %c1_373 = arith.constant 1 : index
    %c2_374 = arith.constant 2 : index
    %c0_375 = arith.constant 0 : index
    %c0_376 = arith.constant 0 : index
    %509 = vector.load %arg10[%c1_373, %c2_374, %c0_375, %c0_376] : memref<3x3x32x32xbf16, #tpu.memory_space<vmem>>, vector<1x1x32x32xbf16>
    %510 = vector.shape_cast %509 : vector<1x1x32x32xbf16> to vector<32x32xbf16>
    %cst_377 = arith.constant dense<0.000000e+00> : vector<16x32xf32>
    %511 = tpu.matmul %508, %510, %cst_377 {dimension_numbers = #tpu.dot_dimension_numbers<[1], [0], [0], [1], [0, 0, 1, 1], [], []>} : vector<16x32xbf16>, vector<32x32xbf16>, vector<16x32xf32> -> vector<16x32xf32>
    %c1_378 = arith.constant 1 : index
    %c2_379 = arith.constant 2 : index
    %c0_380 = arith.constant 0 : index
    %c0_381 = arith.constant 0 : index
    %512 = vector.load %arg11[%c1_378, %c2_379, %c0_380, %c0_381] : memref<3x3x1x32xf32, #tpu.memory_space<vmem>>, vector<1x1x1x32xf32>
    %513 = vector.shape_cast %512 : vector<1x1x1x32xf32> to vector<1x32xf32>
    %514 = vector.broadcast %513 : vector<1x32xf32> to vector<16x32xf32>
    %515 = arith.addf %511, %514 : vector<16x32xf32>
    %516 = arith.addf %469, %515 : vector<16x32xf32>
    %c1_382 = arith.constant 1 : index
    %c2_383 = arith.constant 2 : index
    %c0_384 = arith.constant 0 : index
    %c0_385 = arith.constant 0 : index
    %517 = vector.load %arg12[%c1_382, %c2_383, %c0_384, %c0_385] : memref<3x3x1x32xf32, #tpu.memory_space<vmem>>, vector<1x1x1x32xf32>
    %518 = vector.shape_cast %517 : vector<1x1x1x32xf32> to vector<1x32xf32>
    %c1_386 = arith.constant 1 : index
    %c2_387 = arith.constant 2 : index
    %c0_388 = arith.constant 0 : index
    %c0_389 = arith.constant 0 : index
    %519 = vector.load %arg13[%c1_386, %c2_387, %c0_388, %c0_389] : memref<3x3x1x32xf32, #tpu.memory_space<vmem>>, vector<1x1x1x32xf32>
    %520 = vector.shape_cast %519 : vector<1x1x1x32xf32> to vector<1x32xf32>
    %cst_390 = arith.constant dense<0.000000e+00> : vector<16x1xf32>
    %521 = tpu.matmul %516, %2, %cst_390 {dimension_numbers = #tpu.dot_dimension_numbers<[1], [0], [0], [1], [0, 0, 1, 1], [], []>} : vector<16x32xf32>, vector<32x1xf32>, vector<16x1xf32> -> vector<16x1xf32>
    %522 = arith.mulf %516, %516 : vector<16x32xf32>
    %cst_391 = arith.constant dense<0.000000e+00> : vector<16x1xf32>
    %523 = tpu.matmul %522, %2, %cst_391 {dimension_numbers = #tpu.dot_dimension_numbers<[1], [0], [0], [1], [0, 0, 1, 1], [], []>} : vector<16x32xf32>, vector<32x1xf32>, vector<16x1xf32> -> vector<16x1xf32>
    %cst_392 = arith.constant 3.125000e-02 : f32
    %524 = vector.broadcast %cst_392 : f32 to vector<16x1xf32>
    %525 = arith.mulf %521, %524 : vector<16x1xf32>
    %cst_393 = arith.constant 3.125000e-02 : f32
    %526 = vector.broadcast %cst_393 : f32 to vector<16x1xf32>
    %527 = arith.mulf %523, %526 : vector<16x1xf32>
    %528 = arith.mulf %525, %525 : vector<16x1xf32>
    %529 = arith.subf %527, %528 : vector<16x1xf32>
    %cst_394 = arith.constant 0.000000e+00 : f32
    %530 = vector.broadcast %cst_394 : f32 to vector<16x1xf32>
    %531 = arith.maximumf %529, %530 : vector<16x1xf32>
    %532 = vector.broadcast %525 : vector<16x1xf32> to vector<16x32xf32>
    %533 = arith.subf %516, %532 : vector<16x32xf32>
    %cst_395 = arith.constant 9.99999974E-6 : f32
    %534 = vector.broadcast %cst_395 : f32 to vector<16x1xf32>
    %535 = arith.addf %531, %534 : vector<16x1xf32>
    %536 = math.rsqrt %535 : vector<16x1xf32>
    %537 = vector.broadcast %536 : vector<16x1xf32> to vector<16x32xf32>
    %538 = arith.mulf %533, %537 : vector<16x32xf32>
    %539 = vector.broadcast %518 : vector<1x32xf32> to vector<16x32xf32>
    %540 = arith.mulf %538, %539 : vector<16x32xf32>
    %541 = vector.broadcast %520 : vector<1x32xf32> to vector<16x32xf32>
    %542 = arith.addf %540, %541 : vector<16x32xf32>
    %c1_396 = arith.constant 1 : index
    %c0_397 = arith.constant 0 : index
    %c0_398 = arith.constant 0 : index
    %543 = vector.load %arg16[%c1_396, %c0_397, %c0_398] : memref<3x1x32xf32, #tpu.memory_space<vmem>>, vector<1x1x32xf32>
    %544 = vector.shape_cast %543 : vector<1x1x32xf32> to vector<1x32xf32>
    %c1_399 = arith.constant 1 : index
    %c0_400 = arith.constant 0 : index
    %c0_401 = arith.constant 0 : index
    %545 = vector.load %arg17[%c1_399, %c0_400, %c0_401] : memref<3x1x32xf32, #tpu.memory_space<vmem>>, vector<1x1x32xf32>
    %546 = vector.shape_cast %545 : vector<1x1x32xf32> to vector<1x32xf32>
    %cst_402 = arith.constant dense<0.000000e+00> : vector<16x1xf32>
    %547 = tpu.matmul %542, %2, %cst_402 {dimension_numbers = #tpu.dot_dimension_numbers<[1], [0], [0], [1], [0, 0, 1, 1], [], []>} : vector<16x32xf32>, vector<32x1xf32>, vector<16x1xf32> -> vector<16x1xf32>
    %548 = arith.mulf %542, %542 : vector<16x32xf32>
    %cst_403 = arith.constant dense<0.000000e+00> : vector<16x1xf32>
    %549 = tpu.matmul %548, %2, %cst_403 {dimension_numbers = #tpu.dot_dimension_numbers<[1], [0], [0], [1], [0, 0, 1, 1], [], []>} : vector<16x32xf32>, vector<32x1xf32>, vector<16x1xf32> -> vector<16x1xf32>
    %cst_404 = arith.constant 3.125000e-02 : f32
    %550 = vector.broadcast %cst_404 : f32 to vector<16x1xf32>
    %551 = arith.mulf %547, %550 : vector<16x1xf32>
    %cst_405 = arith.constant 3.125000e-02 : f32
    %552 = vector.broadcast %cst_405 : f32 to vector<16x1xf32>
    %553 = arith.mulf %549, %552 : vector<16x1xf32>
    %554 = arith.mulf %551, %551 : vector<16x1xf32>
    %555 = arith.subf %553, %554 : vector<16x1xf32>
    %cst_406 = arith.constant 0.000000e+00 : f32
    %556 = vector.broadcast %cst_406 : f32 to vector<16x1xf32>
    %557 = arith.maximumf %555, %556 : vector<16x1xf32>
    %558 = vector.broadcast %551 : vector<16x1xf32> to vector<16x32xf32>
    %559 = arith.subf %542, %558 : vector<16x32xf32>
    %cst_407 = arith.constant 9.99999974E-6 : f32
    %560 = vector.broadcast %cst_407 : f32 to vector<16x1xf32>
    %561 = arith.addf %557, %560 : vector<16x1xf32>
    %562 = math.rsqrt %561 : vector<16x1xf32>
    %563 = vector.broadcast %562 : vector<16x1xf32> to vector<16x32xf32>
    %564 = arith.mulf %559, %563 : vector<16x32xf32>
    %565 = vector.broadcast %544 : vector<1x32xf32> to vector<16x32xf32>
    %566 = arith.mulf %564, %565 : vector<16x32xf32>
    %567 = vector.broadcast %546 : vector<1x32xf32> to vector<16x32xf32>
    %568 = arith.addf %566, %567 : vector<16x32xf32>
    %569 = arith.truncf %568 : vector<16x32xf32> to vector<16x32xbf16>
    %c32 = arith.constant 32 : index
    %c0_408 = arith.constant 0 : index
    %570 = vector.load %arg18[%c32, %c0_408] : memref<96x128xbf16, #tpu.memory_space<vmem>>, vector<32x128xbf16>
    %cst_409 = arith.constant dense<0.000000e+00> : vector<16x128xf32>
    %571 = tpu.matmul %569, %570, %cst_409 {dimension_numbers = #tpu.dot_dimension_numbers<[1], [0], [0], [1], [0, 0, 1, 1], [], []>} : vector<16x32xbf16>, vector<32x128xbf16>, vector<16x128xf32> -> vector<16x128xf32>
    %572 = arith.addf %288, %571 : vector<16x128xf32>
    %c2_410 = arith.constant 2 : index
    %c0_411 = arith.constant 0 : index
    %c0_412 = arith.constant 0 : index
    %573 = vector.load %arg2[%c2_410, %c0_411, %c0_412] : memref<3x16x32xf32, #tpu.memory_space<vmem>>, vector<1x16x32xf32>
    %574 = vector.shape_cast %573 : vector<1x16x32xf32> to vector<16x32xf32>
    %575 = arith.truncf %574 : vector<16x32xf32> to vector<16x32xbf16>
    %576 = arith.truncf %0 : vector<16x32xf32> to vector<16x32xbf16>
    %c2_413 = arith.constant 2 : index
    %c0_414 = arith.constant 0 : index
    %c0_415 = arith.constant 0 : index
    %c0_416 = arith.constant 0 : index
    %577 = vector.load %arg4[%c2_413, %c0_414, %c0_415, %c0_416] : memref<3x3x32x32xbf16, #tpu.memory_space<vmem>>, vector<1x1x32x32xbf16>
    %578 = vector.shape_cast %577 : vector<1x1x32x32xbf16> to vector<32x32xbf16>
    %cst_417 = arith.constant dense<0.000000e+00> : vector<16x32xf32>
    %579 = tpu.matmul %576, %578, %cst_417 {dimension_numbers = #tpu.dot_dimension_numbers<[1], [0], [0], [1], [0, 0, 1, 1], [], []>} : vector<16x32xbf16>, vector<32x32xbf16>, vector<16x32xf32> -> vector<16x32xf32>
    %c2_418 = arith.constant 2 : index
    %c0_419 = arith.constant 0 : index
    %c0_420 = arith.constant 0 : index
    %c0_421 = arith.constant 0 : index
    %580 = vector.load %arg5[%c2_418, %c0_419, %c0_420, %c0_421] : memref<3x3x1x32xf32, #tpu.memory_space<vmem>>, vector<1x1x1x32xf32>
    %581 = vector.shape_cast %580 : vector<1x1x1x32xf32> to vector<1x32xf32>
    %582 = vector.broadcast %581 : vector<1x32xf32> to vector<16x32xf32>
    %583 = arith.addf %579, %582 : vector<16x32xf32>
    %c2_422 = arith.constant 2 : index
    %c0_423 = arith.constant 0 : index
    %c0_424 = arith.constant 0 : index
    %c0_425 = arith.constant 0 : index
    %584 = vector.load %arg6[%c2_422, %c0_423, %c0_424, %c0_425] : memref<3x3x32x32xbf16, #tpu.memory_space<vmem>>, vector<1x1x32x32xbf16>
    %585 = vector.shape_cast %584 : vector<1x1x32x32xbf16> to vector<32x32xbf16>
    %cst_426 = arith.constant dense<0.000000e+00> : vector<16x32xf32>
    %586 = tpu.matmul %575, %585, %cst_426 {dimension_numbers = #tpu.dot_dimension_numbers<[1], [0], [0], [1], [0, 0, 1, 1], [], []>} : vector<16x32xbf16>, vector<32x32xbf16>, vector<16x32xf32> -> vector<16x32xf32>
    %c2_427 = arith.constant 2 : index
    %c0_428 = arith.constant 0 : index
    %c0_429 = arith.constant 0 : index
    %c0_430 = arith.constant 0 : index
    %587 = vector.load %arg7[%c2_427, %c0_428, %c0_429, %c0_430] : memref<3x3x1x32xf32, #tpu.memory_space<vmem>>, vector<1x1x1x32xf32>
    %588 = vector.shape_cast %587 : vector<1x1x1x32xf32> to vector<1x32xf32>
    %589 = vector.broadcast %588 : vector<1x32xf32> to vector<16x32xf32>
    %590 = arith.addf %586, %589 : vector<16x32xf32>
    %c2_431 = arith.constant 2 : index
    %c0_432 = arith.constant 0 : index
    %c0_433 = arith.constant 0 : index
    %c0_434 = arith.constant 0 : index
    %591 = vector.load %arg8[%c2_431, %c0_432, %c0_433, %c0_434] : memref<3x3x32x32xbf16, #tpu.memory_space<vmem>>, vector<1x1x32x32xbf16>
    %592 = vector.shape_cast %591 : vector<1x1x32x32xbf16> to vector<32x32xbf16>
    %cst_435 = arith.constant dense<0.000000e+00> : vector<16x32xf32>
    %593 = tpu.matmul %575, %592, %cst_435 {dimension_numbers = #tpu.dot_dimension_numbers<[1], [0], [0], [1], [0, 0, 1, 1], [], []>} : vector<16x32xbf16>, vector<32x32xbf16>, vector<16x32xf32> -> vector<16x32xf32>
    %c2_436 = arith.constant 2 : index
    %c0_437 = arith.constant 0 : index
    %c0_438 = arith.constant 0 : index
    %c0_439 = arith.constant 0 : index
    %594 = vector.load %arg9[%c2_436, %c0_437, %c0_438, %c0_439] : memref<3x3x1x32xf32, #tpu.memory_space<vmem>>, vector<1x1x1x32xf32>
    %595 = vector.shape_cast %594 : vector<1x1x1x32xf32> to vector<1x32xf32>
    %596 = vector.broadcast %595 : vector<1x32xf32> to vector<16x32xf32>
    %597 = arith.addf %593, %596 : vector<16x32xf32>
    %598 = arith.truncf %583 : vector<16x32xf32> to vector<16x32xbf16>
    %599 = arith.truncf %590 : vector<16x32xf32> to vector<16x32xbf16>
    %cst_440 = arith.constant dense<0.000000e+00> : vector<16x16xf32>
    %600 = tpu.matmul %598, %599, %cst_440 {dimension_numbers = #tpu.dot_dimension_numbers<[1], [1], [0], [0], [0, 0, 1, 0], [], []>} : vector<16x32xbf16>, vector<16x32xbf16>, vector<16x16xf32> -> vector<16x16xf32>
    %601 = arith.addf %600, %1 : vector<16x16xf32>
    %cst_441 = arith.constant dense<0xFF800000> : vector<16xf32>
    %602 = vector.multi_reduction <maximumf>, %601, %cst_441 [1] : vector<16x16xf32> to vector<16xf32>
    %603 = vector.shape_cast %602 : vector<16xf32> to vector<16x1xf32>
    %604 = vector.broadcast %603 : vector<16x1xf32> to vector<16x16xf32>
    %605 = arith.subf %601, %604 : vector<16x16xf32>
    %606 = math.exp %605 : vector<16x16xf32>
    %cst_442 = arith.constant dense<0.000000e+00> : vector<16x1xf32>
    %607 = tpu.matmul %606, %3, %cst_442 {dimension_numbers = #tpu.dot_dimension_numbers<[1], [0], [0], [1], [0, 0, 1, 1], [], []>} : vector<16x16xf32>, vector<16x1xf32>, vector<16x1xf32> -> vector<16x1xf32>
    %608 = tpu.reciprocal %607 {approx = true} : vector<16x1xf32> -> vector<16x1xf32>
    %609 = vector.broadcast %608 : vector<16x1xf32> to vector<16x16xf32>
    %610 = arith.mulf %606, %609 : vector<16x16xf32>
    %611 = arith.truncf %610 : vector<16x16xf32> to vector<16x16xbf16>
    %612 = arith.truncf %597 : vector<16x32xf32> to vector<16x32xbf16>
    %cst_443 = arith.constant dense<0.000000e+00> : vector<16x32xf32>
    %613 = tpu.matmul %611, %612, %cst_443 {dimension_numbers = #tpu.dot_dimension_numbers<[1], [0], [0], [1], [0, 0, 1, 1], [], []>} : vector<16x16xbf16>, vector<16x32xbf16>, vector<16x32xf32> -> vector<16x32xf32>
    %614 = arith.truncf %613 : vector<16x32xf32> to vector<16x32xbf16>
    %c2_444 = arith.constant 2 : index
    %c0_445 = arith.constant 0 : index
    %c0_446 = arith.constant 0 : index
    %c0_447 = arith.constant 0 : index
    %615 = vector.load %arg10[%c2_444, %c0_445, %c0_446, %c0_447] : memref<3x3x32x32xbf16, #tpu.memory_space<vmem>>, vector<1x1x32x32xbf16>
    %616 = vector.shape_cast %615 : vector<1x1x32x32xbf16> to vector<32x32xbf16>
    %cst_448 = arith.constant dense<0.000000e+00> : vector<16x32xf32>
    %617 = tpu.matmul %614, %616, %cst_448 {dimension_numbers = #tpu.dot_dimension_numbers<[1], [0], [0], [1], [0, 0, 1, 1], [], []>} : vector<16x32xbf16>, vector<32x32xbf16>, vector<16x32xf32> -> vector<16x32xf32>
    %c2_449 = arith.constant 2 : index
    %c0_450 = arith.constant 0 : index
    %c0_451 = arith.constant 0 : index
    %c0_452 = arith.constant 0 : index
    %618 = vector.load %arg11[%c2_449, %c0_450, %c0_451, %c0_452] : memref<3x3x1x32xf32, #tpu.memory_space<vmem>>, vector<1x1x1x32xf32>
    %619 = vector.shape_cast %618 : vector<1x1x1x32xf32> to vector<1x32xf32>
    %620 = vector.broadcast %619 : vector<1x32xf32> to vector<16x32xf32>
    %621 = arith.addf %617, %620 : vector<16x32xf32>
    %622 = arith.addf %0, %621 : vector<16x32xf32>
    %c2_453 = arith.constant 2 : index
    %c0_454 = arith.constant 0 : index
    %c0_455 = arith.constant 0 : index
    %c0_456 = arith.constant 0 : index
    %623 = vector.load %arg12[%c2_453, %c0_454, %c0_455, %c0_456] : memref<3x3x1x32xf32, #tpu.memory_space<vmem>>, vector<1x1x1x32xf32>
    %624 = vector.shape_cast %623 : vector<1x1x1x32xf32> to vector<1x32xf32>
    %c2_457 = arith.constant 2 : index
    %c0_458 = arith.constant 0 : index
    %c0_459 = arith.constant 0 : index
    %c0_460 = arith.constant 0 : index
    %625 = vector.load %arg13[%c2_457, %c0_458, %c0_459, %c0_460] : memref<3x3x1x32xf32, #tpu.memory_space<vmem>>, vector<1x1x1x32xf32>
    %626 = vector.shape_cast %625 : vector<1x1x1x32xf32> to vector<1x32xf32>
    %cst_461 = arith.constant dense<0.000000e+00> : vector<16x1xf32>
    %627 = tpu.matmul %622, %2, %cst_461 {dimension_numbers = #tpu.dot_dimension_numbers<[1], [0], [0], [1], [0, 0, 1, 1], [], []>} : vector<16x32xf32>, vector<32x1xf32>, vector<16x1xf32> -> vector<16x1xf32>
    %628 = arith.mulf %622, %622 : vector<16x32xf32>
    %cst_462 = arith.constant dense<0.000000e+00> : vector<16x1xf32>
    %629 = tpu.matmul %628, %2, %cst_462 {dimension_numbers = #tpu.dot_dimension_numbers<[1], [0], [0], [1], [0, 0, 1, 1], [], []>} : vector<16x32xf32>, vector<32x1xf32>, vector<16x1xf32> -> vector<16x1xf32>
    %cst_463 = arith.constant 3.125000e-02 : f32
    %630 = vector.broadcast %cst_463 : f32 to vector<16x1xf32>
    %631 = arith.mulf %627, %630 : vector<16x1xf32>
    %cst_464 = arith.constant 3.125000e-02 : f32
    %632 = vector.broadcast %cst_464 : f32 to vector<16x1xf32>
    %633 = arith.mulf %629, %632 : vector<16x1xf32>
    %634 = arith.mulf %631, %631 : vector<16x1xf32>
    %635 = arith.subf %633, %634 : vector<16x1xf32>
    %cst_465 = arith.constant 0.000000e+00 : f32
    %636 = vector.broadcast %cst_465 : f32 to vector<16x1xf32>
    %637 = arith.maximumf %635, %636 : vector<16x1xf32>
    %638 = vector.broadcast %631 : vector<16x1xf32> to vector<16x32xf32>
    %639 = arith.subf %622, %638 : vector<16x32xf32>
    %cst_466 = arith.constant 9.99999974E-6 : f32
    %640 = vector.broadcast %cst_466 : f32 to vector<16x1xf32>
    %641 = arith.addf %637, %640 : vector<16x1xf32>
    %642 = math.rsqrt %641 : vector<16x1xf32>
    %643 = vector.broadcast %642 : vector<16x1xf32> to vector<16x32xf32>
    %644 = arith.mulf %639, %643 : vector<16x32xf32>
    %645 = vector.broadcast %624 : vector<1x32xf32> to vector<16x32xf32>
    %646 = arith.mulf %644, %645 : vector<16x32xf32>
    %647 = vector.broadcast %626 : vector<1x32xf32> to vector<16x32xf32>
    %648 = arith.addf %646, %647 : vector<16x32xf32>
    %649 = arith.truncf %648 : vector<16x32xf32> to vector<16x32xbf16>
    %c2_467 = arith.constant 2 : index
    %c0_468 = arith.constant 0 : index
    %c0_469 = arith.constant 0 : index
    %c0_470 = arith.constant 0 : index
    %650 = vector.load %arg14[%c2_467, %c0_468, %c0_469, %c0_470] : memref<3x2x32x32xbf16, #tpu.memory_space<vmem>>, vector<1x1x32x32xbf16>
    %651 = vector.shape_cast %650 : vector<1x1x32x32xbf16> to vector<32x32xbf16>
    %cst_471 = arith.constant dense<0.000000e+00> : vector<16x32xf32>
    %652 = tpu.matmul %649, %651, %cst_471 {dimension_numbers = #tpu.dot_dimension_numbers<[1], [0], [0], [1], [0, 0, 1, 1], [], []>} : vector<16x32xbf16>, vector<32x32xbf16>, vector<16x32xf32> -> vector<16x32xf32>
    %c2_472 = arith.constant 2 : index
    %c0_473 = arith.constant 0 : index
    %c0_474 = arith.constant 0 : index
    %c0_475 = arith.constant 0 : index
    %653 = vector.load %arg15[%c2_472, %c0_473, %c0_474, %c0_475] : memref<3x2x1x32xf32, #tpu.memory_space<vmem>>, vector<1x1x1x32xf32>
    %654 = vector.shape_cast %653 : vector<1x1x1x32xf32> to vector<1x32xf32>
    %655 = vector.broadcast %654 : vector<1x32xf32> to vector<16x32xf32>
    %656 = arith.addf %652, %655 : vector<16x32xf32>
    %cst_476 = arith.constant 0.000000e+00 : f32
    %657 = vector.broadcast %cst_476 : f32 to vector<16x32xf32>
    %658 = arith.cmpf ogt, %656, %657 : vector<16x32xf32>
    %cst_477 = arith.constant 0.000000e+00 : f32
    %659 = vector.broadcast %cst_477 : f32 to vector<16x32xf32>
    %660 = arith.minimumf %656, %659 : vector<16x32xf32>
    %661 = math.exp %660 : vector<16x32xf32>
    %cst_478 = arith.constant 1.000000e+00 : f32
    %662 = vector.broadcast %cst_478 : f32 to vector<16x32xf32>
    %663 = arith.subf %661, %662 : vector<16x32xf32>
    %664 = arith.select %658, %656, %663 : vector<16x32xi1>, vector<16x32xf32>
    %665 = arith.truncf %664 : vector<16x32xf32> to vector<16x32xbf16>
    %c2_479 = arith.constant 2 : index
    %c1_480 = arith.constant 1 : index
    %c0_481 = arith.constant 0 : index
    %c0_482 = arith.constant 0 : index
    %666 = vector.load %arg4[%c2_479, %c1_480, %c0_481, %c0_482] : memref<3x3x32x32xbf16, #tpu.memory_space<vmem>>, vector<1x1x32x32xbf16>
    %667 = vector.shape_cast %666 : vector<1x1x32x32xbf16> to vector<32x32xbf16>
    %cst_483 = arith.constant dense<0.000000e+00> : vector<16x32xf32>
    %668 = tpu.matmul %665, %667, %cst_483 {dimension_numbers = #tpu.dot_dimension_numbers<[1], [0], [0], [1], [0, 0, 1, 1], [], []>} : vector<16x32xbf16>, vector<32x32xbf16>, vector<16x32xf32> -> vector<16x32xf32>
    %c2_484 = arith.constant 2 : index
    %c1_485 = arith.constant 1 : index
    %c0_486 = arith.constant 0 : index
    %c0_487 = arith.constant 0 : index
    %669 = vector.load %arg5[%c2_484, %c1_485, %c0_486, %c0_487] : memref<3x3x1x32xf32, #tpu.memory_space<vmem>>, vector<1x1x1x32xf32>
    %670 = vector.shape_cast %669 : vector<1x1x1x32xf32> to vector<1x32xf32>
    %671 = vector.broadcast %670 : vector<1x32xf32> to vector<16x32xf32>
    %672 = arith.addf %668, %671 : vector<16x32xf32>
    %c2_488 = arith.constant 2 : index
    %c1_489 = arith.constant 1 : index
    %c0_490 = arith.constant 0 : index
    %c0_491 = arith.constant 0 : index
    %673 = vector.load %arg6[%c2_488, %c1_489, %c0_490, %c0_491] : memref<3x3x32x32xbf16, #tpu.memory_space<vmem>>, vector<1x1x32x32xbf16>
    %674 = vector.shape_cast %673 : vector<1x1x32x32xbf16> to vector<32x32xbf16>
    %cst_492 = arith.constant dense<0.000000e+00> : vector<16x32xf32>
    %675 = tpu.matmul %575, %674, %cst_492 {dimension_numbers = #tpu.dot_dimension_numbers<[1], [0], [0], [1], [0, 0, 1, 1], [], []>} : vector<16x32xbf16>, vector<32x32xbf16>, vector<16x32xf32> -> vector<16x32xf32>
    %c2_493 = arith.constant 2 : index
    %c1_494 = arith.constant 1 : index
    %c0_495 = arith.constant 0 : index
    %c0_496 = arith.constant 0 : index
    %676 = vector.load %arg7[%c2_493, %c1_494, %c0_495, %c0_496] : memref<3x3x1x32xf32, #tpu.memory_space<vmem>>, vector<1x1x1x32xf32>
    %677 = vector.shape_cast %676 : vector<1x1x1x32xf32> to vector<1x32xf32>
    %678 = vector.broadcast %677 : vector<1x32xf32> to vector<16x32xf32>
    %679 = arith.addf %675, %678 : vector<16x32xf32>
    %c2_497 = arith.constant 2 : index
    %c1_498 = arith.constant 1 : index
    %c0_499 = arith.constant 0 : index
    %c0_500 = arith.constant 0 : index
    %680 = vector.load %arg8[%c2_497, %c1_498, %c0_499, %c0_500] : memref<3x3x32x32xbf16, #tpu.memory_space<vmem>>, vector<1x1x32x32xbf16>
    %681 = vector.shape_cast %680 : vector<1x1x32x32xbf16> to vector<32x32xbf16>
    %cst_501 = arith.constant dense<0.000000e+00> : vector<16x32xf32>
    %682 = tpu.matmul %575, %681, %cst_501 {dimension_numbers = #tpu.dot_dimension_numbers<[1], [0], [0], [1], [0, 0, 1, 1], [], []>} : vector<16x32xbf16>, vector<32x32xbf16>, vector<16x32xf32> -> vector<16x32xf32>
    %c2_502 = arith.constant 2 : index
    %c1_503 = arith.constant 1 : index
    %c0_504 = arith.constant 0 : index
    %c0_505 = arith.constant 0 : index
    %683 = vector.load %arg9[%c2_502, %c1_503, %c0_504, %c0_505] : memref<3x3x1x32xf32, #tpu.memory_space<vmem>>, vector<1x1x1x32xf32>
    %684 = vector.shape_cast %683 : vector<1x1x1x32xf32> to vector<1x32xf32>
    %685 = vector.broadcast %684 : vector<1x32xf32> to vector<16x32xf32>
    %686 = arith.addf %682, %685 : vector<16x32xf32>
    %687 = arith.truncf %672 : vector<16x32xf32> to vector<16x32xbf16>
    %688 = arith.truncf %679 : vector<16x32xf32> to vector<16x32xbf16>
    %cst_506 = arith.constant dense<0.000000e+00> : vector<16x16xf32>
    %689 = tpu.matmul %687, %688, %cst_506 {dimension_numbers = #tpu.dot_dimension_numbers<[1], [1], [0], [0], [0, 0, 1, 0], [], []>} : vector<16x32xbf16>, vector<16x32xbf16>, vector<16x16xf32> -> vector<16x16xf32>
    %690 = arith.addf %689, %1 : vector<16x16xf32>
    %cst_507 = arith.constant dense<0xFF800000> : vector<16xf32>
    %691 = vector.multi_reduction <maximumf>, %690, %cst_507 [1] : vector<16x16xf32> to vector<16xf32>
    %692 = vector.shape_cast %691 : vector<16xf32> to vector<16x1xf32>
    %693 = vector.broadcast %692 : vector<16x1xf32> to vector<16x16xf32>
    %694 = arith.subf %690, %693 : vector<16x16xf32>
    %695 = math.exp %694 : vector<16x16xf32>
    %cst_508 = arith.constant dense<0.000000e+00> : vector<16x1xf32>
    %696 = tpu.matmul %695, %3, %cst_508 {dimension_numbers = #tpu.dot_dimension_numbers<[1], [0], [0], [1], [0, 0, 1, 1], [], []>} : vector<16x16xf32>, vector<16x1xf32>, vector<16x1xf32> -> vector<16x1xf32>
    %697 = tpu.reciprocal %696 {approx = true} : vector<16x1xf32> -> vector<16x1xf32>
    %698 = vector.broadcast %697 : vector<16x1xf32> to vector<16x16xf32>
    %699 = arith.mulf %695, %698 : vector<16x16xf32>
    %700 = arith.truncf %699 : vector<16x16xf32> to vector<16x16xbf16>
    %701 = arith.truncf %686 : vector<16x32xf32> to vector<16x32xbf16>
    %cst_509 = arith.constant dense<0.000000e+00> : vector<16x32xf32>
    %702 = tpu.matmul %700, %701, %cst_509 {dimension_numbers = #tpu.dot_dimension_numbers<[1], [0], [0], [1], [0, 0, 1, 1], [], []>} : vector<16x16xbf16>, vector<16x32xbf16>, vector<16x32xf32> -> vector<16x32xf32>
    %703 = arith.truncf %702 : vector<16x32xf32> to vector<16x32xbf16>
    %c2_510 = arith.constant 2 : index
    %c1_511 = arith.constant 1 : index
    %c0_512 = arith.constant 0 : index
    %c0_513 = arith.constant 0 : index
    %704 = vector.load %arg10[%c2_510, %c1_511, %c0_512, %c0_513] : memref<3x3x32x32xbf16, #tpu.memory_space<vmem>>, vector<1x1x32x32xbf16>
    %705 = vector.shape_cast %704 : vector<1x1x32x32xbf16> to vector<32x32xbf16>
    %cst_514 = arith.constant dense<0.000000e+00> : vector<16x32xf32>
    %706 = tpu.matmul %703, %705, %cst_514 {dimension_numbers = #tpu.dot_dimension_numbers<[1], [0], [0], [1], [0, 0, 1, 1], [], []>} : vector<16x32xbf16>, vector<32x32xbf16>, vector<16x32xf32> -> vector<16x32xf32>
    %c2_515 = arith.constant 2 : index
    %c1_516 = arith.constant 1 : index
    %c0_517 = arith.constant 0 : index
    %c0_518 = arith.constant 0 : index
    %707 = vector.load %arg11[%c2_515, %c1_516, %c0_517, %c0_518] : memref<3x3x1x32xf32, #tpu.memory_space<vmem>>, vector<1x1x1x32xf32>
    %708 = vector.shape_cast %707 : vector<1x1x1x32xf32> to vector<1x32xf32>
    %709 = vector.broadcast %708 : vector<1x32xf32> to vector<16x32xf32>
    %710 = arith.addf %706, %709 : vector<16x32xf32>
    %711 = arith.addf %664, %710 : vector<16x32xf32>
    %c2_519 = arith.constant 2 : index
    %c1_520 = arith.constant 1 : index
    %c0_521 = arith.constant 0 : index
    %c0_522 = arith.constant 0 : index
    %712 = vector.load %arg12[%c2_519, %c1_520, %c0_521, %c0_522] : memref<3x3x1x32xf32, #tpu.memory_space<vmem>>, vector<1x1x1x32xf32>
    %713 = vector.shape_cast %712 : vector<1x1x1x32xf32> to vector<1x32xf32>
    %c2_523 = arith.constant 2 : index
    %c1_524 = arith.constant 1 : index
    %c0_525 = arith.constant 0 : index
    %c0_526 = arith.constant 0 : index
    %714 = vector.load %arg13[%c2_523, %c1_524, %c0_525, %c0_526] : memref<3x3x1x32xf32, #tpu.memory_space<vmem>>, vector<1x1x1x32xf32>
    %715 = vector.shape_cast %714 : vector<1x1x1x32xf32> to vector<1x32xf32>
    %cst_527 = arith.constant dense<0.000000e+00> : vector<16x1xf32>
    %716 = tpu.matmul %711, %2, %cst_527 {dimension_numbers = #tpu.dot_dimension_numbers<[1], [0], [0], [1], [0, 0, 1, 1], [], []>} : vector<16x32xf32>, vector<32x1xf32>, vector<16x1xf32> -> vector<16x1xf32>
    %717 = arith.mulf %711, %711 : vector<16x32xf32>
    %cst_528 = arith.constant dense<0.000000e+00> : vector<16x1xf32>
    %718 = tpu.matmul %717, %2, %cst_528 {dimension_numbers = #tpu.dot_dimension_numbers<[1], [0], [0], [1], [0, 0, 1, 1], [], []>} : vector<16x32xf32>, vector<32x1xf32>, vector<16x1xf32> -> vector<16x1xf32>
    %cst_529 = arith.constant 3.125000e-02 : f32
    %719 = vector.broadcast %cst_529 : f32 to vector<16x1xf32>
    %720 = arith.mulf %716, %719 : vector<16x1xf32>
    %cst_530 = arith.constant 3.125000e-02 : f32
    %721 = vector.broadcast %cst_530 : f32 to vector<16x1xf32>
    %722 = arith.mulf %718, %721 : vector<16x1xf32>
    %723 = arith.mulf %720, %720 : vector<16x1xf32>
    %724 = arith.subf %722, %723 : vector<16x1xf32>
    %cst_531 = arith.constant 0.000000e+00 : f32
    %725 = vector.broadcast %cst_531 : f32 to vector<16x1xf32>
    %726 = arith.maximumf %724, %725 : vector<16x1xf32>
    %727 = vector.broadcast %720 : vector<16x1xf32> to vector<16x32xf32>
    %728 = arith.subf %711, %727 : vector<16x32xf32>
    %cst_532 = arith.constant 9.99999974E-6 : f32
    %729 = vector.broadcast %cst_532 : f32 to vector<16x1xf32>
    %730 = arith.addf %726, %729 : vector<16x1xf32>
    %731 = math.rsqrt %730 : vector<16x1xf32>
    %732 = vector.broadcast %731 : vector<16x1xf32> to vector<16x32xf32>
    %733 = arith.mulf %728, %732 : vector<16x32xf32>
    %734 = vector.broadcast %713 : vector<1x32xf32> to vector<16x32xf32>
    %735 = arith.mulf %733, %734 : vector<16x32xf32>
    %736 = vector.broadcast %715 : vector<1x32xf32> to vector<16x32xf32>
    %737 = arith.addf %735, %736 : vector<16x32xf32>
    %738 = arith.truncf %737 : vector<16x32xf32> to vector<16x32xbf16>
    %c2_533 = arith.constant 2 : index
    %c1_534 = arith.constant 1 : index
    %c0_535 = arith.constant 0 : index
    %c0_536 = arith.constant 0 : index
    %739 = vector.load %arg14[%c2_533, %c1_534, %c0_535, %c0_536] : memref<3x2x32x32xbf16, #tpu.memory_space<vmem>>, vector<1x1x32x32xbf16>
    %740 = vector.shape_cast %739 : vector<1x1x32x32xbf16> to vector<32x32xbf16>
    %cst_537 = arith.constant dense<0.000000e+00> : vector<16x32xf32>
    %741 = tpu.matmul %738, %740, %cst_537 {dimension_numbers = #tpu.dot_dimension_numbers<[1], [0], [0], [1], [0, 0, 1, 1], [], []>} : vector<16x32xbf16>, vector<32x32xbf16>, vector<16x32xf32> -> vector<16x32xf32>
    %c2_538 = arith.constant 2 : index
    %c1_539 = arith.constant 1 : index
    %c0_540 = arith.constant 0 : index
    %c0_541 = arith.constant 0 : index
    %742 = vector.load %arg15[%c2_538, %c1_539, %c0_540, %c0_541] : memref<3x2x1x32xf32, #tpu.memory_space<vmem>>, vector<1x1x1x32xf32>
    %743 = vector.shape_cast %742 : vector<1x1x1x32xf32> to vector<1x32xf32>
    %744 = vector.broadcast %743 : vector<1x32xf32> to vector<16x32xf32>
    %745 = arith.addf %741, %744 : vector<16x32xf32>
    %cst_542 = arith.constant 0.000000e+00 : f32
    %746 = vector.broadcast %cst_542 : f32 to vector<16x32xf32>
    %747 = arith.cmpf ogt, %745, %746 : vector<16x32xf32>
    %cst_543 = arith.constant 0.000000e+00 : f32
    %748 = vector.broadcast %cst_543 : f32 to vector<16x32xf32>
    %749 = arith.minimumf %745, %748 : vector<16x32xf32>
    %750 = math.exp %749 : vector<16x32xf32>
    %cst_544 = arith.constant 1.000000e+00 : f32
    %751 = vector.broadcast %cst_544 : f32 to vector<16x32xf32>
    %752 = arith.subf %750, %751 : vector<16x32xf32>
    %753 = arith.select %747, %745, %752 : vector<16x32xi1>, vector<16x32xf32>
    %754 = arith.truncf %753 : vector<16x32xf32> to vector<16x32xbf16>
    %c2_545 = arith.constant 2 : index
    %c2_546 = arith.constant 2 : index
    %c0_547 = arith.constant 0 : index
    %c0_548 = arith.constant 0 : index
    %755 = vector.load %arg4[%c2_545, %c2_546, %c0_547, %c0_548] : memref<3x3x32x32xbf16, #tpu.memory_space<vmem>>, vector<1x1x32x32xbf16>
    %756 = vector.shape_cast %755 : vector<1x1x32x32xbf16> to vector<32x32xbf16>
    %cst_549 = arith.constant dense<0.000000e+00> : vector<16x32xf32>
    %757 = tpu.matmul %754, %756, %cst_549 {dimension_numbers = #tpu.dot_dimension_numbers<[1], [0], [0], [1], [0, 0, 1, 1], [], []>} : vector<16x32xbf16>, vector<32x32xbf16>, vector<16x32xf32> -> vector<16x32xf32>
    %c2_550 = arith.constant 2 : index
    %c2_551 = arith.constant 2 : index
    %c0_552 = arith.constant 0 : index
    %c0_553 = arith.constant 0 : index
    %758 = vector.load %arg5[%c2_550, %c2_551, %c0_552, %c0_553] : memref<3x3x1x32xf32, #tpu.memory_space<vmem>>, vector<1x1x1x32xf32>
    %759 = vector.shape_cast %758 : vector<1x1x1x32xf32> to vector<1x32xf32>
    %760 = vector.broadcast %759 : vector<1x32xf32> to vector<16x32xf32>
    %761 = arith.addf %757, %760 : vector<16x32xf32>
    %c2_554 = arith.constant 2 : index
    %c2_555 = arith.constant 2 : index
    %c0_556 = arith.constant 0 : index
    %c0_557 = arith.constant 0 : index
    %762 = vector.load %arg6[%c2_554, %c2_555, %c0_556, %c0_557] : memref<3x3x32x32xbf16, #tpu.memory_space<vmem>>, vector<1x1x32x32xbf16>
    %763 = vector.shape_cast %762 : vector<1x1x32x32xbf16> to vector<32x32xbf16>
    %cst_558 = arith.constant dense<0.000000e+00> : vector<16x32xf32>
    %764 = tpu.matmul %575, %763, %cst_558 {dimension_numbers = #tpu.dot_dimension_numbers<[1], [0], [0], [1], [0, 0, 1, 1], [], []>} : vector<16x32xbf16>, vector<32x32xbf16>, vector<16x32xf32> -> vector<16x32xf32>
    %c2_559 = arith.constant 2 : index
    %c2_560 = arith.constant 2 : index
    %c0_561 = arith.constant 0 : index
    %c0_562 = arith.constant 0 : index
    %765 = vector.load %arg7[%c2_559, %c2_560, %c0_561, %c0_562] : memref<3x3x1x32xf32, #tpu.memory_space<vmem>>, vector<1x1x1x32xf32>
    %766 = vector.shape_cast %765 : vector<1x1x1x32xf32> to vector<1x32xf32>
    %767 = vector.broadcast %766 : vector<1x32xf32> to vector<16x32xf32>
    %768 = arith.addf %764, %767 : vector<16x32xf32>
    %c2_563 = arith.constant 2 : index
    %c2_564 = arith.constant 2 : index
    %c0_565 = arith.constant 0 : index
    %c0_566 = arith.constant 0 : index
    %769 = vector.load %arg8[%c2_563, %c2_564, %c0_565, %c0_566] : memref<3x3x32x32xbf16, #tpu.memory_space<vmem>>, vector<1x1x32x32xbf16>
    %770 = vector.shape_cast %769 : vector<1x1x32x32xbf16> to vector<32x32xbf16>
    %cst_567 = arith.constant dense<0.000000e+00> : vector<16x32xf32>
    %771 = tpu.matmul %575, %770, %cst_567 {dimension_numbers = #tpu.dot_dimension_numbers<[1], [0], [0], [1], [0, 0, 1, 1], [], []>} : vector<16x32xbf16>, vector<32x32xbf16>, vector<16x32xf32> -> vector<16x32xf32>
    %c2_568 = arith.constant 2 : index
    %c2_569 = arith.constant 2 : index
    %c0_570 = arith.constant 0 : index
    %c0_571 = arith.constant 0 : index
    %772 = vector.load %arg9[%c2_568, %c2_569, %c0_570, %c0_571] : memref<3x3x1x32xf32, #tpu.memory_space<vmem>>, vector<1x1x1x32xf32>
    %773 = vector.shape_cast %772 : vector<1x1x1x32xf32> to vector<1x32xf32>
    %774 = vector.broadcast %773 : vector<1x32xf32> to vector<16x32xf32>
    %775 = arith.addf %771, %774 : vector<16x32xf32>
    %776 = arith.truncf %761 : vector<16x32xf32> to vector<16x32xbf16>
    %777 = arith.truncf %768 : vector<16x32xf32> to vector<16x32xbf16>
    %cst_572 = arith.constant dense<0.000000e+00> : vector<16x16xf32>
    %778 = tpu.matmul %776, %777, %cst_572 {dimension_numbers = #tpu.dot_dimension_numbers<[1], [1], [0], [0], [0, 0, 1, 0], [], []>} : vector<16x32xbf16>, vector<16x32xbf16>, vector<16x16xf32> -> vector<16x16xf32>
    %779 = arith.addf %778, %1 : vector<16x16xf32>
    %cst_573 = arith.constant dense<0xFF800000> : vector<16xf32>
    %780 = vector.multi_reduction <maximumf>, %779, %cst_573 [1] : vector<16x16xf32> to vector<16xf32>
    %781 = vector.shape_cast %780 : vector<16xf32> to vector<16x1xf32>
    %782 = vector.broadcast %781 : vector<16x1xf32> to vector<16x16xf32>
    %783 = arith.subf %779, %782 : vector<16x16xf32>
    %784 = math.exp %783 : vector<16x16xf32>
    %cst_574 = arith.constant dense<0.000000e+00> : vector<16x1xf32>
    %785 = tpu.matmul %784, %3, %cst_574 {dimension_numbers = #tpu.dot_dimension_numbers<[1], [0], [0], [1], [0, 0, 1, 1], [], []>} : vector<16x16xf32>, vector<16x1xf32>, vector<16x1xf32> -> vector<16x1xf32>
    %786 = tpu.reciprocal %785 {approx = true} : vector<16x1xf32> -> vector<16x1xf32>
    %787 = vector.broadcast %786 : vector<16x1xf32> to vector<16x16xf32>
    %788 = arith.mulf %784, %787 : vector<16x16xf32>
    %789 = arith.truncf %788 : vector<16x16xf32> to vector<16x16xbf16>
    %790 = arith.truncf %775 : vector<16x32xf32> to vector<16x32xbf16>
    %cst_575 = arith.constant dense<0.000000e+00> : vector<16x32xf32>
    %791 = tpu.matmul %789, %790, %cst_575 {dimension_numbers = #tpu.dot_dimension_numbers<[1], [0], [0], [1], [0, 0, 1, 1], [], []>} : vector<16x16xbf16>, vector<16x32xbf16>, vector<16x32xf32> -> vector<16x32xf32>
    %792 = arith.truncf %791 : vector<16x32xf32> to vector<16x32xbf16>
    %c2_576 = arith.constant 2 : index
    %c2_577 = arith.constant 2 : index
    %c0_578 = arith.constant 0 : index
    %c0_579 = arith.constant 0 : index
    %793 = vector.load %arg10[%c2_576, %c2_577, %c0_578, %c0_579] : memref<3x3x32x32xbf16, #tpu.memory_space<vmem>>, vector<1x1x32x32xbf16>
    %794 = vector.shape_cast %793 : vector<1x1x32x32xbf16> to vector<32x32xbf16>
    %cst_580 = arith.constant dense<0.000000e+00> : vector<16x32xf32>
    %795 = tpu.matmul %792, %794, %cst_580 {dimension_numbers = #tpu.dot_dimension_numbers<[1], [0], [0], [1], [0, 0, 1, 1], [], []>} : vector<16x32xbf16>, vector<32x32xbf16>, vector<16x32xf32> -> vector<16x32xf32>
    %c2_581 = arith.constant 2 : index
    %c2_582 = arith.constant 2 : index
    %c0_583 = arith.constant 0 : index
    %c0_584 = arith.constant 0 : index
    %796 = vector.load %arg11[%c2_581, %c2_582, %c0_583, %c0_584] : memref<3x3x1x32xf32, #tpu.memory_space<vmem>>, vector<1x1x1x32xf32>
    %797 = vector.shape_cast %796 : vector<1x1x1x32xf32> to vector<1x32xf32>
    %798 = vector.broadcast %797 : vector<1x32xf32> to vector<16x32xf32>
    %799 = arith.addf %795, %798 : vector<16x32xf32>
    %800 = arith.addf %753, %799 : vector<16x32xf32>
    %c2_585 = arith.constant 2 : index
    %c2_586 = arith.constant 2 : index
    %c0_587 = arith.constant 0 : index
    %c0_588 = arith.constant 0 : index
    %801 = vector.load %arg12[%c2_585, %c2_586, %c0_587, %c0_588] : memref<3x3x1x32xf32, #tpu.memory_space<vmem>>, vector<1x1x1x32xf32>
    %802 = vector.shape_cast %801 : vector<1x1x1x32xf32> to vector<1x32xf32>
    %c2_589 = arith.constant 2 : index
    %c2_590 = arith.constant 2 : index
    %c0_591 = arith.constant 0 : index
    %c0_592 = arith.constant 0 : index
    %803 = vector.load %arg13[%c2_589, %c2_590, %c0_591, %c0_592] : memref<3x3x1x32xf32, #tpu.memory_space<vmem>>, vector<1x1x1x32xf32>
    %804 = vector.shape_cast %803 : vector<1x1x1x32xf32> to vector<1x32xf32>
    %cst_593 = arith.constant dense<0.000000e+00> : vector<16x1xf32>
    %805 = tpu.matmul %800, %2, %cst_593 {dimension_numbers = #tpu.dot_dimension_numbers<[1], [0], [0], [1], [0, 0, 1, 1], [], []>} : vector<16x32xf32>, vector<32x1xf32>, vector<16x1xf32> -> vector<16x1xf32>
    %806 = arith.mulf %800, %800 : vector<16x32xf32>
    %cst_594 = arith.constant dense<0.000000e+00> : vector<16x1xf32>
    %807 = tpu.matmul %806, %2, %cst_594 {dimension_numbers = #tpu.dot_dimension_numbers<[1], [0], [0], [1], [0, 0, 1, 1], [], []>} : vector<16x32xf32>, vector<32x1xf32>, vector<16x1xf32> -> vector<16x1xf32>
    %cst_595 = arith.constant 3.125000e-02 : f32
    %808 = vector.broadcast %cst_595 : f32 to vector<16x1xf32>
    %809 = arith.mulf %805, %808 : vector<16x1xf32>
    %cst_596 = arith.constant 3.125000e-02 : f32
    %810 = vector.broadcast %cst_596 : f32 to vector<16x1xf32>
    %811 = arith.mulf %807, %810 : vector<16x1xf32>
    %812 = arith.mulf %809, %809 : vector<16x1xf32>
    %813 = arith.subf %811, %812 : vector<16x1xf32>
    %cst_597 = arith.constant 0.000000e+00 : f32
    %814 = vector.broadcast %cst_597 : f32 to vector<16x1xf32>
    %815 = arith.maximumf %813, %814 : vector<16x1xf32>
    %816 = vector.broadcast %809 : vector<16x1xf32> to vector<16x32xf32>
    %817 = arith.subf %800, %816 : vector<16x32xf32>
    %cst_598 = arith.constant 9.99999974E-6 : f32
    %818 = vector.broadcast %cst_598 : f32 to vector<16x1xf32>
    %819 = arith.addf %815, %818 : vector<16x1xf32>
    %820 = math.rsqrt %819 : vector<16x1xf32>
    %821 = vector.broadcast %820 : vector<16x1xf32> to vector<16x32xf32>
    %822 = arith.mulf %817, %821 : vector<16x32xf32>
    %823 = vector.broadcast %802 : vector<1x32xf32> to vector<16x32xf32>
    %824 = arith.mulf %822, %823 : vector<16x32xf32>
    %825 = vector.broadcast %804 : vector<1x32xf32> to vector<16x32xf32>
    %826 = arith.addf %824, %825 : vector<16x32xf32>
    %c2_599 = arith.constant 2 : index
    %c0_600 = arith.constant 0 : index
    %c0_601 = arith.constant 0 : index
    %827 = vector.load %arg16[%c2_599, %c0_600, %c0_601] : memref<3x1x32xf32, #tpu.memory_space<vmem>>, vector<1x1x32xf32>
    %828 = vector.shape_cast %827 : vector<1x1x32xf32> to vector<1x32xf32>
    %c2_602 = arith.constant 2 : index
    %c0_603 = arith.constant 0 : index
    %c0_604 = arith.constant 0 : index
    %829 = vector.load %arg17[%c2_602, %c0_603, %c0_604] : memref<3x1x32xf32, #tpu.memory_space<vmem>>, vector<1x1x32xf32>
    %830 = vector.shape_cast %829 : vector<1x1x32xf32> to vector<1x32xf32>
    %cst_605 = arith.constant dense<0.000000e+00> : vector<16x1xf32>
    %831 = tpu.matmul %826, %2, %cst_605 {dimension_numbers = #tpu.dot_dimension_numbers<[1], [0], [0], [1], [0, 0, 1, 1], [], []>} : vector<16x32xf32>, vector<32x1xf32>, vector<16x1xf32> -> vector<16x1xf32>
    %832 = arith.mulf %826, %826 : vector<16x32xf32>
    %cst_606 = arith.constant dense<0.000000e+00> : vector<16x1xf32>
    %833 = tpu.matmul %832, %2, %cst_606 {dimension_numbers = #tpu.dot_dimension_numbers<[1], [0], [0], [1], [0, 0, 1, 1], [], []>} : vector<16x32xf32>, vector<32x1xf32>, vector<16x1xf32> -> vector<16x1xf32>
    %cst_607 = arith.constant 3.125000e-02 : f32
    %834 = vector.broadcast %cst_607 : f32 to vector<16x1xf32>
    %835 = arith.mulf %831, %834 : vector<16x1xf32>
    %cst_608 = arith.constant 3.125000e-02 : f32
    %836 = vector.broadcast %cst_608 : f32 to vector<16x1xf32>
    %837 = arith.mulf %833, %836 : vector<16x1xf32>
    %838 = arith.mulf %835, %835 : vector<16x1xf32>
    %839 = arith.subf %837, %838 : vector<16x1xf32>
    %cst_609 = arith.constant 0.000000e+00 : f32
    %840 = vector.broadcast %cst_609 : f32 to vector<16x1xf32>
    %841 = arith.maximumf %839, %840 : vector<16x1xf32>
    %842 = vector.broadcast %835 : vector<16x1xf32> to vector<16x32xf32>
    %843 = arith.subf %826, %842 : vector<16x32xf32>
    %cst_610 = arith.constant 9.99999974E-6 : f32
    %844 = vector.broadcast %cst_610 : f32 to vector<16x1xf32>
    %845 = arith.addf %841, %844 : vector<16x1xf32>
    %846 = math.rsqrt %845 : vector<16x1xf32>
    %847 = vector.broadcast %846 : vector<16x1xf32> to vector<16x32xf32>
    %848 = arith.mulf %843, %847 : vector<16x32xf32>
    %849 = vector.broadcast %828 : vector<1x32xf32> to vector<16x32xf32>
    %850 = arith.mulf %848, %849 : vector<16x32xf32>
    %851 = vector.broadcast %830 : vector<1x32xf32> to vector<16x32xf32>
    %852 = arith.addf %850, %851 : vector<16x32xf32>
    %853 = arith.truncf %852 : vector<16x32xf32> to vector<16x32xbf16>
    %c64 = arith.constant 64 : index
    %c0_611 = arith.constant 0 : index
    %854 = vector.load %arg18[%c64, %c0_611] : memref<96x128xbf16, #tpu.memory_space<vmem>>, vector<32x128xbf16>
    %cst_612 = arith.constant dense<0.000000e+00> : vector<16x128xf32>
    %855 = tpu.matmul %853, %854, %cst_612 {dimension_numbers = #tpu.dot_dimension_numbers<[1], [0], [0], [1], [0, 0, 1, 1], [], []>} : vector<16x32xbf16>, vector<32x128xbf16>, vector<16x128xf32> -> vector<16x128xf32>
    %856 = arith.addf %572, %855 : vector<16x128xf32>
    %c0_613 = arith.constant 0 : index
    %c0_614 = arith.constant 0 : index
    %857 = vector.load %arg19[%c0_613, %c0_614] : memref<1x128xf32, #tpu.memory_space<vmem>>, vector<1x128xf32>
    %858 = vector.broadcast %857 : vector<1x128xf32> to vector<16x128xf32>
    %859 = arith.addf %856, %858 : vector<16x128xf32>
    %cst_615 = arith.constant 0.000000e+00 : f32
    %860 = vector.broadcast %cst_615 : f32 to vector<16x128xf32>
    %861 = arith.cmpf ogt, %859, %860 : vector<16x128xf32>
    %cst_616 = arith.constant 0.000000e+00 : f32
    %862 = vector.broadcast %cst_616 : f32 to vector<16x128xf32>
    %863 = arith.minimumf %859, %862 : vector<16x128xf32>
    %864 = math.exp %863 : vector<16x128xf32>
    %cst_617 = arith.constant 1.000000e+00 : f32
    %865 = vector.broadcast %cst_617 : f32 to vector<16x128xf32>
    %866 = arith.subf %864, %865 : vector<16x128xf32>
    %867 = arith.select %861, %859, %866 : vector<16x128xi1>, vector<16x128xf32>
    %868 = arith.truncf %867 : vector<16x128xf32> to vector<16x128xbf16>
    %c0_618 = arith.constant 0 : index
    %c0_619 = arith.constant 0 : index
    %869 = vector.load %arg20[%c0_618, %c0_619] : memref<128x32xbf16, #tpu.memory_space<vmem>>, vector<128x32xbf16>
    %cst_620 = arith.constant dense<0.000000e+00> : vector<16x32xf32>
    %870 = tpu.matmul %868, %869, %cst_620 {dimension_numbers = #tpu.dot_dimension_numbers<[1], [0], [0], [1], [0, 0, 1, 1], [], []>} : vector<16x128xbf16>, vector<128x32xbf16>, vector<16x32xf32> -> vector<16x32xf32>
    %c0_621 = arith.constant 0 : index
    %c0_622 = arith.constant 0 : index
    %871 = vector.load %arg21[%c0_621, %c0_622] : memref<1x32xf32, #tpu.memory_space<vmem>>, vector<1x32xf32>
    %872 = vector.broadcast %871 : vector<1x32xf32> to vector<16x32xf32>
    %873 = arith.addf %870, %872 : vector<16x32xf32>
    %c0_623 = arith.constant 0 : index
    %c0_624 = arith.constant 0 : index
    %874 = vector.load %arg22[%c0_623, %c0_624] : memref<1x32xf32, #tpu.memory_space<vmem>>, vector<1x32xf32>
    %c0_625 = arith.constant 0 : index
    %c0_626 = arith.constant 0 : index
    %875 = vector.load %arg23[%c0_625, %c0_626] : memref<1x32xf32, #tpu.memory_space<vmem>>, vector<1x32xf32>
    %cst_627 = arith.constant dense<0.000000e+00> : vector<16x1xf32>
    %876 = tpu.matmul %873, %2, %cst_627 {dimension_numbers = #tpu.dot_dimension_numbers<[1], [0], [0], [1], [0, 0, 1, 1], [], []>} : vector<16x32xf32>, vector<32x1xf32>, vector<16x1xf32> -> vector<16x1xf32>
    %877 = arith.mulf %873, %873 : vector<16x32xf32>
    %cst_628 = arith.constant dense<0.000000e+00> : vector<16x1xf32>
    %878 = tpu.matmul %877, %2, %cst_628 {dimension_numbers = #tpu.dot_dimension_numbers<[1], [0], [0], [1], [0, 0, 1, 1], [], []>} : vector<16x32xf32>, vector<32x1xf32>, vector<16x1xf32> -> vector<16x1xf32>
    %cst_629 = arith.constant 3.125000e-02 : f32
    %879 = vector.broadcast %cst_629 : f32 to vector<16x1xf32>
    %880 = arith.mulf %876, %879 : vector<16x1xf32>
    %cst_630 = arith.constant 3.125000e-02 : f32
    %881 = vector.broadcast %cst_630 : f32 to vector<16x1xf32>
    %882 = arith.mulf %878, %881 : vector<16x1xf32>
    %883 = arith.mulf %880, %880 : vector<16x1xf32>
    %884 = arith.subf %882, %883 : vector<16x1xf32>
    %cst_631 = arith.constant 0.000000e+00 : f32
    %885 = vector.broadcast %cst_631 : f32 to vector<16x1xf32>
    %886 = arith.maximumf %884, %885 : vector<16x1xf32>
    %887 = vector.broadcast %880 : vector<16x1xf32> to vector<16x32xf32>
    %888 = arith.subf %873, %887 : vector<16x32xf32>
    %cst_632 = arith.constant 9.99999974E-6 : f32
    %889 = vector.broadcast %cst_632 : f32 to vector<16x1xf32>
    %890 = arith.addf %886, %889 : vector<16x1xf32>
    %891 = math.rsqrt %890 : vector<16x1xf32>
    %892 = vector.broadcast %891 : vector<16x1xf32> to vector<16x32xf32>
    %893 = arith.mulf %888, %892 : vector<16x32xf32>
    %894 = vector.broadcast %874 : vector<1x32xf32> to vector<16x32xf32>
    %895 = arith.mulf %893, %894 : vector<16x32xf32>
    %896 = vector.broadcast %875 : vector<1x32xf32> to vector<16x32xf32>
    %897 = arith.addf %895, %896 : vector<16x32xf32>
    %c0_633 = arith.constant 0 : index
    %c0_634 = arith.constant 0 : index
    %898 = vector.load %arg24[%c0_633, %c0_634] : memref<16x32xf32, #tpu.memory_space<vmem>>, vector<16x32xf32>
    tpu.vector_store %arg24[%c0_633, %c0_634], %897 {strides = array<i32>} : memref<16x32xf32, #tpu.memory_space<vmem>>, vector<16x32xf32>,
    return
  }
  func.func @transform_0(%arg0: i32) -> (i32, i32) {
    %c0_i32 = arith.constant 0 : i32
    %c0_i32_0 = arith.constant 0 : i32
    %c0_i32_1 = arith.constant 0 : i32
    return %c0_i32, %c0_i32_0 : i32, i32
  }
  func.func @transform_1(%arg0: i32) -> (i32, i32, i32) {
    %c0_i32 = arith.constant 0 : i32
    %c0_i32_0 = arith.constant 0 : i32
    %c0_i32_1 = arith.constant 0 : i32
    %c0_i32_2 = arith.constant 0 : i32
    return %c0_i32, %c0_i32_0, %c0_i32_1 : i32, i32, i32
  }
  func.func @transform_2(%arg0: i32) -> (i32, i32) {
    %c0_i32 = arith.constant 0 : i32
    %c0_i32_0 = arith.constant 0 : i32
    %c0_i32_1 = arith.constant 0 : i32
    return %c0_i32, %c0_i32_0 : i32, i32
  }
  func.func @transform_3(%arg0: i32) -> (i32, i32, i32, i32) {
    %c0_i32 = arith.constant 0 : i32
    %c0_i32_0 = arith.constant 0 : i32
    %c0_i32_1 = arith.constant 0 : i32
    %c0_i32_2 = arith.constant 0 : i32
    %c0_i32_3 = arith.constant 0 : i32
    return %c0_i32, %c0_i32_0, %c0_i32_1, %c0_i32_2 : i32, i32, i32, i32
  }
  func.func @transform_4(%arg0: i32) -> (i32, i32, i32, i32) {
    %c0_i32 = arith.constant 0 : i32
    %c0_i32_0 = arith.constant 0 : i32
    %c0_i32_1 = arith.constant 0 : i32
    %c0_i32_2 = arith.constant 0 : i32
    %c0_i32_3 = arith.constant 0 : i32
    return %c0_i32, %c0_i32_0, %c0_i32_1, %c0_i32_2 : i32, i32, i32, i32
  }
  func.func @transform_5(%arg0: i32) -> (i32, i32, i32, i32) {
    %c0_i32 = arith.constant 0 : i32
    %c0_i32_0 = arith.constant 0 : i32
    %c0_i32_1 = arith.constant 0 : i32
    %c0_i32_2 = arith.constant 0 : i32
    %c0_i32_3 = arith.constant 0 : i32
    return %c0_i32, %c0_i32_0, %c0_i32_1, %c0_i32_2 : i32, i32, i32, i32
  }
  func.func @transform_6(%arg0: i32) -> (i32, i32, i32, i32) {
    %c0_i32 = arith.constant 0 : i32
    %c0_i32_0 = arith.constant 0 : i32
    %c0_i32_1 = arith.constant 0 : i32
    %c0_i32_2 = arith.constant 0 : i32
    %c0_i32_3 = arith.constant 0 : i32
    return %c0_i32, %c0_i32_0, %c0_i32_1, %c0_i32_2 : i32, i32, i32, i32
  }
  func.func @transform_7(%arg0: i32) -> (i32, i32, i32, i32) {
    %c0_i32 = arith.constant 0 : i32
    %c0_i32_0 = arith.constant 0 : i32
    %c0_i32_1 = arith.constant 0 : i32
    %c0_i32_2 = arith.constant 0 : i32
    %c0_i32_3 = arith.constant 0 : i32
    return %c0_i32, %c0_i32_0, %c0_i32_1, %c0_i32_2 : i32, i32, i32, i32
  }
  func.func @transform_8(%arg0: i32) -> (i32, i32, i32, i32) {
    %c0_i32 = arith.constant 0 : i32
    %c0_i32_0 = arith.constant 0 : i32
    %c0_i32_1 = arith.constant 0 : i32
    %c0_i32_2 = arith.constant 0 : i32
    %c0_i32_3 = arith.constant 0 : i32
    return %c0_i32, %c0_i32_0, %c0_i32_1, %c0_i32_2 : i32, i32, i32, i32
  }
  func.func @transform_9(%arg0: i32) -> (i32, i32, i32, i32) {
    %c0_i32 = arith.constant 0 : i32
    %c0_i32_0 = arith.constant 0 : i32
    %c0_i32_1 = arith.constant 0 : i32
    %c0_i32_2 = arith.constant 0 : i32
    %c0_i32_3 = arith.constant 0 : i32
    return %c0_i32, %c0_i32_0, %c0_i32_1, %c0_i32_2 : i32, i32, i32, i32
  }
  func.func @transform_10(%arg0: i32) -> (i32, i32, i32, i32) {
    %c0_i32 = arith.constant 0 : i32
    %c0_i32_0 = arith.constant 0 : i32
    %c0_i32_1 = arith.constant 0 : i32
    %c0_i32_2 = arith.constant 0 : i32
    %c0_i32_3 = arith.constant 0 : i32
    return %c0_i32, %c0_i32_0, %c0_i32_1, %c0_i32_2 : i32, i32, i32, i32
  }
  func.func @transform_11(%arg0: i32) -> (i32, i32, i32, i32) {
    %c0_i32 = arith.constant 0 : i32
    %c0_i32_0 = arith.constant 0 : i32
    %c0_i32_1 = arith.constant 0 : i32
    %c0_i32_2 = arith.constant 0 : i32
    %c0_i32_3 = arith.constant 0 : i32
    return %c0_i32, %c0_i32_0, %c0_i32_1, %c0_i32_2 : i32, i32, i32, i32
  }
  func.func @transform_12(%arg0: i32) -> (i32, i32, i32, i32) {
    %c0_i32 = arith.constant 0 : i32
    %c0_i32_0 = arith.constant 0 : i32
    %c0_i32_1 = arith.constant 0 : i32
    %c0_i32_2 = arith.constant 0 : i32
    %c0_i32_3 = arith.constant 0 : i32
    return %c0_i32, %c0_i32_0, %c0_i32_1, %c0_i32_2 : i32, i32, i32, i32
  }
  func.func @transform_13(%arg0: i32) -> (i32, i32, i32, i32) {
    %c0_i32 = arith.constant 0 : i32
    %c0_i32_0 = arith.constant 0 : i32
    %c0_i32_1 = arith.constant 0 : i32
    %c0_i32_2 = arith.constant 0 : i32
    %c0_i32_3 = arith.constant 0 : i32
    return %c0_i32, %c0_i32_0, %c0_i32_1, %c0_i32_2 : i32, i32, i32, i32
  }
  func.func @transform_14(%arg0: i32) -> (i32, i32, i32, i32) {
    %c0_i32 = arith.constant 0 : i32
    %c0_i32_0 = arith.constant 0 : i32
    %c0_i32_1 = arith.constant 0 : i32
    %c0_i32_2 = arith.constant 0 : i32
    %c0_i32_3 = arith.constant 0 : i32
    return %c0_i32, %c0_i32_0, %c0_i32_1, %c0_i32_2 : i32, i32, i32, i32
  }
  func.func @transform_15(%arg0: i32) -> (i32, i32, i32) {
    %c0_i32 = arith.constant 0 : i32
    %c0_i32_0 = arith.constant 0 : i32
    %c0_i32_1 = arith.constant 0 : i32
    %c0_i32_2 = arith.constant 0 : i32
    return %c0_i32, %c0_i32_0, %c0_i32_1 : i32, i32, i32
  }
  func.func @transform_16(%arg0: i32) -> (i32, i32, i32) {
    %c0_i32 = arith.constant 0 : i32
    %c0_i32_0 = arith.constant 0 : i32
    %c0_i32_1 = arith.constant 0 : i32
    %c0_i32_2 = arith.constant 0 : i32
    return %c0_i32, %c0_i32_0, %c0_i32_1 : i32, i32, i32
  }
  func.func @transform_17(%arg0: i32) -> (i32, i32) {
    %c0_i32 = arith.constant 0 : i32
    %c0_i32_0 = arith.constant 0 : i32
    %c0_i32_1 = arith.constant 0 : i32
    return %c0_i32, %c0_i32_0 : i32, i32
  }
  func.func @transform_18(%arg0: i32) -> (i32, i32) {
    %c0_i32 = arith.constant 0 : i32
    %c0_i32_0 = arith.constant 0 : i32
    %c0_i32_1 = arith.constant 0 : i32
    return %c0_i32, %c0_i32_0 : i32, i32
  }
  func.func @transform_19(%arg0: i32) -> (i32, i32) {
    %c0_i32 = arith.constant 0 : i32
    %c0_i32_0 = arith.constant 0 : i32
    %c0_i32_1 = arith.constant 0 : i32
    return %c0_i32, %c0_i32_0 : i32, i32
  }
  func.func @transform_20(%arg0: i32) -> (i32, i32) {
    %c0_i32 = arith.constant 0 : i32
    %c0_i32_0 = arith.constant 0 : i32
    %c0_i32_1 = arith.constant 0 : i32
    return %c0_i32, %c0_i32_0 : i32, i32
  }
  func.func @transform_21(%arg0: i32) -> (i32, i32) {
    %c0_i32 = arith.constant 0 : i32
    %c0_i32_0 = arith.constant 0 : i32
    %c0_i32_1 = arith.constant 0 : i32
    return %c0_i32, %c0_i32_0 : i32, i32
  }
  func.func @transform_22(%arg0: i32) -> (i32, i32) {
    %c0_i32 = arith.constant 0 : i32
    %c0_i32_0 = arith.constant 0 : i32
    %c0_i32_1 = arith.constant 0 : i32
    return %c0_i32, %c0_i32_0 : i32, i32
  }
  func.func @transform_23(%arg0: i32) -> (i32, i32) {
    %c0_i32 = arith.constant 0 : i32
    %c0_i32_0 = arith.constant 0 : i32
    %c0_i32_1 = arith.constant 0 : i32
    return %c0_i32, %c0_i32_0 : i32, i32
  }
}

</mosaic_0001>

<llo_original>
// kernel: tpu_custom_call.1
$region0: #{tpu_custom_call.1}
  #allocation0 [shape = 'u32[]', space=smem, size = 0x4, offset = 0x4, fixed_abs, tag = 'smem constant byte address 0x4 - core index']
  #allocation1 [shape = 'u32[144,128]{1,0:T(1,128)}', space=vmem, size = 0x12000, scoped, tag = 'internal scratch']
  %s0 = inlined_call_operand.hbm [shape: f32[16,32], index: 0, kind: input, shape index: {}]
  %s1 = inlined_call_operand.hbm [shape: f32[3,16,32], index: 1, kind: input, shape index: {}]
  %s2 = inlined_call_operand.hbm [shape: f32[16,16], index: 2, kind: input, shape index: {}]
  %s3 = inlined_call_operand.hbm [shape: bf16[3,3,32,32], index: 3, kind: input, shape index: {}]
  %s4 = inlined_call_operand.hbm [shape: f32[3,3,1,32], index: 4, kind: input, shape index: {}]
  %s5 = inlined_call_operand.hbm [shape: bf16[3,3,32,32], index: 5, kind: input, shape index: {}]
  %s6 = inlined_call_operand.hbm [shape: f32[3,3,1,32], index: 6, kind: input, shape index: {}]
  %s7 = inlined_call_operand.hbm [shape: bf16[3,3,32,32], index: 7, kind: input, shape index: {}]
  %s8 = inlined_call_operand.hbm [shape: f32[3,3,1,32], index: 8, kind: input, shape index: {}]
  %s9 = inlined_call_operand.hbm [shape: bf16[3,3,32,32], index: 9, kind: input, shape index: {}]
  %s10 = inlined_call_operand.hbm [shape: f32[3,3,1,32], index: 10, kind: input, shape index: {}]
  %s11 = inlined_call_operand.hbm [shape: f32[3,3,1,32], index: 11, kind: input, shape index: {}]
  %s12 = inlined_call_operand.hbm [shape: f32[3,3,1,32], index: 12, kind: input, shape index: {}]
  %s13 = inlined_call_operand.vmem [shape: bf16[3,2,32,32], index: 13, kind: input, shape index: {}]
  %s14 = inlined_call_operand.hbm [shape: f32[3,2,1,32], index: 14, kind: input, shape index: {}]
  %s15 = inlined_call_operand.hbm [shape: f32[3,1,32], index: 15, kind: input, shape index: {}]
  %s16 = inlined_call_operand.hbm [shape: f32[3,1,32], index: 16, kind: input, shape index: {}]
  %s17 = inlined_call_operand.vmem [shape: bf16[96,128], index: 17, kind: input, shape index: {}]
  %s18 = inlined_call_operand.vmem [shape: f32[1,128], index: 18, kind: input, shape index: {}]
  %s19 = inlined_call_operand.vmem [shape: bf16[128,32], index: 19, kind: input, shape index: {}]
  %s20 = inlined_call_operand.vmem [shape: f32[1,32], index: 20, kind: input, shape index: {}]
  %s21 = inlined_call_operand.vmem [shape: f32[1,32], index: 21, kind: input, shape index: {}]
  %s22 = inlined_call_operand.vmem [shape: f32[1,32], index: 22, kind: input, shape index: {}]
  %s23 = inlined_call_operand.hbm [shape: f32[16,32], index: 23, kind: output, shape index: {}]
  %s24 = sld [smem:[#allocation0]]
  $region166: #{tpu_custom_call.1} parent=0
    _
  %s26 = ssub.s32 1, %s24
  %s27 = scalar_select 0, %s26, %s24
  $region1: #{tpu_custom_call.1} parent=0
    #allocation2 [shape = 'u8[8192]{0}', space=vmem, size = 0x2000, scoped, tag = 'input window, operand 0, single buffered']
    #allocation3 [shape = 's32[1]{0}', space=sflag, size = 0x4, scoped, tag = 'scoped memory for tpu_custom_call.1']
    #allocation4 [shape = 's32[1]{0}', space=sflag, size = 0x4, scoped, tag = 'scoped memory for tpu_custom_call.1']
    #allocation5 [shape = 'u8[24576]{0}', space=vmem, size = 0x6000, scoped, tag = 'input window, operand 1, single buffered']
    #allocation6 [shape = 's32[1]{0}', space=sflag, size = 0x4, scoped, tag = 'scoped memory for tpu_custom_call.1']
    #allocation7 [shape = 'u8[8192]{0}', space=vmem, size = 0x2000, scoped, tag = 'input window, operand 2, single buffered']
    #allocation8 [shape = 'u8[73728]{0}', space=vmem, size = 0x12000, scoped, tag = 'input window, operand 3, single buffered']
    #allocation9 [shape = 's32[1]{0}', space=sflag, size = 0x4, scoped, tag = 'scoped memory for tpu_custom_call.1']
    #allocation10 [shape = 'u8[4608]{0}', space=vmem, size = 0x1400, scoped, tag = 'input window, operand 4, single buffered']
    #allocation11 [shape = 'u8[73728]{0}', space=vmem, size = 0x12000, scoped, tag = 'input window, operand 5, single buffered']
    #allocation12 [shape = 's32[1]{0}', space=sflag, size = 0x4, scoped, tag = 'scoped memory for tpu_custom_call.1']
    #allocation13 [shape = 'u8[4608]{0}', space=vmem, size = 0x1400, scoped, tag = 'input window, operand 6, single buffered']
    #allocation14 [shape = 'u8[73728]{0}', space=vmem, size = 0x12000, scoped, tag = 'input window, operand 7, single buffered']
    #allocation15 [shape = 's32[1]{0}', space=sflag, size = 0x4, scoped, tag = 'scoped memory for tpu_custom_call.1']
    #allocation16 [shape = 'u8[4608]{0}', space=vmem, size = 0x1400, scoped, tag = 'input window, operand 8, single buffered']
    #allocation17 [shape = 'u8[73728]{0}', space=vmem, size = 0x12000, scoped, tag = 'input window, operand 9, single buffered']
    #allocation18 [shape = 's32[1]{0}', space=sflag, size = 0x4, scoped, tag = 'scoped memory for tpu_custom_call.1']
    #allocation19 [shape = 'u8[4608]{0}', space=vmem, size = 0x1400, scoped, tag = 'input window, operand 10, single buffered']
    #allocation20 [shape = 'u8[4608]{0}', space=vmem, size = 0x1400, scoped, tag = 'input window, operand 11, single buffered']
    #allocation21 [shape = 's32[1]{0}', space=sflag, size = 0x4, scoped, tag = 'scoped memory for tpu_custom_call.1']
    #allocation22 [shape = 'u8[4608]{0}', space=vmem, size = 0x1400, scoped, tag = 'input window, operand 12, single buffered']
    #allocation23 [shape = 'u8[3072]{0}', space=vmem, size = 0xc00, scoped, tag = 'input window, operand 14, single buffered']
    #allocation24 [shape = 's32[1]{0}', space=sflag, size = 0x4, scoped, tag = 'scoped memory for tpu_custom_call.1']
    #allocation25 [shape = 'u8[1536]{0}', space=vmem, size = 0x800, scoped, tag = 'input window, operand 15, single buffered']
    #allocation26 [shape = 'u8[1536]{0}', space=vmem, size = 0x800, scoped, tag = 'input window, operand 16, single buffered']
    #allocation27 [shape = 's32[1]{0}', space=sflag, size = 0x4, scoped, tag = 'scoped memory for tpu_custom_call.1']
    #allocation28 [shape = 'u8[8192]{0}', space=vmem, size = 0x2000, scoped, tag = 'output window, operand 0, single buffered']
    %28 = vsyncpa [#allocation3], 0
    %29 = vsyncpa [#allocation6], 0
    %30 = vsyncpa [#allocation9], 0
    %31 = vsyncpa [#allocation12], 0
    %32 = vsyncpa [#allocation15], 0
    %33 = vsyncpa [#allocation18], 0
    %34 = vsyncpa [#allocation21], 0
    %35 = vsyncpa [#allocation24], 0
    %36 = vsyncpa [#allocation27], 0
    %37 = vsyncpa [#allocation4], 0
    // Predicated region
    $region2: #{tpu_custom_call.1} parent=1 // pred_check
      _
    $region3: #{tpu_custom_call.1} parent=1 // pred_check_branch
      %39 = sbr.rel (0) target = $region5
    $region4: #{tpu_custom_call.1} parent=1 // pred_region
      %s41 = ssub.s32 256, 256
      %42 = vsyncadd [#allocation3], %s41
      %s43 = sshll.u32 [#allocation2], 4
      %s44 = int_to_ptr.vmem [resolvable:$true] %s43
      %49 = dma.hbm_to_vmem [thread:$0]  %s0, 256, %s44, [#allocation3], 128, 128, 8
    $region5: #{tpu_custom_call.1} parent=1 // pred_fallthru
      _
    // Predicated region
    $region6: #{tpu_custom_call.1} parent=1 // pred_check
      _
    $region7: #{tpu_custom_call.1} parent=1 // pred_check_branch
      %51 = sbr.rel (0) target = $region9
    $region8: #{tpu_custom_call.1} parent=1 // pred_region
      %s53 = ssub.s32 768, 768
      %54 = vsyncadd [#allocation6], %s53
      %s55 = sshll.u32 [#allocation5], 4
      %s56 = int_to_ptr.vmem [resolvable:$true] %s55
      %61 = dma.hbm_to_vmem [thread:$0]  %s1, 768, %s56, [#allocation6], 128, 128, 8
    $region9: #{tpu_custom_call.1} parent=1 // pred_fallthru
      _
    // Predicated region
    $region10: #{tpu_custom_call.1} parent=1 // pred_check
      _
    $region11: #{tpu_custom_call.1} parent=1 // pred_check_branch
      %63 = sbr.rel (0) target = $region13
    $region12: #{tpu_custom_call.1} parent=1 // pred_region
      %s65 = ssub.s32 256, 256
      %66 = vsyncadd [#allocation6], %s65
      %s67 = sshll.u32 [#allocation7], 4
      %s68 = int_to_ptr.vmem [resolvable:$true] %s67
      %73 = dma.hbm_to_vmem [thread:$0]  %s2, 256, %s68, [#allocation6], 128, 128, 8
    $region13: #{tpu_custom_call.1} parent=1 // pred_fallthru
      _
    // Predicated region
    $region14: #{tpu_custom_call.1} parent=1 // pred_check
      _
    $region15: #{tpu_custom_call.1} parent=1 // pred_check_branch
      %75 = sbr.rel (0) target = $region17
    $region16: #{tpu_custom_call.1} parent=1 // pred_region
      %s77 = ssub.s32 2304, 2304
      %78 = vsyncadd [#allocation9], %s77
      %s79 = sshll.u32 [#allocation8], 4
      %s80 = int_to_ptr.vmem [resolvable:$true] %s79
      %85 = dma.hbm_to_vmem [thread:$0]  %s3, 2304, %s80, [#allocation9], 64, 64, 4
    $region17: #{tpu_custom_call.1} parent=1 // pred_fallthru
      _
    // Predicated region
    $region18: #{tpu_custom_call.1} parent=1 // pred_check
      _
    $region19: #{tpu_custom_call.1} parent=1 // pred_check_branch
      %87 = sbr.rel (0) target = $region21
    $region20: #{tpu_custom_call.1} parent=1 // pred_region
      %s89 = ssub.s32 144, 144
      %90 = vsyncadd [#allocation9], %s89
      %s91 = sshll.u32 [#allocation10], 4
      %s92 = int_to_ptr.vmem [resolvable:$true] %s91
      %97 = dma.hbm_to_vmem [thread:$0]  %s4, 144, %s92, [#allocation9], 16, 16, 1
    $region21: #{tpu_custom_call.1} parent=1 // pred_fallthru
      _
    // Predicated region
    $region22: #{tpu_custom_call.1} parent=1 // pred_check
      _
    $region23: #{tpu_custom_call.1} parent=1 // pred_check_branch
      %99 = sbr.rel (0) target = $region25
    $region24: #{tpu_custom_call.1} parent=1 // pred_region
      %s101 = ssub.s32 2304, 2304
      %102 = vsyncadd [#allocation12], %s101
      %s103 = sshll.u32 [#allocation11], 4
      %s104 = int_to_ptr.vmem [resolvable:$true] %s103
      %109 = dma.hbm_to_vmem [thread:$0]  %s5, 2304, %s104, [#allocation12], 64, 64, 4
    $region25: #{tpu_custom_call.1} parent=1 // pred_fallthru
      _
    // Predicated region
    $region26: #{tpu_custom_call.1} parent=1 // pred_check
      _
    $region27: #{tpu_custom_call.1} parent=1 // pred_check_branch
      %111 = sbr.rel (0) target = $region29
    $region28: #{tpu_custom_call.1} parent=1 // pred_region
      %s113 = ssub.s32 144, 144
      %114 = vsyncadd [#allocation12], %s113
      %s115 = sshll.u32 [#allocation13], 4
      %s116 = int_to_ptr.vmem [resolvable:$true] %s115
      %121 = dma.hbm_to_vmem [thread:$0]  %s6, 144, %s116, [#allocation12], 16, 16, 1
    $region29: #{tpu_custom_call.1} parent=1 // pred_fallthru
      _
    // Predicated region
    $region30: #{tpu_custom_call.1} parent=1 // pred_check
      _
    $region31: #{tpu_custom_call.1} parent=1 // pred_check_branch
      %123 = sbr.rel (0) target = $region33
    $region32: #{tpu_custom_call.1} parent=1 // pred_region
      %s125 = ssub.s32 2304, 2304
      %126 = vsyncadd [#allocation15], %s125
      %s127 = sshll.u32 [#allocation14], 4
      %s128 = int_to_ptr.vmem [resolvable:$true] %s127
      %133 = dma.hbm_to_vmem [thread:$0]  %s7, 2304, %s128, [#allocation15], 64, 64, 4
    $region33: #{tpu_custom_call.1} parent=1 // pred_fallthru
      _
    // Predicated region
    $region34: #{tpu_custom_call.1} parent=1 // pred_check
      _
    $region35: #{tpu_custom_call.1} parent=1 // pred_check_branch
      %135 = sbr.rel (0) target = $region37
    $region36: #{tpu_custom_call.1} parent=1 // pred_region
      %s137 = ssub.s32 144, 144
      %138 = vsyncadd [#allocation15], %s137
      %s139 = sshll.u32 [#allocation16], 4
      %s140 = int_to_ptr.vmem [resolvable:$true] %s139
      %145 = dma.hbm_to_vmem [thread:$0]  %s8, 144, %s140, [#allocation15], 16, 16, 1
    $region37: #{tpu_custom_call.1} parent=1 // pred_fallthru
      _
    // Predicated region
    $region38: #{tpu_custom_call.1} parent=1 // pred_check
      _
    $region39: #{tpu_custom_call.1} parent=1 // pred_check_branch
      %147 = sbr.rel (0) target = $region41
    $region40: #{tpu_custom_call.1} parent=1 // pred_region
      %s149 = ssub.s32 2304, 2304
      %150 = vsyncadd [#allocation18], %s149
      %s151 = sshll.u32 [#allocation17], 4
      %s152 = int_to_ptr.vmem [resolvable:$true] %s151
      %157 = dma.hbm_to_vmem [thread:$0]  %s9, 2304, %s152, [#allocation18], 64, 64, 4
    $region41: #{tpu_custom_call.1} parent=1 // pred_fallthru
      _
    // Predicated region
    $region42: #{tpu_custom_call.1} parent=1 // pred_check
      _
    $region43: #{tpu_custom_call.1} parent=1 // pred_check_branch
      %159 = sbr.rel (0) target = $region45
    $region44: #{tpu_custom_call.1} parent=1 // pred_region
      %s161 = ssub.s32 144, 144
      %162 = vsyncadd [#allocation18], %s161
      %s163 = sshll.u32 [#allocation19], 4
      %s164 = int_to_ptr.vmem [resolvable:$true] %s163
      %169 = dma.hbm_to_vmem [thread:$0]  %s10, 144, %s164, [#allocation18], 16, 16, 1
    $region45: #{tpu_custom_call.1} parent=1 // pred_fallthru
      _
    // Predicated region
    $region46: #{tpu_custom_call.1} parent=1 // pred_check
      _
    $region47: #{tpu_custom_call.1} parent=1 // pred_check_branch
      %171 = sbr.rel (0) target = $region49
    $region48: #{tpu_custom_call.1} parent=1 // pred_region
      %s173 = ssub.s32 144, 144
      %174 = vsyncadd [#allocation21], %s173
      %s175 = sshll.u32 [#allocation20], 4
      %s176 = int_to_ptr.vmem [resolvable:$true] %s175
      %181 = dma.hbm_to_vmem [thread:$0]  %s11, 144, %s176, [#allocation21], 16, 16, 1
    $region49: #{tpu_custom_call.1} parent=1 // pred_fallthru
      _
    // Predicated region
    $region50: #{tpu_custom_call.1} parent=1 // pred_check
      _
    $region51: #{tpu_custom_call.1} parent=1 // pred_check_branch
      %183 = sbr.rel (0) target = $region53
    $region52: #{tpu_custom_call.1} parent=1 // pred_region
      %s185 = ssub.s32 144, 144
      %186 = vsyncadd [#allocation21], %s185
      %s187 = sshll.u32 [#allocation22], 4
      %s188 = int_to_ptr.vmem [resolvable:$true] %s187
      %193 = dma.hbm_to_vmem [thread:$0]  %s12, 144, %s188, [#allocation21], 16, 16, 1
    $region53: #{tpu_custom_call.1} parent=1 // pred_fallthru
      _
    // Predicated region
    $region54: #{tpu_custom_call.1} parent=1 // pred_check
      _
    $region55: #{tpu_custom_call.1} parent=1 // pred_check_branch
      %195 = sbr.rel (0) target = $region57
    $region56: #{tpu_custom_call.1} parent=1 // pred_region
      _
    $region57: #{tpu_custom_call.1} parent=1 // pred_fallthru
      _
    // Predicated region
    $region58: #{tpu_custom_call.1} parent=1 // pred_check
      _
    $region59: #{tpu_custom_call.1} parent=1 // pred_check_branch
      %197 = sbr.rel (0) target = $region61
    $region60: #{tpu_custom_call.1} parent=1 // pred_region
      %s199 = ssub.s32 96, 96
      %200 = vsyncadd [#allocation24], %s199
      %s201 = sshll.u32 [#allocation23], 4
      %s202 = int_to_ptr.vmem [resolvable:$true] %s201
      %207 = dma.hbm_to_vmem [thread:$0]  %s14, 96, %s202, [#allocation24], 16, 16, 1
    $region61: #{tpu_custom_call.1} parent=1 // pred_fallthru
      _
    // Predicated region
    $region62: #{tpu_custom_call.1} parent=1 // pred_check
      _
    $region63: #{tpu_custom_call.1} parent=1 // pred_check_branch
      %209 = sbr.rel (0) target = $region65
    $region64: #{tpu_custom_call.1} parent=1 // pred_region
      %s211 = ssub.s32 48, 48
      %212 = vsyncadd [#allocation24], %s211
      %s213 = sshll.u32 [#allocation25], 4
      %s214 = int_to_ptr.vmem [resolvable:$true] %s213
      %219 = dma.hbm_to_vmem [thread:$0]  %s15, 48, %s214, [#allocation24], 16, 16, 1
    $region65: #{tpu_custom_call.1} parent=1 // pred_fallthru
      _
    // Predicated region
    $region66: #{tpu_custom_call.1} parent=1 // pred_check
      _
    $region67: #{tpu_custom_call.1} parent=1 // pred_check_branch
      %221 = sbr.rel (0) target = $region69
    $region68: #{tpu_custom_call.1} parent=1 // pred_region
      %s223 = ssub.s32 48, 48
      %224 = vsyncadd [#allocation27], %s223
      %s225 = sshll.u32 [#allocation26], 4
      %s226 = int_to_ptr.vmem [resolvable:$true] %s225
      %231 = dma.hbm_to_vmem [thread:$0]  %s16, 48, %s226, [#allocation27], 16, 16, 1
    $region69: #{tpu_custom_call.1} parent=1 // pred_fallthru
      _
    // Predicated region
    $region70: #{tpu_custom_call.1} parent=1 // pred_check
      _
    $region71: #{tpu_custom_call.1} parent=1 // pred_check_branch
      %233 = sbr.rel (0) target = $region73
    $region72: #{tpu_custom_call.1} parent=1 // pred_region
      _
    $region73: #{tpu_custom_call.1} parent=1 // pred_fallthru
      _
    // Predicated region
    $region74: #{tpu_custom_call.1} parent=1 // pred_check
      _
    $region75: #{tpu_custom_call.1} parent=1 // pred_check_branch
      %235 = sbr.rel (0) target = $region77
    $region76: #{tpu_custom_call.1} parent=1 // pred_region
      _
    $region77: #{tpu_custom_call.1} parent=1 // pred_fallthru
      _
    // Predicated region
    $region78: #{tpu_custom_call.1} parent=1 // pred_check
      _
    $region79: #{tpu_custom_call.1} parent=1 // pred_check_branch
      %237 = sbr.rel (0) target = $region81
    $region80: #{tpu_custom_call.1} parent=1 // pred_region
      _
    $region81: #{tpu_custom_call.1} parent=1 // pred_fallthru
      _
    // Predicated region
    $region82: #{tpu_custom_call.1} parent=1 // pred_check
      _
    $region83: #{tpu_custom_call.1} parent=1 // pred_check_branch
      %239 = sbr.rel (0) target = $region85
    $region84: #{tpu_custom_call.1} parent=1 // pred_region
      _
    $region85: #{tpu_custom_call.1} parent=1 // pred_fallthru
      _
    // Predicated region
    $region86: #{tpu_custom_call.1} parent=1 // pred_check
      _
    $region87: #{tpu_custom_call.1} parent=1 // pred_check_branch
      %241 = sbr.rel (0) target = $region89
    $region88: #{tpu_custom_call.1} parent=1 // pred_region
      _
    $region89: #{tpu_custom_call.1} parent=1 // pred_fallthru
      _
    // Predicated region
    $region90: #{tpu_custom_call.1} parent=1 // pred_check
      _
    $region91: #{tpu_custom_call.1} parent=1 // pred_check_branch
      %243 = sbr.rel (0) target = $region93
    $region92: #{tpu_custom_call.1} parent=1 // pred_region
      _
    $region93: #{tpu_custom_call.1} parent=1 // pred_fallthru
      _
    // Predicated region
    $region94: #{tpu_custom_call.1} parent=1 // pred_check
      _
    $region95: #{tpu_custom_call.1} parent=1 // pred_check_branch
      %245 = sbr.rel (0) target = $region97
    $region96: #{tpu_custom_call.1} parent=1 // pred_region
      %246 = dma.done [#allocation3], 256
    $region97: #{tpu_custom_call.1} parent=1 // pred_fallthru
      _
    // Predicated region
    $region98: #{tpu_custom_call.1} parent=1 // pred_check
      _
    $region99: #{tpu_custom_call.1} parent=1 // pred_check_branch
      %248 = sbr.rel (0) target = $region101
    $region100: #{tpu_custom_call.1} parent=1 // pred_region
      %249 = dma.done [#allocation6], 768
    $region101: #{tpu_custom_call.1} parent=1 // pred_fallthru
      _
    // Predicated region
    $region102: #{tpu_custom_call.1} parent=1 // pred_check
      _
    $region103: #{tpu_custom_call.1} parent=1 // pred_check_branch
      %251 = sbr.rel (0) target = $region105
    $region104: #{tpu_custom_call.1} parent=1 // pred_region
      %252 = dma.done [#allocation6], 256
    $region105: #{tpu_custom_call.1} parent=1 // pred_fallthru
      _
    // Predicated region
    $region106: #{tpu_custom_call.1} parent=1 // pred_check
      _
    $region107: #{tpu_custom_call.1} parent=1 // pred_check_branch
      %254 = sbr.rel (0) target = $region109
    $region108: #{tpu_custom_call.1} parent=1 // pred_region
      %255 = dma.done [#allocation9], 2304
    $region109: #{tpu_custom_call.1} parent=1 // pred_fallthru
      _
    // Predicated region
    $region110: #{tpu_custom_call.1} parent=1 // pred_check
      _
    $region111: #{tpu_custom_call.1} parent=1 // pred_check_branch
      %257 = sbr.rel (0) target = $region113
    $region112: #{tpu_custom_call.1} parent=1 // pred_region
      %258 = dma.done [#allocation9], 144
    $region113: #{tpu_custom_call.1} parent=1 // pred_fallthru
      _
    // Predicated region
    $region114: #{tpu_custom_call.1} parent=1 // pred_check
      _
    $region115: #{tpu_custom_call.1} parent=1 // pred_check_branch
      %260 = sbr.rel (0) target = $region117
    $region116: #{tpu_custom_call.1} parent=1 // pred_region
      %261 = dma.done [#allocation12], 2304
    $region117: #{tpu_custom_call.1} parent=1 // pred_fallthru
      _
    // Predicated region
    $region118: #{tpu_custom_call.1} parent=1 // pred_check
      _
    $region119: #{tpu_custom_call.1} parent=1 // pred_check_branch
      %263 = sbr.rel (0) target = $region121
    $region120: #{tpu_custom_call.1} parent=1 // pred_region
      %264 = dma.done [#allocation12], 144
    $region121: #{tpu_custom_call.1} parent=1 // pred_fallthru
      _
    // Predicated region
    $region122: #{tpu_custom_call.1} parent=1 // pred_check
      _
    $region123: #{tpu_custom_call.1} parent=1 // pred_check_branch
      %266 = sbr.rel (0) target = $region125
    $region124: #{tpu_custom_call.1} parent=1 // pred_region
      %267 = dma.done [#allocation15], 2304
    $region125: #{tpu_custom_call.1} parent=1 // pred_fallthru
      _
    // Predicated region
    $region126: #{tpu_custom_call.1} parent=1 // pred_check
      _
    $region127: #{tpu_custom_call.1} parent=1 // pred_check_branch
      %269 = sbr.rel (0) target = $region129
    $region128: #{tpu_custom_call.1} parent=1 // pred_region
      %270 = dma.done [#allocation15], 144
    $region129: #{tpu_custom_call.1} parent=1 // pred_fallthru
      _
    // Predicated region
    $region130: #{tpu_custom_call.1} parent=1 // pred_check
      _
    $region131: #{tpu_custom_call.1} parent=1 // pred_check_branch
      %272 = sbr.rel (0) target = $region133
    $region132: #{tpu_custom_call.1} parent=1 // pred_region
      %273 = dma.done [#allocation18], 2304
    $region133: #{tpu_custom_call.1} parent=1 // pred_fallthru
      _
    // Predicated region
    $region134: #{tpu_custom_call.1} parent=1 // pred_check
      _
    $region135: #{tpu_custom_call.1} parent=1 // pred_check_branch
      %275 = sbr.rel (0) target = $region137
    $region136: #{tpu_custom_call.1} parent=1 // pred_region
      %276 = dma.done [#allocation18], 144
    $region137: #{tpu_custom_call.1} parent=1 // pred_fallthru
      _
    // Predicated region
    $region138: #{tpu_custom_call.1} parent=1 // pred_check
      _
    $region139: #{tpu_custom_call.1} parent=1 // pred_check_branch
      %278 = sbr.rel (0) target = $region141
    $region140: #{tpu_custom_call.1} parent=1 // pred_region
      %279 = dma.done [#allocation21], 144
    $region141: #{tpu_custom_call.1} parent=1 // pred_fallthru
      _
    // Predicated region
    $region142: #{tpu_custom_call.1} parent=1 // pred_check
      _
    $region143: #{tpu_custom_call.1} parent=1 // pred_check_branch
      %281 = sbr.rel (0) target = $region145
    $region144: #{tpu_custom_call.1} parent=1 // pred_region
      %282 = dma.done [#allocation21], 144
    $region145: #{tpu_custom_call.1} parent=1 // pred_fallthru
      _
    // Predicated region
    $region146: #{tpu_custom_call.1} parent=1 // pred_check
      _
    $region147: #{tpu_custom_call.1} parent=1 // pred_check_branch
      %284 = sbr.rel (0) target = $region149
    $region148: #{tpu_custom_call.1} parent=1 // pred_region
      %285 = dma.done [#allocation24], 96
    $region149: #{tpu_custom_call.1} parent=1 // pred_fallthru
      _
    // Predicated region
    $region150: #{tpu_custom_call.1} parent=1 // pred_check
      _
    $region151: #{tpu_custom_call.1} parent=1 // pred_check_branch
      %287 = sbr.rel (0) target = $region153
    $region152: #{tpu_custom_call.1} parent=1 // pred_region
      %288 = dma.done [#allocation24], 48
    $region153: #{tpu_custom_call.1} parent=1 // pred_fallthru
      _
    // Predicated region
    $region154: #{tpu_custom_call.1} parent=1 // pred_check
      _
    $region155: #{tpu_custom_call.1} parent=1 // pred_check_branch
      %290 = sbr.rel (0) target = $region157
    $region156: #{tpu_custom_call.1} parent=1 // pred_region
      %291 = dma.done [#allocation27], 48
    $region157: #{tpu_custom_call.1} parent=1 // pred_fallthru
      _
    %v293 = vld [vmem:[#allocation2] sm:$0xff]
    %v294 = vld [vmem:[#allocation2 + $0x8] sm:$0xff]
    %v295 = vld [vmem:[#allocation7] sm:$0xff]
    %v296 = vld [vmem:[#allocation7 + $0x8] sm:$0xff]
    %v297 = vld [vmem:[#allocation5] sm:$0xff]
    %v298 = vld [vmem:[#allocation5 + $0x8] sm:$0xff]
    %v299 = vpack.c.bf16 %v298, %v297
    %v300 = vpack.c.bf16 %v294, %v293
    %v301 = vld [vmem:[#allocation8] sm:$0xf]
    %v302 = vld [vmem:[#allocation8 + $0x4] sm:$0xf]
    %v303 = vld [vmem:[#allocation8 + $0x8] sm:$0xf]
    %v304 = vld [vmem:[#allocation8 + $0xc] sm:$0xf]
    %v305 = vld [vmem:[#allocation10] sm:$0x1]
    %v307 = vlaneseq
    %v308 = vshrl.u32 %v307, 7
    %v309 = vsub.s32 0, %v308
    %v310 = vrot.slane %v305, %v309
    %v316 = vunpack.c.l.b16 %v301
    %v317 = vunpack.c.l.b16 %v302
    %v318 = vunpack.c.l.b16 %v303
    %v319 = vunpack.c.l.b16 %v304
    %v320 = vpack.c.b16 %v317, %v316
    %v321 = vpack.c.b16 %v319, %v318
    %vm324 = vcmask 261120
    %v326 = vsel %vm324, %v300, 0
    %328 = vmatprep.subr.bf16.mxu0 0
    %329 = vmatpush1.bf16.msra.mxu0 %v320
    %330 = vmatprep.subr.bf16.mxu0 0
    %331 = vmatpush1.bf16.msra.mxu0 %v321
    %332 = vmatprep.subr.bf16.mxu0 0
    %333 = vmatpush1.bf16.msra.mxu0 0
    %334 = vmatprep.subr.bf16.mxu0 0
    %335 = vmatpush1.bf16.msra.mxu0 0
    %336 = vmatprep.subr.bf16.mxu0 0
    %337 = vmatpush1.bf16.msra.mxu0 0
    %338 = vmatprep.subr.bf16.mxu0 0
    %339 = vmatpush1.bf16.msra.mxu0 0
    %340 = vmatprep.subr.bf16.mxu0 0
    %341 = vmatpush1.bf16.msra.mxu0 0
    %342 = vmatprep.subr.bf16.mxu0 0
    %343 = vmatpush1.bf16.msra.mxu0 0
    %344 = vmatprep.subr.bf16.mxu0 0
    %345 = vmatpush1.bf16.msra.mxu0 0
    %346 = vmatprep.subr.bf16.mxu0 0
    %347 = vmatpush1.bf16.msra.mxu0 0
    %348 = vmatprep.subr.bf16.mxu0 0
    %349 = vmatpush1.bf16.msra.mxu0 0
    %350 = vmatprep.subr.bf16.mxu0 0
    %351 = vmatpush1.bf16.msra.mxu0 0
    %352 = vmatprep.subr.bf16.mxu0 0
    %353 = vmatpush1.bf16.msra.mxu0 0
    %354 = vmatprep.subr.bf16.mxu0 0
    %355 = vmatpush1.bf16.msra.mxu0 0
    %356 = vmatprep.subr.bf16.mxu0 0
    %357 = vmatpush1.bf16.msra.mxu0 0
    %358 = vmatprep.subr.bf16.mxu0 0
    %359 = vmatpush1.bf16.msra.mxu0 0
    %360 = vmatprep.mubr.bf16.mxu0 0
    %361 = vmatmul.mubr.bf16.gmra.mrb[0].mxu0 %v326
    %v362 = vpop.f32.mrb[0].mxu0
    %v363 = vadd.f32 %v310, %v362
    %v364 = vpop.f32.mrb[0].mxu0
    %v365 = vpop.f32.mrb[0].mxu0
    %v366 = vadd.f32 %v310, %v365
    %v367 = vpop.f32.mrb[0].mxu0
    %368 = vdwg.mxu0
    %v369 = vld [vmem:[#allocation11] sm:$0xf]
    %v370 = vld [vmem:[#allocation11 + $0x4] sm:$0xf]
    %v371 = vld [vmem:[#allocation11 + $0x8] sm:$0xf]
    %v372 = vld [vmem:[#allocation11 + $0xc] sm:$0xf]
    %v373 = vld [vmem:[#allocation13] sm:$0x1]
    %v375 = vlaneseq
    %v376 = vshrl.u32 %v375, 7
    %v377 = vsub.s32 0, %v376
    %v378 = vrot.slane %v373, %v377
    %v384 = vunpack.c.l.b16 %v369
    %v385 = vunpack.c.l.b16 %v370
    %v386 = vunpack.c.l.b16 %v371
    %v387 = vunpack.c.l.b16 %v372
    %v388 = vpack.c.b16 %v385, %v384
    %v389 = vpack.c.b16 %v387, %v386
    %v393 = vsel %vm324, %v299, 0
    %395 = vmatprep.subr.bf16.mxu0 0
    %396 = vmatpush1.bf16.msra.mxu0 %v388
    %397 = vmatprep.subr.bf16.mxu0 0
    %398 = vmatpush1.bf16.msra.mxu0 %v389
    %399 = vmatprep.subr.bf16.mxu0 0
    %400 = vmatpush1.bf16.msra.mxu0 0
    %401 = vmatprep.subr.bf16.mxu0 0
    %402 = vmatpush1.bf16.msra.mxu0 0
    %403 = vmatprep.subr.bf16.mxu0 0
    %404 = vmatpush1.bf16.msra.mxu0 0
    %405 = vmatprep.subr.bf16.mxu0 0
    %406 = vmatpush1.bf16.msra.mxu0 0
    %407 = vmatprep.subr.bf16.mxu0 0
    %408 = vmatpush1.bf16.msra.mxu0 0
    %409 = vmatprep.subr.bf16.mxu0 0
    %410 = vmatpush1.bf16.msra.mxu0 0
    %411 = vmatprep.subr.bf16.mxu0 0
    %412 = vmatpush1.bf16.msra.mxu0 0
    %413 = vmatprep.subr.bf16.mxu0 0
    %414 = vmatpush1.bf16.msra.mxu0 0
    %415 = vmatprep.subr.bf16.mxu0 0
    %416 = vmatpush1.bf16.msra.mxu0 0
    %417 = vmatprep.subr.bf16.mxu0 0
    %418 = vmatpush1.bf16.msra.mxu0 0
    %419 = vmatprep.subr.bf16.mxu0 0
    %420 = vmatpush1.bf16.msra.mxu0 0
    %421 = vmatprep.subr.bf16.mxu0 0
    %422 = vmatpush1.bf16.msra.mxu0 0
    %423 = vmatprep.subr.bf16.mxu0 0
    %424 = vmatpush1.bf16.msra.mxu0 0
    %425 = vmatprep.subr.bf16.mxu0 0
    %426 = vmatpush1.bf16.msra.mxu0 0
    %427 = vmatprep.mubr.bf16.mxu0 0
    %428 = vmatmul.mubr.bf16.gmra.mrb[0].mxu0 %v393
    %v429 = vpop.f32.mrb[0].mxu0
    %v430 = vadd.f32 %v378, %v429
    %v431 = vpop.f32.mrb[0].mxu0
    %v432 = vpop.f32.mrb[0].mxu0
    %v433 = vadd.f32 %v378, %v432
    %v434 = vpop.f32.mrb[0].mxu0
    %435 = vdwg.mxu0
    %v436 = vld [vmem:[#allocation14] sm:$0xf]
    %v437 = vld [vmem:[#allocation14 + $0x4] sm:$0xf]
    %v438 = vld [vmem:[#allocation14 + $0x8] sm:$0xf]
    %v439 = vld [vmem:[#allocation14 + $0xc] sm:$0xf]
    %v440 = vld [vmem:[#allocation16] sm:$0x1]
    %v442 = vlaneseq
    %v443 = vshrl.u32 %v442, 7
    %v444 = vsub.s32 0, %v443
    %v445 = vrot.slane %v440, %v444
    %v451 = vunpack.c.l.b16 %v436
    %v452 = vunpack.c.l.b16 %v437
    %v453 = vunpack.c.l.b16 %v438
    %v454 = vunpack.c.l.b16 %v439
    %v455 = vpack.c.b16 %v452, %v451
    %v456 = vpack.c.b16 %v454, %v453
    %459 = vmatprep.subr.bf16.mxu0 0
    %460 = vmatpush1.bf16.msra.mxu0 %v455
    %461 = vmatprep.subr.bf16.mxu0 0
    %462 = vmatpush1.bf16.msra.mxu0 %v456
    %463 = vmatprep.subr.bf16.mxu0 0
    %464 = vmatpush1.bf16.msra.mxu0 0
    %465 = vmatprep.subr.bf16.mxu0 0
    %466 = vmatpush1.bf16.msra.mxu0 0
    %467 = vmatprep.subr.bf16.mxu0 0
    %468 = vmatpush1.bf16.msra.mxu0 0
    %469 = vmatprep.subr.bf16.mxu0 0
    %470 = vmatpush1.bf16.msra.mxu0 0
    %471 = vmatprep.subr.bf16.mxu0 0
    %472 = vmatpush1.bf16.msra.mxu0 0
    %473 = vmatprep.subr.bf16.mxu0 0
    %474 = vmatpush1.bf16.msra.mxu0 0
    %475 = vmatprep.subr.bf16.mxu0 0
    %476 = vmatpush1.bf16.msra.mxu0 0
    %477 = vmatprep.subr.bf16.mxu0 0
    %478 = vmatpush1.bf16.msra.mxu0 0
    %479 = vmatprep.subr.bf16.mxu0 0
    %480 = vmatpush1.bf16.msra.mxu0 0
    %481 = vmatprep.subr.bf16.mxu0 0
    %482 = vmatpush1.bf16.msra.mxu0 0
    %483 = vmatprep.subr.bf16.mxu0 0
    %484 = vmatpush1.bf16.msra.mxu0 0
    %485 = vmatprep.subr.bf16.mxu0 0
    %486 = vmatpush1.bf16.msra.mxu0 0
    %487 = vmatprep.subr.bf16.mxu0 0
    %488 = vmatpush1.bf16.msra.mxu0 0
    %489 = vmatprep.subr.bf16.mxu0 0
    %490 = vmatpush1.bf16.msra.mxu0 0
    %491 = vmatprep.mubr.bf16.mxu0 0
    %492 = vmatmul.mubr.bf16.gmra.mrb[0].mxu0 %v393
    %v493 = vpop.f32.mrb[0].mxu0
    %v494 = vadd.f32 %v445, %v493
    %v495 = vpop.f32.mrb[0].mxu0
    %v496 = vpop.f32.mrb[0].mxu0
    %v497 = vadd.f32 %v445, %v496
    %v498 = vpop.f32.mrb[0].mxu0
    %499 = vdwg.mxu0
    %v500 = vpack.c.bf16 %v366, %v363
    %v501 = vpack.c.bf16 %v433, %v430
    %v503 = vsel %vm324, %v500, 0
    %v506 = vsel %vm324, %v501, 0
    %508 = vmatprep.subr.bf16.mxu0 0
    %509 = vmatpush1.bf16.xpose.msra.mxu0 %v506
    %510 = vmatprep.subr.bf16.mxu0 0
    %511 = vmatpush1.bf16.xpose.msra.mxu0 0
    %512 = vmatprep.subr.bf16.mxu0 0
    %513 = vmatpush1.bf16.xpose.msra.mxu0 0
    %514 = vmatprep.subr.bf16.mxu0 0
    %515 = vmatpush1.bf16.xpose.msra.mxu0 0
    %516 = vmatprep.subr.bf16.mxu0 0
    %517 = vmatpush1.bf16.xpose.msra.mxu0 0
    %518 = vmatprep.subr.bf16.mxu0 0
    %519 = vmatpush1.bf16.xpose.msra.mxu0 0
    %520 = vmatprep.subr.bf16.mxu0 0
    %521 = vmatpush1.bf16.xpose.msra.mxu0 0
    %522 = vmatprep.subr.bf16.mxu0 0
    %523 = vmatpush1.bf16.xpose.msra.mxu0 0
    %524 = vmatprep.subr.bf16.mxu0 0
    %525 = vmatpush1.bf16.xpose.msra.mxu0 0
    %526 = vmatprep.subr.bf16.mxu0 0
    %527 = vmatpush1.bf16.xpose.msra.mxu0 0
    %528 = vmatprep.subr.bf16.mxu0 0
    %529 = vmatpush1.bf16.xpose.msra.mxu0 0
    %530 = vmatprep.subr.bf16.mxu0 0
    %531 = vmatpush1.bf16.xpose.msra.mxu0 0
    %532 = vmatprep.subr.bf16.mxu0 0
    %533 = vmatpush1.bf16.xpose.msra.mxu0 0
    %534 = vmatprep.subr.bf16.mxu0 0
    %535 = vmatpush1.bf16.xpose.msra.mxu0 0
    %536 = vmatprep.subr.bf16.mxu0 0
    %537 = vmatpush1.bf16.xpose.msra.mxu0 0
    %538 = vmatprep.subr.bf16.mxu0 0
    %539 = vmatpush1.bf16.xpose.msra.mxu0 0
    %540 = vmatprep.mubr.bf16.mxu0 0
    %541 = vmatmul.mubr.bf16.gmra.mrb[0].mxu0 %v503
    %v542 = vpop.f32.mrb[0].mxu0
    %v543 = vadd.f32 %v295, %v542
    %v544 = vpop.f32.mrb[0].mxu0
    %v545 = vpop.f32.mrb[0].mxu0
    %v546 = vadd.f32 %v296, %v545
    %v547 = vpop.f32.mrb[0].mxu0
    %548 = vdwg.mxu0
    %vm549 = vcmask 130048
    %v550 = vsel %vm549, %v543, -inf
    %551 = vmax.xlane.f32.xlu0 %v550
    %v552 = vpop.xlane.xlu0 %551
    %v553 = vsel %vm549, %v546, -inf
    %554 = vmax.xlane.f32.xlu0 %v553
    %v555 = vpop.xlane.xlu0 %554
    %v556 = vsub.f32 %v543, %v552
    %v557 = vsub.f32 %v546, %v555
    %v558 = vmul.f32 %v556, 1.442695
    %v559 = vpow.pop %v558
    %v560 = vmul.f32 %v557, 1.442695
    %v561 = vpow.pop %v560
    %v563 = vsel %vm549, %v559, 0
    %v566 = vsel %vm549, %v561, 0
    %568 = vmatprep.subr.mxu0 0.0
    %569 = vmatpush1.msra.mxu0 1.0
    %570 = vmatprep.subr.mxu0 0.0
    %571 = vmatpush1.msra.mxu0 1.0
    %572 = vmatprep.subr.mxu0 0.0
    %573 = vmatpush1.msra.mxu0 0.0
    %574 = vmatprep.subr.mxu0 0.0
    %575 = vmatpush1.msra.mxu0 0.0
    %576 = vmatprep.subr.mxu0 0.0
    %577 = vmatpush1.msra.mxu0 0.0
    %578 = vmatprep.subr.mxu0 0.0
    %579 = vmatpush1.msra.mxu0 0.0
    %580 = vmatprep.subr.mxu0 0.0
    %581 = vmatpush1.msra.mxu0 0.0
    %582 = vmatprep.subr.mxu0 0.0
    %583 = vmatpush1.msra.mxu0 0.0
    %584 = vmatprep.subr.mxu0 0.0
    %585 = vmatpush1.msra.mxu0 0.0
    %586 = vmatprep.subr.mxu0 0.0
    %587 = vmatpush1.msra.mxu0 0.0
    %588 = vmatprep.subr.mxu0 0.0
    %589 = vmatpush1.msra.mxu0 0.0
    %590 = vmatprep.subr.mxu0 0.0
    %591 = vmatpush1.msra.mxu0 0.0
    %592 = vmatprep.subr.mxu0 0.0
    %593 = vmatpush1.msra.mxu0 0.0
    %594 = vmatprep.subr.mxu0 0.0
    %595 = vmatpush1.msra.mxu0 0.0
    %596 = vmatprep.subr.mxu0 0.0
    %597 = vmatpush1.msra.mxu0 0.0
    %598 = vmatprep.subr.mxu0 0.0
    %599 = vmatpush1.msra.mxu0 0.0
    %600 = vmatprep.subr.mxu0 0.0
    %601 = vmatpush1.msra.mxu0 0.0
    %602 = vmatprep.subr.mxu0 0.0
    %603 = vmatpush1.msra.mxu0 0.0
    %604 = vmatprep.subr.mxu0 0.0
    %605 = vmatpush1.msra.mxu0 0.0
    %606 = vmatprep.subr.mxu0 0.0
    %607 = vmatpush1.msra.mxu0 0.0
    %608 = vmatprep.subr.mxu0 0.0
    %609 = vmatpush1.msra.mxu0 0.0
    %610 = vmatprep.subr.mxu0 0.0
    %611 = vmatpush1.msra.mxu0 0.0
    %612 = vmatprep.subr.mxu0 0.0
    %613 = vmatpush1.msra.mxu0 0.0
    %614 = vmatprep.subr.mxu0 0.0
    %615 = vmatpush1.msra.mxu0 0.0
    %616 = vmatprep.subr.mxu0 0.0
    %617 = vmatpush1.msra.mxu0 0.0
    %618 = vmatprep.subr.mxu0 0.0
    %619 = vmatpush1.msra.mxu0 0.0
    %620 = vmatprep.subr.mxu0 0.0
    %621 = vmatpush1.msra.mxu0 0.0
    %622 = vmatprep.subr.mxu0 0.0
    %623 = vmatpush1.msra.mxu0 0.0
    %624 = vmatprep.subr.mxu0 0.0
    %625 = vmatpush1.msra.mxu0 0.0
    %626 = vmatprep.subr.mxu0 0.0
    %627 = vmatpush1.msra.mxu0 0.0
    %628 = vmatprep.subr.mxu0 0.0
    %629 = vmatpush1.msra.mxu0 0.0
    %630 = vmatprep.subr.mxu0 0.0
    %631 = vmatpush1.msra.mxu0 0.0
    %632 = vmatprep.mubr.f32.mxu0 0.0
    %633 = vmatmul.mubr.f32.gmra.mrb[0].mxu0 %v563
    %v634 = vpop.f32.mrb[0].mxu0
    %v635 = vadd.f32 0.0, %v634
    %v636 = vpop.f32.mrb[0].mxu0
    %637 = vmatprep.mubr.f32.mxu0 0.0
    %638 = vmatmul.mubr.f32.gmra.mrb[0].mxu0 %v566
    %v639 = vpop.f32.mrb[0].mxu0
    %v640 = vadd.f32 0.0, %v639
    %v641 = vpop.f32.mrb[0].mxu0
    %642 = vdwg.mxu0
    %v643 = vrcp.pop %v635
    %v644 = vrcp.pop %v640
    %646 = vset.pattern.permute.xlu0 0
    %647 = vperm.xlu0 %646, %v643
    %v648 = vpop.permute.xlu0 %647
    %651 = vset.pattern.permute.xlu0 0
    %652 = vperm.xlu0 %651, %v644
    %v653 = vpop.permute.xlu0 %652
    %v655 = vmul.f32 %v559, %v648
    %v656 = vmul.f32 %v561, %v653
    %v657 = vpack.c.bf16 %v656, %v655
    %v658 = vpack.c.bf16 %v497, %v494
    %v660 = vsel %vm549, %v657, 0
    %662 = vmatprep.subr.bf16.mxu0 0
    %663 = vmatpush1.bf16.msra.mxu0 %v658
    %664 = vmatprep.subr.bf16.mxu0 0
    %665 = vmatpush1.bf16.msra.mxu0 0
    %666 = vmatprep.subr.bf16.mxu0 0
    %667 = vmatpush1.bf16.msra.mxu0 0
    %668 = vmatprep.subr.bf16.mxu0 0
    %669 = vmatpush1.bf16.msra.mxu0 0
    %670 = vmatprep.subr.bf16.mxu0 0
    %671 = vmatpush1.bf16.msra.mxu0 0
    %672 = vmatprep.subr.bf16.mxu0 0
    %673 = vmatpush1.bf16.msra.mxu0 0
    %674 = vmatprep.subr.bf16.mxu0 0
    %675 = vmatpush1.bf16.msra.mxu0 0
    %676 = vmatprep.subr.bf16.mxu0 0
    %677 = vmatpush1.bf16.msra.mxu0 0
    %678 = vmatprep.subr.bf16.mxu0 0
    %679 = vmatpush1.bf16.msra.mxu0 0
    %680 = vmatprep.subr.bf16.mxu0 0
    %681 = vmatpush1.bf16.msra.mxu0 0
    %682 = vmatprep.subr.bf16.mxu0 0
    %683 = vmatpush1.bf16.msra.mxu0 0
    %684 = vmatprep.subr.bf16.mxu0 0
    %685 = vmatpush1.bf16.msra.mxu0 0
    %686 = vmatprep.subr.bf16.mxu0 0
    %687 = vmatpush1.bf16.msra.mxu0 0
    %688 = vmatprep.subr.bf16.mxu0 0
    %689 = vmatpush1.bf16.msra.mxu0 0
    %690 = vmatprep.subr.bf16.mxu0 0
    %691 = vmatpush1.bf16.msra.mxu0 0
    %692 = vmatprep.subr.bf16.mxu0 0
    %693 = vmatpush1.bf16.msra.mxu0 0
    %694 = vmatprep.mubr.bf16.mxu0 0
    %695 = vmatmul.mubr.bf16.gmra.mrb[0].mxu0 %v660
    %v696 = vpop.f32.mrb[0].mxu0
    %v697 = vadd.f32 0.0, %v696
    %v698 = vpop.f32.mrb[0].mxu0
    %v699 = vpop.f32.mrb[0].mxu0
    %v700 = vadd.f32 0.0, %v699
    %v701 = vpop.f32.mrb[0].mxu0
    %702 = vdwg.mxu0
    %v703 = vpack.c.bf16 %v700, %v697
    %v704 = vld [vmem:[#allocation17] sm:$0xf]
    %v705 = vld [vmem:[#allocation17 + $0x4] sm:$0xf]
    %v706 = vld [vmem:[#allocation17 + $0x8] sm:$0xf]
    %v707 = vld [vmem:[#allocation17 + $0xc] sm:$0xf]
    %v708 = vld [vmem:[#allocation19] sm:$0x1]
    %v710 = vlaneseq
    %v711 = vshrl.u32 %v710, 7
    %v712 = vsub.s32 0, %v711
    %v713 = vrot.slane %v708, %v712
    %v719 = vunpack.c.l.b16 %v704
    %v720 = vunpack.c.l.b16 %v705
    %v721 = vunpack.c.l.b16 %v706
    %v722 = vunpack.c.l.b16 %v707
    %v723 = vpack.c.b16 %v720, %v719
    %v724 = vpack.c.b16 %v722, %v721
    %v728 = vsel %vm324, %v703, 0
    %730 = vmatprep.subr.bf16.mxu0 0
    %731 = vmatpush1.bf16.msra.mxu0 %v723
    %732 = vmatprep.subr.bf16.mxu0 0
    %733 = vmatpush1.bf16.msra.mxu0 %v724
    %734 = vmatprep.subr.bf16.mxu0 0
    %735 = vmatpush1.bf16.msra.mxu0 0
    %736 = vmatprep.subr.bf16.mxu0 0
    %737 = vmatpush1.bf16.msra.mxu0 0
    %738 = vmatprep.subr.bf16.mxu0 0
    %739 = vmatpush1.bf16.msra.mxu0 0
    %740 = vmatprep.subr.bf16.mxu0 0
    %741 = vmatpush1.bf16.msra.mxu0 0
    %742 = vmatprep.subr.bf16.mxu0 0
    %743 = vmatpush1.bf16.msra.mxu0 0
    %744 = vmatprep.subr.bf16.mxu0 0
    %745 = vmatpush1.bf16.msra.mxu0 0
    %746 = vmatprep.subr.bf16.mxu0 0
    %747 = vmatpush1.bf16.msra.mxu0 0
    %748 = vmatprep.subr.bf16.mxu0 0
    %749 = vmatpush1.bf16.msra.mxu0 0
    %750 = vmatprep.subr.bf16.mxu0 0
    %751 = vmatpush1.bf16.msra.mxu0 0
    %752 = vmatprep.subr.bf16.mxu0 0
    %753 = vmatpush1.bf16.msra.mxu0 0
    %754 = vmatprep.subr.bf16.mxu0 0
    %755 = vmatpush1.bf16.msra.mxu0 0
    %756 = vmatprep.subr.bf16.mxu0 0
    %757 = vmatpush1.bf16.msra.mxu0 0
    %758 = vmatprep.subr.bf16.mxu0 0
    %759 = vmatpush1.bf16.msra.mxu0 0
    %760 = vmatprep.subr.bf16.mxu0 0
    %761 = vmatpush1.bf16.msra.mxu0 0
    %762 = vmatprep.mubr.bf16.mxu0 0
    %763 = vmatmul.mubr.bf16.gmra.mrb[0].mxu0 %v728
    %v764 = vpop.f32.mrb[0].mxu0
    %v765 = vadd.f32 %v713, %v764
    %v766 = vpop.f32.mrb[0].mxu0
    %v767 = vpop.f32.mrb[0].mxu0
    %v768 = vadd.f32 %v713, %v767
    %v769 = vpop.f32.mrb[0].mxu0
    %770 = vdwg.mxu0
    %v771 = vadd.f32 %v293, %v765
    %v772 = vadd.f32 %v294, %v768
    %v773 = vld [vmem:[#allocation20] sm:$0x1]
    %v774 = vld [vmem:[#allocation22] sm:$0x1]
    %v776 = vsel %vm324, %v771, 0
    %v779 = vsel %vm324, %v772, 0
    %781 = vmatprep.subr.mxu0 0.0
    %782 = vmatpush1.msra.mxu0 1.0
    %783 = vmatprep.subr.mxu0 0.0
    %784 = vmatpush1.msra.mxu0 1.0
    %785 = vmatprep.subr.mxu0 0.0
    %786 = vmatpush1.msra.mxu0 1.0
    %787 = vmatprep.subr.mxu0 0.0
    %788 = vmatpush1.msra.mxu0 1.0
    %789 = vmatprep.subr.mxu0 0.0
    %790 = vmatpush1.msra.mxu0 0.0
    %791 = vmatprep.subr.mxu0 0.0
    %792 = vmatpush1.msra.mxu0 0.0
    %793 = vmatprep.subr.mxu0 0.0
    %794 = vmatpush1.msra.mxu0 0.0
    %795 = vmatprep.subr.mxu0 0.0
    %796 = vmatpush1.msra.mxu0 0.0
    %797 = vmatprep.subr.mxu0 0.0
    %798 = vmatpush1.msra.mxu0 0.0
    %799 = vmatprep.subr.mxu0 0.0
    %800 = vmatpush1.msra.mxu0 0.0
    %801 = vmatprep.subr.mxu0 0.0
    %802 = vmatpush1.msra.mxu0 0.0
    %803 = vmatprep.subr.mxu0 0.0
    %804 = vmatpush1.msra.mxu0 0.0
    %805 = vmatprep.subr.mxu0 0.0
    %806 = vmatpush1.msra.mxu0 0.0
    %807 = vmatprep.subr.mxu0 0.0
    %808 = vmatpush1.msra.mxu0 0.0
    %809 = vmatprep.subr.mxu0 0.0
    %810 = vmatpush1.msra.mxu0 0.0
    %811 = vmatprep.subr.mxu0 0.0
    %812 = vmatpush1.msra.mxu0 0.0
    %813 = vmatprep.subr.mxu0 0.0
    %814 = vmatpush1.msra.mxu0 0.0
    %815 = vmatprep.subr.mxu0 0.0
    %816 = vmatpush1.msra.mxu0 0.0
    %817 = vmatprep.subr.mxu0 0.0
    %818 = vmatpush1.msra.mxu0 0.0
    %819 = vmatprep.subr.mxu0 0.0
    %820 = vmatpush1.msra.mxu0 0.0
    %821 = vmatprep.subr.mxu0 0.0
    %822 = vmatpush1.msra.mxu0 0.0
    %823 = vmatprep.subr.mxu0 0.0
    %824 = vmatpush1.msra.mxu0 0.0
    %825 = vmatprep.subr.mxu0 0.0
    %826 = vmatpush1.msra.mxu0 0.0
    %827 = vmatprep.subr.mxu0 0.0
    %828 = vmatpush1.msra.mxu0 0.0
    %829 = vmatprep.subr.mxu0 0.0
    %830 = vmatpush1.msra.mxu0 0.0
    %831 = vmatprep.subr.mxu0 0.0
    %832 = vmatpush1.msra.mxu0 0.0
    %833 = vmatprep.subr.mxu0 0.0
    %834 = vmatpush1.msra.mxu0 0.0
    %835 = vmatprep.subr.mxu0 0.0
    %836 = vmatpush1.msra.mxu0 0.0
    %837 = vmatprep.subr.mxu0 0.0
    %838 = vmatpush1.msra.mxu0 0.0
    %839 = vmatprep.subr.mxu0 0.0
    %840 = vmatpush1.msra.mxu0 0.0
    %841 = vmatprep.subr.mxu0 0.0
    %842 = vmatpush1.msra.mxu0 0.0
    %843 = vmatprep.subr.mxu0 0.0
    %844 = vmatpush1.msra.mxu0 0.0
    %845 = vmatprep.mubr.f32.mxu0 0.0
    %846 = vmatmul.mubr.f32.gmra.mrb[0].mxu0 %v776
    %v847 = vpop.f32.mrb[0].mxu0
    %v848 = vadd.f32 0.0, %v847
    %v849 = vpop.f32.mrb[0].mxu0
    %850 = vmatprep.mubr.f32.mxu0 0.0
    %851 = vmatmul.mubr.f32.gmra.mrb[0].mxu0 %v779
    %v852 = vpop.f32.mrb[0].mxu0
    %v853 = vadd.f32 0.0, %v852
    %v854 = vpop.f32.mrb[0].mxu0
    %855 = vdwg.mxu0
    %v856 = vmul.f32 %v771, %v771
    %v857 = vmul.f32 %v772, %v772
    %v859 = vsel %vm324, %v856, 0
    %v862 = vsel %vm324, %v857, 0
    %864 = vmatprep.subr.mxu0 0.0
    %865 = vmatpush1.msra.mxu0 1.0
    %866 = vmatprep.subr.mxu0 0.0
    %867 = vmatpush1.msra.mxu0 1.0
    %868 = vmatprep.subr.mxu0 0.0
    %869 = vmatpush1.msra.mxu0 1.0
    %870 = vmatprep.subr.mxu0 0.0
    %871 = vmatpush1.msra.mxu0 1.0
    %872 = vmatprep.subr.mxu0 0.0
    %873 = vmatpush1.msra.mxu0 0.0
    %874 = vmatprep.subr.mxu0 0.0
    %875 = vmatpush1.msra.mxu0 0.0
    %876 = vmatprep.subr.mxu0 0.0
    %877 = vmatpush1.msra.mxu0 0.0
    %878 = vmatprep.subr.mxu0 0.0
    %879 = vmatpush1.msra.mxu0 0.0
    %880 = vmatprep.subr.mxu0 0.0
    %881 = vmatpush1.msra.mxu0 0.0
    %882 = vmatprep.subr.mxu0 0.0
    %883 = vmatpush1.msra.mxu0 0.0
    %884 = vmatprep.subr.mxu0 0.0
    %885 = vmatpush1.msra.mxu0 0.0
    %886 = vmatprep.subr.mxu0 0.0
    %887 = vmatpush1.msra.mxu0 0.0
    %888 = vmatprep.subr.mxu0 0.0
    %889 = vmatpush1.msra.mxu0 0.0
    %890 = vmatprep.subr.mxu0 0.0
    %891 = vmatpush1.msra.mxu0 0.0
    %892 = vmatprep.subr.mxu0 0.0
    %893 = vmatpush1.msra.mxu0 0.0
    %894 = vmatprep.subr.mxu0 0.0
    %895 = vmatpush1.msra.mxu0 0.0
    %896 = vmatprep.subr.mxu0 0.0
    %897 = vmatpush1.msra.mxu0 0.0
    %898 = vmatprep.subr.mxu0 0.0
    %899 = vmatpush1.msra.mxu0 0.0
    %900 = vmatprep.subr.mxu0 0.0
    %901 = vmatpush1.msra.mxu0 0.0
    %902 = vmatprep.subr.mxu0 0.0
    %903 = vmatpush1.msra.mxu0 0.0
    %904 = vmatprep.subr.mxu0 0.0
    %905 = vmatpush1.msra.mxu0 0.0
    %906 = vmatprep.subr.mxu0 0.0
    %907 = vmatpush1.msra.mxu0 0.0
    %908 = vmatprep.subr.mxu0 0.0
    %909 = vmatpush1.msra.mxu0 0.0
    %910 = vmatprep.subr.mxu0 0.0
    %911 = vmatpush1.msra.mxu0 0.0
    %912 = vmatprep.subr.mxu0 0.0
    %913 = vmatpush1.msra.mxu0 0.0
    %914 = vmatprep.subr.mxu0 0.0
    %915 = vmatpush1.msra.mxu0 0.0
    %916 = vmatprep.subr.mxu0 0.0
    %917 = vmatpush1.msra.mxu0 0.0
    %918 = vmatprep.subr.mxu0 0.0
    %919 = vmatpush1.msra.mxu0 0.0
    %920 = vmatprep.subr.mxu0 0.0
    %921 = vmatpush1.msra.mxu0 0.0
    %922 = vmatprep.subr.mxu0 0.0
    %923 = vmatpush1.msra.mxu0 0.0
    %924 = vmatprep.subr.mxu0 0.0
    %925 = vmatpush1.msra.mxu0 0.0
    %926 = vmatprep.subr.mxu0 0.0
    %927 = vmatpush1.msra.mxu0 0.0
    %928 = vmatprep.mubr.f32.mxu0 0.0
    %929 = vmatmul.mubr.f32.gmra.mrb[0].mxu0 %v859
    %v930 = vpop.f32.mrb[0].mxu0
    %v931 = vadd.f32 0.0, %v930
    %v932 = vpop.f32.mrb[0].mxu0
    %933 = vmatprep.mubr.f32.mxu0 0.0
    %934 = vmatmul.mubr.f32.gmra.mrb[0].mxu0 %v862
    %v935 = vpop.f32.mrb[0].mxu0
    %v936 = vadd.f32 0.0, %v935
    %v937 = vpop.f32.mrb[0].mxu0
    %938 = vdwg.mxu0
    %v939 = vmul.f32 %v848, 0.03125
    %v940 = vmul.f32 %v853, 0.03125
    %v941 = vmul.f32 %v931, 0.03125
    %v942 = vmul.f32 %v936, 0.03125
    %v943 = vmul.f32 %v939, %v939
    %v944 = vmul.f32 %v940, %v940
    %v945 = vsub.f32 %v941, %v943
    %v946 = vsub.f32 %v942, %v944
    %v947 = vmax.f32 %v945, 0.0
    %v948 = vmax.f32 %v946, 0.0
    %950 = vset.pattern.permute.xlu0 0
    %951 = vperm.xlu0 %950, %v939
    %v952 = vpop.permute.xlu0 %951
    %955 = vset.pattern.permute.xlu0 0
    %956 = vperm.xlu0 %955, %v940
    %v957 = vpop.permute.xlu0 %956
    %v959 = vsub.f32 %v771, %v952
    %v960 = vsub.f32 %v772, %v957
    %v961 = vadd.f32 %v947, 1e-05
    %v962 = vadd.f32 %v948, 1e-05
    %v963 = vrsqrt.pop %v961
    %v964 = vrsqrt.pop %v962
    %966 = vset.pattern.permute.xlu0 0
    %967 = vperm.xlu0 %966, %v963
    %v968 = vpop.permute.xlu0 %967
    %971 = vset.pattern.permute.xlu0 0
    %972 = vperm.xlu0 %971, %v964
    %v973 = vpop.permute.xlu0 %972
    %v975 = vmul.f32 %v959, %v968
    %v976 = vmul.f32 %v960, %v973
    %v978 = vlaneseq
    %v979 = vshrl.u32 %v978, 7
    %v980 = vsub.s32 0, %v979
    %v981 = vrot.slane %v773, %v980
    %v983 = vmul.f32 %v975, %v981
    %v984 = vmul.f32 %v976, %v981
    %v986 = vlaneseq
    %v987 = vshrl.u32 %v986, 7
    %v988 = vsub.s32 0, %v987
    %v989 = vrot.slane %v774, %v988
    %v991 = vadd.f32 %v983, %v989
    %v992 = vadd.f32 %v984, %v989
    %v993 = vpack.c.bf16 %v992, %v991
    %v994 = vld [vmem:[%s13] sm:$0xf]
    %v995 = vld [vmem:[%s13 + $0x4] sm:$0xf]
    %v996 = vld [vmem:[%s13 + $0x8] sm:$0xf]
    %v997 = vld [vmem:[%s13 + $0xc] sm:$0xf]
    %v998 = vld [vmem:[#allocation23] sm:$0x1]
    %v1000 = vlaneseq
    %v1001 = vshrl.u32 %v1000, 7
    %v1002 = vsub.s32 0, %v1001
    %v1003 = vrot.slane %v998, %v1002
    %v1009 = vunpack.c.l.b16 %v994
    %v1010 = vunpack.c.l.b16 %v995
    %v1011 = vunpack.c.l.b16 %v996
    %v1012 = vunpack.c.l.b16 %v997
    %v1013 = vpack.c.b16 %v1010, %v1009
    %v1014 = vpack.c.b16 %v1012, %v1011
    %v1018 = vsel %vm324, %v993, 0
    %1020 = vmatprep.subr.bf16.mxu0 0
    %1021 = vmatpush1.bf16.msra.mxu0 %v1013
    %1022 = vmatprep.subr.bf16.mxu0 0
    %1023 = vmatpush1.bf16.msra.mxu0 %v1014
    %1024 = vmatprep.subr.bf16.mxu0 0
    %1025 = vmatpush1.bf16.msra.mxu0 0
    %1026 = vmatprep.subr.bf16.mxu0 0
    %1027 = vmatpush1.bf16.msra.mxu0 0
    %1028 = vmatprep.subr.bf16.mxu0 0
    %1029 = vmatpush1.bf16.msra.mxu0 0
    %1030 = vmatprep.subr.bf16.mxu0 0
    %1031 = vmatpush1.bf16.msra.mxu0 0
    %1032 = vmatprep.subr.bf16.mxu0 0
    %1033 = vmatpush1.bf16.msra.mxu0 0
    %1034 = vmatprep.subr.bf16.mxu0 0
    %1035 = vmatpush1.bf16.msra.mxu0 0
    %1036 = vmatprep.subr.bf16.mxu0 0
    %1037 = vmatpush1.bf16.msra.mxu0 0
    %1038 = vmatprep.subr.bf16.mxu0 0
    %1039 = vmatpush1.bf16.msra.mxu0 0
    %1040 = vmatprep.subr.bf16.mxu0 0
    %1041 = vmatpush1.bf16.msra.mxu0 0
    %1042 = vmatprep.subr.bf16.mxu0 0
    %1043 = vmatpush1.bf16.msra.mxu0 0
    %1044 = vmatprep.subr.bf16.mxu0 0
    %1045 = vmatpush1.bf16.msra.mxu0 0
    %1046 = vmatprep.subr.bf16.mxu0 0
    %1047 = vmatpush1.bf16.msra.mxu0 0
    %1048 = vmatprep.subr.bf16.mxu0 0
    %1049 = vmatpush1.bf16.msra.mxu0 0
    %1050 = vmatprep.subr.bf16.mxu0 0
    %1051 = vmatpush1.bf16.msra.mxu0 0
    %1052 = vmatprep.mubr.bf16.mxu0 0
    %1053 = vmatmul.mubr.bf16.gmra.mrb[0].mxu0 %v1018
    %v1054 = vpop.f32.mrb[0].mxu0
    %v1055 = vadd.f32 %v1003, %v1054
    %v1056 = vpop.f32.mrb[0].mxu0
    %v1057 = vpop.f32.mrb[0].mxu0
    %v1058 = vadd.f32 %v1003, %v1057
    %v1059 = vpop.f32.mrb[0].mxu0
    %1060 = vdwg.mxu0
    %vm1061 = vcmp.gt.f32.partialorder %v1055, 0.0
    %vm1062 = vcmp.gt.f32.partialorder %v1058, 0.0
    %v1063 = vmin.f32 %v1055, 0.0
    %v1064 = vmin.f32 %v1058, 0.0
    %v1065 = vmul.f32 %v1063, 1.442695
    %v1066 = vpow.pop %v1065
    %v1067 = vmul.f32 %v1064, 1.442695
    %v1068 = vpow.pop %v1067
    %v1069 = vsub.f32 %v1066, 1.0
    %v1070 = vsub.f32 %v1068, 1.0
    %v1071 = vsel %vm1061, %v1055, %v1069
    %v1072 = vsel %vm1062, %v1058, %v1070
    %v1073 = vpack.c.bf16 %v1072, %v1071
    %s1074 = scalar_lea.vmem [#allocation8], 16
    %v1075 = vld [vmem:[%s1074] sm:$0xf]
    %v1076 = vld [vmem:[%s1074 + $0x4] sm:$0xf]
    %v1077 = vld [vmem:[%s1074 + $0x8] sm:$0xf]
    %v1078 = vld [vmem:[%s1074 + $0xc] sm:$0xf]
    %s1079 = scalar_lea.vmem [#allocation10], 1
    %v1080 = vld [vmem:[%s1079] sm:$0x1]
    %v1082 = vlaneseq
    %v1083 = vshrl.u32 %v1082, 7
    %v1084 = vsub.s32 0, %v1083
    %v1085 = vrot.slane %v1080, %v1084
    %v1091 = vunpack.c.l.b16 %v1075
    %v1092 = vunpack.c.l.b16 %v1076
    %v1093 = vunpack.c.l.b16 %v1077
    %v1094 = vunpack.c.l.b16 %v1078
    %v1095 = vpack.c.b16 %v1092, %v1091
    %v1096 = vpack.c.b16 %v1094, %v1093
    %v1100 = vsel %vm324, %v1073, 0
    %1102 = vmatprep.subr.bf16.mxu0 0
    %1103 = vmatpush1.bf16.msra.mxu0 %v1095
    %1104 = vmatprep.subr.bf16.mxu0 0
    %1105 = vmatpush1.bf16.msra.mxu0 %v1096
    %1106 = vmatprep.subr.bf16.mxu0 0
    %1107 = vmatpush1.bf16.msra.mxu0 0
    %1108 = vmatprep.subr.bf16.mxu0 0
    %1109 = vmatpush1.bf16.msra.mxu0 0
    %1110 = vmatprep.subr.bf16.mxu0 0
    %1111 = vmatpush1.bf16.msra.mxu0 0
    %1112 = vmatprep.subr.bf16.mxu0 0
    %1113 = vmatpush1.bf16.msra.mxu0 0
    %1114 = vmatprep.subr.bf16.mxu0 0
    %1115 = vmatpush1.bf16.msra.mxu0 0
    %1116 = vmatprep.subr.bf16.mxu0 0
    %1117 = vmatpush1.bf16.msra.mxu0 0
    %1118 = vmatprep.subr.bf16.mxu0 0
    %1119 = vmatpush1.bf16.msra.mxu0 0
    %1120 = vmatprep.subr.bf16.mxu0 0
    %1121 = vmatpush1.bf16.msra.mxu0 0
    %1122 = vmatprep.subr.bf16.mxu0 0
    %1123 = vmatpush1.bf16.msra.mxu0 0
    %1124 = vmatprep.subr.bf16.mxu0 0
    %1125 = vmatpush1.bf16.msra.mxu0 0
    %1126 = vmatprep.subr.bf16.mxu0 0
    %1127 = vmatpush1.bf16.msra.mxu0 0
    %1128 = vmatprep.subr.bf16.mxu0 0
    %1129 = vmatpush1.bf16.msra.mxu0 0
    %1130 = vmatprep.subr.bf16.mxu0 0
    %1131 = vmatpush1.bf16.msra.mxu0 0
    %1132 = vmatprep.subr.bf16.mxu0 0
    %1133 = vmatpush1.bf16.msra.mxu0 0
    %1134 = vmatprep.mubr.bf16.mxu0 0
    %1135 = vmatmul.mubr.bf16.gmra.mrb[0].mxu0 %v1100
    %v1136 = vpop.f32.mrb[0].mxu0
    %v1137 = vadd.f32 %v1085, %v1136
    %v1138 = vpop.f32.mrb[0].mxu0
    %v1139 = vpop.f32.mrb[0].mxu0
    %v1140 = vadd.f32 %v1085, %v1139
    %v1141 = vpop.f32.mrb[0].mxu0
    %1142 = vdwg.mxu0
    %s1143 = scalar_lea.vmem [#allocation11], 16
    %v1144 = vld [vmem:[%s1143] sm:$0xf]
    %v1145 = vld [vmem:[%s1143 + $0x4] sm:$0xf]
    %v1146 = vld [vmem:[%s1143 + $0x8] sm:$0xf]
    %v1147 = vld [vmem:[%s1143 + $0xc] sm:$0xf]
    %s1148 = scalar_lea.vmem [#allocation13], 1
    %v1149 = vld [vmem:[%s1148] sm:$0x1]
    %v1151 = vlaneseq
    %v1152 = vshrl.u32 %v1151, 7
    %v1153 = vsub.s32 0, %v1152
    %v1154 = vrot.slane %v1149, %v1153
    %v1160 = vunpack.c.l.b16 %v1144
    %v1161 = vunpack.c.l.b16 %v1145
    %v1162 = vunpack.c.l.b16 %v1146
    %v1163 = vunpack.c.l.b16 %v1147
    %v1164 = vpack.c.b16 %v1161, %v1160
    %v1165 = vpack.c.b16 %v1163, %v1162
    %1168 = vmatprep.subr.bf16.mxu0 0
    %1169 = vmatpush1.bf16.msra.mxu0 %v1164
    %1170 = vmatprep.subr.bf16.mxu0 0
    %1171 = vmatpush1.bf16.msra.mxu0 %v1165
    %1172 = vmatprep.subr.bf16.mxu0 0
    %1173 = vmatpush1.bf16.msra.mxu0 0
    %1174 = vmatprep.subr.bf16.mxu0 0
    %1175 = vmatpush1.bf16.msra.mxu0 0
    %1176 = vmatprep.subr.bf16.mxu0 0
    %1177 = vmatpush1.bf16.msra.mxu0 0
    %1178 = vmatprep.subr.bf16.mxu0 0
    %1179 = vmatpush1.bf16.msra.mxu0 0
    %1180 = vmatprep.subr.bf16.mxu0 0
    %1181 = vmatpush1.bf16.msra.mxu0 0
    %1182 = vmatprep.subr.bf16.mxu0 0
    %1183 = vmatpush1.bf16.msra.mxu0 0
    %1184 = vmatprep.subr.bf16.mxu0 0
    %1185 = vmatpush1.bf16.msra.mxu0 0
    %1186 = vmatprep.subr.bf16.mxu0 0
    %1187 = vmatpush1.bf16.msra.mxu0 0
    %1188 = vmatprep.subr.bf16.mxu0 0
    %1189 = vmatpush1.bf16.msra.mxu0 0
    %1190 = vmatprep.subr.bf16.mxu0 0
    %1191 = vmatpush1.bf16.msra.mxu0 0
    %1192 = vmatprep.subr.bf16.mxu0 0
    %1193 = vmatpush1.bf16.msra.mxu0 0
    %1194 = vmatprep.subr.bf16.mxu0 0
    %1195 = vmatpush1.bf16.msra.mxu0 0
    %1196 = vmatprep.subr.bf16.mxu0 0
    %1197 = vmatpush1.bf16.msra.mxu0 0
    %1198 = vmatprep.subr.bf16.mxu0 0
    %1199 = vmatpush1.bf16.msra.mxu0 0
    %1200 = vmatprep.mubr.bf16.mxu0 0
    %1201 = vmatmul.mubr.bf16.gmra.mrb[0].mxu0 %v393
    %v1202 = vpop.f32.mrb[0].mxu0
    %v1203 = vadd.f32 %v1154, %v1202
    %v1204 = vpop.f32.mrb[0].mxu0
    %v1205 = vpop.f32.mrb[0].mxu0
    %v1206 = vadd.f32 %v1154, %v1205
    %v1207 = vpop.f32.mrb[0].mxu0
    %1208 = vdwg.mxu0
    %s1209 = scalar_lea.vmem [#allocation14], 16
    %v1210 = vld [vmem:[%s1209] sm:$0xf]
    %v1211 = vld [vmem:[%s1209 + $0x4] sm:$0xf]
    %v1212 = vld [vmem:[%s1209 + $0x8] sm:$0xf]
    %v1213 = vld [vmem:[%s1209 + $0xc] sm:$0xf]
    %s1214 = scalar_lea.vmem [#allocation16], 1
    %v1215 = vld [vmem:[%s1214] sm:$0x1]
    %v1217 = vlaneseq
    %v1218 = vshrl.u32 %v1217, 7
    %v1219 = vsub.s32 0, %v1218
    %v1220 = vrot.slane %v1215, %v1219
    %v1226 = vunpack.c.l.b16 %v1210
    %v1227 = vunpack.c.l.b16 %v1211
    %v1228 = vunpack.c.l.b16 %v1212
    %v1229 = vunpack.c.l.b16 %v1213
    %v1230 = vpack.c.b16 %v1227, %v1226
    %v1231 = vpack.c.b16 %v1229, %v1228
    %1234 = vmatprep.subr.bf16.mxu0 0
    %1235 = vmatpush1.bf16.msra.mxu0 %v1230
    %1236 = vmatprep.subr.bf16.mxu0 0
    %1237 = vmatpush1.bf16.msra.mxu0 %v1231
    %1238 = vmatprep.subr.bf16.mxu0 0
    %1239 = vmatpush1.bf16.msra.mxu0 0
    %1240 = vmatprep.subr.bf16.mxu0 0
    %1241 = vmatpush1.bf16.msra.mxu0 0
    %1242 = vmatprep.subr.bf16.mxu0 0
    %1243 = vmatpush1.bf16.msra.mxu0 0
    %1244 = vmatprep.subr.bf16.mxu0 0
    %1245 = vmatpush1.bf16.msra.mxu0 0
    %1246 = vmatprep.subr.bf16.mxu0 0
    %1247 = vmatpush1.bf16.msra.mxu0 0
    %1248 = vmatprep.subr.bf16.mxu0 0
    %1249 = vmatpush1.bf16.msra.mxu0 0
    %1250 = vmatprep.subr.bf16.mxu0 0
    %1251 = vmatpush1.bf16.msra.mxu0 0
    %1252 = vmatprep.subr.bf16.mxu0 0
    %1253 = vmatpush1.bf16.msra.mxu0 0
    %1254 = vmatprep.subr.bf16.mxu0 0
    %1255 = vmatpush1.bf16.msra.mxu0 0
    %1256 = vmatprep.subr.bf16.mxu0 0
    %1257 = vmatpush1.bf16.msra.mxu0 0
    %1258 = vmatprep.subr.bf16.mxu0 0
    %1259 = vmatpush1.bf16.msra.mxu0 0
    %1260 = vmatprep.subr.bf16.mxu0 0
    %1261 = vmatpush1.bf16.msra.mxu0 0
    %1262 = vmatprep.subr.bf16.mxu0 0
    %1263 = vmatpush1.bf16.msra.mxu0 0
    %1264 = vmatprep.subr.bf16.mxu0 0
    %1265 = vmatpush1.bf16.msra.mxu0 0
    %1266 = vmatprep.mubr.bf16.mxu0 0
    %1267 = vmatmul.mubr.bf16.gmra.mrb[0].mxu0 %v393
    %v1268 = vpop.f32.mrb[0].mxu0
    %v1269 = vadd.f32 %v1220, %v1268
    %v1270 = vpop.f32.mrb[0].mxu0
    %v1271 = vpop.f32.mrb[0].mxu0
    %v1272 = vadd.f32 %v1220, %v1271
    %v1273 = vpop.f32.mrb[0].mxu0
    %1274 = vdwg.mxu0
    %v1275 = vpack.c.bf16 %v1140, %v1137
    %v1276 = vpack.c.bf16 %v1206, %v1203
    %v1278 = vsel %vm324, %v1275, 0
    %v1281 = vsel %vm324, %v1276, 0
    %1283 = vmatprep.subr.bf16.mxu0 0
    %1284 = vmatpush1.bf16.xpose.msra.mxu0 %v1281
    %1285 = vmatprep.subr.bf16.mxu0 0
    %1286 = vmatpush1.bf16.xpose.msra.mxu0 0
    %1287 = vmatprep.subr.bf16.mxu0 0
    %1288 = vmatpush1.bf16.xpose.msra.mxu0 0
    %1289 = vmatprep.subr.bf16.mxu0 0
    %1290 = vmatpush1.bf16.xpose.msra.mxu0 0
    %1291 = vmatprep.subr.bf16.mxu0 0
    %1292 = vmatpush1.bf16.xpose.msra.mxu0 0
    %1293 = vmatprep.subr.bf16.mxu0 0
    %1294 = vmatpush1.bf16.xpose.msra.mxu0 0
    %1295 = vmatprep.subr.bf16.mxu0 0
    %1296 = vmatpush1.bf16.xpose.msra.mxu0 0
    %1297 = vmatprep.subr.bf16.mxu0 0
    %1298 = vmatpush1.bf16.xpose.msra.mxu0 0
    %1299 = vmatprep.subr.bf16.mxu0 0
    %1300 = vmatpush1.bf16.xpose.msra.mxu0 0
    %1301 = vmatprep.subr.bf16.mxu0 0
    %1302 = vmatpush1.bf16.xpose.msra.mxu0 0
    %1303 = vmatprep.subr.bf16.mxu0 0
    %1304 = vmatpush1.bf16.xpose.msra.mxu0 0
    %1305 = vmatprep.subr.bf16.mxu0 0
    %1306 = vmatpush1.bf16.xpose.msra.mxu0 0
    %1307 = vmatprep.subr.bf16.mxu0 0
    %1308 = vmatpush1.bf16.xpose.msra.mxu0 0
    %1309 = vmatprep.subr.bf16.mxu0 0
    %1310 = vmatpush1.bf16.xpose.msra.mxu0 0
    %1311 = vmatprep.subr.bf16.mxu0 0
    %1312 = vmatpush1.bf16.xpose.msra.mxu0 0
    %1313 = vmatprep.subr.bf16.mxu0 0
    %1314 = vmatpush1.bf16.xpose.msra.mxu0 0
    %1315 = vmatprep.mubr.bf16.mxu0 0
    %1316 = vmatmul.mubr.bf16.gmra.mrb[0].mxu0 %v1278
    %v1317 = vpop.f32.mrb[0].mxu0
    %v1318 = vadd.f32 %v295, %v1317
    %v1319 = vpop.f32.mrb[0].mxu0
    %v1320 = vpop.f32.mrb[0].mxu0
    %v1321 = vadd.f32 %v296, %v1320
    %v1322 = vpop.f32.mrb[0].mxu0
    %1323 = vdwg.mxu0
    %v1324 = vsel %vm549, %v1318, -inf
    %1325 = vmax.xlane.f32.xlu0 %v1324
    %v1326 = vpop.xlane.xlu0 %1325
    %v1327 = vsel %vm549, %v1321, -inf
    %1328 = vmax.xlane.f32.xlu0 %v1327
    %v1329 = vpop.xlane.xlu0 %1328
    %v1330 = vsub.f32 %v1318, %v1326
    %v1331 = vsub.f32 %v1321, %v1329
    %v1332 = vmul.f32 %v1330, 1.442695
    %v1333 = vpow.pop %v1332
    %v1334 = vmul.f32 %v1331, 1.442695
    %v1335 = vpow.pop %v1334
    %v1337 = vsel %vm549, %v1333, 0
    %v1340 = vsel %vm549, %v1335, 0
    %1342 = vmatprep.subr.mxu0 0.0
    %1343 = vmatpush1.msra.mxu0 1.0
    %1344 = vmatprep.subr.mxu0 0.0
    %1345 = vmatpush1.msra.mxu0 1.0
    %1346 = vmatprep.subr.mxu0 0.0
    %1347 = vmatpush1.msra.mxu0 0.0
    %1348 = vmatprep.subr.mxu0 0.0
    %1349 = vmatpush1.msra.mxu0 0.0
    %1350 = vmatprep.subr.mxu0 0.0
    %1351 = vmatpush1.msra.mxu0 0.0
    %1352 = vmatprep.subr.mxu0 0.0
    %1353 = vmatpush1.msra.mxu0 0.0
    %1354 = vmatprep.subr.mxu0 0.0
    %1355 = vmatpush1.msra.mxu0 0.0
    %1356 = vmatprep.subr.mxu0 0.0
    %1357 = vmatpush1.msra.mxu0 0.0
    %1358 = vmatprep.subr.mxu0 0.0
    %1359 = vmatpush1.msra.mxu0 0.0
    %1360 = vmatprep.subr.mxu0 0.0
    %1361 = vmatpush1.msra.mxu0 0.0
    %1362 = vmatprep.subr.mxu0 0.0
    %1363 = vmatpush1.msra.mxu0 0.0
    %1364 = vmatprep.subr.mxu0 0.0
    %1365 = vmatpush1.msra.mxu0 0.0
    %1366 = vmatprep.subr.mxu0 0.0
    %1367 = vmatpush1.msra.mxu0 0.0
    %1368 = vmatprep.subr.mxu0 0.0
    %1369 = vmatpush1.msra.mxu0 0.0
    %1370 = vmatprep.subr.mxu0 0.0
    %1371 = vmatpush1.msra.mxu0 0.0
    %1372 = vmatprep.subr.mxu0 0.0
    %1373 = vmatpush1.msra.mxu0 0.0
    %1374 = vmatprep.subr.mxu0 0.0
    %1375 = vmatpush1.msra.mxu0 0.0
    %1376 = vmatprep.subr.mxu0 0.0
    %1377 = vmatpush1.msra.mxu0 0.0
    %1378 = vmatprep.subr.mxu0 0.0
    %1379 = vmatpush1.msra.mxu0 0.0
    %1380 = vmatprep.subr.mxu0 0.0
    %1381 = vmatpush1.msra.mxu0 0.0
    %1382 = vmatprep.subr.mxu0 0.0
    %1383 = vmatpush1.msra.mxu0 0.0
    %1384 = vmatprep.subr.mxu0 0.0
    %1385 = vmatpush1.msra.mxu0 0.0
    %1386 = vmatprep.subr.mxu0 0.0
    %1387 = vmatpush1.msra.mxu0 0.0
    %1388 = vmatprep.subr.mxu0 0.0
    %1389 = vmatpush1.msra.mxu0 0.0
    %1390 = vmatprep.subr.mxu0 0.0
    %1391 = vmatpush1.msra.mxu0 0.0
    %1392 = vmatprep.subr.mxu0 0.0
    %1393 = vmatpush1.msra.mxu0 0.0
    %1394 = vmatprep.subr.mxu0 0.0
    %1395 = vmatpush1.msra.mxu0 0.0
    %1396 = vmatprep.subr.mxu0 0.0
    %1397 = vmatpush1.msra.mxu0 0.0
    %1398 = vmatprep.subr.mxu0 0.0
    %1399 = vmatpush1.msra.mxu0 0.0
    %1400 = vmatprep.subr.mxu0 0.0
    %1401 = vmatpush1.msra.mxu0 0.0
    %1402 = vmatprep.subr.mxu0 0.0
    %1403 = vmatpush1.msra.mxu0 0.0
    %1404 = vmatprep.subr.mxu0 0.0
    %1405 = vmatpush1.msra.mxu0 0.0
    %1406 = vmatprep.mubr.f32.mxu0 0.0
    %1407 = vmatmul.mubr.f32.gmra.mrb[0].mxu0 %v1337
    %v1408 = vpop.f32.mrb[0].mxu0
    %v1409 = vadd.f32 0.0, %v1408
    %v1410 = vpop.f32.mrb[0].mxu0
    %1411 = vmatprep.mubr.f32.mxu0 0.0
    %1412 = vmatmul.mubr.f32.gmra.mrb[0].mxu0 %v1340
    %v1413 = vpop.f32.mrb[0].mxu0
    %v1414 = vadd.f32 0.0, %v1413
    %v1415 = vpop.f32.mrb[0].mxu0
    %1416 = vdwg.mxu0
    %v1417 = vrcp.pop %v1409
    %v1418 = vrcp.pop %v1414
    %1420 = vset.pattern.permute.xlu0 0
    %1421 = vperm.xlu0 %1420, %v1417
    %v1422 = vpop.permute.xlu0 %1421
    %1425 = vset.pattern.permute.xlu0 0
    %1426 = vperm.xlu0 %1425, %v1418
    %v1427 = vpop.permute.xlu0 %1426
    %v1429 = vmul.f32 %v1333, %v1422
    %v1430 = vmul.f32 %v1335, %v1427
    %v1431 = vpack.c.bf16 %v1430, %v1429
    %v1432 = vpack.c.bf16 %v1272, %v1269
    %v1434 = vsel %vm549, %v1431, 0
    %1436 = vmatprep.subr.bf16.mxu0 0
    %1437 = vmatpush1.bf16.msra.mxu0 %v1432
    %1438 = vmatprep.subr.bf16.mxu0 0
    %1439 = vmatpush1.bf16.msra.mxu0 0
    %1440 = vmatprep.subr.bf16.mxu0 0
    %1441 = vmatpush1.bf16.msra.mxu0 0
    %1442 = vmatprep.subr.bf16.mxu0 0
    %1443 = vmatpush1.bf16.msra.mxu0 0
    %1444 = vmatprep.subr.bf16.mxu0 0
    %1445 = vmatpush1.bf16.msra.mxu0 0
    %1446 = vmatprep.subr.bf16.mxu0 0
    %1447 = vmatpush1.bf16.msra.mxu0 0
    %1448 = vmatprep.subr.bf16.mxu0 0
    %1449 = vmatpush1.bf16.msra.mxu0 0
    %1450 = vmatprep.subr.bf16.mxu0 0
    %1451 = vmatpush1.bf16.msra.mxu0 0
    %1452 = vmatprep.subr.bf16.mxu0 0
    %1453 = vmatpush1.bf16.msra.mxu0 0
    %1454 = vmatprep.subr.bf16.mxu0 0
    %1455 = vmatpush1.bf16.msra.mxu0 0
    %1456 = vmatprep.subr.bf16.mxu0 0
    %1457 = vmatpush1.bf16.msra.mxu0 0
    %1458 = vmatprep.subr.bf16.mxu0 0
    %1459 = vmatpush1.bf16.msra.mxu0 0
    %1460 = vmatprep.subr.bf16.mxu0 0
    %1461 = vmatpush1.bf16.msra.mxu0 0
    %1462 = vmatprep.subr.bf16.mxu0 0
    %1463 = vmatpush1.bf16.msra.mxu0 0
    %1464 = vmatprep.subr.bf16.mxu0 0
    %1465 = vmatpush1.bf16.msra.mxu0 0
    %1466 = vmatprep.subr.bf16.mxu0 0
    %1467 = vmatpush1.bf16.msra.mxu0 0
    %1468 = vmatprep.mubr.bf16.mxu0 0
    %1469 = vmatmul.mubr.bf16.gmra.mrb[0].mxu0 %v1434
    %v1470 = vpop.f32.mrb[0].mxu0
    %v1471 = vadd.f32 0.0, %v1470
    %v1472 = vpop.f32.mrb[0].mxu0
    %v1473 = vpop.f32.mrb[0].mxu0
    %v1474 = vadd.f32 0.0, %v1473
    %v1475 = vpop.f32.mrb[0].mxu0
    %1476 = vdwg.mxu0
    %v1477 = vpack.c.bf16 %v1474, %v1471
    %s1478 = scalar_lea.vmem [#allocation17], 16
    %v1479 = vld [vmem:[%s1478] sm:$0xf]
    %v1480 = vld [vmem:[%s1478 + $0x4] sm:$0xf]
    %v1481 = vld [vmem:[%s1478 + $0x8] sm:$0xf]
    %v1482 = vld [vmem:[%s1478 + $0xc] sm:$0xf]
    %s1483 = scalar_lea.vmem [#allocation19], 1
    %v1484 = vld [vmem:[%s1483] sm:$0x1]
    %v1486 = vlaneseq
    %v1487 = vshrl.u32 %v1486, 7
    %v1488 = vsub.s32 0, %v1487
    %v1489 = vrot.slane %v1484, %v1488
    %v1495 = vunpack.c.l.b16 %v1479
    %v1496 = vunpack.c.l.b16 %v1480
    %v1497 = vunpack.c.l.b16 %v1481
    %v1498 = vunpack.c.l.b16 %v1482
    %v1499 = vpack.c.b16 %v1496, %v1495
    %v1500 = vpack.c.b16 %v1498, %v1497
    %v1504 = vsel %vm324, %v1477, 0
    %1506 = vmatprep.subr.bf16.mxu0 0
    %1507 = vmatpush1.bf16.msra.mxu0 %v1499
    %1508 = vmatprep.subr.bf16.mxu0 0
    %1509 = vmatpush1.bf16.msra.mxu0 %v1500
    %1510 = vmatprep.subr.bf16.mxu0 0
    %1511 = vmatpush1.bf16.msra.mxu0 0
    %1512 = vmatprep.subr.bf16.mxu0 0
    %1513 = vmatpush1.bf16.msra.mxu0 0
    %1514 = vmatprep.subr.bf16.mxu0 0
    %1515 = vmatpush1.bf16.msra.mxu0 0
    %1516 = vmatprep.subr.bf16.mxu0 0
    %1517 = vmatpush1.bf16.msra.mxu0 0
    %1518 = vmatprep.subr.bf16.mxu0 0
    %1519 = vmatpush1.bf16.msra.mxu0 0
    %1520 = vmatprep.subr.bf16.mxu0 0
    %1521 = vmatpush1.bf16.msra.mxu0 0
    %1522 = vmatprep.subr.bf16.mxu0 0
    %1523 = vmatpush1.bf16.msra.mxu0 0
    %1524 = vmatprep.subr.bf16.mxu0 0
    %1525 = vmatpush1.bf16.msra.mxu0 0
    %1526 = vmatprep.subr.bf16.mxu0 0
    %1527 = vmatpush1.bf16.msra.mxu0 0
    %1528 = vmatprep.subr.bf16.mxu0 0
    %1529 = vmatpush1.bf16.msra.mxu0 0
    %1530 = vmatprep.subr.bf16.mxu0 0
    %1531 = vmatpush1.bf16.msra.mxu0 0
    %1532 = vmatprep.subr.bf16.mxu0 0
    %1533 = vmatpush1.bf16.msra.mxu0 0
    %1534 = vmatprep.subr.bf16.mxu0 0
    %1535 = vmatpush1.bf16.msra.mxu0 0
    %1536 = vmatprep.subr.bf16.mxu0 0
    %1537 = vmatpush1.bf16.msra.mxu0 0
    %1538 = vmatprep.mubr.bf16.mxu0 0
    %1539 = vmatmul.mubr.bf16.gmra.mrb[0].mxu0 %v1504
    %v1540 = vpop.f32.mrb[0].mxu0
    %v1541 = vadd.f32 %v1489, %v1540
    %v1542 = vpop.f32.mrb[0].mxu0
    %v1543 = vpop.f32.mrb[0].mxu0
    %v1544 = vadd.f32 %v1489, %v1543
    %v1545 = vpop.f32.mrb[0].mxu0
    %1546 = vdwg.mxu0
    %v1547 = vadd.f32 %v1071, %v1541
    %v1548 = vadd.f32 %v1072, %v1544
    %s1549 = scalar_lea.vmem [#allocation20], 1
    %v1550 = vld [vmem:[%s1549] sm:$0x1]
    %s1551 = scalar_lea.vmem [#allocation22], 1
    %v1552 = vld [vmem:[%s1551] sm:$0x1]
    %v1554 = vsel %vm324, %v1547, 0
    %v1557 = vsel %vm324, %v1548, 0
    %1559 = vmatprep.subr.mxu0 0.0
    %1560 = vmatpush1.msra.mxu0 1.0
    %1561 = vmatprep.subr.mxu0 0.0
    %1562 = vmatpush1.msra.mxu0 1.0
    %1563 = vmatprep.subr.mxu0 0.0
    %1564 = vmatpush1.msra.mxu0 1.0
    %1565 = vmatprep.subr.mxu0 0.0
    %1566 = vmatpush1.msra.mxu0 1.0
    %1567 = vmatprep.subr.mxu0 0.0
    %1568 = vmatpush1.msra.mxu0 0.0
    %1569 = vmatprep.subr.mxu0 0.0
    %1570 = vmatpush1.msra.mxu0 0.0
    %1571 = vmatprep.subr.mxu0 0.0
    %1572 = vmatpush1.msra.mxu0 0.0
    %1573 = vmatprep.subr.mxu0 0.0
    %1574 = vmatpush1.msra.mxu0 0.0
    %1575 = vmatprep.subr.mxu0 0.0
    %1576 = vmatpush1.msra.mxu0 0.0
    %1577 = vmatprep.subr.mxu0 0.0
    %1578 = vmatpush1.msra.mxu0 0.0
    %1579 = vmatprep.subr.mxu0 0.0
    %1580 = vmatpush1.msra.mxu0 0.0
    %1581 = vmatprep.subr.mxu0 0.0
    %1582 = vmatpush1.msra.mxu0 0.0
    %1583 = vmatprep.subr.mxu0 0.0
    %1584 = vmatpush1.msra.mxu0 0.0
    %1585 = vmatprep.subr.mxu0 0.0
    %1586 = vmatpush1.msra.mxu0 0.0
    %1587 = vmatprep.subr.mxu0 0.0
    %1588 = vmatpush1.msra.mxu0 0.0
    %1589 = vmatprep.subr.mxu0 0.0
    %1590 = vmatpush1.msra.mxu0 0.0
    %1591 = vmatprep.subr.mxu0 0.0
    %1592 = vmatpush1.msra.mxu0 0.0
    %1593 = vmatprep.subr.mxu0 0.0
    %1594 = vmatpush1.msra.mxu0 0.0
    %1595 = vmatprep.subr.mxu0 0.0
    %1596 = vmatpush1.msra.mxu0 0.0
    %1597 = vmatprep.subr.mxu0 0.0
    %1598 = vmatpush1.msra.mxu0 0.0
    %1599 = vmatprep.subr.mxu0 0.0
    %1600 = vmatpush1.msra.mxu0 0.0
    %1601 = vmatprep.subr.mxu0 0.0
    %1602 = vmatpush1.msra.mxu0 0.0
    %1603 = vmatprep.subr.mxu0 0.0
    %1604 = vmatpush1.msra.mxu0 0.0
    %1605 = vmatprep.subr.mxu0 0.0
    %1606 = vmatpush1.msra.mxu0 0.0
    %1607 = vmatprep.subr.mxu0 0.0
    %1608 = vmatpush1.msra.mxu0 0.0
    %1609 = vmatprep.subr.mxu0 0.0
    %1610 = vmatpush1.msra.mxu0 0.0
    %1611 = vmatprep.subr.mxu0 0.0
    %1612 = vmatpush1.msra.mxu0 0.0
    %1613 = vmatprep.subr.mxu0 0.0
    %1614 = vmatpush1.msra.mxu0 0.0
    %1615 = vmatprep.subr.mxu0 0.0
    %1616 = vmatpush1.msra.mxu0 0.0
    %1617 = vmatprep.subr.mxu0 0.0
    %1618 = vmatpush1.msra.mxu0 0.0
    %1619 = vmatprep.subr.mxu0 0.0
    %1620 = vmatpush1.msra.mxu0 0.0
    %1621 = vmatprep.subr.mxu0 0.0
    %1622 = vmatpush1.msra.mxu0 0.0
    %1623 = vmatprep.mubr.f32.mxu0 0.0
    %1624 = vmatmul.mubr.f32.gmra.mrb[0].mxu0 %v1554
    %v1625 = vpop.f32.mrb[0].mxu0
    %v1626 = vadd.f32 0.0, %v1625
    %v1627 = vpop.f32.mrb[0].mxu0
    %1628 = vmatprep.mubr.f32.mxu0 0.0
    %1629 = vmatmul.mubr.f32.gmra.mrb[0].mxu0 %v1557
    %v1630 = vpop.f32.mrb[0].mxu0
    %v1631 = vadd.f32 0.0, %v1630
    %v1632 = vpop.f32.mrb[0].mxu0
    %1633 = vdwg.mxu0
    %v1634 = vmul.f32 %v1547, %v1547
    %v1635 = vmul.f32 %v1548, %v1548
    %v1637 = vsel %vm324, %v1634, 0
    %v1640 = vsel %vm324, %v1635, 0
    %1642 = vmatprep.subr.mxu0 0.0
    %1643 = vmatpush1.msra.mxu0 1.0
    %1644 = vmatprep.subr.mxu0 0.0
    %1645 = vmatpush1.msra.mxu0 1.0
    %1646 = vmatprep.subr.mxu0 0.0
    %1647 = vmatpush1.msra.mxu0 1.0
    %1648 = vmatprep.subr.mxu0 0.0
    %1649 = vmatpush1.msra.mxu0 1.0
    %1650 = vmatprep.subr.mxu0 0.0
    %1651 = vmatpush1.msra.mxu0 0.0
    %1652 = vmatprep.subr.mxu0 0.0
    %1653 = vmatpush1.msra.mxu0 0.0
    %1654 = vmatprep.subr.mxu0 0.0
    %1655 = vmatpush1.msra.mxu0 0.0
    %1656 = vmatprep.subr.mxu0 0.0
    %1657 = vmatpush1.msra.mxu0 0.0
    %1658 = vmatprep.subr.mxu0 0.0
    %1659 = vmatpush1.msra.mxu0 0.0
    %1660 = vmatprep.subr.mxu0 0.0
    %1661 = vmatpush1.msra.mxu0 0.0
    %1662 = vmatprep.subr.mxu0 0.0
    %1663 = vmatpush1.msra.mxu0 0.0
    %1664 = vmatprep.subr.mxu0 0.0
    %1665 = vmatpush1.msra.mxu0 0.0
    %1666 = vmatprep.subr.mxu0 0.0
    %1667 = vmatpush1.msra.mxu0 0.0
    %1668 = vmatprep.subr.mxu0 0.0
    %1669 = vmatpush1.msra.mxu0 0.0
    %1670 = vmatprep.subr.mxu0 0.0
    %1671 = vmatpush1.msra.mxu0 0.0
    %1672 = vmatprep.subr.mxu0 0.0
    %1673 = vmatpush1.msra.mxu0 0.0
    %1674 = vmatprep.subr.mxu0 0.0
    %1675 = vmatpush1.msra.mxu0 0.0
    %1676 = vmatprep.subr.mxu0 0.0
    %1677 = vmatpush1.msra.mxu0 0.0
    %1678 = vmatprep.subr.mxu0 0.0
    %1679 = vmatpush1.msra.mxu0 0.0
    %1680 = vmatprep.subr.mxu0 0.0
    %1681 = vmatpush1.msra.mxu0 0.0
    %1682 = vmatprep.subr.mxu0 0.0
    %1683 = vmatpush1.msra.mxu0 0.0
    %1684 = vmatprep.subr.mxu0 0.0
    %1685 = vmatpush1.msra.mxu0 0.0
    %1686 = vmatprep.subr.mxu0 0.0
    %1687 = vmatpush1.msra.mxu0 0.0
    %1688 = vmatprep.subr.mxu0 0.0
    %1689 = vmatpush1.msra.mxu0 0.0
    %1690 = vmatprep.subr.mxu0 0.0
    %1691 = vmatpush1.msra.mxu0 0.0
    %1692 = vmatprep.subr.mxu0 0.0
    %1693 = vmatpush1.msra.mxu0 0.0
    %1694 = vmatprep.subr.mxu0 0.0
    %1695 = vmatpush1.msra.mxu0 0.0
    %1696 = vmatprep.subr.mxu0 0.0
    %1697 = vmatpush1.msra.mxu0 0.0
    %1698 = vmatprep.subr.mxu0 0.0
    %1699 = vmatpush1.msra.mxu0 0.0
    %1700 = vmatprep.subr.mxu0 0.0
    %1701 = vmatpush1.msra.mxu0 0.0
    %1702 = vmatprep.subr.mxu0 0.0
    %1703 = vmatpush1.msra.mxu0 0.0
    %1704 = vmatprep.subr.mxu0 0.0
    %1705 = vmatpush1.msra.mxu0 0.0
    %1706 = vmatprep.mubr.f32.mxu0 0.0
    %1707 = vmatmul.mubr.f32.gmra.mrb[0].mxu0 %v1637
    %v1708 = vpop.f32.mrb[0].mxu0
    %v1709 = vadd.f32 0.0, %v1708
    %v1710 = vpop.f32.mrb[0].mxu0
    %1711 = vmatprep.mubr.f32.mxu0 0.0
    %1712 = vmatmul.mubr.f32.gmra.mrb[0].mxu0 %v1640
    %v1713 = vpop.f32.mrb[0].mxu0
    %v1714 = vadd.f32 0.0, %v1713
    %v1715 = vpop.f32.mrb[0].mxu0
    %1716 = vdwg.mxu0
    %v1717 = vmul.f32 %v1626, 0.03125
    %v1718 = vmul.f32 %v1631, 0.03125
    %v1719 = vmul.f32 %v1709, 0.03125
    %v1720 = vmul.f32 %v1714, 0.03125
    %v1721 = vmul.f32 %v1717, %v1717
    %v1722 = vmul.f32 %v1718, %v1718
    %v1723 = vsub.f32 %v1719, %v1721
    %v1724 = vsub.f32 %v1720, %v1722
    %v1725 = vmax.f32 %v1723, 0.0
    %v1726 = vmax.f32 %v1724, 0.0
    %1728 = vset.pattern.permute.xlu0 0
    %1729 = vperm.xlu0 %1728, %v1717
    %v1730 = vpop.permute.xlu0 %1729
    %1733 = vset.pattern.permute.xlu0 0
    %1734 = vperm.xlu0 %1733, %v1718
    %v1735 = vpop.permute.xlu0 %1734
    %v1737 = vsub.f32 %v1547, %v1730
    %v1738 = vsub.f32 %v1548, %v1735
    %v1739 = vadd.f32 %v1725, 1e-05
    %v1740 = vadd.f32 %v1726, 1e-05
    %v1741 = vrsqrt.pop %v1739
    %v1742 = vrsqrt.pop %v1740
    %1744 = vset.pattern.permute.xlu0 0
    %1745 = vperm.xlu0 %1744, %v1741
    %v1746 = vpop.permute.xlu0 %1745
    %1749 = vset.pattern.permute.xlu0 0
    %1750 = vperm.xlu0 %1749, %v1742
    %v1751 = vpop.permute.xlu0 %1750
    %v1753 = vmul.f32 %v1737, %v1746
    %v1754 = vmul.f32 %v1738, %v1751
    %v1756 = vlaneseq
    %v1757 = vshrl.u32 %v1756, 7
    %v1758 = vsub.s32 0, %v1757
    %v1759 = vrot.slane %v1550, %v1758
    %v1761 = vmul.f32 %v1753, %v1759
    %v1762 = vmul.f32 %v1754, %v1759
    %v1764 = vlaneseq
    %v1765 = vshrl.u32 %v1764, 7
    %v1766 = vsub.s32 0, %v1765
    %v1767 = vrot.slane %v1552, %v1766
    %v1769 = vadd.f32 %v1761, %v1767
    %v1770 = vadd.f32 %v1762, %v1767
    %v1771 = vpack.c.bf16 %v1770, %v1769
    %s1772 = scalar_lea.vmem %s13, 16
    %v1773 = vld [vmem:[%s1772] sm:$0xf]
    %v1774 = vld [vmem:[%s1772 + $0x4] sm:$0xf]
    %v1775 = vld [vmem:[%s1772 + $0x8] sm:$0xf]
    %v1776 = vld [vmem:[%s1772 + $0xc] sm:$0xf]
    %s1777 = scalar_lea.vmem [#allocation23], 1
    %v1778 = vld [vmem:[%s1777] sm:$0x1]
    %v1780 = vlaneseq
    %v1781 = vshrl.u32 %v1780, 7
    %v1782 = vsub.s32 0, %v1781
    %v1783 = vrot.slane %v1778, %v1782
    %v1789 = vunpack.c.l.b16 %v1773
    %v1790 = vunpack.c.l.b16 %v1774
    %v1791 = vunpack.c.l.b16 %v1775
    %v1792 = vunpack.c.l.b16 %v1776
    %v1793 = vpack.c.b16 %v1790, %v1789
    %v1794 = vpack.c.b16 %v1792, %v1791
    %v1798 = vsel %vm324, %v1771, 0
    %1800 = vmatprep.subr.bf16.mxu0 0
    %1801 = vmatpush1.bf16.msra.mxu0 %v1793
    %1802 = vmatprep.subr.bf16.mxu0 0
    %1803 = vmatpush1.bf16.msra.mxu0 %v1794
    %1804 = vmatprep.subr.bf16.mxu0 0
    %1805 = vmatpush1.bf16.msra.mxu0 0
    %1806 = vmatprep.subr.bf16.mxu0 0
    %1807 = vmatpush1.bf16.msra.mxu0 0
    %1808 = vmatprep.subr.bf16.mxu0 0
    %1809 = vmatpush1.bf16.msra.mxu0 0
    %1810 = vmatprep.subr.bf16.mxu0 0
    %1811 = vmatpush1.bf16.msra.mxu0 0
    %1812 = vmatprep.subr.bf16.mxu0 0
    %1813 = vmatpush1.bf16.msra.mxu0 0
    %1814 = vmatprep.subr.bf16.mxu0 0
    %1815 = vmatpush1.bf16.msra.mxu0 0
    %1816 = vmatprep.subr.bf16.mxu0 0
    %1817 = vmatpush1.bf16.msra.mxu0 0
    %1818 = vmatprep.subr.bf16.mxu0 0
    %1819 = vmatpush1.bf16.msra.mxu0 0
    %1820 = vmatprep.subr.bf16.mxu0 0
    %1821 = vmatpush1.bf16.msra.mxu0 0
    %1822 = vmatprep.subr.bf16.mxu0 0
    %1823 = vmatpush1.bf16.msra.mxu0 0
    %1824 = vmatprep.subr.bf16.mxu0 0
    %1825 = vmatpush1.bf16.msra.mxu0 0
    %1826 = vmatprep.subr.bf16.mxu0 0
    %1827 = vmatpush1.bf16.msra.mxu0 0
    %1828 = vmatprep.subr.bf16.mxu0 0
    %1829 = vmatpush1.bf16.msra.mxu0 0
    %1830 = vmatprep.subr.bf16.mxu0 0
    %1831 = vmatpush1.bf16.msra.mxu0 0
    %1832 = vmatprep.mubr.bf16.mxu0 0
    %1833 = vmatmul.mubr.bf16.gmra.mrb[0].mxu0 %v1798
    %v1834 = vpop.f32.mrb[0].mxu0
    %v1835 = vadd.f32 %v1783, %v1834
    %v1836 = vpop.f32.mrb[0].mxu0
    %v1837 = vpop.f32.mrb[0].mxu0
    %v1838 = vadd.f32 %v1783, %v1837
    %v1839 = vpop.f32.mrb[0].mxu0
    %1840 = vdwg.mxu0
    %vm1841 = vcmp.gt.f32.partialorder %v1835, 0.0
    %vm1842 = vcmp.gt.f32.partialorder %v1838, 0.0
    %v1843 = vmin.f32 %v1835, 0.0
    %v1844 = vmin.f32 %v1838, 0.0
    %v1845 = vmul.f32 %v1843, 1.442695
    %v1846 = vpow.pop %v1845
    %v1847 = vmul.f32 %v1844, 1.442695
    %v1848 = vpow.pop %v1847
    %v1849 = vsub.f32 %v1846, 1.0
    %v1850 = vsub.f32 %v1848, 1.0
    %v1851 = vsel %vm1841, %v1835, %v1849
    %v1852 = vsel %vm1842, %v1838, %v1850
    %v1853 = vpack.c.bf16 %v1852, %v1851
    %s1854 = scalar_lea.vmem [#allocation8], 32
    %v1855 = vld [vmem:[%s1854] sm:$0xf]
    %v1856 = vld [vmem:[%s1854 + $0x4] sm:$0xf]
    %v1857 = vld [vmem:[%s1854 + $0x8] sm:$0xf]
    %v1858 = vld [vmem:[%s1854 + $0xc] sm:$0xf]
    %s1859 = scalar_lea.vmem [#allocation10], 2
    %v1860 = vld [vmem:[%s1859] sm:$0x1]
    %v1862 = vlaneseq
    %v1863 = vshrl.u32 %v1862, 7
    %v1864 = vsub.s32 0, %v1863
    %v1865 = vrot.slane %v1860, %v1864
    %v1871 = vunpack.c.l.b16 %v1855
    %v1872 = vunpack.c.l.b16 %v1856
    %v1873 = vunpack.c.l.b16 %v1857
    %v1874 = vunpack.c.l.b16 %v1858
    %v1875 = vpack.c.b16 %v1872, %v1871
    %v1876 = vpack.c.b16 %v1874, %v1873
    %v1880 = vsel %vm324, %v1853, 0
    %1882 = vmatprep.subr.bf16.mxu0 0
    %1883 = vmatpush1.bf16.msra.mxu0 %v1875
    %1884 = vmatprep.subr.bf16.mxu0 0
    %1885 = vmatpush1.bf16.msra.mxu0 %v1876
    %1886 = vmatprep.subr.bf16.mxu0 0
    %1887 = vmatpush1.bf16.msra.mxu0 0
    %1888 = vmatprep.subr.bf16.mxu0 0
    %1889 = vmatpush1.bf16.msra.mxu0 0
    %1890 = vmatprep.subr.bf16.mxu0 0
    %1891 = vmatpush1.bf16.msra.mxu0 0
    %1892 = vmatprep.subr.bf16.mxu0 0
    %1893 = vmatpush1.bf16.msra.mxu0 0
    %1894 = vmatprep.subr.bf16.mxu0 0
    %1895 = vmatpush1.bf16.msra.mxu0 0
    %1896 = vmatprep.subr.bf16.mxu0 0
    %1897 = vmatpush1.bf16.msra.mxu0 0
    %1898 = vmatprep.subr.bf16.mxu0 0
    %1899 = vmatpush1.bf16.msra.mxu0 0
    %1900 = vmatprep.subr.bf16.mxu0 0
    %1901 = vmatpush1.bf16.msra.mxu0 0
    %1902 = vmatprep.subr.bf16.mxu0 0
    %1903 = vmatpush1.bf16.msra.mxu0 0
    %1904 = vmatprep.subr.bf16.mxu0 0
    %1905 = vmatpush1.bf16.msra.mxu0 0
    %1906 = vmatprep.subr.bf16.mxu0 0
    %1907 = vmatpush1.bf16.msra.mxu0 0
    %1908 = vmatprep.subr.bf16.mxu0 0
    %1909 = vmatpush1.bf16.msra.mxu0 0
    %1910 = vmatprep.subr.bf16.mxu0 0
    %1911 = vmatpush1.bf16.msra.mxu0 0
    %1912 = vmatprep.subr.bf16.mxu0 0
    %1913 = vmatpush1.bf16.msra.mxu0 0
    %1914 = vmatprep.mubr.bf16.mxu0 0
    %1915 = vmatmul.mubr.bf16.gmra.mrb[0].mxu0 %v1880
    %v1916 = vpop.f32.mrb[0].mxu0
    %v1917 = vadd.f32 %v1865, %v1916
    %v1918 = vpop.f32.mrb[0].mxu0
    %v1919 = vpop.f32.mrb[0].mxu0
    %v1920 = vadd.f32 %v1865, %v1919
    %v1921 = vpop.f32.mrb[0].mxu0
    %1922 = vdwg.mxu0
    %s1923 = scalar_lea.vmem [#allocation11], 32
    %v1924 = vld [vmem:[%s1923] sm:$0xf]
    %v1925 = vld [vmem:[%s1923 + $0x4] sm:$0xf]
    %v1926 = vld [vmem:[%s1923 + $0x8] sm:$0xf]
    %v1927 = vld [vmem:[%s1923 + $0xc] sm:$0xf]
    %s1928 = scalar_lea.vmem [#allocation13], 2
    %v1929 = vld [vmem:[%s1928] sm:$0x1]
    %v1931 = vlaneseq
    %v1932 = vshrl.u32 %v1931, 7
    %v1933 = vsub.s32 0, %v1932
    %v1934 = vrot.slane %v1929, %v1933
    %v1940 = vunpack.c.l.b16 %v1924
    %v1941 = vunpack.c.l.b16 %v1925
    %v1942 = vunpack.c.l.b16 %v1926
    %v1943 = vunpack.c.l.b16 %v1927
    %v1944 = vpack.c.b16 %v1941, %v1940
    %v1945 = vpack.c.b16 %v1943, %v1942
    %1948 = vmatprep.subr.bf16.mxu0 0
    %1949 = vmatpush1.bf16.msra.mxu0 %v1944
    %1950 = vmatprep.subr.bf16.mxu0 0
    %1951 = vmatpush1.bf16.msra.mxu0 %v1945
    %1952 = vmatprep.subr.bf16.mxu0 0
    %1953 = vmatpush1.bf16.msra.mxu0 0
    %1954 = vmatprep.subr.bf16.mxu0 0
    %1955 = vmatpush1.bf16.msra.mxu0 0
    %1956 = vmatprep.subr.bf16.mxu0 0
    %1957 = vmatpush1.bf16.msra.mxu0 0
    %1958 = vmatprep.subr.bf16.mxu0 0
    %1959 = vmatpush1.bf16.msra.mxu0 0
    %1960 = vmatprep.subr.bf16.mxu0 0
    %1961 = vmatpush1.bf16.msra.mxu0 0
    %1962 = vmatprep.subr.bf16.mxu0 0
    %1963 = vmatpush1.bf16.msra.mxu0 0
    %1964 = vmatprep.subr.bf16.mxu0 0
    %1965 = vmatpush1.bf16.msra.mxu0 0
    %1966 = vmatprep.subr.bf16.mxu0 0
    %1967 = vmatpush1.bf16.msra.mxu0 0
    %1968 = vmatprep.subr.bf16.mxu0 0
    %1969 = vmatpush1.bf16.msra.mxu0 0
    %1970 = vmatprep.subr.bf16.mxu0 0
    %1971 = vmatpush1.bf16.msra.mxu0 0
    %1972 = vmatprep.subr.bf16.mxu0 0
    %1973 = vmatpush1.bf16.msra.mxu0 0
    %1974 = vmatprep.subr.bf16.mxu0 0
    %1975 = vmatpush1.bf16.msra.mxu0 0
    %1976 = vmatprep.subr.bf16.mxu0 0
    %1977 = vmatpush1.bf16.msra.mxu0 0
    %1978 = vmatprep.subr.bf16.mxu0 0
    %1979 = vmatpush1.bf16.msra.mxu0 0
    %1980 = vmatprep.mubr.bf16.mxu0 0
    %1981 = vmatmul.mubr.bf16.gmra.mrb[0].mxu0 %v393
    %v1982 = vpop.f32.mrb[0].mxu0
    %v1983 = vadd.f32 %v1934, %v1982
    %v1984 = vpop.f32.mrb[0].mxu0
    %v1985 = vpop.f32.mrb[0].mxu0
    %v1986 = vadd.f32 %v1934, %v1985
    %v1987 = vpop.f32.mrb[0].mxu0
    %1988 = vdwg.mxu0
    %s1989 = scalar_lea.vmem [#allocation14], 32
    %v1990 = vld [vmem:[%s1989] sm:$0xf]
    %v1991 = vld [vmem:[%s1989 + $0x4] sm:$0xf]
    %v1992 = vld [vmem:[%s1989 + $0x8] sm:$0xf]
    %v1993 = vld [vmem:[%s1989 + $0xc] sm:$0xf]
    %s1994 = scalar_lea.vmem [#allocation16], 2
    %v1995 = vld [vmem:[%s1994] sm:$0x1]
    %v1997 = vlaneseq
    %v1998 = vshrl.u32 %v1997, 7
    %v1999 = vsub.s32 0, %v1998
    %v2000 = vrot.slane %v1995, %v1999
    %v2006 = vunpack.c.l.b16 %v1990
    %v2007 = vunpack.c.l.b16 %v1991
    %v2008 = vunpack.c.l.b16 %v1992
    %v2009 = vunpack.c.l.b16 %v1993
    %v2010 = vpack.c.b16 %v2007, %v2006
    %v2011 = vpack.c.b16 %v2009, %v2008
    %2014 = vmatprep.subr.bf16.mxu0 0
    %2015 = vmatpush1.bf16.msra.mxu0 %v2010
    %2016 = vmatprep.subr.bf16.mxu0 0
    %2017 = vmatpush1.bf16.msra.mxu0 %v2011
    %2018 = vmatprep.subr.bf16.mxu0 0
    %2019 = vmatpush1.bf16.msra.mxu0 0
    %2020 = vmatprep.subr.bf16.mxu0 0
    %2021 = vmatpush1.bf16.msra.mxu0 0
    %2022 = vmatprep.subr.bf16.mxu0 0
    %2023 = vmatpush1.bf16.msra.mxu0 0
    %2024 = vmatprep.subr.bf16.mxu0 0
    %2025 = vmatpush1.bf16.msra.mxu0 0
    %2026 = vmatprep.subr.bf16.mxu0 0
    %2027 = vmatpush1.bf16.msra.mxu0 0
    %2028 = vmatprep.subr.bf16.mxu0 0
    %2029 = vmatpush1.bf16.msra.mxu0 0
    %2030 = vmatprep.subr.bf16.mxu0 0
    %2031 = vmatpush1.bf16.msra.mxu0 0
    %2032 = vmatprep.subr.bf16.mxu0 0
    %2033 = vmatpush1.bf16.msra.mxu0 0
    %2034 = vmatprep.subr.bf16.mxu0 0
    %2035 = vmatpush1.bf16.msra.mxu0 0
    %2036 = vmatprep.subr.bf16.mxu0 0
    %2037 = vmatpush1.bf16.msra.mxu0 0
    %2038 = vmatprep.subr.bf16.mxu0 0
    %2039 = vmatpush1.bf16.msra.mxu0 0
    %2040 = vmatprep.subr.bf16.mxu0 0
    %2041 = vmatpush1.bf16.msra.mxu0 0
    %2042 = vmatprep.subr.bf16.mxu0 0
    %2043 = vmatpush1.bf16.msra.mxu0 0
    %2044 = vmatprep.subr.bf16.mxu0 0
    %2045 = vmatpush1.bf16.msra.mxu0 0
    %2046 = vmatprep.mubr.bf16.mxu0 0
    %2047 = vmatmul.mubr.bf16.gmra.mrb[0].mxu0 %v393
    %v2048 = vpop.f32.mrb[0].mxu0
    %v2049 = vadd.f32 %v2000, %v2048
    %v2050 = vpop.f32.mrb[0].mxu0
    %v2051 = vpop.f32.mrb[0].mxu0
    %v2052 = vadd.f32 %v2000, %v2051
    %v2053 = vpop.f32.mrb[0].mxu0
    %2054 = vdwg.mxu0
    %v2055 = vpack.c.bf16 %v1920, %v1917
    %v2056 = vpack.c.bf16 %v1986, %v1983
    %v2058 = vsel %vm324, %v2055, 0
    %v2061 = vsel %vm324, %v2056, 0
    %2063 = vmatprep.subr.bf16.mxu0 0
    %2064 = vmatpush1.bf16.xpose.msra.mxu0 %v2061
    %2065 = vmatprep.subr.bf16.mxu0 0
    %2066 = vmatpush1.bf16.xpose.msra.mxu0 0
    %2067 = vmatprep.subr.bf16.mxu0 0
    %2068 = vmatpush1.bf16.xpose.msra.mxu0 0
    %2069 = vmatprep.subr.bf16.mxu0 0
    %2070 = vmatpush1.bf16.xpose.msra.mxu0 0
    %2071 = vmatprep.subr.bf16.mxu0 0
    %2072 = vmatpush1.bf16.xpose.msra.mxu0 0
    %2073 = vmatprep.subr.bf16.mxu0 0
    %2074 = vmatpush1.bf16.xpose.msra.mxu0 0
    %2075 = vmatprep.subr.bf16.mxu0 0
    %2076 = vmatpush1.bf16.xpose.msra.mxu0 0
    %2077 = vmatprep.subr.bf16.mxu0 0
    %2078 = vmatpush1.bf16.xpose.msra.mxu0 0
    %2079 = vmatprep.subr.bf16.mxu0 0
    %2080 = vmatpush1.bf16.xpose.msra.mxu0 0
    %2081 = vmatprep.subr.bf16.mxu0 0
    %2082 = vmatpush1.bf16.xpose.msra.mxu0 0
    %2083 = vmatprep.subr.bf16.mxu0 0
    %2084 = vmatpush1.bf16.xpose.msra.mxu0 0
    %2085 = vmatprep.subr.bf16.mxu0 0
    %2086 = vmatpush1.bf16.xpose.msra.mxu0 0
    %2087 = vmatprep.subr.bf16.mxu0 0
    %2088 = vmatpush1.bf16.xpose.msra.mxu0 0
    %2089 = vmatprep.subr.bf16.mxu0 0
    %2090 = vmatpush1.bf16.xpose.msra.mxu0 0
    %2091 = vmatprep.subr.bf16.mxu0 0
    %2092 = vmatpush1.bf16.xpose.msra.mxu0 0
    %2093 = vmatprep.subr.bf16.mxu0 0
    %2094 = vmatpush1.bf16.xpose.msra.mxu0 0
    %2095 = vmatprep.mubr.bf16.mxu0 0
    %2096 = vmatmul.mubr.bf16.gmra.mrb[0].mxu0 %v2058
    %v2097 = vpop.f32.mrb[0].mxu0
    %v2098 = vadd.f32 %v295, %v2097
    %v2099 = vpop.f32.mrb[0].mxu0
    %v2100 = vpop.f32.mrb[0].mxu0
    %v2101 = vadd.f32 %v296, %v2100
    %v2102 = vpop.f32.mrb[0].mxu0
    %2103 = vdwg.mxu0
    %v2104 = vsel %vm549, %v2098, -inf
    %2105 = vmax.xlane.f32.xlu0 %v2104
    %v2106 = vpop.xlane.xlu0 %2105
    %v2107 = vsel %vm549, %v2101, -inf
    %2108 = vmax.xlane.f32.xlu0 %v2107
    %v2109 = vpop.xlane.xlu0 %2108
    %v2110 = vsub.f32 %v2098, %v2106
    %v2111 = vsub.f32 %v2101, %v2109
    %v2112 = vmul.f32 %v2110, 1.442695
    %v2113 = vpow.pop %v2112
    %v2114 = vmul.f32 %v2111, 1.442695
    %v2115 = vpow.pop %v2114
    %v2117 = vsel %vm549, %v2113, 0
    %v2120 = vsel %vm549, %v2115, 0
    %2122 = vmatprep.subr.mxu0 0.0
    %2123 = vmatpush1.msra.mxu0 1.0
    %2124 = vmatprep.subr.mxu0 0.0
    %2125 = vmatpush1.msra.mxu0 1.0
    %2126 = vmatprep.subr.mxu0 0.0
    %2127 = vmatpush1.msra.mxu0 0.0
    %2128 = vmatprep.subr.mxu0 0.0
    %2129 = vmatpush1.msra.mxu0 0.0
    %2130 = vmatprep.subr.mxu0 0.0
    %2131 = vmatpush1.msra.mxu0 0.0
    %2132 = vmatprep.subr.mxu0 0.0
    %2133 = vmatpush1.msra.mxu0 0.0
    %2134 = vmatprep.subr.mxu0 0.0
    %2135 = vmatpush1.msra.mxu0 0.0
    %2136 = vmatprep.subr.mxu0 0.0
    %2137 = vmatpush1.msra.mxu0 0.0
    %2138 = vmatprep.subr.mxu0 0.0
    %2139 = vmatpush1.msra.mxu0 0.0
    %2140 = vmatprep.subr.mxu0 0.0
    %2141 = vmatpush1.msra.mxu0 0.0
    %2142 = vmatprep.subr.mxu0 0.0
    %2143 = vmatpush1.msra.mxu0 0.0
    %2144 = vmatprep.subr.mxu0 0.0
    %2145 = vmatpush1.msra.mxu0 0.0
    %2146 = vmatprep.subr.mxu0 0.0
    %2147 = vmatpush1.msra.mxu0 0.0
    %2148 = vmatprep.subr.mxu0 0.0
    %2149 = vmatpush1.msra.mxu0 0.0
    %2150 = vmatprep.subr.mxu0 0.0
    %2151 = vmatpush1.msra.mxu0 0.0
    %2152 = vmatprep.subr.mxu0 0.0
    %2153 = vmatpush1.msra.mxu0 0.0
    %2154 = vmatprep.subr.mxu0 0.0
    %2155 = vmatpush1.msra.mxu0 0.0
    %2156 = vmatprep.subr.mxu0 0.0
    %2157 = vmatpush1.msra.mxu0 0.0
    %2158 = vmatprep.subr.mxu0 0.0
    %2159 = vmatpush1.msra.mxu0 0.0
    %2160 = vmatprep.subr.mxu0 0.0
    %2161 = vmatpush1.msra.mxu0 0.0
    %2162 = vmatprep.subr.mxu0 0.0
    %2163 = vmatpush1.msra.mxu0 0.0
    %2164 = vmatprep.subr.mxu0 0.0
    %2165 = vmatpush1.msra.mxu0 0.0
    %2166 = vmatprep.subr.mxu0 0.0
    %2167 = vmatpush1.msra.mxu0 0.0
    %2168 = vmatprep.subr.mxu0 0.0
    %2169 = vmatpush1.msra.mxu0 0.0
    %2170 = vmatprep.subr.mxu0 0.0
    %2171 = vmatpush1.msra.mxu0 0.0
    %2172 = vmatprep.subr.mxu0 0.0
    %2173 = vmatpush1.msra.mxu0 0.0
    %2174 = vmatprep.subr.mxu0 0.0
    %2175 = vmatpush1.msra.mxu0 0.0
    %2176 = vmatprep.subr.mxu0 0.0
    %2177 = vmatpush1.msra.mxu0 0.0
    %2178 = vmatprep.subr.mxu0 0.0
    %2179 = vmatpush1.msra.mxu0 0.0
    %2180 = vmatprep.subr.mxu0 0.0
    %2181 = vmatpush1.msra.mxu0 0.0
    %2182 = vmatprep.subr.mxu0 0.0
    %2183 = vmatpush1.msra.mxu0 0.0
    %2184 = vmatprep.subr.mxu0 0.0
    %2185 = vmatpush1.msra.mxu0 0.0
    %2186 = vmatprep.mubr.f32.mxu0 0.0
    %2187 = vmatmul.mubr.f32.gmra.mrb[0].mxu0 %v2117
    %v2188 = vpop.f32.mrb[0].mxu0
    %v2189 = vadd.f32 0.0, %v2188
    %v2190 = vpop.f32.mrb[0].mxu0
    %2191 = vmatprep.mubr.f32.mxu0 0.0
    %2192 = vmatmul.mubr.f32.gmra.mrb[0].mxu0 %v2120
    %v2193 = vpop.f32.mrb[0].mxu0
    %v2194 = vadd.f32 0.0, %v2193
    %v2195 = vpop.f32.mrb[0].mxu0
    %2196 = vdwg.mxu0
    %v2197 = vrcp.pop %v2189
    %v2198 = vrcp.pop %v2194
    %2200 = vset.pattern.permute.xlu0 0
    %2201 = vperm.xlu0 %2200, %v2197
    %v2202 = vpop.permute.xlu0 %2201
    %2205 = vset.pattern.permute.xlu0 0
    %2206 = vperm.xlu0 %2205, %v2198
    %v2207 = vpop.permute.xlu0 %2206
    %v2209 = vmul.f32 %v2113, %v2202
    %v2210 = vmul.f32 %v2115, %v2207
    %v2211 = vpack.c.bf16 %v2210, %v2209
    %v2212 = vpack.c.bf16 %v2052, %v2049
    %v2214 = vsel %vm549, %v2211, 0
    %2216 = vmatprep.subr.bf16.mxu0 0
    %2217 = vmatpush1.bf16.msra.mxu0 %v2212
    %2218 = vmatprep.subr.bf16.mxu0 0
    %2219 = vmatpush1.bf16.msra.mxu0 0
    %2220 = vmatprep.subr.bf16.mxu0 0
    %2221 = vmatpush1.bf16.msra.mxu0 0
    %2222 = vmatprep.subr.bf16.mxu0 0
    %2223 = vmatpush1.bf16.msra.mxu0 0
    %2224 = vmatprep.subr.bf16.mxu0 0
    %2225 = vmatpush1.bf16.msra.mxu0 0
    %2226 = vmatprep.subr.bf16.mxu0 0
    %2227 = vmatpush1.bf16.msra.mxu0 0
    %2228 = vmatprep.subr.bf16.mxu0 0
    %2229 = vmatpush1.bf16.msra.mxu0 0
    %2230 = vmatprep.subr.bf16.mxu0 0
    %2231 = vmatpush1.bf16.msra.mxu0 0
    %2232 = vmatprep.subr.bf16.mxu0 0
    %2233 = vmatpush1.bf16.msra.mxu0 0
    %2234 = vmatprep.subr.bf16.mxu0 0
    %2235 = vmatpush1.bf16.msra.mxu0 0
    %2236 = vmatprep.subr.bf16.mxu0 0
    %2237 = vmatpush1.bf16.msra.mxu0 0
    %2238 = vmatprep.subr.bf16.mxu0 0
    %2239 = vmatpush1.bf16.msra.mxu0 0
    %2240 = vmatprep.subr.bf16.mxu0 0
    %2241 = vmatpush1.bf16.msra.mxu0 0
    %2242 = vmatprep.subr.bf16.mxu0 0
    %2243 = vmatpush1.bf16.msra.mxu0 0
    %2244 = vmatprep.subr.bf16.mxu0 0
    %2245 = vmatpush1.bf16.msra.mxu0 0
    %2246 = vmatprep.subr.bf16.mxu0 0
    %2247 = vmatpush1.bf16.msra.mxu0 0
    %2248 = vmatprep.mubr.bf16.mxu0 0
    %2249 = vmatmul.mubr.bf16.gmra.mrb[0].mxu0 %v2214
    %v2250 = vpop.f32.mrb[0].mxu0
    %v2251 = vadd.f32 0.0, %v2250
    %v2252 = vpop.f32.mrb[0].mxu0
    %v2253 = vpop.f32.mrb[0].mxu0
    %v2254 = vadd.f32 0.0, %v2253
    %v2255 = vpop.f32.mrb[0].mxu0
    %2256 = vdwg.mxu0
    %v2257 = vpack.c.bf16 %v2254, %v2251
    %s2258 = scalar_lea.vmem [#allocation17], 32
    %v2259 = vld [vmem:[%s2258] sm:$0xf]
    %v2260 = vld [vmem:[%s2258 + $0x4] sm:$0xf]
    %v2261 = vld [vmem:[%s2258 + $0x8] sm:$0xf]
    %v2262 = vld [vmem:[%s2258 + $0xc] sm:$0xf]
    %s2263 = scalar_lea.vmem [#allocation19], 2
    %v2264 = vld [vmem:[%s2263] sm:$0x1]
    %v2266 = vlaneseq
    %v2267 = vshrl.u32 %v2266, 7
    %v2268 = vsub.s32 0, %v2267
    %v2269 = vrot.slane %v2264, %v2268
    %v2275 = vunpack.c.l.b16 %v2259
    %v2276 = vunpack.c.l.b16 %v2260
    %v2277 = vunpack.c.l.b16 %v2261
    %v2278 = vunpack.c.l.b16 %v2262
    %v2279 = vpack.c.b16 %v2276, %v2275
    %v2280 = vpack.c.b16 %v2278, %v2277
    %v2284 = vsel %vm324, %v2257, 0
    %2286 = vmatprep.subr.bf16.mxu0 0
    %2287 = vmatpush1.bf16.msra.mxu0 %v2279
    %2288 = vmatprep.subr.bf16.mxu0 0
    %2289 = vmatpush1.bf16.msra.mxu0 %v2280
    %2290 = vmatprep.subr.bf16.mxu0 0
    %2291 = vmatpush1.bf16.msra.mxu0 0
    %2292 = vmatprep.subr.bf16.mxu0 0
    %2293 = vmatpush1.bf16.msra.mxu0 0
    %2294 = vmatprep.subr.bf16.mxu0 0
    %2295 = vmatpush1.bf16.msra.mxu0 0
    %2296 = vmatprep.subr.bf16.mxu0 0
    %2297 = vmatpush1.bf16.msra.mxu0 0
    %2298 = vmatprep.subr.bf16.mxu0 0
    %2299 = vmatpush1.bf16.msra.mxu0 0
    %2300 = vmatprep.subr.bf16.mxu0 0
    %2301 = vmatpush1.bf16.msra.mxu0 0
    %2302 = vmatprep.subr.bf16.mxu0 0
    %2303 = vmatpush1.bf16.msra.mxu0 0
    %2304 = vmatprep.subr.bf16.mxu0 0
    %2305 = vmatpush1.bf16.msra.mxu0 0
    %2306 = vmatprep.subr.bf16.mxu0 0
    %2307 = vmatpush1.bf16.msra.mxu0 0
    %2308 = vmatprep.subr.bf16.mxu0 0
    %2309 = vmatpush1.bf16.msra.mxu0 0
    %2310 = vmatprep.subr.bf16.mxu0 0
    %2311 = vmatpush1.bf16.msra.mxu0 0
    %2312 = vmatprep.subr.bf16.mxu0 0
    %2313 = vmatpush1.bf16.msra.mxu0 0
    %2314 = vmatprep.subr.bf16.mxu0 0
    %2315 = vmatpush1.bf16.msra.mxu0 0
    %2316 = vmatprep.subr.bf16.mxu0 0
    %2317 = vmatpush1.bf16.msra.mxu0 0
    %2318 = vmatprep.mubr.bf16.mxu0 0
    %2319 = vmatmul.mubr.bf16.gmra.mrb[0].mxu0 %v2284
    %v2320 = vpop.f32.mrb[0].mxu0
    %v2321 = vadd.f32 %v2269, %v2320
    %v2322 = vpop.f32.mrb[0].mxu0
    %v2323 = vpop.f32.mrb[0].mxu0
    %v2324 = vadd.f32 %v2269, %v2323
    %v2325 = vpop.f32.mrb[0].mxu0
    %2326 = vdwg.mxu0
    %v2327 = vadd.f32 %v1851, %v2321
    %v2328 = vadd.f32 %v1852, %v2324
    %s2329 = scalar_lea.vmem [#allocation20], 2
    %v2330 = vld [vmem:[%s2329] sm:$0x1]
    %s2331 = scalar_lea.vmem [#allocation22], 2
    %v2332 = vld [vmem:[%s2331] sm:$0x1]
    %v2334 = vsel %vm324, %v2327, 0
    %v2337 = vsel %vm324, %v2328, 0
    %2339 = vmatprep.subr.mxu0 0.0
    %2340 = vmatpush1.msra.mxu0 1.0
    %2341 = vmatprep.subr.mxu0 0.0
    %2342 = vmatpush1.msra.mxu0 1.0
    %2343 = vmatprep.subr.mxu0 0.0
    %2344 = vmatpush1.msra.mxu0 1.0
    %2345 = vmatprep.subr.mxu0 0.0
    %2346 = vmatpush1.msra.mxu0 1.0
    %2347 = vmatprep.subr.mxu0 0.0
    %2348 = vmatpush1.msra.mxu0 0.0
    %2349 = vmatprep.subr.mxu0 0.0
    %2350 = vmatpush1.msra.mxu0 0.0
    %2351 = vmatprep.subr.mxu0 0.0
    %2352 = vmatpush1.msra.mxu0 0.0
    %2353 = vmatprep.subr.mxu0 0.0
    %2354 = vmatpush1.msra.mxu0 0.0
    %2355 = vmatprep.subr.mxu0 0.0
    %2356 = vmatpush1.msra.mxu0 0.0
    %2357 = vmatprep.subr.mxu0 0.0
    %2358 = vmatpush1.msra.mxu0 0.0
    %2359 = vmatprep.subr.mxu0 0.0
    %2360 = vmatpush1.msra.mxu0 0.0
    %2361 = vmatprep.subr.mxu0 0.0
    %2362 = vmatpush1.msra.mxu0 0.0
    %2363 = vmatprep.subr.mxu0 0.0
    %2364 = vmatpush1.msra.mxu0 0.0
    %2365 = vmatprep.subr.mxu0 0.0
    %2366 = vmatpush1.msra.mxu0 0.0
    %2367 = vmatprep.subr.mxu0 0.0
    %2368 = vmatpush1.msra.mxu0 0.0
    %2369 = vmatprep.subr.mxu0 0.0
    %2370 = vmatpush1.msra.mxu0 0.0
    %2371 = vmatprep.subr.mxu0 0.0
    %2372 = vmatpush1.msra.mxu0 0.0
    %2373 = vmatprep.subr.mxu0 0.0
    %2374 = vmatpush1.msra.mxu0 0.0
    %2375 = vmatprep.subr.mxu0 0.0
    %2376 = vmatpush1.msra.mxu0 0.0
    %2377 = vmatprep.subr.mxu0 0.0
    %2378 = vmatpush1.msra.mxu0 0.0
    %2379 = vmatprep.subr.mxu0 0.0
    %2380 = vmatpush1.msra.mxu0 0.0
    %2381 = vmatprep.subr.mxu0 0.0
    %2382 = vmatpush1.msra.mxu0 0.0
    %2383 = vmatprep.subr.mxu0 0.0
    %2384 = vmatpush1.msra.mxu0 0.0
    %2385 = vmatprep.subr.mxu0 0.0
    %2386 = vmatpush1.msra.mxu0 0.0
    %2387 = vmatprep.subr.mxu0 0.0
    %2388 = vmatpush1.msra.mxu0 0.0
    %2389 = vmatprep.subr.mxu0 0.0
    %2390 = vmatpush1.msra.mxu0 0.0
    %2391 = vmatprep.subr.mxu0 0.0
    %2392 = vmatpush1.msra.mxu0 0.0
    %2393 = vmatprep.subr.mxu0 0.0
    %2394 = vmatpush1.msra.mxu0 0.0
    %2395 = vmatprep.subr.mxu0 0.0
    %2396 = vmatpush1.msra.mxu0 0.0
    %2397 = vmatprep.subr.mxu0 0.0
    %2398 = vmatpush1.msra.mxu0 0.0
    %2399 = vmatprep.subr.mxu0 0.0
    %2400 = vmatpush1.msra.mxu0 0.0
    %2401 = vmatprep.subr.mxu0 0.0
    %2402 = vmatpush1.msra.mxu0 0.0
    %2403 = vmatprep.mubr.f32.mxu0 0.0
    %2404 = vmatmul.mubr.f32.gmra.mrb[0].mxu0 %v2334
    %v2405 = vpop.f32.mrb[0].mxu0
    %v2406 = vadd.f32 0.0, %v2405
    %v2407 = vpop.f32.mrb[0].mxu0
    %2408 = vmatprep.mubr.f32.mxu0 0.0
    %2409 = vmatmul.mubr.f32.gmra.mrb[0].mxu0 %v2337
    %v2410 = vpop.f32.mrb[0].mxu0
    %v2411 = vadd.f32 0.0, %v2410
    %v2412 = vpop.f32.mrb[0].mxu0
    %2413 = vdwg.mxu0
    %v2414 = vmul.f32 %v2327, %v2327
    %v2415 = vmul.f32 %v2328, %v2328
    %v2417 = vsel %vm324, %v2414, 0
    %v2420 = vsel %vm324, %v2415, 0
    %2422 = vmatprep.subr.mxu0 0.0
    %2423 = vmatpush1.msra.mxu0 1.0
    %2424 = vmatprep.subr.mxu0 0.0
    %2425 = vmatpush1.msra.mxu0 1.0
    %2426 = vmatprep.subr.mxu0 0.0
    %2427 = vmatpush1.msra.mxu0 1.0
    %2428 = vmatprep.subr.mxu0 0.0
    %2429 = vmatpush1.msra.mxu0 1.0
    %2430 = vmatprep.subr.mxu0 0.0
    %2431 = vmatpush1.msra.mxu0 0.0
    %2432 = vmatprep.subr.mxu0 0.0
    %2433 = vmatpush1.msra.mxu0 0.0
    %2434 = vmatprep.subr.mxu0 0.0
    %2435 = vmatpush1.msra.mxu0 0.0
    %2436 = vmatprep.subr.mxu0 0.0
    %2437 = vmatpush1.msra.mxu0 0.0
    %2438 = vmatprep.subr.mxu0 0.0
    %2439 = vmatpush1.msra.mxu0 0.0
    %2440 = vmatprep.subr.mxu0 0.0
    %2441 = vmatpush1.msra.mxu0 0.0
    %2442 = vmatprep.subr.mxu0 0.0
    %2443 = vmatpush1.msra.mxu0 0.0
    %2444 = vmatprep.subr.mxu0 0.0
    %2445 = vmatpush1.msra.mxu0 0.0
    %2446 = vmatprep.subr.mxu0 0.0
    %2447 = vmatpush1.msra.mxu0 0.0
    %2448 = vmatprep.subr.mxu0 0.0
    %2449 = vmatpush1.msra.mxu0 0.0
    %2450 = vmatprep.subr.mxu0 0.0
    %2451 = vmatpush1.msra.mxu0 0.0
    %2452 = vmatprep.subr.mxu0 0.0
    %2453 = vmatpush1.msra.mxu0 0.0
    %2454 = vmatprep.subr.mxu0 0.0
    %2455 = vmatpush1.msra.mxu0 0.0
    %2456 = vmatprep.subr.mxu0 0.0
    %2457 = vmatpush1.msra.mxu0 0.0
    %2458 = vmatprep.subr.mxu0 0.0
    %2459 = vmatpush1.msra.mxu0 0.0
    %2460 = vmatprep.subr.mxu0 0.0
    %2461 = vmatpush1.msra.mxu0 0.0
    %2462 = vmatprep.subr.mxu0 0.0
    %2463 = vmatpush1.msra.mxu0 0.0
    %2464 = vmatprep.subr.mxu0 0.0
    %2465 = vmatpush1.msra.mxu0 0.0
    %2466 = vmatprep.subr.mxu0 0.0
    %2467 = vmatpush1.msra.mxu0 0.0
    %2468 = vmatprep.subr.mxu0 0.0
    %2469 = vmatpush1.msra.mxu0 0.0
    %2470 = vmatprep.subr.mxu0 0.0
    %2471 = vmatpush1.msra.mxu0 0.0
    %2472 = vmatprep.subr.mxu0 0.0
    %2473 = vmatpush1.msra.mxu0 0.0
    %2474 = vmatprep.subr.mxu0 0.0
    %2475 = vmatpush1.msra.mxu0 0.0
    %2476 = vmatprep.subr.mxu0 0.0
    %2477 = vmatpush1.msra.mxu0 0.0
    %2478 = vmatprep.subr.mxu0 0.0
    %2479 = vmatpush1.msra.mxu0 0.0
    %2480 = vmatprep.subr.mxu0 0.0
    %2481 = vmatpush1.msra.mxu0 0.0
    %2482 = vmatprep.subr.mxu0 0.0
    %2483 = vmatpush1.msra.mxu0 0.0
    %2484 = vmatprep.subr.mxu0 0.0
    %2485 = vmatpush1.msra.mxu0 0.0
    %2486 = vmatprep.mubr.f32.mxu0 0.0
    %2487 = vmatmul.mubr.f32.gmra.mrb[0].mxu0 %v2417
    %v2488 = vpop.f32.mrb[0].mxu0
    %v2489 = vadd.f32 0.0, %v2488
    %v2490 = vpop.f32.mrb[0].mxu0
    %2491 = vmatprep.mubr.f32.mxu0 0.0
    %2492 = vmatmul.mubr.f32.gmra.mrb[0].mxu0 %v2420
    %v2493 = vpop.f32.mrb[0].mxu0
    %v2494 = vadd.f32 0.0, %v2493
    %v2495 = vpop.f32.mrb[0].mxu0
    %2496 = vdwg.mxu0
    %v2497 = vmul.f32 %v2406, 0.03125
    %v2498 = vmul.f32 %v2411, 0.03125
    %v2499 = vmul.f32 %v2489, 0.03125
    %v2500 = vmul.f32 %v2494, 0.03125
    %v2501 = vmul.f32 %v2497, %v2497
    %v2502 = vmul.f32 %v2498, %v2498
    %v2503 = vsub.f32 %v2499, %v2501
    %v2504 = vsub.f32 %v2500, %v2502
    %v2505 = vmax.f32 %v2503, 0.0
    %v2506 = vmax.f32 %v2504, 0.0
    %2508 = vset.pattern.permute.xlu0 0
    %2509 = vperm.xlu0 %2508, %v2497
    %v2510 = vpop.permute.xlu0 %2509
    %2513 = vset.pattern.permute.xlu0 0
    %2514 = vperm.xlu0 %2513, %v2498
    %v2515 = vpop.permute.xlu0 %2514
    %v2517 = vsub.f32 %v2327, %v2510
    %v2518 = vsub.f32 %v2328, %v2515
    %v2519 = vadd.f32 %v2505, 1e-05
    %v2520 = vadd.f32 %v2506, 1e-05
    %v2521 = vrsqrt.pop %v2519
    %v2522 = vrsqrt.pop %v2520
    %2524 = vset.pattern.permute.xlu0 0
    %2525 = vperm.xlu0 %2524, %v2521
    %v2526 = vpop.permute.xlu0 %2525
    %2529 = vset.pattern.permute.xlu0 0
    %2530 = vperm.xlu0 %2529, %v2522
    %v2531 = vpop.permute.xlu0 %2530
    %v2533 = vmul.f32 %v2517, %v2526
    %v2534 = vmul.f32 %v2518, %v2531
    %v2536 = vlaneseq
    %v2537 = vshrl.u32 %v2536, 7
    %v2538 = vsub.s32 0, %v2537
    %v2539 = vrot.slane %v2330, %v2538
    %v2541 = vmul.f32 %v2533, %v2539
    %v2542 = vmul.f32 %v2534, %v2539
    %v2544 = vlaneseq
    %v2545 = vshrl.u32 %v2544, 7
    %v2546 = vsub.s32 0, %v2545
    %v2547 = vrot.slane %v2332, %v2546
    %v2549 = vadd.f32 %v2541, %v2547
    %v2550 = vadd.f32 %v2542, %v2547
    %v2551 = vld [vmem:[#allocation25] sm:$0x1]
    %v2552 = vld [vmem:[#allocation26] sm:$0x1]
    %v2554 = vsel %vm324, %v2549, 0
    %v2557 = vsel %vm324, %v2550, 0
    %2559 = vmatprep.subr.mxu0 0.0
    %2560 = vmatpush1.msra.mxu0 1.0
    %2561 = vmatprep.subr.mxu0 0.0
    %2562 = vmatpush1.msra.mxu0 1.0
    %2563 = vmatprep.subr.mxu0 0.0
    %2564 = vmatpush1.msra.mxu0 1.0
    %2565 = vmatprep.subr.mxu0 0.0
    %2566 = vmatpush1.msra.mxu0 1.0
    %2567 = vmatprep.subr.mxu0 0.0
    %2568 = vmatpush1.msra.mxu0 0.0
    %2569 = vmatprep.subr.mxu0 0.0
    %2570 = vmatpush1.msra.mxu0 0.0
    %2571 = vmatprep.subr.mxu0 0.0
    %2572 = vmatpush1.msra.mxu0 0.0
    %2573 = vmatprep.subr.mxu0 0.0
    %2574 = vmatpush1.msra.mxu0 0.0
    %2575 = vmatprep.subr.mxu0 0.0
    %2576 = vmatpush1.msra.mxu0 0.0
    %2577 = vmatprep.subr.mxu0 0.0
    %2578 = vmatpush1.msra.mxu0 0.0
    %2579 = vmatprep.subr.mxu0 0.0
    %2580 = vmatpush1.msra.mxu0 0.0
    %2581 = vmatprep.subr.mxu0 0.0
    %2582 = vmatpush1.msra.mxu0 0.0
    %2583 = vmatprep.subr.mxu0 0.0
    %2584 = vmatpush1.msra.mxu0 0.0
    %2585 = vmatprep.subr.mxu0 0.0
    %2586 = vmatpush1.msra.mxu0 0.0
    %2587 = vmatprep.subr.mxu0 0.0
    %2588 = vmatpush1.msra.mxu0 0.0
    %2589 = vmatprep.subr.mxu0 0.0
    %2590 = vmatpush1.msra.mxu0 0.0
    %2591 = vmatprep.subr.mxu0 0.0
    %2592 = vmatpush1.msra.mxu0 0.0
    %2593 = vmatprep.subr.mxu0 0.0
    %2594 = vmatpush1.msra.mxu0 0.0
    %2595 = vmatprep.subr.mxu0 0.0
    %2596 = vmatpush1.msra.mxu0 0.0
    %2597 = vmatprep.subr.mxu0 0.0
    %2598 = vmatpush1.msra.mxu0 0.0
    %2599 = vmatprep.subr.mxu0 0.0
    %2600 = vmatpush1.msra.mxu0 0.0
    %2601 = vmatprep.subr.mxu0 0.0
    %2602 = vmatpush1.msra.mxu0 0.0
    %2603 = vmatprep.subr.mxu0 0.0
    %2604 = vmatpush1.msra.mxu0 0.0
    %2605 = vmatprep.subr.mxu0 0.0
    %2606 = vmatpush1.msra.mxu0 0.0
    %2607 = vmatprep.subr.mxu0 0.0
    %2608 = vmatpush1.msra.mxu0 0.0
    %2609 = vmatprep.subr.mxu0 0.0
    %2610 = vmatpush1.msra.mxu0 0.0
    %2611 = vmatprep.subr.mxu0 0.0
    %2612 = vmatpush1.msra.mxu0 0.0
    %2613 = vmatprep.subr.mxu0 0.0
    %2614 = vmatpush1.msra.mxu0 0.0
    %2615 = vmatprep.subr.mxu0 0.0
    %2616 = vmatpush1.msra.mxu0 0.0
    %2617 = vmatprep.subr.mxu0 0.0
    %2618 = vmatpush1.msra.mxu0 0.0
    %2619 = vmatprep.subr.mxu0 0.0
    %2620 = vmatpush1.msra.mxu0 0.0
    %2621 = vmatprep.subr.mxu0 0.0
    %2622 = vmatpush1.msra.mxu0 0.0
    %2623 = vmatprep.mubr.f32.mxu0 0.0
    %2624 = vmatmul.mubr.f32.gmra.mrb[0].mxu0 %v2554
    %v2625 = vpop.f32.mrb[0].mxu0
    %v2626 = vadd.f32 0.0, %v2625
    %v2627 = vpop.f32.mrb[0].mxu0
    %2628 = vmatprep.mubr.f32.mxu0 0.0
    %2629 = vmatmul.mubr.f32.gmra.mrb[0].mxu0 %v2557
    %v2630 = vpop.f32.mrb[0].mxu0
    %v2631 = vadd.f32 0.0, %v2630
    %v2632 = vpop.f32.mrb[0].mxu0
    %2633 = vdwg.mxu0
    %v2634 = vmul.f32 %v2549, %v2549
    %v2635 = vmul.f32 %v2550, %v2550
    %v2637 = vsel %vm324, %v2634, 0
    %v2640 = vsel %vm324, %v2635, 0
    %2642 = vmatprep.subr.mxu0 0.0
    %2643 = vmatpush1.msra.mxu0 1.0
    %2644 = vmatprep.subr.mxu0 0.0
    %2645 = vmatpush1.msra.mxu0 1.0
    %2646 = vmatprep.subr.mxu0 0.0
    %2647 = vmatpush1.msra.mxu0 1.0
    %2648 = vmatprep.subr.mxu0 0.0
    %2649 = vmatpush1.msra.mxu0 1.0
    %2650 = vmatprep.subr.mxu0 0.0
    %2651 = vmatpush1.msra.mxu0 0.0
    %2652 = vmatprep.subr.mxu0 0.0
    %2653 = vmatpush1.msra.mxu0 0.0
    %2654 = vmatprep.subr.mxu0 0.0
    %2655 = vmatpush1.msra.mxu0 0.0
    %2656 = vmatprep.subr.mxu0 0.0
    %2657 = vmatpush1.msra.mxu0 0.0
    %2658 = vmatprep.subr.mxu0 0.0
    %2659 = vmatpush1.msra.mxu0 0.0
    %2660 = vmatprep.subr.mxu0 0.0
    %2661 = vmatpush1.msra.mxu0 0.0
    %2662 = vmatprep.subr.mxu0 0.0
    %2663 = vmatpush1.msra.mxu0 0.0
    %2664 = vmatprep.subr.mxu0 0.0
    %2665 = vmatpush1.msra.mxu0 0.0
    %2666 = vmatprep.subr.mxu0 0.0
    %2667 = vmatpush1.msra.mxu0 0.0
    %2668 = vmatprep.subr.mxu0 0.0
    %2669 = vmatpush1.msra.mxu0 0.0
    %2670 = vmatprep.subr.mxu0 0.0
    %2671 = vmatpush1.msra.mxu0 0.0
    %2672 = vmatprep.subr.mxu0 0.0
    %2673 = vmatpush1.msra.mxu0 0.0
    %2674 = vmatprep.subr.mxu0 0.0
    %2675 = vmatpush1.msra.mxu0 0.0
    %2676 = vmatprep.subr.mxu0 0.0
    %2677 = vmatpush1.msra.mxu0 0.0
    %2678 = vmatprep.subr.mxu0 0.0
    %2679 = vmatpush1.msra.mxu0 0.0
    %2680 = vmatprep.subr.mxu0 0.0
    %2681 = vmatpush1.msra.mxu0 0.0
    %2682 = vmatprep.subr.mxu0 0.0
    %2683 = vmatpush1.msra.mxu0 0.0
    %2684 = vmatprep.subr.mxu0 0.0
    %2685 = vmatpush1.msra.mxu0 0.0
    %2686 = vmatprep.subr.mxu0 0.0
    %2687 = vmatpush1.msra.mxu0 0.0
    %2688 = vmatprep.subr.mxu0 0.0
    %2689 = vmatpush1.msra.mxu0 0.0
    %2690 = vmatprep.subr.mxu0 0.0
    %2691 = vmatpush1.msra.mxu0 0.0
    %2692 = vmatprep.subr.mxu0 0.0
    %2693 = vmatpush1.msra.mxu0 0.0
    %2694 = vmatprep.subr.mxu0 0.0
    %2695 = vmatpush1.msra.mxu0 0.0
    %2696 = vmatprep.subr.mxu0 0.0
    %2697 = vmatpush1.msra.mxu0 0.0
    %2698 = vmatprep.subr.mxu0 0.0
    %2699 = vmatpush1.msra.mxu0 0.0
    %2700 = vmatprep.subr.mxu0 0.0
    %2701 = vmatpush1.msra.mxu0 0.0
    %2702 = vmatprep.subr.mxu0 0.0
    %2703 = vmatpush1.msra.mxu0 0.0
    %2704 = vmatprep.subr.mxu0 0.0
    %2705 = vmatpush1.msra.mxu0 0.0
    %2706 = vmatprep.mubr.f32.mxu0 0.0
    %2707 = vmatmul.mubr.f32.gmra.mrb[0].mxu0 %v2637
    %v2708 = vpop.f32.mrb[0].mxu0
    %v2709 = vadd.f32 0.0, %v2708
    %v2710 = vpop.f32.mrb[0].mxu0
    %2711 = vmatprep.mubr.f32.mxu0 0.0
    %2712 = vmatmul.mubr.f32.gmra.mrb[0].mxu0 %v2640
    %v2713 = vpop.f32.mrb[0].mxu0
    %v2714 = vadd.f32 0.0, %v2713
    %v2715 = vpop.f32.mrb[0].mxu0
    %2716 = vdwg.mxu0
    %v2717 = vmul.f32 %v2626, 0.03125
    %v2718 = vmul.f32 %v2631, 0.03125
    %v2719 = vmul.f32 %v2709, 0.03125
    %v2720 = vmul.f32 %v2714, 0.03125
    %v2721 = vmul.f32 %v2717, %v2717
    %v2722 = vmul.f32 %v2718, %v2718
    %v2723 = vsub.f32 %v2719, %v2721
    %v2724 = vsub.f32 %v2720, %v2722
    %v2725 = vmax.f32 %v2723, 0.0
    %v2726 = vmax.f32 %v2724, 0.0
    %2728 = vset.pattern.permute.xlu0 0
    %2729 = vperm.xlu0 %2728, %v2717
    %v2730 = vpop.permute.xlu0 %2729
    %2733 = vset.pattern.permute.xlu0 0
    %2734 = vperm.xlu0 %2733, %v2718
    %v2735 = vpop.permute.xlu0 %2734
    %v2737 = vsub.f32 %v2549, %v2730
    %v2738 = vsub.f32 %v2550, %v2735
    %v2739 = vadd.f32 %v2725, 1e-05
    %v2740 = vadd.f32 %v2726, 1e-05
    %v2741 = vrsqrt.pop %v2739
    %v2742 = vrsqrt.pop %v2740
    %2744 = vset.pattern.permute.xlu0 0
    %2745 = vperm.xlu0 %2744, %v2741
    %v2746 = vpop.permute.xlu0 %2745
    %2749 = vset.pattern.permute.xlu0 0
    %2750 = vperm.xlu0 %2749, %v2742
    %v2751 = vpop.permute.xlu0 %2750
    %v2753 = vmul.f32 %v2737, %v2746
    %v2754 = vmul.f32 %v2738, %v2751
    %v2756 = vlaneseq
    %v2757 = vshrl.u32 %v2756, 7
    %v2758 = vsub.s32 0, %v2757
    %v2759 = vrot.slane %v2551, %v2758
    %v2761 = vmul.f32 %v2753, %v2759
    %v2762 = vmul.f32 %v2754, %v2759
    %v2764 = vlaneseq
    %v2765 = vshrl.u32 %v2764, 7
    %v2766 = vsub.s32 0, %v2765
    %v2767 = vrot.slane %v2552, %v2766
    %v2769 = vadd.f32 %v2761, %v2767
    %v2770 = vadd.f32 %v2762, %v2767
    %v2771 = vpack.c.bf16 %v2770, %v2769
    %v2772 = vld [vmem:[%s17] sm:$0xf]
    %v2773 = vld [vmem:[%s17 + $0x4] sm:$0xf]
    %v2774 = vld [vmem:[%s17 + $0x8] sm:$0xf]
    %v2775 = vld [vmem:[%s17 + $0xc] sm:$0xf]
    %s2776 = scalar_lea.vmem [#allocation5], 16
    %v2777 = vld [vmem:[%s2776] sm:$0xff]
    %v2778 = vld [vmem:[%s2776 + $0x8] sm:$0xff]
    %v2779 = vpack.c.bf16 %v2778, %v2777
    %s2780 = scalar_lea.vmem [#allocation8], 48
    %v2781 = vld [vmem:[%s2780] sm:$0xf]
    %v2782 = vld [vmem:[%s2780 + $0x4] sm:$0xf]
    %v2783 = vld [vmem:[%s2780 + $0x8] sm:$0xf]
    %v2784 = vld [vmem:[%s2780 + $0xc] sm:$0xf]
    %s2785 = scalar_lea.vmem [#allocation10], 3
    %v2786 = vld [vmem:[%s2785] sm:$0x1]
    %v2788 = vlaneseq
    %v2789 = vshrl.u32 %v2788, 7
    %v2790 = vsub.s32 0, %v2789
    %v2791 = vrot.slane %v2786, %v2790
    %v2797 = vunpack.c.l.b16 %v2781
    %v2798 = vunpack.c.l.b16 %v2782
    %v2799 = vunpack.c.l.b16 %v2783
    %v2800 = vunpack.c.l.b16 %v2784
    %v2801 = vpack.c.b16 %v2798, %v2797
    %v2802 = vpack.c.b16 %v2800, %v2799
    %2805 = vmatprep.subr.bf16.mxu0 0
    %2806 = vmatpush1.bf16.msra.mxu0 %v2801
    %2807 = vmatprep.subr.bf16.mxu0 0
    %2808 = vmatpush1.bf16.msra.mxu0 %v2802
    %2809 = vmatprep.subr.bf16.mxu0 0
    %2810 = vmatpush1.bf16.msra.mxu0 0
    %2811 = vmatprep.subr.bf16.mxu0 0
    %2812 = vmatpush1.bf16.msra.mxu0 0
    %2813 = vmatprep.subr.bf16.mxu0 0
    %2814 = vmatpush1.bf16.msra.mxu0 0
    %2815 = vmatprep.subr.bf16.mxu0 0
    %2816 = vmatpush1.bf16.msra.mxu0 0
    %2817 = vmatprep.subr.bf16.mxu0 0
    %2818 = vmatpush1.bf16.msra.mxu0 0
    %2819 = vmatprep.subr.bf16.mxu0 0
    %2820 = vmatpush1.bf16.msra.mxu0 0
    %2821 = vmatprep.subr.bf16.mxu0 0
    %2822 = vmatpush1.bf16.msra.mxu0 0
    %2823 = vmatprep.subr.bf16.mxu0 0
    %2824 = vmatpush1.bf16.msra.mxu0 0
    %2825 = vmatprep.subr.bf16.mxu0 0
    %2826 = vmatpush1.bf16.msra.mxu0 0
    %2827 = vmatprep.subr.bf16.mxu0 0
    %2828 = vmatpush1.bf16.msra.mxu0 0
    %2829 = vmatprep.subr.bf16.mxu0 0
    %2830 = vmatpush1.bf16.msra.mxu0 0
    %2831 = vmatprep.subr.bf16.mxu0 0
    %2832 = vmatpush1.bf16.msra.mxu0 0
    %2833 = vmatprep.subr.bf16.mxu0 0
    %2834 = vmatpush1.bf16.msra.mxu0 0
    %2835 = vmatprep.subr.bf16.mxu0 0
    %2836 = vmatpush1.bf16.msra.mxu0 0
    %2837 = vmatprep.mubr.bf16.mxu0 0
    %2838 = vmatmul.mubr.bf16.gmra.mrb[0].mxu0 %v326
    %v2839 = vpop.f32.mrb[0].mxu0
    %v2840 = vadd.f32 %v2791, %v2839
    %v2841 = vpop.f32.mrb[0].mxu0
    %v2842 = vpop.f32.mrb[0].mxu0
    %v2843 = vadd.f32 %v2791, %v2842
    %v2844 = vpop.f32.mrb[0].mxu0
    %2845 = vdwg.mxu0
    %s2846 = scalar_lea.vmem [#allocation11], 48
    %v2847 = vld [vmem:[%s2846] sm:$0xf]
    %v2848 = vld [vmem:[%s2846 + $0x4] sm:$0xf]
    %v2849 = vld [vmem:[%s2846 + $0x8] sm:$0xf]
    %v2850 = vld [vmem:[%s2846 + $0xc] sm:$0xf]
    %s2851 = scalar_lea.vmem [#allocation13], 3
    %v2852 = vld [vmem:[%s2851] sm:$0x1]
    %v2854 = vlaneseq
    %v2855 = vshrl.u32 %v2854, 7
    %v2856 = vsub.s32 0, %v2855
    %v2857 = vrot.slane %v2852, %v2856
    %v2863 = vunpack.c.l.b16 %v2847
    %v2864 = vunpack.c.l.b16 %v2848
    %v2865 = vunpack.c.l.b16 %v2849
    %v2866 = vunpack.c.l.b16 %v2850
    %v2867 = vpack.c.b16 %v2864, %v2863
    %v2868 = vpack.c.b16 %v2866, %v2865
    %v2872 = vsel %vm324, %v2779, 0
    %2874 = vmatprep.subr.bf16.mxu0 0
    %2875 = vmatpush1.bf16.msra.mxu0 %v2867
    %2876 = vmatprep.subr.bf16.mxu0 0
    %2877 = vmatpush1.bf16.msra.mxu0 %v2868
    %2878 = vmatprep.subr.bf16.mxu0 0
    %2879 = vmatpush1.bf16.msra.mxu0 0
    %2880 = vmatprep.subr.bf16.mxu0 0
    %2881 = vmatpush1.bf16.msra.mxu0 0
    %2882 = vmatprep.subr.bf16.mxu0 0
    %2883 = vmatpush1.bf16.msra.mxu0 0
    %2884 = vmatprep.subr.bf16.mxu0 0
    %2885 = vmatpush1.bf16.msra.mxu0 0
    %2886 = vmatprep.subr.bf16.mxu0 0
    %2887 = vmatpush1.bf16.msra.mxu0 0
    %2888 = vmatprep.subr.bf16.mxu0 0
    %2889 = vmatpush1.bf16.msra.mxu0 0
    %2890 = vmatprep.subr.bf16.mxu0 0
    %2891 = vmatpush1.bf16.msra.mxu0 0
    %2892 = vmatprep.subr.bf16.mxu0 0
    %2893 = vmatpush1.bf16.msra.mxu0 0
    %2894 = vmatprep.subr.bf16.mxu0 0
    %2895 = vmatpush1.bf16.msra.mxu0 0
    %2896 = vmatprep.subr.bf16.mxu0 0
    %2897 = vmatpush1.bf16.msra.mxu0 0
    %2898 = vmatprep.subr.bf16.mxu0 0
    %2899 = vmatpush1.bf16.msra.mxu0 0
    %2900 = vmatprep.subr.bf16.mxu0 0
    %2901 = vmatpush1.bf16.msra.mxu0 0
    %2902 = vmatprep.subr.bf16.mxu0 0
    %2903 = vmatpush1.bf16.msra.mxu0 0
    %2904 = vmatprep.subr.bf16.mxu0 0
    %2905 = vmatpush1.bf16.msra.mxu0 0
    %2906 = vmatprep.mubr.bf16.mxu0 0
    %2907 = vmatmul.mubr.bf16.gmra.mrb[0].mxu0 %v2872
    %v2908 = vpop.f32.mrb[0].mxu0
    %v2909 = vadd.f32 %v2857, %v2908
    %v2910 = vpop.f32.mrb[0].mxu0
    %v2911 = vpop.f32.mrb[0].mxu0
    %v2912 = vadd.f32 %v2857, %v2911
    %v2913 = vpop.f32.mrb[0].mxu0
    %2914 = vdwg.mxu0
    %s2915 = scalar_lea.vmem [#allocation14], 48
    %v2916 = vld [vmem:[%s2915] sm:$0xf]
    %v2917 = vld [vmem:[%s2915 + $0x4] sm:$0xf]
    %v2918 = vld [vmem:[%s2915 + $0x8] sm:$0xf]
    %v2919 = vld [vmem:[%s2915 + $0xc] sm:$0xf]
    %s2920 = scalar_lea.vmem [#allocation16], 3
    %v2921 = vld [vmem:[%s2920] sm:$0x1]
    %v2923 = vlaneseq
    %v2924 = vshrl.u32 %v2923, 7
    %v2925 = vsub.s32 0, %v2924
    %v2926 = vrot.slane %v2921, %v2925
    %v2932 = vunpack.c.l.b16 %v2916
    %v2933 = vunpack.c.l.b16 %v2917
    %v2934 = vunpack.c.l.b16 %v2918
    %v2935 = vunpack.c.l.b16 %v2919
    %v2936 = vpack.c.b16 %v2933, %v2932
    %v2937 = vpack.c.b16 %v2935, %v2934
    %2940 = vmatprep.subr.bf16.mxu0 0
    %2941 = vmatpush1.bf16.msra.mxu0 %v2936
    %2942 = vmatprep.subr.bf16.mxu0 0
    %2943 = vmatpush1.bf16.msra.mxu0 %v2937
    %2944 = vmatprep.subr.bf16.mxu0 0
    %2945 = vmatpush1.bf16.msra.mxu0 0
    %2946 = vmatprep.subr.bf16.mxu0 0
    %2947 = vmatpush1.bf16.msra.mxu0 0
    %2948 = vmatprep.subr.bf16.mxu0 0
    %2949 = vmatpush1.bf16.msra.mxu0 0
    %2950 = vmatprep.subr.bf16.mxu0 0
    %2951 = vmatpush1.bf16.msra.mxu0 0
    %2952 = vmatprep.subr.bf16.mxu0 0
    %2953 = vmatpush1.bf16.msra.mxu0 0
    %2954 = vmatprep.subr.bf16.mxu0 0
    %2955 = vmatpush1.bf16.msra.mxu0 0
    %2956 = vmatprep.subr.bf16.mxu0 0
    %2957 = vmatpush1.bf16.msra.mxu0 0
    %2958 = vmatprep.subr.bf16.mxu0 0
    %2959 = vmatpush1.bf16.msra.mxu0 0
    %2960 = vmatprep.subr.bf16.mxu0 0
    %2961 = vmatpush1.bf16.msra.mxu0 0
    %2962 = vmatprep.subr.bf16.mxu0 0
    %2963 = vmatpush1.bf16.msra.mxu0 0
    %2964 = vmatprep.subr.bf16.mxu0 0
    %2965 = vmatpush1.bf16.msra.mxu0 0
    %2966 = vmatprep.subr.bf16.mxu0 0
    %2967 = vmatpush1.bf16.msra.mxu0 0
    %2968 = vmatprep.subr.bf16.mxu0 0
    %2969 = vmatpush1.bf16.msra.mxu0 0
    %2970 = vmatprep.subr.bf16.mxu0 0
    %2971 = vmatpush1.bf16.msra.mxu0 0
    %2972 = vmatprep.mubr.bf16.mxu0 0
    %2973 = vmatmul.mubr.bf16.gmra.mrb[0].mxu0 %v2872
    %v2974 = vpop.f32.mrb[0].mxu0
    %v2975 = vadd.f32 %v2926, %v2974
    %v2976 = vpop.f32.mrb[0].mxu0
    %v2977 = vpop.f32.mrb[0].mxu0
    %v2978 = vadd.f32 %v2926, %v2977
    %v2979 = vpop.f32.mrb[0].mxu0
    %2980 = vdwg.mxu0
    %v2981 = vpack.c.bf16 %v2843, %v2840
    %v2982 = vpack.c.bf16 %v2912, %v2909
    %v2984 = vsel %vm324, %v2981, 0
    %v2987 = vsel %vm324, %v2982, 0
    %2989 = vmatprep.subr.bf16.mxu0 0
    %2990 = vmatpush1.bf16.xpose.msra.mxu0 %v2987
    %2991 = vmatprep.subr.bf16.mxu0 0
    %2992 = vmatpush1.bf16.xpose.msra.mxu0 0
    %2993 = vmatprep.subr.bf16.mxu0 0
    %2994 = vmatpush1.bf16.xpose.msra.mxu0 0
    %2995 = vmatprep.subr.bf16.mxu0 0
    %2996 = vmatpush1.bf16.xpose.msra.mxu0 0
    %2997 = vmatprep.subr.bf16.mxu0 0
    %2998 = vmatpush1.bf16.xpose.msra.mxu0 0
    %2999 = vmatprep.subr.bf16.mxu0 0
    %3000 = vmatpush1.bf16.xpose.msra.mxu0 0
    %3001 = vmatprep.subr.bf16.mxu0 0
    %3002 = vmatpush1.bf16.xpose.msra.mxu0 0
    %3003 = vmatprep.subr.bf16.mxu0 0
    %3004 = vmatpush1.bf16.xpose.msra.mxu0 0
    %3005 = vmatprep.subr.bf16.mxu0 0
    %3006 = vmatpush1.bf16.xpose.msra.mxu0 0
    %3007 = vmatprep.subr.bf16.mxu0 0
    %3008 = vmatpush1.bf16.xpose.msra.mxu0 0
    %3009 = vmatprep.subr.bf16.mxu0 0
    %3010 = vmatpush1.bf16.xpose.msra.mxu0 0
    %3011 = vmatprep.subr.bf16.mxu0 0
    %3012 = vmatpush1.bf16.xpose.msra.mxu0 0
    %3013 = vmatprep.subr.bf16.mxu0 0
    %3014 = vmatpush1.bf16.xpose.msra.mxu0 0
    %3015 = vmatprep.subr.bf16.mxu0 0
    %3016 = vmatpush1.bf16.xpose.msra.mxu0 0
    %3017 = vmatprep.subr.bf16.mxu0 0
    %3018 = vmatpush1.bf16.xpose.msra.mxu0 0
    %3019 = vmatprep.subr.bf16.mxu0 0
    %3020 = vmatpush1.bf16.xpose.msra.mxu0 0
    %3021 = vmatprep.mubr.bf16.mxu0 0
    %3022 = vmatmul.mubr.bf16.gmra.mrb[0].mxu0 %v2984
    %v3023 = vpop.f32.mrb[0].mxu0
    %v3024 = vadd.f32 %v295, %v3023
    %v3025 = vpop.f32.mrb[0].mxu0
    %v3026 = vpop.f32.mrb[0].mxu0
    %v3027 = vadd.f32 %v296, %v3026
    %v3028 = vpop.f32.mrb[0].mxu0
    %3029 = vdwg.mxu0
    %v3030 = vsel %vm549, %v3024, -inf
    %3031 = vmax.xlane.f32.xlu0 %v3030
    %v3032 = vpop.xlane.xlu0 %3031
    %v3033 = vsel %vm549, %v3027, -inf
    %3034 = vmax.xlane.f32.xlu0 %v3033
    %v3035 = vpop.xlane.xlu0 %3034
    %v3036 = vsub.f32 %v3024, %v3032
    %v3037 = vsub.f32 %v3027, %v3035
    %v3038 = vmul.f32 %v3036, 1.442695
    %v3039 = vpow.pop %v3038
    %v3040 = vmul.f32 %v3037, 1.442695
    %v3041 = vpow.pop %v3040
    %v3043 = vsel %vm549, %v3039, 0
    %v3046 = vsel %vm549, %v3041, 0
    %3048 = vmatprep.subr.mxu0 0.0
    %3049 = vmatpush1.msra.mxu0 1.0
    %3050 = vmatprep.subr.mxu0 0.0
    %3051 = vmatpush1.msra.mxu0 1.0
    %3052 = vmatprep.subr.mxu0 0.0
    %3053 = vmatpush1.msra.mxu0 0.0
    %3054 = vmatprep.subr.mxu0 0.0
    %3055 = vmatpush1.msra.mxu0 0.0
    %3056 = vmatprep.subr.mxu0 0.0
    %3057 = vmatpush1.msra.mxu0 0.0
    %3058 = vmatprep.subr.mxu0 0.0
    %3059 = vmatpush1.msra.mxu0 0.0
    %3060 = vmatprep.subr.mxu0 0.0
    %3061 = vmatpush1.msra.mxu0 0.0
    %3062 = vmatprep.subr.mxu0 0.0
    %3063 = vmatpush1.msra.mxu0 0.0
    %3064 = vmatprep.subr.mxu0 0.0
    %3065 = vmatpush1.msra.mxu0 0.0
    %3066 = vmatprep.subr.mxu0 0.0
    %3067 = vmatpush1.msra.mxu0 0.0
    %3068 = vmatprep.subr.mxu0 0.0
    %3069 = vmatpush1.msra.mxu0 0.0
    %3070 = vmatprep.subr.mxu0 0.0
    %3071 = vmatpush1.msra.mxu0 0.0
    %3072 = vmatprep.subr.mxu0 0.0
    %3073 = vmatpush1.msra.mxu0 0.0
    %3074 = vmatprep.subr.mxu0 0.0
    %3075 = vmatpush1.msra.mxu0 0.0
    %3076 = vmatprep.subr.mxu0 0.0
    %3077 = vmatpush1.msra.mxu0 0.0
    %3078 = vmatprep.subr.mxu0 0.0
    %3079 = vmatpush1.msra.mxu0 0.0
    %3080 = vmatprep.subr.mxu0 0.0
    %3081 = vmatpush1.msra.mxu0 0.0
    %3082 = vmatprep.subr.mxu0 0.0
    %3083 = vmatpush1.msra.mxu0 0.0
    %3084 = vmatprep.subr.mxu0 0.0
    %3085 = vmatpush1.msra.mxu0 0.0
    %3086 = vmatprep.subr.mxu0 0.0
    %3087 = vmatpush1.msra.mxu0 0.0
    %3088 = vmatprep.subr.mxu0 0.0
    %3089 = vmatpush1.msra.mxu0 0.0
    %3090 = vmatprep.subr.mxu0 0.0
    %3091 = vmatpush1.msra.mxu0 0.0
    %3092 = vmatprep.subr.mxu0 0.0
    %3093 = vmatpush1.msra.mxu0 0.0
    %3094 = vmatprep.subr.mxu0 0.0
    %3095 = vmatpush1.msra.mxu0 0.0
    %3096 = vmatprep.subr.mxu0 0.0
    %3097 = vmatpush1.msra.mxu0 0.0
    %3098 = vmatprep.subr.mxu0 0.0
    %3099 = vmatpush1.msra.mxu0 0.0
    %3100 = vmatprep.subr.mxu0 0.0
    %3101 = vmatpush1.msra.mxu0 0.0
    %3102 = vmatprep.subr.mxu0 0.0
    %3103 = vmatpush1.msra.mxu0 0.0
    %3104 = vmatprep.subr.mxu0 0.0
    %3105 = vmatpush1.msra.mxu0 0.0
    %3106 = vmatprep.subr.mxu0 0.0
    %3107 = vmatpush1.msra.mxu0 0.0
    %3108 = vmatprep.subr.mxu0 0.0
    %3109 = vmatpush1.msra.mxu0 0.0
    %3110 = vmatprep.subr.mxu0 0.0
    %3111 = vmatpush1.msra.mxu0 0.0
    %3112 = vmatprep.mubr.f32.mxu0 0.0
    %3113 = vmatmul.mubr.f32.gmra.mrb[0].mxu0 %v3043
    %v3114 = vpop.f32.mrb[0].mxu0
    %v3115 = vadd.f32 0.0, %v3114
    %v3116 = vpop.f32.mrb[0].mxu0
    %3117 = vmatprep.mubr.f32.mxu0 0.0
    %3118 = vmatmul.mubr.f32.gmra.mrb[0].mxu0 %v3046
    %v3119 = vpop.f32.mrb[0].mxu0
    %v3120 = vadd.f32 0.0, %v3119
    %v3121 = vpop.f32.mrb[0].mxu0
    %3122 = vdwg.mxu0
    %v3123 = vrcp.pop %v3115
    %v3124 = vrcp.pop %v3120
    %3126 = vset.pattern.permute.xlu0 0
    %3127 = vperm.xlu0 %3126, %v3123
    %v3128 = vpop.permute.xlu0 %3127
    %3131 = vset.pattern.permute.xlu0 0
    %3132 = vperm.xlu0 %3131, %v3124
    %v3133 = vpop.permute.xlu0 %3132
    %v3135 = vmul.f32 %v3039, %v3128
    %v3136 = vmul.f32 %v3041, %v3133
    %v3137 = vpack.c.bf16 %v3136, %v3135
    %v3138 = vpack.c.bf16 %v2978, %v2975
    %v3140 = vsel %vm549, %v3137, 0
    %3142 = vmatprep.subr.bf16.mxu0 0
    %3143 = vmatpush1.bf16.msra.mxu0 %v3138
    %3144 = vmatprep.subr.bf16.mxu0 0
    %3145 = vmatpush1.bf16.msra.mxu0 0
    %3146 = vmatprep.subr.bf16.mxu0 0
    %3147 = vmatpush1.bf16.msra.mxu0 0
    %3148 = vmatprep.subr.bf16.mxu0 0
    %3149 = vmatpush1.bf16.msra.mxu0 0
    %3150 = vmatprep.subr.bf16.mxu0 0
    %3151 = vmatpush1.bf16.msra.mxu0 0
    %3152 = vmatprep.subr.bf16.mxu0 0
    %3153 = vmatpush1.bf16.msra.mxu0 0
    %3154 = vmatprep.subr.bf16.mxu0 0
    %3155 = vmatpush1.bf16.msra.mxu0 0
    %3156 = vmatprep.subr.bf16.mxu0 0
    %3157 = vmatpush1.bf16.msra.mxu0 0
    %3158 = vmatprep.subr.bf16.mxu0 0
    %3159 = vmatpush1.bf16.msra.mxu0 0
    %3160 = vmatprep.subr.bf16.mxu0 0
    %3161 = vmatpush1.bf16.msra.mxu0 0
    %3162 = vmatprep.subr.bf16.mxu0 0
    %3163 = vmatpush1.bf16.msra.mxu0 0
    %3164 = vmatprep.subr.bf16.mxu0 0
    %3165 = vmatpush1.bf16.msra.mxu0 0
    %3166 = vmatprep.subr.bf16.mxu0 0
    %3167 = vmatpush1.bf16.msra.mxu0 0
    %3168 = vmatprep.subr.bf16.mxu0 0
    %3169 = vmatpush1.bf16.msra.mxu0 0
    %3170 = vmatprep.subr.bf16.mxu0 0
    %3171 = vmatpush1.bf16.msra.mxu0 0
    %3172 = vmatprep.subr.bf16.mxu0 0
    %3173 = vmatpush1.bf16.msra.mxu0 0
    %3174 = vmatprep.mubr.bf16.mxu0 0
    %3175 = vmatmul.mubr.bf16.gmra.mrb[0].mxu0 %v3140
    %v3176 = vpop.f32.mrb[0].mxu0
    %v3177 = vadd.f32 0.0, %v3176
    %v3178 = vpop.f32.mrb[0].mxu0
    %v3179 = vpop.f32.mrb[0].mxu0
    %v3180 = vadd.f32 0.0, %v3179
    %v3181 = vpop.f32.mrb[0].mxu0
    %3182 = vdwg.mxu0
    %v3183 = vpack.c.bf16 %v3180, %v3177
    %s3184 = scalar_lea.vmem [#allocation17], 48
    %v3185 = vld [vmem:[%s3184] sm:$0xf]
    %v3186 = vld [vmem:[%s3184 + $0x4] sm:$0xf]
    %v3187 = vld [vmem:[%s3184 + $0x8] sm:$0xf]
    %v3188 = vld [vmem:[%s3184 + $0xc] sm:$0xf]
    %s3189 = scalar_lea.vmem [#allocation19], 3
    %v3190 = vld [vmem:[%s3189] sm:$0x1]
    %v3192 = vlaneseq
    %v3193 = vshrl.u32 %v3192, 7
    %v3194 = vsub.s32 0, %v3193
    %v3195 = vrot.slane %v3190, %v3194
    %v3201 = vunpack.c.l.b16 %v3185
    %v3202 = vunpack.c.l.b16 %v3186
    %v3203 = vunpack.c.l.b16 %v3187
    %v3204 = vunpack.c.l.b16 %v3188
    %v3205 = vpack.c.b16 %v3202, %v3201
    %v3206 = vpack.c.b16 %v3204, %v3203
    %v3210 = vsel %vm324, %v3183, 0
    %3212 = vmatprep.subr.bf16.mxu0 0
    %3213 = vmatpush1.bf16.msra.mxu0 %v3205
    %3214 = vmatprep.subr.bf16.mxu0 0
    %3215 = vmatpush1.bf16.msra.mxu0 %v3206
    %3216 = vmatprep.subr.bf16.mxu0 0
    %3217 = vmatpush1.bf16.msra.mxu0 0
    %3218 = vmatprep.subr.bf16.mxu0 0
    %3219 = vmatpush1.bf16.msra.mxu0 0
    %3220 = vmatprep.subr.bf16.mxu0 0
    %3221 = vmatpush1.bf16.msra.mxu0 0
    %3222 = vmatprep.subr.bf16.mxu0 0
    %3223 = vmatpush1.bf16.msra.mxu0 0
    %3224 = vmatprep.subr.bf16.mxu0 0
    %3225 = vmatpush1.bf16.msra.mxu0 0
    %3226 = vmatprep.subr.bf16.mxu0 0
    %3227 = vmatpush1.bf16.msra.mxu0 0
    %3228 = vmatprep.subr.bf16.mxu0 0
    %3229 = vmatpush1.bf16.msra.mxu0 0
    %3230 = vmatprep.subr.bf16.mxu0 0
    %3231 = vmatpush1.bf16.msra.mxu0 0
    %3232 = vmatprep.subr.bf16.mxu0 0
    %3233 = vmatpush1.bf16.msra.mxu0 0
    %3234 = vmatprep.subr.bf16.mxu0 0
    %3235 = vmatpush1.bf16.msra.mxu0 0
    %3236 = vmatprep.subr.bf16.mxu0 0
    %3237 = vmatpush1.bf16.msra.mxu0 0
    %3238 = vmatprep.subr.bf16.mxu0 0
    %3239 = vmatpush1.bf16.msra.mxu0 0
    %3240 = vmatprep.subr.bf16.mxu0 0
    %3241 = vmatpush1.bf16.msra.mxu0 0
    %3242 = vmatprep.subr.bf16.mxu0 0
    %3243 = vmatpush1.bf16.msra.mxu0 0
    %3244 = vmatprep.mubr.bf16.mxu0 0
    %3245 = vmatmul.mubr.bf16.gmra.mrb[0].mxu0 %v3210
    %v3246 = vpop.f32.mrb[0].mxu0
    %v3247 = vadd.f32 %v3195, %v3246
    %v3248 = vpop.f32.mrb[0].mxu0
    %v3249 = vpop.f32.mrb[0].mxu0
    %v3250 = vadd.f32 %v3195, %v3249
    %v3251 = vpop.f32.mrb[0].mxu0
    %3252 = vdwg.mxu0
    %v3253 = vadd.f32 %v293, %v3247
    %v3254 = vadd.f32 %v294, %v3250
    %s3255 = scalar_lea.vmem [#allocation20], 3
    %v3256 = vld [vmem:[%s3255] sm:$0x1]
    %s3257 = scalar_lea.vmem [#allocation22], 3
    %v3258 = vld [vmem:[%s3257] sm:$0x1]
    %v3260 = vsel %vm324, %v3253, 0
    %v3263 = vsel %vm324, %v3254, 0
    %3265 = vmatprep.subr.mxu0 0.0
    %3266 = vmatpush1.msra.mxu0 1.0
    %3267 = vmatprep.subr.mxu0 0.0
    %3268 = vmatpush1.msra.mxu0 1.0
    %3269 = vmatprep.subr.mxu0 0.0
    %3270 = vmatpush1.msra.mxu0 1.0
    %3271 = vmatprep.subr.mxu0 0.0
    %3272 = vmatpush1.msra.mxu0 1.0
    %3273 = vmatprep.subr.mxu0 0.0
    %3274 = vmatpush1.msra.mxu0 0.0
    %3275 = vmatprep.subr.mxu0 0.0
    %3276 = vmatpush1.msra.mxu0 0.0
    %3277 = vmatprep.subr.mxu0 0.0
    %3278 = vmatpush1.msra.mxu0 0.0
    %3279 = vmatprep.subr.mxu0 0.0
    %3280 = vmatpush1.msra.mxu0 0.0
    %3281 = vmatprep.subr.mxu0 0.0
    %3282 = vmatpush1.msra.mxu0 0.0
    %3283 = vmatprep.subr.mxu0 0.0
    %3284 = vmatpush1.msra.mxu0 0.0
    %3285 = vmatprep.subr.mxu0 0.0
    %3286 = vmatpush1.msra.mxu0 0.0
    %3287 = vmatprep.subr.mxu0 0.0
    %3288 = vmatpush1.msra.mxu0 0.0
    %3289 = vmatprep.subr.mxu0 0.0
    %3290 = vmatpush1.msra.mxu0 0.0
    %3291 = vmatprep.subr.mxu0 0.0
    %3292 = vmatpush1.msra.mxu0 0.0
    %3293 = vmatprep.subr.mxu0 0.0
    %3294 = vmatpush1.msra.mxu0 0.0
    %3295 = vmatprep.subr.mxu0 0.0
    %3296 = vmatpush1.msra.mxu0 0.0
    %3297 = vmatprep.subr.mxu0 0.0
    %3298 = vmatpush1.msra.mxu0 0.0
    %3299 = vmatprep.subr.mxu0 0.0
    %3300 = vmatpush1.msra.mxu0 0.0
    %3301 = vmatprep.subr.mxu0 0.0
    %3302 = vmatpush1.msra.mxu0 0.0
    %3303 = vmatprep.subr.mxu0 0.0
    %3304 = vmatpush1.msra.mxu0 0.0
    %3305 = vmatprep.subr.mxu0 0.0
    %3306 = vmatpush1.msra.mxu0 0.0
    %3307 = vmatprep.subr.mxu0 0.0
    %3308 = vmatpush1.msra.mxu0 0.0
    %3309 = vmatprep.subr.mxu0 0.0
    %3310 = vmatpush1.msra.mxu0 0.0
    %3311 = vmatprep.subr.mxu0 0.0
    %3312 = vmatpush1.msra.mxu0 0.0
    %3313 = vmatprep.subr.mxu0 0.0
    %3314 = vmatpush1.msra.mxu0 0.0
    %3315 = vmatprep.subr.mxu0 0.0
    %3316 = vmatpush1.msra.mxu0 0.0
    %3317 = vmatprep.subr.mxu0 0.0
    %3318 = vmatpush1.msra.mxu0 0.0
    %3319 = vmatprep.subr.mxu0 0.0
    %3320 = vmatpush1.msra.mxu0 0.0
    %3321 = vmatprep.subr.mxu0 0.0
    %3322 = vmatpush1.msra.mxu0 0.0
    %3323 = vmatprep.subr.mxu0 0.0
    %3324 = vmatpush1.msra.mxu0 0.0
    %3325 = vmatprep.subr.mxu0 0.0
    %3326 = vmatpush1.msra.mxu0 0.0
    %3327 = vmatprep.subr.mxu0 0.0
    %3328 = vmatpush1.msra.mxu0 0.0
    %3329 = vmatprep.mubr.f32.mxu0 0.0
    %3330 = vmatmul.mubr.f32.gmra.mrb[0].mxu0 %v3260
    %v3331 = vpop.f32.mrb[0].mxu0
    %v3332 = vadd.f32 0.0, %v3331
    %v3333 = vpop.f32.mrb[0].mxu0
    %3334 = vmatprep.mubr.f32.mxu0 0.0
    %3335 = vmatmul.mubr.f32.gmra.mrb[0].mxu0 %v3263
    %v3336 = vpop.f32.mrb[0].mxu0
    %v3337 = vadd.f32 0.0, %v3336
    %v3338 = vpop.f32.mrb[0].mxu0
    %3339 = vdwg.mxu0
    %v3340 = vmul.f32 %v3253, %v3253
    %v3341 = vmul.f32 %v3254, %v3254
    %v3343 = vsel %vm324, %v3340, 0
    %v3346 = vsel %vm324, %v3341, 0
    %3348 = vmatprep.subr.mxu0 0.0
    %3349 = vmatpush1.msra.mxu0 1.0
    %3350 = vmatprep.subr.mxu0 0.0
    %3351 = vmatpush1.msra.mxu0 1.0
    %3352 = vmatprep.subr.mxu0 0.0
    %3353 = vmatpush1.msra.mxu0 1.0
    %3354 = vmatprep.subr.mxu0 0.0
    %3355 = vmatpush1.msra.mxu0 1.0
    %3356 = vmatprep.subr.mxu0 0.0
    %3357 = vmatpush1.msra.mxu0 0.0
    %3358 = vmatprep.subr.mxu0 0.0
    %3359 = vmatpush1.msra.mxu0 0.0
    %3360 = vmatprep.subr.mxu0 0.0
    %3361 = vmatpush1.msra.mxu0 0.0
    %3362 = vmatprep.subr.mxu0 0.0
    %3363 = vmatpush1.msra.mxu0 0.0
    %3364 = vmatprep.subr.mxu0 0.0
    %3365 = vmatpush1.msra.mxu0 0.0
    %3366 = vmatprep.subr.mxu0 0.0
    %3367 = vmatpush1.msra.mxu0 0.0
    %3368 = vmatprep.subr.mxu0 0.0
    %3369 = vmatpush1.msra.mxu0 0.0
    %3370 = vmatprep.subr.mxu0 0.0
    %3371 = vmatpush1.msra.mxu0 0.0
    %3372 = vmatprep.subr.mxu0 0.0
    %3373 = vmatpush1.msra.mxu0 0.0
    %3374 = vmatprep.subr.mxu0 0.0
    %3375 = vmatpush1.msra.mxu0 0.0
    %3376 = vmatprep.subr.mxu0 0.0
    %3377 = vmatpush1.msra.mxu0 0.0
    %3378 = vmatprep.subr.mxu0 0.0
    %3379 = vmatpush1.msra.mxu0 0.0
    %3380 = vmatprep.subr.mxu0 0.0
    %3381 = vmatpush1.msra.mxu0 0.0
    %3382 = vmatprep.subr.mxu0 0.0
    %3383 = vmatpush1.msra.mxu0 0.0
    %3384 = vmatprep.subr.mxu0 0.0
    %3385 = vmatpush1.msra.mxu0 0.0
    %3386 = vmatprep.subr.mxu0 0.0
    %3387 = vmatpush1.msra.mxu0 0.0
    %3388 = vmatprep.subr.mxu0 0.0
    %3389 = vmatpush1.msra.mxu0 0.0
    %3390 = vmatprep.subr.mxu0 0.0
    %3391 = vmatpush1.msra.mxu0 0.0
    %3392 = vmatprep.subr.mxu0 0.0
    %3393 = vmatpush1.msra.mxu0 0.0
    %3394 = vmatprep.subr.mxu0 0.0
    %3395 = vmatpush1.msra.mxu0 0.0
    %3396 = vmatprep.subr.mxu0 0.0
    %3397 = vmatpush1.msra.mxu0 0.0
    %3398 = vmatprep.subr.mxu0 0.0
    %3399 = vmatpush1.msra.mxu0 0.0
    %3400 = vmatprep.subr.mxu0 0.0
    %3401 = vmatpush1.msra.mxu0 0.0
    %3402 = vmatprep.subr.mxu0 0.0
    %3403 = vmatpush1.msra.mxu0 0.0
    %3404 = vmatprep.subr.mxu0 0.0
    %3405 = vmatpush1.msra.mxu0 0.0
    %3406 = vmatprep.subr.mxu0 0.0
    %3407 = vmatpush1.msra.mxu0 0.0
    %3408 = vmatprep.subr.mxu0 0.0
    %3409 = vmatpush1.msra.mxu0 0.0
    %3410 = vmatprep.subr.mxu0 0.0
    %3411 = vmatpush1.msra.mxu0 0.0
    %3412 = vmatprep.mubr.f32.mxu0 0.0
    %3413 = vmatmul.mubr.f32.gmra.mrb[0].mxu0 %v3343
    %v3414 = vpop.f32.mrb[0].mxu0
    %v3415 = vadd.f32 0.0, %v3414
    %v3416 = vpop.f32.mrb[0].mxu0
    %3417 = vmatprep.mubr.f32.mxu0 0.0
    %3418 = vmatmul.mubr.f32.gmra.mrb[0].mxu0 %v3346
    %v3419 = vpop.f32.mrb[0].mxu0
    %v3420 = vadd.f32 0.0, %v3419
    %v3421 = vpop.f32.mrb[0].mxu0
    %3422 = vdwg.mxu0
    %v3423 = vmul.f32 %v3332, 0.03125
    %v3424 = vmul.f32 %v3337, 0.03125
    %v3425 = vmul.f32 %v3415, 0.03125
    %v3426 = vmul.f32 %v3420, 0.03125
    %v3427 = vmul.f32 %v3423, %v3423
    %v3428 = vmul.f32 %v3424, %v3424
    %v3429 = vsub.f32 %v3425, %v3427
    %v3430 = vsub.f32 %v3426, %v3428
    %v3431 = vmax.f32 %v3429, 0.0
    %v3432 = vmax.f32 %v3430, 0.0
    %3434 = vset.pattern.permute.xlu0 0
    %3435 = vperm.xlu0 %3434, %v3423
    %v3436 = vpop.permute.xlu0 %3435
    %3439 = vset.pattern.permute.xlu0 0
    %3440 = vperm.xlu0 %3439, %v3424
    %v3441 = vpop.permute.xlu0 %3440
    %v3443 = vsub.f32 %v3253, %v3436
    %v3444 = vsub.f32 %v3254, %v3441
    %v3445 = vadd.f32 %v3431, 1e-05
    %v3446 = vadd.f32 %v3432, 1e-05
    %v3447 = vrsqrt.pop %v3445
    %v3448 = vrsqrt.pop %v3446
    %3450 = vset.pattern.permute.xlu0 0
    %3451 = vperm.xlu0 %3450, %v3447
    %v3452 = vpop.permute.xlu0 %3451
    %3455 = vset.pattern.permute.xlu0 0
    %3456 = vperm.xlu0 %3455, %v3448
    %v3457 = vpop.permute.xlu0 %3456
    %v3459 = vmul.f32 %v3443, %v3452
    %v3460 = vmul.f32 %v3444, %v3457
    %v3462 = vlaneseq
    %v3463 = vshrl.u32 %v3462, 7
    %v3464 = vsub.s32 0, %v3463
    %v3465 = vrot.slane %v3256, %v3464
    %v3467 = vmul.f32 %v3459, %v3465
    %v3468 = vmul.f32 %v3460, %v3465
    %v3470 = vlaneseq
    %v3471 = vshrl.u32 %v3470, 7
    %v3472 = vsub.s32 0, %v3471
    %v3473 = vrot.slane %v3258, %v3472
    %v3475 = vadd.f32 %v3467, %v3473
    %v3476 = vadd.f32 %v3468, %v3473
    %v3477 = vpack.c.bf16 %v3476, %v3475
    %s3478 = scalar_lea.vmem %s13, 32
    %v3479 = vld [vmem:[%s3478] sm:$0xf]
    %v3480 = vld [vmem:[%s3478 + $0x4] sm:$0xf]
    %v3481 = vld [vmem:[%s3478 + $0x8] sm:$0xf]
    %v3482 = vld [vmem:[%s3478 + $0xc] sm:$0xf]
    %s3483 = scalar_lea.vmem [#allocation23], 2
    %v3484 = vld [vmem:[%s3483] sm:$0x1]
    %v3486 = vlaneseq
    %v3487 = vshrl.u32 %v3486, 7
    %v3488 = vsub.s32 0, %v3487
    %v3489 = vrot.slane %v3484, %v3488
    %v3495 = vunpack.c.l.b16 %v3479
    %v3496 = vunpack.c.l.b16 %v3480
    %v3497 = vunpack.c.l.b16 %v3481
    %v3498 = vunpack.c.l.b16 %v3482
    %v3499 = vpack.c.b16 %v3496, %v3495
    %v3500 = vpack.c.b16 %v3498, %v3497
    %v3504 = vsel %vm324, %v3477, 0
    %3506 = vmatprep.subr.bf16.mxu0 0
    %3507 = vmatpush1.bf16.msra.mxu0 %v3499
    %3508 = vmatprep.subr.bf16.mxu0 0
    %3509 = vmatpush1.bf16.msra.mxu0 %v3500
    %3510 = vmatprep.subr.bf16.mxu0 0
    %3511 = vmatpush1.bf16.msra.mxu0 0
    %3512 = vmatprep.subr.bf16.mxu0 0
    %3513 = vmatpush1.bf16.msra.mxu0 0
    %3514 = vmatprep.subr.bf16.mxu0 0
    %3515 = vmatpush1.bf16.msra.mxu0 0
    %3516 = vmatprep.subr.bf16.mxu0 0
    %3517 = vmatpush1.bf16.msra.mxu0 0
    %3518 = vmatprep.subr.bf16.mxu0 0
    %3519 = vmatpush1.bf16.msra.mxu0 0
    %3520 = vmatprep.subr.bf16.mxu0 0
    %3521 = vmatpush1.bf16.msra.mxu0 0
    %3522 = vmatprep.subr.bf16.mxu0 0
    %3523 = vmatpush1.bf16.msra.mxu0 0
    %3524 = vmatprep.subr.bf16.mxu0 0
    %3525 = vmatpush1.bf16.msra.mxu0 0
    %3526 = vmatprep.subr.bf16.mxu0 0
    %3527 = vmatpush1.bf16.msra.mxu0 0
    %3528 = vmatprep.subr.bf16.mxu0 0
    %3529 = vmatpush1.bf16.msra.mxu0 0
    %3530 = vmatprep.subr.bf16.mxu0 0
    %3531 = vmatpush1.bf16.msra.mxu0 0
    %3532 = vmatprep.subr.bf16.mxu0 0
    %3533 = vmatpush1.bf16.msra.mxu0 0
    %3534 = vmatprep.subr.bf16.mxu0 0
    %3535 = vmatpush1.bf16.msra.mxu0 0
    %3536 = vmatprep.subr.bf16.mxu0 0
    %3537 = vmatpush1.bf16.msra.mxu0 0
    %3538 = vmatprep.mubr.bf16.mxu0 0
    %3539 = vmatmul.mubr.bf16.gmra.mrb[0].mxu0 %v3504
    %v3540 = vpop.f32.mrb[0].mxu0
    %v3541 = vadd.f32 %v3489, %v3540
    %v3542 = vpop.f32.mrb[0].mxu0
    %v3543 = vpop.f32.mrb[0].mxu0
    %v3544 = vadd.f32 %v3489, %v3543
    %v3545 = vpop.f32.mrb[0].mxu0
    %3546 = vdwg.mxu0
    %vm3547 = vcmp.gt.f32.partialorder %v3541, 0.0
    %vm3548 = vcmp.gt.f32.partialorder %v3544, 0.0
    %v3549 = vmin.f32 %v3541, 0.0
    %v3550 = vmin.f32 %v3544, 0.0
    %v3551 = vmul.f32 %v3549, 1.442695
    %v3552 = vpow.pop %v3551
    %v3553 = vmul.f32 %v3550, 1.442695
    %v3554 = vpow.pop %v3553
    %v3555 = vsub.f32 %v3552, 1.0
    %v3556 = vsub.f32 %v3554, 1.0
    %v3557 = vsel %vm3547, %v3541, %v3555
    %v3558 = vsel %vm3548, %v3544, %v3556
    %v3559 = vpack.c.bf16 %v3558, %v3557
    %s3560 = scalar_lea.vmem [#allocation8], 64
    %v3561 = vld [vmem:[%s3560] sm:$0xf]
    %v3562 = vld [vmem:[%s3560 + $0x4] sm:$0xf]
    %v3563 = vld [vmem:[%s3560 + $0x8] sm:$0xf]
    %v3564 = vld [vmem:[%s3560 + $0xc] sm:$0xf]
    %s3565 = scalar_lea.vmem [#allocation10], 4
    %v3566 = vld [vmem:[%s3565] sm:$0x1]
    %v3568 = vlaneseq
    %v3569 = vshrl.u32 %v3568, 7
    %v3570 = vsub.s32 0, %v3569
    %v3571 = vrot.slane %v3566, %v3570
    %v3577 = vunpack.c.l.b16 %v3561
    %v3578 = vunpack.c.l.b16 %v3562
    %v3579 = vunpack.c.l.b16 %v3563
    %v3580 = vunpack.c.l.b16 %v3564
    %v3581 = vpack.c.b16 %v3578, %v3577
    %v3582 = vpack.c.b16 %v3580, %v3579
    %v3586 = vsel %vm324, %v3559, 0
    %3588 = vmatprep.subr.bf16.mxu0 0
    %3589 = vmatpush1.bf16.msra.mxu0 %v3581
    %3590 = vmatprep.subr.bf16.mxu0 0
    %3591 = vmatpush1.bf16.msra.mxu0 %v3582
    %3592 = vmatprep.subr.bf16.mxu0 0
    %3593 = vmatpush1.bf16.msra.mxu0 0
    %3594 = vmatprep.subr.bf16.mxu0 0
    %3595 = vmatpush1.bf16.msra.mxu0 0
    %3596 = vmatprep.subr.bf16.mxu0 0
    %3597 = vmatpush1.bf16.msra.mxu0 0
    %3598 = vmatprep.subr.bf16.mxu0 0
    %3599 = vmatpush1.bf16.msra.mxu0 0
    %3600 = vmatprep.subr.bf16.mxu0 0
    %3601 = vmatpush1.bf16.msra.mxu0 0
    %3602 = vmatprep.subr.bf16.mxu0 0
    %3603 = vmatpush1.bf16.msra.mxu0 0
    %3604 = vmatprep.subr.bf16.mxu0 0
    %3605 = vmatpush1.bf16.msra.mxu0 0
    %3606 = vmatprep.subr.bf16.mxu0 0
    %3607 = vmatpush1.bf16.msra.mxu0 0
    %3608 = vmatprep.subr.bf16.mxu0 0
    %3609 = vmatpush1.bf16.msra.mxu0 0
    %3610 = vmatprep.subr.bf16.mxu0 0
    %3611 = vmatpush1.bf16.msra.mxu0 0
    %3612 = vmatprep.subr.bf16.mxu0 0
    %3613 = vmatpush1.bf16.msra.mxu0 0
    %3614 = vmatprep.subr.bf16.mxu0 0
    %3615 = vmatpush1.bf16.msra.mxu0 0
    %3616 = vmatprep.subr.bf16.mxu0 0
    %3617 = vmatpush1.bf16.msra.mxu0 0
    %3618 = vmatprep.subr.bf16.mxu0 0
    %3619 = vmatpush1.bf16.msra.mxu0 0
    %3620 = vmatprep.mubr.bf16.mxu0 0
    %3621 = vmatmul.mubr.bf16.gmra.mrb[0].mxu0 %v3586
    %v3622 = vpop.f32.mrb[0].mxu0
    %v3623 = vadd.f32 %v3571, %v3622
    %v3624 = vpop.f32.mrb[0].mxu0
    %v3625 = vpop.f32.mrb[0].mxu0
    %v3626 = vadd.f32 %v3571, %v3625
    %v3627 = vpop.f32.mrb[0].mxu0
    %3628 = vdwg.mxu0
    %s3629 = scalar_lea.vmem [#allocation11], 64
    %v3630 = vld [vmem:[%s3629] sm:$0xf]
    %v3631 = vld [vmem:[%s3629 + $0x4] sm:$0xf]
    %v3632 = vld [vmem:[%s3629 + $0x8] sm:$0xf]
    %v3633 = vld [vmem:[%s3629 + $0xc] sm:$0xf]
    %s3634 = scalar_lea.vmem [#allocation13], 4
    %v3635 = vld [vmem:[%s3634] sm:$0x1]
    %v3637 = vlaneseq
    %v3638 = vshrl.u32 %v3637, 7
    %v3639 = vsub.s32 0, %v3638
    %v3640 = vrot.slane %v3635, %v3639
    %v3646 = vunpack.c.l.b16 %v3630
    %v3647 = vunpack.c.l.b16 %v3631
    %v3648 = vunpack.c.l.b16 %v3632
    %v3649 = vunpack.c.l.b16 %v3633
    %v3650 = vpack.c.b16 %v3647, %v3646
    %v3651 = vpack.c.b16 %v3649, %v3648
    %3654 = vmatprep.subr.bf16.mxu0 0
    %3655 = vmatpush1.bf16.msra.mxu0 %v3650
    %3656 = vmatprep.subr.bf16.mxu0 0
    %3657 = vmatpush1.bf16.msra.mxu0 %v3651
    %3658 = vmatprep.subr.bf16.mxu0 0
    %3659 = vmatpush1.bf16.msra.mxu0 0
    %3660 = vmatprep.subr.bf16.mxu0 0
    %3661 = vmatpush1.bf16.msra.mxu0 0
    %3662 = vmatprep.subr.bf16.mxu0 0
    %3663 = vmatpush1.bf16.msra.mxu0 0
    %3664 = vmatprep.subr.bf16.mxu0 0
    %3665 = vmatpush1.bf16.msra.mxu0 0
    %3666 = vmatprep.subr.bf16.mxu0 0
    %3667 = vmatpush1.bf16.msra.mxu0 0
    %3668 = vmatprep.subr.bf16.mxu0 0
    %3669 = vmatpush1.bf16.msra.mxu0 0
    %3670 = vmatprep.subr.bf16.mxu0 0
    %3671 = vmatpush1.bf16.msra.mxu0 0
    %3672 = vmatprep.subr.bf16.mxu0 0
    %3673 = vmatpush1.bf16.msra.mxu0 0
    %3674 = vmatprep.subr.bf16.mxu0 0
    %3675 = vmatpush1.bf16.msra.mxu0 0
    %3676 = vmatprep.subr.bf16.mxu0 0
    %3677 = vmatpush1.bf16.msra.mxu0 0
    %3678 = vmatprep.subr.bf16.mxu0 0
    %3679 = vmatpush1.bf16.msra.mxu0 0
    %3680 = vmatprep.subr.bf16.mxu0 0
    %3681 = vmatpush1.bf16.msra.mxu0 0
    %3682 = vmatprep.subr.bf16.mxu0 0
    %3683 = vmatpush1.bf16.msra.mxu0 0
    %3684 = vmatprep.subr.bf16.mxu0 0
    %3685 = vmatpush1.bf16.msra.mxu0 0
    %3686 = vmatprep.mubr.bf16.mxu0 0
    %3687 = vmatmul.mubr.bf16.gmra.mrb[0].mxu0 %v2872
    %v3688 = vpop.f32.mrb[0].mxu0
    %v3689 = vadd.f32 %v3640, %v3688
    %v3690 = vpop.f32.mrb[0].mxu0
    %v3691 = vpop.f32.mrb[0].mxu0
    %v3692 = vadd.f32 %v3640, %v3691
    %v3693 = vpop.f32.mrb[0].mxu0
    %3694 = vdwg.mxu0
    %s3695 = scalar_lea.vmem [#allocation14], 64
    %v3696 = vld [vmem:[%s3695] sm:$0xf]
    %v3697 = vld [vmem:[%s3695 + $0x4] sm:$0xf]
    %v3698 = vld [vmem:[%s3695 + $0x8] sm:$0xf]
    %v3699 = vld [vmem:[%s3695 + $0xc] sm:$0xf]
    %s3700 = scalar_lea.vmem [#allocation16], 4
    %v3701 = vld [vmem:[%s3700] sm:$0x1]
    %v3703 = vlaneseq
    %v3704 = vshrl.u32 %v3703, 7
    %v3705 = vsub.s32 0, %v3704
    %v3706 = vrot.slane %v3701, %v3705
    %v3712 = vunpack.c.l.b16 %v3696
    %v3713 = vunpack.c.l.b16 %v3697
    %v3714 = vunpack.c.l.b16 %v3698
    %v3715 = vunpack.c.l.b16 %v3699
    %v3716 = vpack.c.b16 %v3713, %v3712
    %v3717 = vpack.c.b16 %v3715, %v3714
    %3720 = vmatprep.subr.bf16.mxu0 0
    %3721 = vmatpush1.bf16.msra.mxu0 %v3716
    %3722 = vmatprep.subr.bf16.mxu0 0
    %3723 = vmatpush1.bf16.msra.mxu0 %v3717
    %3724 = vmatprep.subr.bf16.mxu0 0
    %3725 = vmatpush1.bf16.msra.mxu0 0
    %3726 = vmatprep.subr.bf16.mxu0 0
    %3727 = vmatpush1.bf16.msra.mxu0 0
    %3728 = vmatprep.subr.bf16.mxu0 0
    %3729 = vmatpush1.bf16.msra.mxu0 0
    %3730 = vmatprep.subr.bf16.mxu0 0
    %3731 = vmatpush1.bf16.msra.mxu0 0
    %3732 = vmatprep.subr.bf16.mxu0 0
    %3733 = vmatpush1.bf16.msra.mxu0 0
    %3734 = vmatprep.subr.bf16.mxu0 0
    %3735 = vmatpush1.bf16.msra.mxu0 0
    %3736 = vmatprep.subr.bf16.mxu0 0
    %3737 = vmatpush1.bf16.msra.mxu0 0
    %3738 = vmatprep.subr.bf16.mxu0 0
    %3739 = vmatpush1.bf16.msra.mxu0 0
    %3740 = vmatprep.subr.bf16.mxu0 0
    %3741 = vmatpush1.bf16.msra.mxu0 0
    %3742 = vmatprep.subr.bf16.mxu0 0
    %3743 = vmatpush1.bf16.msra.mxu0 0
    %3744 = vmatprep.subr.bf16.mxu0 0
    %3745 = vmatpush1.bf16.msra.mxu0 0
    %3746 = vmatprep.subr.bf16.mxu0 0
    %3747 = vmatpush1.bf16.msra.mxu0 0
    %3748 = vmatprep.subr.bf16.mxu0 0
    %3749 = vmatpush1.bf16.msra.mxu0 0
    %3750 = vmatprep.subr.bf16.mxu0 0
    %3751 = vmatpush1.bf16.msra.mxu0 0
    %3752 = vmatprep.mubr.bf16.mxu0 0
    %3753 = vmatmul.mubr.bf16.gmra.mrb[0].mxu0 %v2872
    %v3754 = vpop.f32.mrb[0].mxu0
    %v3755 = vadd.f32 %v3706, %v3754
    %v3756 = vpop.f32.mrb[0].mxu0
    %v3757 = vpop.f32.mrb[0].mxu0
    %v3758 = vadd.f32 %v3706, %v3757
    %v3759 = vpop.f32.mrb[0].mxu0
    %3760 = vdwg.mxu0
    %v3761 = vpack.c.bf16 %v3626, %v3623
    %v3762 = vpack.c.bf16 %v3692, %v3689
    %v3764 = vsel %vm324, %v3761, 0
    %v3767 = vsel %vm324, %v3762, 0
    %3769 = vmatprep.subr.bf16.mxu0 0
    %3770 = vmatpush1.bf16.xpose.msra.mxu0 %v3767
    %3771 = vmatprep.subr.bf16.mxu0 0
    %3772 = vmatpush1.bf16.xpose.msra.mxu0 0
    %3773 = vmatprep.subr.bf16.mxu0 0
    %3774 = vmatpush1.bf16.xpose.msra.mxu0 0
    %3775 = vmatprep.subr.bf16.mxu0 0
    %3776 = vmatpush1.bf16.xpose.msra.mxu0 0
    %3777 = vmatprep.subr.bf16.mxu0 0
    %3778 = vmatpush1.bf16.xpose.msra.mxu0 0
    %3779 = vmatprep.subr.bf16.mxu0 0
    %3780 = vmatpush1.bf16.xpose.msra.mxu0 0
    %3781 = vmatprep.subr.bf16.mxu0 0
    %3782 = vmatpush1.bf16.xpose.msra.mxu0 0
    %3783 = vmatprep.subr.bf16.mxu0 0
    %3784 = vmatpush1.bf16.xpose.msra.mxu0 0
    %3785 = vmatprep.subr.bf16.mxu0 0
    %3786 = vmatpush1.bf16.xpose.msra.mxu0 0
    %3787 = vmatprep.subr.bf16.mxu0 0
    %3788 = vmatpush1.bf16.xpose.msra.mxu0 0
    %3789 = vmatprep.subr.bf16.mxu0 0
    %3790 = vmatpush1.bf16.xpose.msra.mxu0 0
    %3791 = vmatprep.subr.bf16.mxu0 0
    %3792 = vmatpush1.bf16.xpose.msra.mxu0 0
    %3793 = vmatprep.subr.bf16.mxu0 0
    %3794 = vmatpush1.bf16.xpose.msra.mxu0 0
    %3795 = vmatprep.subr.bf16.mxu0 0
    %3796 = vmatpush1.bf16.xpose.msra.mxu0 0
    %3797 = vmatprep.subr.bf16.mxu0 0
    %3798 = vmatpush1.bf16.xpose.msra.mxu0 0
    %3799 = vmatprep.subr.bf16.mxu0 0
    %3800 = vmatpush1.bf16.xpose.msra.mxu0 0
    %3801 = vmatprep.mubr.bf16.mxu0 0
    %3802 = vmatmul.mubr.bf16.gmra.mrb[0].mxu0 %v3764
    %v3803 = vpop.f32.mrb[0].mxu0
    %v3804 = vadd.f32 %v295, %v3803
    %v3805 = vpop.f32.mrb[0].mxu0
    %v3806 = vpop.f32.mrb[0].mxu0
    %v3807 = vadd.f32 %v296, %v3806
    %v3808 = vpop.f32.mrb[0].mxu0
    %3809 = vdwg.mxu0
    %v3810 = vsel %vm549, %v3804, -inf
    %3811 = vmax.xlane.f32.xlu0 %v3810
    %v3812 = vpop.xlane.xlu0 %3811
    %v3813 = vsel %vm549, %v3807, -inf
    %3814 = vmax.xlane.f32.xlu0 %v3813
    %v3815 = vpop.xlane.xlu0 %3814
    %v3816 = vsub.f32 %v3804, %v3812
    %v3817 = vsub.f32 %v3807, %v3815
    %v3818 = vmul.f32 %v3816, 1.442695
    %v3819 = vpow.pop %v3818
    %v3820 = vmul.f32 %v3817, 1.442695
    %v3821 = vpow.pop %v3820
    %v3823 = vsel %vm549, %v3819, 0
    %v3826 = vsel %vm549, %v3821, 0
    %3828 = vmatprep.subr.mxu0 0.0
    %3829 = vmatpush1.msra.mxu0 1.0
    %3830 = vmatprep.subr.mxu0 0.0
    %3831 = vmatpush1.msra.mxu0 1.0
    %3832 = vmatprep.subr.mxu0 0.0
    %3833 = vmatpush1.msra.mxu0 0.0
    %3834 = vmatprep.subr.mxu0 0.0
    %3835 = vmatpush1.msra.mxu0 0.0
    %3836 = vmatprep.subr.mxu0 0.0
    %3837 = vmatpush1.msra.mxu0 0.0
    %3838 = vmatprep.subr.mxu0 0.0
    %3839 = vmatpush1.msra.mxu0 0.0
    %3840 = vmatprep.subr.mxu0 0.0
    %3841 = vmatpush1.msra.mxu0 0.0
    %3842 = vmatprep.subr.mxu0 0.0
    %3843 = vmatpush1.msra.mxu0 0.0
    %3844 = vmatprep.subr.mxu0 0.0
    %3845 = vmatpush1.msra.mxu0 0.0
    %3846 = vmatprep.subr.mxu0 0.0
    %3847 = vmatpush1.msra.mxu0 0.0
    %3848 = vmatprep.subr.mxu0 0.0
    %3849 = vmatpush1.msra.mxu0 0.0
    %3850 = vmatprep.subr.mxu0 0.0
    %3851 = vmatpush1.msra.mxu0 0.0
    %3852 = vmatprep.subr.mxu0 0.0
    %3853 = vmatpush1.msra.mxu0 0.0
    %3854 = vmatprep.subr.mxu0 0.0
    %3855 = vmatpush1.msra.mxu0 0.0
    %3856 = vmatprep.subr.mxu0 0.0
    %3857 = vmatpush1.msra.mxu0 0.0
    %3858 = vmatprep.subr.mxu0 0.0
    %3859 = vmatpush1.msra.mxu0 0.0
    %3860 = vmatprep.subr.mxu0 0.0
    %3861 = vmatpush1.msra.mxu0 0.0
    %3862 = vmatprep.subr.mxu0 0.0
    %3863 = vmatpush1.msra.mxu0 0.0
    %3864 = vmatprep.subr.mxu0 0.0
    %3865 = vmatpush1.msra.mxu0 0.0
    %3866 = vmatprep.subr.mxu0 0.0
    %3867 = vmatpush1.msra.mxu0 0.0
    %3868 = vmatprep.subr.mxu0 0.0
    %3869 = vmatpush1.msra.mxu0 0.0
    %3870 = vmatprep.subr.mxu0 0.0
    %3871 = vmatpush1.msra.mxu0 0.0
    %3872 = vmatprep.subr.mxu0 0.0
    %3873 = vmatpush1.msra.mxu0 0.0
    %3874 = vmatprep.subr.mxu0 0.0
    %3875 = vmatpush1.msra.mxu0 0.0
    %3876 = vmatprep.subr.mxu0 0.0
    %3877 = vmatpush1.msra.mxu0 0.0
    %3878 = vmatprep.subr.mxu0 0.0
    %3879 = vmatpush1.msra.mxu0 0.0
    %3880 = vmatprep.subr.mxu0 0.0
    %3881 = vmatpush1.msra.mxu0 0.0
    %3882 = vmatprep.subr.mxu0 0.0
    %3883 = vmatpush1.msra.mxu0 0.0
    %3884 = vmatprep.subr.mxu0 0.0
    %3885 = vmatpush1.msra.mxu0 0.0
    %3886 = vmatprep.subr.mxu0 0.0
    %3887 = vmatpush1.msra.mxu0 0.0
    %3888 = vmatprep.subr.mxu0 0.0
    %3889 = vmatpush1.msra.mxu0 0.0
    %3890 = vmatprep.subr.mxu0 0.0
    %3891 = vmatpush1.msra.mxu0 0.0
    %3892 = vmatprep.mubr.f32.mxu0 0.0
    %3893 = vmatmul.mubr.f32.gmra.mrb[0].mxu0 %v3823
    %v3894 = vpop.f32.mrb[0].mxu0
    %v3895 = vadd.f32 0.0, %v3894
    %v3896 = vpop.f32.mrb[0].mxu0
    %3897 = vmatprep.mubr.f32.mxu0 0.0
    %3898 = vmatmul.mubr.f32.gmra.mrb[0].mxu0 %v3826
    %v3899 = vpop.f32.mrb[0].mxu0
    %v3900 = vadd.f32 0.0, %v3899
    %v3901 = vpop.f32.mrb[0].mxu0
    %3902 = vdwg.mxu0
    %v3903 = vrcp.pop %v3895
    %v3904 = vrcp.pop %v3900
    %3906 = vset.pattern.permute.xlu0 0
    %3907 = vperm.xlu0 %3906, %v3903
    %v3908 = vpop.permute.xlu0 %3907
    %3911 = vset.pattern.permute.xlu0 0
    %3912 = vperm.xlu0 %3911, %v3904
    %v3913 = vpop.permute.xlu0 %3912
    %v3915 = vmul.f32 %v3819, %v3908
    %v3916 = vmul.f32 %v3821, %v3913
    %v3917 = vpack.c.bf16 %v3916, %v3915
    %v3918 = vpack.c.bf16 %v3758, %v3755
    %v3920 = vsel %vm549, %v3917, 0
    %3922 = vmatprep.subr.bf16.mxu0 0
    %3923 = vmatpush1.bf16.msra.mxu0 %v3918
    %3924 = vmatprep.subr.bf16.mxu0 0
    %3925 = vmatpush1.bf16.msra.mxu0 0
    %3926 = vmatprep.subr.bf16.mxu0 0
    %3927 = vmatpush1.bf16.msra.mxu0 0
    %3928 = vmatprep.subr.bf16.mxu0 0
    %3929 = vmatpush1.bf16.msra.mxu0 0
    %3930 = vmatprep.subr.bf16.mxu0 0
    %3931 = vmatpush1.bf16.msra.mxu0 0
    %3932 = vmatprep.subr.bf16.mxu0 0
    %3933 = vmatpush1.bf16.msra.mxu0 0
    %3934 = vmatprep.subr.bf16.mxu0 0
    %3935 = vmatpush1.bf16.msra.mxu0 0
    %3936 = vmatprep.subr.bf16.mxu0 0
    %3937 = vmatpush1.bf16.msra.mxu0 0
    %3938 = vmatprep.subr.bf16.mxu0 0
    %3939 = vmatpush1.bf16.msra.mxu0 0
    %3940 = vmatprep.subr.bf16.mxu0 0
    %3941 = vmatpush1.bf16.msra.mxu0 0
    %3942 = vmatprep.subr.bf16.mxu0 0
    %3943 = vmatpush1.bf16.msra.mxu0 0
    %3944 = vmatprep.subr.bf16.mxu0 0
    %3945 = vmatpush1.bf16.msra.mxu0 0
    %3946 = vmatprep.subr.bf16.mxu0 0
    %3947 = vmatpush1.bf16.msra.mxu0 0
    %3948 = vmatprep.subr.bf16.mxu0 0
    %3949 = vmatpush1.bf16.msra.mxu0 0
    %3950 = vmatprep.subr.bf16.mxu0 0
    %3951 = vmatpush1.bf16.msra.mxu0 0
    %3952 = vmatprep.subr.bf16.mxu0 0
    %3953 = vmatpush1.bf16.msra.mxu0 0
    %3954 = vmatprep.mubr.bf16.mxu0 0
    %3955 = vmatmul.mubr.bf16.gmra.mrb[0].mxu0 %v3920
    %v3956 = vpop.f32.mrb[0].mxu0
    %v3957 = vadd.f32 0.0, %v3956
    %v3958 = vpop.f32.mrb[0].mxu0
    %v3959 = vpop.f32.mrb[0].mxu0
    %v3960 = vadd.f32 0.0, %v3959
    %v3961 = vpop.f32.mrb[0].mxu0
    %3962 = vdwg.mxu0
    %v3963 = vpack.c.bf16 %v3960, %v3957
    %s3964 = scalar_lea.vmem [#allocation17], 64
    %v3965 = vld [vmem:[%s3964] sm:$0xf]
    %v3966 = vld [vmem:[%s3964 + $0x4] sm:$0xf]
    %v3967 = vld [vmem:[%s3964 + $0x8] sm:$0xf]
    %v3968 = vld [vmem:[%s3964 + $0xc] sm:$0xf]
    %s3969 = scalar_lea.vmem [#allocation19], 4
    %v3970 = vld [vmem:[%s3969] sm:$0x1]
    %v3972 = vlaneseq
    %v3973 = vshrl.u32 %v3972, 7
    %v3974 = vsub.s32 0, %v3973
    %v3975 = vrot.slane %v3970, %v3974
    %v3981 = vunpack.c.l.b16 %v3965
    %v3982 = vunpack.c.l.b16 %v3966
    %v3983 = vunpack.c.l.b16 %v3967
    %v3984 = vunpack.c.l.b16 %v3968
    %v3985 = vpack.c.b16 %v3982, %v3981
    %v3986 = vpack.c.b16 %v3984, %v3983
    %v3990 = vsel %vm324, %v3963, 0
    %3992 = vmatprep.subr.bf16.mxu0 0
    %3993 = vmatpush1.bf16.msra.mxu0 %v3985
    %3994 = vmatprep.subr.bf16.mxu0 0
    %3995 = vmatpush1.bf16.msra.mxu0 %v3986
    %3996 = vmatprep.subr.bf16.mxu0 0
    %3997 = vmatpush1.bf16.msra.mxu0 0
    %3998 = vmatprep.subr.bf16.mxu0 0
    %3999 = vmatpush1.bf16.msra.mxu0 0
    %4000 = vmatprep.subr.bf16.mxu0 0
    %4001 = vmatpush1.bf16.msra.mxu0 0
    %4002 = vmatprep.subr.bf16.mxu0 0
    %4003 = vmatpush1.bf16.msra.mxu0 0
    %4004 = vmatprep.subr.bf16.mxu0 0
    %4005 = vmatpush1.bf16.msra.mxu0 0
    %4006 = vmatprep.subr.bf16.mxu0 0
    %4007 = vmatpush1.bf16.msra.mxu0 0
    %4008 = vmatprep.subr.bf16.mxu0 0
    %4009 = vmatpush1.bf16.msra.mxu0 0
    %4010 = vmatprep.subr.bf16.mxu0 0
    %4011 = vmatpush1.bf16.msra.mxu0 0
    %4012 = vmatprep.subr.bf16.mxu0 0
    %4013 = vmatpush1.bf16.msra.mxu0 0
    %4014 = vmatprep.subr.bf16.mxu0 0
    %4015 = vmatpush1.bf16.msra.mxu0 0
    %4016 = vmatprep.subr.bf16.mxu0 0
    %4017 = vmatpush1.bf16.msra.mxu0 0
    %4018 = vmatprep.subr.bf16.mxu0 0
    %4019 = vmatpush1.bf16.msra.mxu0 0
    %4020 = vmatprep.subr.bf16.mxu0 0
    %4021 = vmatpush1.bf16.msra.mxu0 0
    %4022 = vmatprep.subr.bf16.mxu0 0
    %4023 = vmatpush1.bf16.msra.mxu0 0
    %4024 = vmatprep.mubr.bf16.mxu0 0
    %4025 = vmatmul.mubr.bf16.gmra.mrb[0].mxu0 %v3990
    %v4026 = vpop.f32.mrb[0].mxu0
    %v4027 = vadd.f32 %v3975, %v4026
    %v4028 = vpop.f32.mrb[0].mxu0
    %v4029 = vpop.f32.mrb[0].mxu0
    %v4030 = vadd.f32 %v3975, %v4029
    %v4031 = vpop.f32.mrb[0].mxu0
    %4032 = vdwg.mxu0
    %v4033 = vadd.f32 %v3557, %v4027
    %v4034 = vadd.f32 %v3558, %v4030
    %s4035 = scalar_lea.vmem [#allocation20], 4
    %v4036 = vld [vmem:[%s4035] sm:$0x1]
    %s4037 = scalar_lea.vmem [#allocation22], 4
    %v4038 = vld [vmem:[%s4037] sm:$0x1]
    %v4040 = vsel %vm324, %v4033, 0
    %v4043 = vsel %vm324, %v4034, 0
    %4045 = vmatprep.subr.mxu0 0.0
    %4046 = vmatpush1.msra.mxu0 1.0
    %4047 = vmatprep.subr.mxu0 0.0
    %4048 = vmatpush1.msra.mxu0 1.0
    %4049 = vmatprep.subr.mxu0 0.0
    %4050 = vmatpush1.msra.mxu0 1.0
    %4051 = vmatprep.subr.mxu0 0.0
    %4052 = vmatpush1.msra.mxu0 1.0
    %4053 = vmatprep.subr.mxu0 0.0
    %4054 = vmatpush1.msra.mxu0 0.0
    %4055 = vmatprep.subr.mxu0 0.0
    %4056 = vmatpush1.msra.mxu0 0.0
    %4057 = vmatprep.subr.mxu0 0.0
    %4058 = vmatpush1.msra.mxu0 0.0
    %4059 = vmatprep.subr.mxu0 0.0
    %4060 = vmatpush1.msra.mxu0 0.0
    %4061 = vmatprep.subr.mxu0 0.0
    %4062 = vmatpush1.msra.mxu0 0.0
    %4063 = vmatprep.subr.mxu0 0.0
    %4064 = vmatpush1.msra.mxu0 0.0
    %4065 = vmatprep.subr.mxu0 0.0
    %4066 = vmatpush1.msra.mxu0 0.0
    %4067 = vmatprep.subr.mxu0 0.0
    %4068 = vmatpush1.msra.mxu0 0.0
    %4069 = vmatprep.subr.mxu0 0.0
    %4070 = vmatpush1.msra.mxu0 0.0
    %4071 = vmatprep.subr.mxu0 0.0
    %4072 = vmatpush1.msra.mxu0 0.0
    %4073 = vmatprep.subr.mxu0 0.0
    %4074 = vmatpush1.msra.mxu0 0.0
    %4075 = vmatprep.subr.mxu0 0.0
    %4076 = vmatpush1.msra.mxu0 0.0
    %4077 = vmatprep.subr.mxu0 0.0
    %4078 = vmatpush1.msra.mxu0 0.0
    %4079 = vmatprep.subr.mxu0 0.0
    %4080 = vmatpush1.msra.mxu0 0.0
    %4081 = vmatprep.subr.mxu0 0.0
    %4082 = vmatpush1.msra.mxu0 0.0
    %4083 = vmatprep.subr.mxu0 0.0
    %4084 = vmatpush1.msra.mxu0 0.0
    %4085 = vmatprep.subr.mxu0 0.0
    %4086 = vmatpush1.msra.mxu0 0.0
    %4087 = vmatprep.subr.mxu0 0.0
    %4088 = vmatpush1.msra.mxu0 0.0
    %4089 = vmatprep.subr.mxu0 0.0
    %4090 = vmatpush1.msra.mxu0 0.0
    %4091 = vmatprep.subr.mxu0 0.0
    %4092 = vmatpush1.msra.mxu0 0.0
    %4093 = vmatprep.subr.mxu0 0.0
    %4094 = vmatpush1.msra.mxu0 0.0
    %4095 = vmatprep.subr.mxu0 0.0
    %4096 = vmatpush1.msra.mxu0 0.0
    %4097 = vmatprep.subr.mxu0 0.0
    %4098 = vmatpush1.msra.mxu0 0.0
    %4099 = vmatprep.subr.mxu0 0.0
    %4100 = vmatpush1.msra.mxu0 0.0
    %4101 = vmatprep.subr.mxu0 0.0
    %4102 = vmatpush1.msra.mxu0 0.0
    %4103 = vmatprep.subr.mxu0 0.0
    %4104 = vmatpush1.msra.mxu0 0.0
    %4105 = vmatprep.subr.mxu0 0.0
    %4106 = vmatpush1.msra.mxu0 0.0
    %4107 = vmatprep.subr.mxu0 0.0
    %4108 = vmatpush1.msra.mxu0 0.0
    %4109 = vmatprep.mubr.f32.mxu0 0.0
    %4110 = vmatmul.mubr.f32.gmra.mrb[0].mxu0 %v4040
    %v4111 = vpop.f32.mrb[0].mxu0
    %v4112 = vadd.f32 0.0, %v4111
    %v4113 = vpop.f32.mrb[0].mxu0
    %4114 = vmatprep.mubr.f32.mxu0 0.0
    %4115 = vmatmul.mubr.f32.gmra.mrb[0].mxu0 %v4043
    %v4116 = vpop.f32.mrb[0].mxu0
    %v4117 = vadd.f32 0.0, %v4116
    %v4118 = vpop.f32.mrb[0].mxu0
    %4119 = vdwg.mxu0
    %v4120 = vmul.f32 %v4033, %v4033
    %v4121 = vmul.f32 %v4034, %v4034
    %v4123 = vsel %vm324, %v4120, 0
    %v4126 = vsel %vm324, %v4121, 0
    %4128 = vmatprep.subr.mxu0 0.0
    %4129 = vmatpush1.msra.mxu0 1.0
    %4130 = vmatprep.subr.mxu0 0.0
    %4131 = vmatpush1.msra.mxu0 1.0
    %4132 = vmatprep.subr.mxu0 0.0
    %4133 = vmatpush1.msra.mxu0 1.0
    %4134 = vmatprep.subr.mxu0 0.0
    %4135 = vmatpush1.msra.mxu0 1.0
    %4136 = vmatprep.subr.mxu0 0.0
    %4137 = vmatpush1.msra.mxu0 0.0
    %4138 = vmatprep.subr.mxu0 0.0
    %4139 = vmatpush1.msra.mxu0 0.0
    %4140 = vmatprep.subr.mxu0 0.0
    %4141 = vmatpush1.msra.mxu0 0.0
    %4142 = vmatprep.subr.mxu0 0.0
    %4143 = vmatpush1.msra.mxu0 0.0
    %4144 = vmatprep.subr.mxu0 0.0
    %4145 = vmatpush1.msra.mxu0 0.0
    %4146 = vmatprep.subr.mxu0 0.0
    %4147 = vmatpush1.msra.mxu0 0.0
    %4148 = vmatprep.subr.mxu0 0.0
    %4149 = vmatpush1.msra.mxu0 0.0
    %4150 = vmatprep.subr.mxu0 0.0
    %4151 = vmatpush1.msra.mxu0 0.0
    %4152 = vmatprep.subr.mxu0 0.0
    %4153 = vmatpush1.msra.mxu0 0.0
    %4154 = vmatprep.subr.mxu0 0.0
    %4155 = vmatpush1.msra.mxu0 0.0
    %4156 = vmatprep.subr.mxu0 0.0
    %4157 = vmatpush1.msra.mxu0 0.0
    %4158 = vmatprep.subr.mxu0 0.0
    %4159 = vmatpush1.msra.mxu0 0.0
    %4160 = vmatprep.subr.mxu0 0.0
    %4161 = vmatpush1.msra.mxu0 0.0
    %4162 = vmatprep.subr.mxu0 0.0
    %4163 = vmatpush1.msra.mxu0 0.0
    %4164 = vmatprep.subr.mxu0 0.0
    %4165 = vmatpush1.msra.mxu0 0.0
    %4166 = vmatprep.subr.mxu0 0.0
    %4167 = vmatpush1.msra.mxu0 0.0
    %4168 = vmatprep.subr.mxu0 0.0
    %4169 = vmatpush1.msra.mxu0 0.0
    %4170 = vmatprep.subr.mxu0 0.0
    %4171 = vmatpush1.msra.mxu0 0.0
    %4172 = vmatprep.subr.mxu0 0.0
    %4173 = vmatpush1.msra.mxu0 0.0
    %4174 = vmatprep.subr.mxu0 0.0
    %4175 = vmatpush1.msra.mxu0 0.0
    %4176 = vmatprep.subr.mxu0 0.0
    %4177 = vmatpush1.msra.mxu0 0.0
    %4178 = vmatprep.subr.mxu0 0.0
    %4179 = vmatpush1.msra.mxu0 0.0
    %4180 = vmatprep.subr.mxu0 0.0
    %4181 = vmatpush1.msra.mxu0 0.0
    %4182 = vmatprep.subr.mxu0 0.0
    %4183 = vmatpush1.msra.mxu0 0.0
    %4184 = vmatprep.subr.mxu0 0.0
    %4185 = vmatpush1.msra.mxu0 0.0
    %4186 = vmatprep.subr.mxu0 0.0
    %4187 = vmatpush1.msra.mxu0 0.0
    %4188 = vmatprep.subr.mxu0 0.0
    %4189 = vmatpush1.msra.mxu0 0.0
    %4190 = vmatprep.subr.mxu0 0.0
    %4191 = vmatpush1.msra.mxu0 0.0
    %4192 = vmatprep.mubr.f32.mxu0 0.0
    %4193 = vmatmul.mubr.f32.gmra.mrb[0].mxu0 %v4123
    %v4194 = vpop.f32.mrb[0].mxu0
    %v4195 = vadd.f32 0.0, %v4194
    %v4196 = vpop.f32.mrb[0].mxu0
    %4197 = vmatprep.mubr.f32.mxu0 0.0
    %4198 = vmatmul.mubr.f32.gmra.mrb[0].mxu0 %v4126
    %v4199 = vpop.f32.mrb[0].mxu0
    %v4200 = vadd.f32 0.0, %v4199
    %v4201 = vpop.f32.mrb[0].mxu0
    %4202 = vdwg.mxu0
    %v4203 = vmul.f32 %v4112, 0.03125
    %v4204 = vmul.f32 %v4117, 0.03125
    %v4205 = vmul.f32 %v4195, 0.03125
    %v4206 = vmul.f32 %v4200, 0.03125
    %v4207 = vmul.f32 %v4203, %v4203
    %v4208 = vmul.f32 %v4204, %v4204
    %v4209 = vsub.f32 %v4205, %v4207
    %v4210 = vsub.f32 %v4206, %v4208
    %v4211 = vmax.f32 %v4209, 0.0
    %v4212 = vmax.f32 %v4210, 0.0
    %4214 = vset.pattern.permute.xlu0 0
    %4215 = vperm.xlu0 %4214, %v4203
    %v4216 = vpop.permute.xlu0 %4215
    %4219 = vset.pattern.permute.xlu0 0
    %4220 = vperm.xlu0 %4219, %v4204
    %v4221 = vpop.permute.xlu0 %4220
    %v4223 = vsub.f32 %v4033, %v4216
    %v4224 = vsub.f32 %v4034, %v4221
    %v4225 = vadd.f32 %v4211, 1e-05
    %v4226 = vadd.f32 %v4212, 1e-05
    %v4227 = vrsqrt.pop %v4225
    %v4228 = vrsqrt.pop %v4226
    %4230 = vset.pattern.permute.xlu0 0
    %4231 = vperm.xlu0 %4230, %v4227
    %v4232 = vpop.permute.xlu0 %4231
    %4235 = vset.pattern.permute.xlu0 0
    %4236 = vperm.xlu0 %4235, %v4228
    %v4237 = vpop.permute.xlu0 %4236
    %v4239 = vmul.f32 %v4223, %v4232
    %v4240 = vmul.f32 %v4224, %v4237
    %v4242 = vlaneseq
    %v4243 = vshrl.u32 %v4242, 7
    %v4244 = vsub.s32 0, %v4243
    %v4245 = vrot.slane %v4036, %v4244
    %v4247 = vmul.f32 %v4239, %v4245
    %v4248 = vmul.f32 %v4240, %v4245
    %v4250 = vlaneseq
    %v4251 = vshrl.u32 %v4250, 7
    %v4252 = vsub.s32 0, %v4251
    %v4253 = vrot.slane %v4038, %v4252
    %v4255 = vadd.f32 %v4247, %v4253
    %v4256 = vadd.f32 %v4248, %v4253
    %v4257 = vpack.c.bf16 %v4256, %v4255
    %s4258 = scalar_lea.vmem %s13, 48
    %v4259 = vld [vmem:[%s4258] sm:$0xf]
    %v4260 = vld [vmem:[%s4258 + $0x4] sm:$0xf]
    %v4261 = vld [vmem:[%s4258 + $0x8] sm:$0xf]
    %v4262 = vld [vmem:[%s4258 + $0xc] sm:$0xf]
    %s4263 = scalar_lea.vmem [#allocation23], 3
    %v4264 = vld [vmem:[%s4263] sm:$0x1]
    %v4266 = vlaneseq
    %v4267 = vshrl.u32 %v4266, 7
    %v4268 = vsub.s32 0, %v4267
    %v4269 = vrot.slane %v4264, %v4268
    %v4275 = vunpack.c.l.b16 %v4259
    %v4276 = vunpack.c.l.b16 %v4260
    %v4277 = vunpack.c.l.b16 %v4261
    %v4278 = vunpack.c.l.b16 %v4262
    %v4279 = vpack.c.b16 %v4276, %v4275
    %v4280 = vpack.c.b16 %v4278, %v4277
    %v4284 = vsel %vm324, %v4257, 0
    %4286 = vmatprep.subr.bf16.mxu0 0
    %4287 = vmatpush1.bf16.msra.mxu0 %v4279
    %4288 = vmatprep.subr.bf16.mxu0 0
    %4289 = vmatpush1.bf16.msra.mxu0 %v4280
    %4290 = vmatprep.subr.bf16.mxu0 0
    %4291 = vmatpush1.bf16.msra.mxu0 0
    %4292 = vmatprep.subr.bf16.mxu0 0
    %4293 = vmatpush1.bf16.msra.mxu0 0
    %4294 = vmatprep.subr.bf16.mxu0 0
    %4295 = vmatpush1.bf16.msra.mxu0 0
    %4296 = vmatprep.subr.bf16.mxu0 0
    %4297 = vmatpush1.bf16.msra.mxu0 0
    %4298 = vmatprep.subr.bf16.mxu0 0
    %4299 = vmatpush1.bf16.msra.mxu0 0
    %4300 = vmatprep.subr.bf16.mxu0 0
    %4301 = vmatpush1.bf16.msra.mxu0 0
    %4302 = vmatprep.subr.bf16.mxu0 0
    %4303 = vmatpush1.bf16.msra.mxu0 0
    %4304 = vmatprep.subr.bf16.mxu0 0
    %4305 = vmatpush1.bf16.msra.mxu0 0
    %4306 = vmatprep.subr.bf16.mxu0 0
    %4307 = vmatpush1.bf16.msra.mxu0 0
    %4308 = vmatprep.subr.bf16.mxu0 0
    %4309 = vmatpush1.bf16.msra.mxu0 0
    %4310 = vmatprep.subr.bf16.mxu0 0
    %4311 = vmatpush1.bf16.msra.mxu0 0
    %4312 = vmatprep.subr.bf16.mxu0 0
    %4313 = vmatpush1.bf16.msra.mxu0 0
    %4314 = vmatprep.subr.bf16.mxu0 0
    %4315 = vmatpush1.bf16.msra.mxu0 0
    %4316 = vmatprep.subr.bf16.mxu0 0
    %4317 = vmatpush1.bf16.msra.mxu0 0
    %4318 = vmatprep.mubr.bf16.mxu0 0
    %4319 = vmatmul.mubr.bf16.gmra.mrb[0].mxu0 %v4284
    %v4320 = vpop.f32.mrb[0].mxu0
    %v4321 = vadd.f32 %v4269, %v4320
    %v4322 = vpop.f32.mrb[0].mxu0
    %v4323 = vpop.f32.mrb[0].mxu0
    %v4324 = vadd.f32 %v4269, %v4323
    %v4325 = vpop.f32.mrb[0].mxu0
    %4326 = vdwg.mxu0
    %vm4327 = vcmp.gt.f32.partialorder %v4321, 0.0
    %vm4328 = vcmp.gt.f32.partialorder %v4324, 0.0
    %v4329 = vmin.f32 %v4321, 0.0
    %v4330 = vmin.f32 %v4324, 0.0
    %v4331 = vmul.f32 %v4329, 1.442695
    %v4332 = vpow.pop %v4331
    %v4333 = vmul.f32 %v4330, 1.442695
    %v4334 = vpow.pop %v4333
    %v4335 = vsub.f32 %v4332, 1.0
    %v4336 = vsub.f32 %v4334, 1.0
    %v4337 = vsel %vm4327, %v4321, %v4335
    %v4338 = vsel %vm4328, %v4324, %v4336
    %v4339 = vpack.c.bf16 %v4338, %v4337
    %s4340 = scalar_lea.vmem [#allocation8], 80
    %v4341 = vld [vmem:[%s4340] sm:$0xf]
    %v4342 = vld [vmem:[%s4340 + $0x4] sm:$0xf]
    %v4343 = vld [vmem:[%s4340 + $0x8] sm:$0xf]
    %v4344 = vld [vmem:[%s4340 + $0xc] sm:$0xf]
    %s4345 = scalar_lea.vmem [#allocation10], 5
    %v4346 = vld [vmem:[%s4345] sm:$0x1]
    %v4348 = vlaneseq
    %v4349 = vshrl.u32 %v4348, 7
    %v4350 = vsub.s32 0, %v4349
    %v4351 = vrot.slane %v4346, %v4350
    %v4357 = vunpack.c.l.b16 %v4341
    %v4358 = vunpack.c.l.b16 %v4342
    %v4359 = vunpack.c.l.b16 %v4343
    %v4360 = vunpack.c.l.b16 %v4344
    %v4361 = vpack.c.b16 %v4358, %v4357
    %v4362 = vpack.c.b16 %v4360, %v4359
    %v4366 = vsel %vm324, %v4339, 0
    %4368 = vmatprep.subr.bf16.mxu0 0
    %4369 = vmatpush1.bf16.msra.mxu0 %v4361
    %4370 = vmatprep.subr.bf16.mxu0 0
    %4371 = vmatpush1.bf16.msra.mxu0 %v4362
    %4372 = vmatprep.subr.bf16.mxu0 0
    %4373 = vmatpush1.bf16.msra.mxu0 0
    %4374 = vmatprep.subr.bf16.mxu0 0
    %4375 = vmatpush1.bf16.msra.mxu0 0
    %4376 = vmatprep.subr.bf16.mxu0 0
    %4377 = vmatpush1.bf16.msra.mxu0 0
    %4378 = vmatprep.subr.bf16.mxu0 0
    %4379 = vmatpush1.bf16.msra.mxu0 0
    %4380 = vmatprep.subr.bf16.mxu0 0
    %4381 = vmatpush1.bf16.msra.mxu0 0
    %4382 = vmatprep.subr.bf16.mxu0 0
    %4383 = vmatpush1.bf16.msra.mxu0 0
    %4384 = vmatprep.subr.bf16.mxu0 0
    %4385 = vmatpush1.bf16.msra.mxu0 0
    %4386 = vmatprep.subr.bf16.mxu0 0
    %4387 = vmatpush1.bf16.msra.mxu0 0
    %4388 = vmatprep.subr.bf16.mxu0 0
    %4389 = vmatpush1.bf16.msra.mxu0 0
    %4390 = vmatprep.subr.bf16.mxu0 0
    %4391 = vmatpush1.bf16.msra.mxu0 0
    %4392 = vmatprep.subr.bf16.mxu0 0
    %4393 = vmatpush1.bf16.msra.mxu0 0
    %4394 = vmatprep.subr.bf16.mxu0 0
    %4395 = vmatpush1.bf16.msra.mxu0 0
    %4396 = vmatprep.subr.bf16.mxu0 0
    %4397 = vmatpush1.bf16.msra.mxu0 0
    %4398 = vmatprep.subr.bf16.mxu0 0
    %4399 = vmatpush1.bf16.msra.mxu0 0
    %4400 = vmatprep.mubr.bf16.mxu0 0
    %4401 = vmatmul.mubr.bf16.gmra.mrb[0].mxu0 %v4366
    %v4402 = vpop.f32.mrb[0].mxu0
    %v4403 = vadd.f32 %v4351, %v4402
    %v4404 = vpop.f32.mrb[0].mxu0
    %v4405 = vpop.f32.mrb[0].mxu0
    %v4406 = vadd.f32 %v4351, %v4405
    %v4407 = vpop.f32.mrb[0].mxu0
    %4408 = vdwg.mxu0
    %s4409 = scalar_lea.vmem [#allocation11], 80
    %v4410 = vld [vmem:[%s4409] sm:$0xf]
    %v4411 = vld [vmem:[%s4409 + $0x4] sm:$0xf]
    %v4412 = vld [vmem:[%s4409 + $0x8] sm:$0xf]
    %v4413 = vld [vmem:[%s4409 + $0xc] sm:$0xf]
    %s4414 = scalar_lea.vmem [#allocation13], 5
    %v4415 = vld [vmem:[%s4414] sm:$0x1]
    %v4417 = vlaneseq
    %v4418 = vshrl.u32 %v4417, 7
    %v4419 = vsub.s32 0, %v4418
    %v4420 = vrot.slane %v4415, %v4419
    %v4426 = vunpack.c.l.b16 %v4410
    %v4427 = vunpack.c.l.b16 %v4411
    %v4428 = vunpack.c.l.b16 %v4412
    %v4429 = vunpack.c.l.b16 %v4413
    %v4430 = vpack.c.b16 %v4427, %v4426
    %v4431 = vpack.c.b16 %v4429, %v4428
    %4434 = vmatprep.subr.bf16.mxu0 0
    %4435 = vmatpush1.bf16.msra.mxu0 %v4430
    %4436 = vmatprep.subr.bf16.mxu0 0
    %4437 = vmatpush1.bf16.msra.mxu0 %v4431
    %4438 = vmatprep.subr.bf16.mxu0 0
    %4439 = vmatpush1.bf16.msra.mxu0 0
    %4440 = vmatprep.subr.bf16.mxu0 0
    %4441 = vmatpush1.bf16.msra.mxu0 0
    %4442 = vmatprep.subr.bf16.mxu0 0
    %4443 = vmatpush1.bf16.msra.mxu0 0
    %4444 = vmatprep.subr.bf16.mxu0 0
    %4445 = vmatpush1.bf16.msra.mxu0 0
    %4446 = vmatprep.subr.bf16.mxu0 0
    %4447 = vmatpush1.bf16.msra.mxu0 0
    %4448 = vmatprep.subr.bf16.mxu0 0
    %4449 = vmatpush1.bf16.msra.mxu0 0
    %4450 = vmatprep.subr.bf16.mxu0 0
    %4451 = vmatpush1.bf16.msra.mxu0 0
    %4452 = vmatprep.subr.bf16.mxu0 0
    %4453 = vmatpush1.bf16.msra.mxu0 0
    %4454 = vmatprep.subr.bf16.mxu0 0
    %4455 = vmatpush1.bf16.msra.mxu0 0
    %4456 = vmatprep.subr.bf16.mxu0 0
    %4457 = vmatpush1.bf16.msra.mxu0 0
    %4458 = vmatprep.subr.bf16.mxu0 0
    %4459 = vmatpush1.bf16.msra.mxu0 0
    %4460 = vmatprep.subr.bf16.mxu0 0
    %4461 = vmatpush1.bf16.msra.mxu0 0
    %4462 = vmatprep.subr.bf16.mxu0 0
    %4463 = vmatpush1.bf16.msra.mxu0 0
    %4464 = vmatprep.subr.bf16.mxu0 0
    %4465 = vmatpush1.bf16.msra.mxu0 0
    %4466 = vmatprep.mubr.bf16.mxu0 0
    %4467 = vmatmul.mubr.bf16.gmra.mrb[0].mxu0 %v2872
    %v4468 = vpop.f32.mrb[0].mxu0
    %v4469 = vadd.f32 %v4420, %v4468
    %v4470 = vpop.f32.mrb[0].mxu0
    %v4471 = vpop.f32.mrb[0].mxu0
    %v4472 = vadd.f32 %v4420, %v4471
    %v4473 = vpop.f32.mrb[0].mxu0
    %4474 = vdwg.mxu0
    %s4475 = scalar_lea.vmem [#allocation14], 80
    %v4476 = vld [vmem:[%s4475] sm:$0xf]
    %v4477 = vld [vmem:[%s4475 + $0x4] sm:$0xf]
    %v4478 = vld [vmem:[%s4475 + $0x8] sm:$0xf]
    %v4479 = vld [vmem:[%s4475 + $0xc] sm:$0xf]
    %s4480 = scalar_lea.vmem [#allocation16], 5
    %v4481 = vld [vmem:[%s4480] sm:$0x1]
    %v4483 = vlaneseq
    %v4484 = vshrl.u32 %v4483, 7
    %v4485 = vsub.s32 0, %v4484
    %v4486 = vrot.slane %v4481, %v4485
    %v4492 = vunpack.c.l.b16 %v4476
    %v4493 = vunpack.c.l.b16 %v4477
    %v4494 = vunpack.c.l.b16 %v4478
    %v4495 = vunpack.c.l.b16 %v4479
    %v4496 = vpack.c.b16 %v4493, %v4492
    %v4497 = vpack.c.b16 %v4495, %v4494
    %4500 = vmatprep.subr.bf16.mxu0 0
    %4501 = vmatpush1.bf16.msra.mxu0 %v4496
    %4502 = vmatprep.subr.bf16.mxu0 0
    %4503 = vmatpush1.bf16.msra.mxu0 %v4497
    %4504 = vmatprep.subr.bf16.mxu0 0
    %4505 = vmatpush1.bf16.msra.mxu0 0
    %4506 = vmatprep.subr.bf16.mxu0 0
    %4507 = vmatpush1.bf16.msra.mxu0 0
    %4508 = vmatprep.subr.bf16.mxu0 0
    %4509 = vmatpush1.bf16.msra.mxu0 0
    %4510 = vmatprep.subr.bf16.mxu0 0
    %4511 = vmatpush1.bf16.msra.mxu0 0
    %4512 = vmatprep.subr.bf16.mxu0 0
    %4513 = vmatpush1.bf16.msra.mxu0 0
    %4514 = vmatprep.subr.bf16.mxu0 0
    %4515 = vmatpush1.bf16.msra.mxu0 0
    %4516 = vmatprep.subr.bf16.mxu0 0
    %4517 = vmatpush1.bf16.msra.mxu0 0
    %4518 = vmatprep.subr.bf16.mxu0 0
    %4519 = vmatpush1.bf16.msra.mxu0 0
    %4520 = vmatprep.subr.bf16.mxu0 0
    %4521 = vmatpush1.bf16.msra.mxu0 0
    %4522 = vmatprep.subr.bf16.mxu0 0
    %4523 = vmatpush1.bf16.msra.mxu0 0
    %4524 = vmatprep.subr.bf16.mxu0 0
    %4525 = vmatpush1.bf16.msra.mxu0 0
    %4526 = vmatprep.subr.bf16.mxu0 0
    %4527 = vmatpush1.bf16.msra.mxu0 0
    %4528 = vmatprep.subr.bf16.mxu0 0
    %4529 = vmatpush1.bf16.msra.mxu0 0
    %4530 = vmatprep.subr.bf16.mxu0 0
    %4531 = vmatpush1.bf16.msra.mxu0 0
    %4532 = vmatprep.mubr.bf16.mxu0 0
    %4533 = vmatmul.mubr.bf16.gmra.mrb[0].mxu0 %v2872
    %v4534 = vpop.f32.mrb[0].mxu0
    %v4535 = vadd.f32 %v4486, %v4534
    %v4536 = vpop.f32.mrb[0].mxu0
    %v4537 = vpop.f32.mrb[0].mxu0
    %v4538 = vadd.f32 %v4486, %v4537
    %v4539 = vpop.f32.mrb[0].mxu0
    %4540 = vdwg.mxu0
    %v4541 = vpack.c.bf16 %v4406, %v4403
    %v4542 = vpack.c.bf16 %v4472, %v4469
    %v4544 = vsel %vm324, %v4541, 0
    %v4547 = vsel %vm324, %v4542, 0
    %4549 = vmatprep.subr.bf16.mxu0 0
    %4550 = vmatpush1.bf16.xpose.msra.mxu0 %v4547
    %4551 = vmatprep.subr.bf16.mxu0 0
    %4552 = vmatpush1.bf16.xpose.msra.mxu0 0
    %4553 = vmatprep.subr.bf16.mxu0 0
    %4554 = vmatpush1.bf16.xpose.msra.mxu0 0
    %4555 = vmatprep.subr.bf16.mxu0 0
    %4556 = vmatpush1.bf16.xpose.msra.mxu0 0
    %4557 = vmatprep.subr.bf16.mxu0 0
    %4558 = vmatpush1.bf16.xpose.msra.mxu0 0
    %4559 = vmatprep.subr.bf16.mxu0 0
    %4560 = vmatpush1.bf16.xpose.msra.mxu0 0
    %4561 = vmatprep.subr.bf16.mxu0 0
    %4562 = vmatpush1.bf16.xpose.msra.mxu0 0
    %4563 = vmatprep.subr.bf16.mxu0 0
    %4564 = vmatpush1.bf16.xpose.msra.mxu0 0
    %4565 = vmatprep.subr.bf16.mxu0 0
    %4566 = vmatpush1.bf16.xpose.msra.mxu0 0
    %4567 = vmatprep.subr.bf16.mxu0 0
    %4568 = vmatpush1.bf16.xpose.msra.mxu0 0
    %4569 = vmatprep.subr.bf16.mxu0 0
    %4570 = vmatpush1.bf16.xpose.msra.mxu0 0
    %4571 = vmatprep.subr.bf16.mxu0 0
    %4572 = vmatpush1.bf16.xpose.msra.mxu0 0
    %4573 = vmatprep.subr.bf16.mxu0 0
    %4574 = vmatpush1.bf16.xpose.msra.mxu0 0
    %4575 = vmatprep.subr.bf16.mxu0 0
    %4576 = vmatpush1.bf16.xpose.msra.mxu0 0
    %4577 = vmatprep.subr.bf16.mxu0 0
    %4578 = vmatpush1.bf16.xpose.msra.mxu0 0
    %4579 = vmatprep.subr.bf16.mxu0 0
    %4580 = vmatpush1.bf16.xpose.msra.mxu0 0
    %4581 = vmatprep.mubr.bf16.mxu0 0
    %4582 = vmatmul.mubr.bf16.gmra.mrb[0].mxu0 %v4544
    %v4583 = vpop.f32.mrb[0].mxu0
    %v4584 = vadd.f32 %v295, %v4583
    %v4585 = vpop.f32.mrb[0].mxu0
    %v4586 = vpop.f32.mrb[0].mxu0
    %v4587 = vadd.f32 %v296, %v4586
    %v4588 = vpop.f32.mrb[0].mxu0
    %4589 = vdwg.mxu0
    %v4590 = vsel %vm549, %v4584, -inf
    %4591 = vmax.xlane.f32.xlu0 %v4590
    %v4592 = vpop.xlane.xlu0 %4591
    %v4593 = vsel %vm549, %v4587, -inf
    %4594 = vmax.xlane.f32.xlu0 %v4593
    %v4595 = vpop.xlane.xlu0 %4594
    %v4596 = vsub.f32 %v4584, %v4592
    %v4597 = vsub.f32 %v4587, %v4595
    %v4598 = vmul.f32 %v4596, 1.442695
    %v4599 = vpow.pop %v4598
    %v4600 = vmul.f32 %v4597, 1.442695
    %v4601 = vpow.pop %v4600
    %v4603 = vsel %vm549, %v4599, 0
    %v4606 = vsel %vm549, %v4601, 0
    %4608 = vmatprep.subr.mxu0 0.0
    %4609 = vmatpush1.msra.mxu0 1.0
    %4610 = vmatprep.subr.mxu0 0.0
    %4611 = vmatpush1.msra.mxu0 1.0
    %4612 = vmatprep.subr.mxu0 0.0
    %4613 = vmatpush1.msra.mxu0 0.0
    %4614 = vmatprep.subr.mxu0 0.0
    %4615 = vmatpush1.msra.mxu0 0.0
    %4616 = vmatprep.subr.mxu0 0.0
    %4617 = vmatpush1.msra.mxu0 0.0
    %4618 = vmatprep.subr.mxu0 0.0
    %4619 = vmatpush1.msra.mxu0 0.0
    %4620 = vmatprep.subr.mxu0 0.0
    %4621 = vmatpush1.msra.mxu0 0.0
    %4622 = vmatprep.subr.mxu0 0.0
    %4623 = vmatpush1.msra.mxu0 0.0
    %4624 = vmatprep.subr.mxu0 0.0
    %4625 = vmatpush1.msra.mxu0 0.0
    %4626 = vmatprep.subr.mxu0 0.0
    %4627 = vmatpush1.msra.mxu0 0.0
    %4628 = vmatprep.subr.mxu0 0.0
    %4629 = vmatpush1.msra.mxu0 0.0
    %4630 = vmatprep.subr.mxu0 0.0
    %4631 = vmatpush1.msra.mxu0 0.0
    %4632 = vmatprep.subr.mxu0 0.0
    %4633 = vmatpush1.msra.mxu0 0.0
    %4634 = vmatprep.subr.mxu0 0.0
    %4635 = vmatpush1.msra.mxu0 0.0
    %4636 = vmatprep.subr.mxu0 0.0
    %4637 = vmatpush1.msra.mxu0 0.0
    %4638 = vmatprep.subr.mxu0 0.0
    %4639 = vmatpush1.msra.mxu0 0.0
    %4640 = vmatprep.subr.mxu0 0.0
    %4641 = vmatpush1.msra.mxu0 0.0
    %4642 = vmatprep.subr.mxu0 0.0
    %4643 = vmatpush1.msra.mxu0 0.0
    %4644 = vmatprep.subr.mxu0 0.0
    %4645 = vmatpush1.msra.mxu0 0.0
    %4646 = vmatprep.subr.mxu0 0.0
    %4647 = vmatpush1.msra.mxu0 0.0
    %4648 = vmatprep.subr.mxu0 0.0
    %4649 = vmatpush1.msra.mxu0 0.0
    %4650 = vmatprep.subr.mxu0 0.0
    %4651 = vmatpush1.msra.mxu0 0.0
    %4652 = vmatprep.subr.mxu0 0.0
    %4653 = vmatpush1.msra.mxu0 0.0
    %4654 = vmatprep.subr.mxu0 0.0
    %4655 = vmatpush1.msra.mxu0 0.0
    %4656 = vmatprep.subr.mxu0 0.0
    %4657 = vmatpush1.msra.mxu0 0.0
    %4658 = vmatprep.subr.mxu0 0.0
    %4659 = vmatpush1.msra.mxu0 0.0
    %4660 = vmatprep.subr.mxu0 0.0
    %4661 = vmatpush1.msra.mxu0 0.0
    %4662 = vmatprep.subr.mxu0 0.0
    %4663 = vmatpush1.msra.mxu0 0.0
    %4664 = vmatprep.subr.mxu0 0.0
    %4665 = vmatpush1.msra.mxu0 0.0
    %4666 = vmatprep.subr.mxu0 0.0
    %4667 = vmatpush1.msra.mxu0 0.0
    %4668 = vmatprep.subr.mxu0 0.0
    %4669 = vmatpush1.msra.mxu0 0.0
    %4670 = vmatprep.subr.mxu0 0.0
    %4671 = vmatpush1.msra.mxu0 0.0
    %4672 = vmatprep.mubr.f32.mxu0 0.0
    %4673 = vmatmul.mubr.f32.gmra.mrb[0].mxu0 %v4603
    %v4674 = vpop.f32.mrb[0].mxu0
    %v4675 = vadd.f32 0.0, %v4674
    %v4676 = vpop.f32.mrb[0].mxu0
    %4677 = vmatprep.mubr.f32.mxu0 0.0
    %4678 = vmatmul.mubr.f32.gmra.mrb[0].mxu0 %v4606
    %v4679 = vpop.f32.mrb[0].mxu0
    %v4680 = vadd.f32 0.0, %v4679
    %v4681 = vpop.f32.mrb[0].mxu0
    %4682 = vdwg.mxu0
    %v4683 = vrcp.pop %v4675
    %v4684 = vrcp.pop %v4680
    %4686 = vset.pattern.permute.xlu0 0
    %4687 = vperm.xlu0 %4686, %v4683
    %v4688 = vpop.permute.xlu0 %4687
    %4691 = vset.pattern.permute.xlu0 0
    %4692 = vperm.xlu0 %4691, %v4684
    %v4693 = vpop.permute.xlu0 %4692
    %v4695 = vmul.f32 %v4599, %v4688
    %v4696 = vmul.f32 %v4601, %v4693
    %v4697 = vpack.c.bf16 %v4696, %v4695
    %v4698 = vpack.c.bf16 %v4538, %v4535
    %v4700 = vsel %vm549, %v4697, 0
    %4702 = vmatprep.subr.bf16.mxu0 0
    %4703 = vmatpush1.bf16.msra.mxu0 %v4698
    %4704 = vmatprep.subr.bf16.mxu0 0
    %4705 = vmatpush1.bf16.msra.mxu0 0
    %4706 = vmatprep.subr.bf16.mxu0 0
    %4707 = vmatpush1.bf16.msra.mxu0 0
    %4708 = vmatprep.subr.bf16.mxu0 0
    %4709 = vmatpush1.bf16.msra.mxu0 0
    %4710 = vmatprep.subr.bf16.mxu0 0
    %4711 = vmatpush1.bf16.msra.mxu0 0
    %4712 = vmatprep.subr.bf16.mxu0 0
    %4713 = vmatpush1.bf16.msra.mxu0 0
    %4714 = vmatprep.subr.bf16.mxu0 0
    %4715 = vmatpush1.bf16.msra.mxu0 0
    %4716 = vmatprep.subr.bf16.mxu0 0
    %4717 = vmatpush1.bf16.msra.mxu0 0
    %4718 = vmatprep.subr.bf16.mxu0 0
    %4719 = vmatpush1.bf16.msra.mxu0 0
    %4720 = vmatprep.subr.bf16.mxu0 0
    %4721 = vmatpush1.bf16.msra.mxu0 0
    %4722 = vmatprep.subr.bf16.mxu0 0
    %4723 = vmatpush1.bf16.msra.mxu0 0
    %4724 = vmatprep.subr.bf16.mxu0 0
    %4725 = vmatpush1.bf16.msra.mxu0 0
    %4726 = vmatprep.subr.bf16.mxu0 0
    %4727 = vmatpush1.bf16.msra.mxu0 0
    %4728 = vmatprep.subr.bf16.mxu0 0
    %4729 = vmatpush1.bf16.msra.mxu0 0
    %4730 = vmatprep.subr.bf16.mxu0 0
    %4731 = vmatpush1.bf16.msra.mxu0 0
    %4732 = vmatprep.subr.bf16.mxu0 0
    %4733 = vmatpush1.bf16.msra.mxu0 0
    %4734 = vmatprep.mubr.bf16.mxu0 0
    %4735 = vmatmul.mubr.bf16.gmra.mrb[0].mxu0 %v4700
    %v4736 = vpop.f32.mrb[0].mxu0
    %v4737 = vadd.f32 0.0, %v4736
    %v4738 = vpop.f32.mrb[0].mxu0
    %v4739 = vpop.f32.mrb[0].mxu0
    %v4740 = vadd.f32 0.0, %v4739
    %v4741 = vpop.f32.mrb[0].mxu0
    %4742 = vdwg.mxu0
    %v4743 = vpack.c.bf16 %v4740, %v4737
    %s4744 = scalar_lea.vmem [#allocation17], 80
    %v4745 = vld [vmem:[%s4744] sm:$0xf]
    %v4746 = vld [vmem:[%s4744 + $0x4] sm:$0xf]
    %v4747 = vld [vmem:[%s4744 + $0x8] sm:$0xf]
    %v4748 = vld [vmem:[%s4744 + $0xc] sm:$0xf]
    %s4749 = scalar_lea.vmem [#allocation19], 5
    %v4750 = vld [vmem:[%s4749] sm:$0x1]
    %v4752 = vlaneseq
    %v4753 = vshrl.u32 %v4752, 7
    %v4754 = vsub.s32 0, %v4753
    %v4755 = vrot.slane %v4750, %v4754
    %v4761 = vunpack.c.l.b16 %v4745
    %v4762 = vunpack.c.l.b16 %v4746
    %v4763 = vunpack.c.l.b16 %v4747
    %v4764 = vunpack.c.l.b16 %v4748
    %v4765 = vpack.c.b16 %v4762, %v4761
    %v4766 = vpack.c.b16 %v4764, %v4763
    %v4770 = vsel %vm324, %v4743, 0
    %4772 = vmatprep.subr.bf16.mxu0 0
    %4773 = vmatpush1.bf16.msra.mxu0 %v4765
    %4774 = vmatprep.subr.bf16.mxu0 0
    %4775 = vmatpush1.bf16.msra.mxu0 %v4766
    %4776 = vmatprep.subr.bf16.mxu0 0
    %4777 = vmatpush1.bf16.msra.mxu0 0
    %4778 = vmatprep.subr.bf16.mxu0 0
    %4779 = vmatpush1.bf16.msra.mxu0 0
    %4780 = vmatprep.subr.bf16.mxu0 0
    %4781 = vmatpush1.bf16.msra.mxu0 0
    %4782 = vmatprep.subr.bf16.mxu0 0
    %4783 = vmatpush1.bf16.msra.mxu0 0
    %4784 = vmatprep.subr.bf16.mxu0 0
    %4785 = vmatpush1.bf16.msra.mxu0 0
    %4786 = vmatprep.subr.bf16.mxu0 0
    %4787 = vmatpush1.bf16.msra.mxu0 0
    %4788 = vmatprep.subr.bf16.mxu0 0
    %4789 = vmatpush1.bf16.msra.mxu0 0
    %4790 = vmatprep.subr.bf16.mxu0 0
    %4791 = vmatpush1.bf16.msra.mxu0 0
    %4792 = vmatprep.subr.bf16.mxu0 0
    %4793 = vmatpush1.bf16.msra.mxu0 0
    %4794 = vmatprep.subr.bf16.mxu0 0
    %4795 = vmatpush1.bf16.msra.mxu0 0
    %4796 = vmatprep.subr.bf16.mxu0 0
    %4797 = vmatpush1.bf16.msra.mxu0 0
    %4798 = vmatprep.subr.bf16.mxu0 0
    %4799 = vmatpush1.bf16.msra.mxu0 0
    %4800 = vmatprep.subr.bf16.mxu0 0
    %4801 = vmatpush1.bf16.msra.mxu0 0
    %4802 = vmatprep.subr.bf16.mxu0 0
    %4803 = vmatpush1.bf16.msra.mxu0 0
    %4804 = vmatprep.mubr.bf16.mxu0 0
    %4805 = vmatmul.mubr.bf16.gmra.mrb[0].mxu0 %v4770
    %v4806 = vpop.f32.mrb[0].mxu0
    %v4807 = vadd.f32 %v4755, %v4806
    %v4808 = vpop.f32.mrb[0].mxu0
    %v4809 = vpop.f32.mrb[0].mxu0
    %v4810 = vadd.f32 %v4755, %v4809
    %v4811 = vpop.f32.mrb[0].mxu0
    %4812 = vdwg.mxu0
    %v4813 = vadd.f32 %v4337, %v4807
    %v4814 = vadd.f32 %v4338, %v4810
    %s4815 = scalar_lea.vmem [#allocation20], 5
    %v4816 = vld [vmem:[%s4815] sm:$0x1]
    %s4817 = scalar_lea.vmem [#allocation22], 5
    %v4818 = vld [vmem:[%s4817] sm:$0x1]
    %v4820 = vsel %vm324, %v4813, 0
    %v4823 = vsel %vm324, %v4814, 0
    %4825 = vmatprep.subr.mxu0 0.0
    %4826 = vmatpush1.msra.mxu0 1.0
    %4827 = vmatprep.subr.mxu0 0.0
    %4828 = vmatpush1.msra.mxu0 1.0
    %4829 = vmatprep.subr.mxu0 0.0
    %4830 = vmatpush1.msra.mxu0 1.0
    %4831 = vmatprep.subr.mxu0 0.0
    %4832 = vmatpush1.msra.mxu0 1.0
    %4833 = vmatprep.subr.mxu0 0.0
    %4834 = vmatpush1.msra.mxu0 0.0
    %4835 = vmatprep.subr.mxu0 0.0
    %4836 = vmatpush1.msra.mxu0 0.0
    %4837 = vmatprep.subr.mxu0 0.0
    %4838 = vmatpush1.msra.mxu0 0.0
    %4839 = vmatprep.subr.mxu0 0.0
    %4840 = vmatpush1.msra.mxu0 0.0
    %4841 = vmatprep.subr.mxu0 0.0
    %4842 = vmatpush1.msra.mxu0 0.0
    %4843 = vmatprep.subr.mxu0 0.0
    %4844 = vmatpush1.msra.mxu0 0.0
    %4845 = vmatprep.subr.mxu0 0.0
    %4846 = vmatpush1.msra.mxu0 0.0
    %4847 = vmatprep.subr.mxu0 0.0
    %4848 = vmatpush1.msra.mxu0 0.0
    %4849 = vmatprep.subr.mxu0 0.0
    %4850 = vmatpush1.msra.mxu0 0.0
    %4851 = vmatprep.subr.mxu0 0.0
    %4852 = vmatpush1.msra.mxu0 0.0
    %4853 = vmatprep.subr.mxu0 0.0
    %4854 = vmatpush1.msra.mxu0 0.0
    %4855 = vmatprep.subr.mxu0 0.0
    %4856 = vmatpush1.msra.mxu0 0.0
    %4857 = vmatprep.subr.mxu0 0.0
    %4858 = vmatpush1.msra.mxu0 0.0
    %4859 = vmatprep.subr.mxu0 0.0
    %4860 = vmatpush1.msra.mxu0 0.0
    %4861 = vmatprep.subr.mxu0 0.0
    %4862 = vmatpush1.msra.mxu0 0.0
    %4863 = vmatprep.subr.mxu0 0.0
    %4864 = vmatpush1.msra.mxu0 0.0
    %4865 = vmatprep.subr.mxu0 0.0
    %4866 = vmatpush1.msra.mxu0 0.0
    %4867 = vmatprep.subr.mxu0 0.0
    %4868 = vmatpush1.msra.mxu0 0.0
    %4869 = vmatprep.subr.mxu0 0.0
    %4870 = vmatpush1.msra.mxu0 0.0
    %4871 = vmatprep.subr.mxu0 0.0
    %4872 = vmatpush1.msra.mxu0 0.0
    %4873 = vmatprep.subr.mxu0 0.0
    %4874 = vmatpush1.msra.mxu0 0.0
    %4875 = vmatprep.subr.mxu0 0.0
    %4876 = vmatpush1.msra.mxu0 0.0
    %4877 = vmatprep.subr.mxu0 0.0
    %4878 = vmatpush1.msra.mxu0 0.0
    %4879 = vmatprep.subr.mxu0 0.0
    %4880 = vmatpush1.msra.mxu0 0.0
    %4881 = vmatprep.subr.mxu0 0.0
    %4882 = vmatpush1.msra.mxu0 0.0
    %4883 = vmatprep.subr.mxu0 0.0
    %4884 = vmatpush1.msra.mxu0 0.0
    %4885 = vmatprep.subr.mxu0 0.0
    %4886 = vmatpush1.msra.mxu0 0.0
    %4887 = vmatprep.subr.mxu0 0.0
    %4888 = vmatpush1.msra.mxu0 0.0
    %4889 = vmatprep.mubr.f32.mxu0 0.0
    %4890 = vmatmul.mubr.f32.gmra.mrb[0].mxu0 %v4820
    %v4891 = vpop.f32.mrb[0].mxu0
    %v4892 = vadd.f32 0.0, %v4891
    %v4893 = vpop.f32.mrb[0].mxu0
    %4894 = vmatprep.mubr.f32.mxu0 0.0
    %4895 = vmatmul.mubr.f32.gmra.mrb[0].mxu0 %v4823
    %v4896 = vpop.f32.mrb[0].mxu0
    %v4897 = vadd.f32 0.0, %v4896
    %v4898 = vpop.f32.mrb[0].mxu0
    %4899 = vdwg.mxu0
    %v4900 = vmul.f32 %v4813, %v4813
    %v4901 = vmul.f32 %v4814, %v4814
    %v4903 = vsel %vm324, %v4900, 0
    %v4906 = vsel %vm324, %v4901, 0
    %4908 = vmatprep.subr.mxu0 0.0
    %4909 = vmatpush1.msra.mxu0 1.0
    %4910 = vmatprep.subr.mxu0 0.0
    %4911 = vmatpush1.msra.mxu0 1.0
    %4912 = vmatprep.subr.mxu0 0.0
    %4913 = vmatpush1.msra.mxu0 1.0
    %4914 = vmatprep.subr.mxu0 0.0
    %4915 = vmatpush1.msra.mxu0 1.0
    %4916 = vmatprep.subr.mxu0 0.0
    %4917 = vmatpush1.msra.mxu0 0.0
    %4918 = vmatprep.subr.mxu0 0.0
    %4919 = vmatpush1.msra.mxu0 0.0
    %4920 = vmatprep.subr.mxu0 0.0
    %4921 = vmatpush1.msra.mxu0 0.0
    %4922 = vmatprep.subr.mxu0 0.0
    %4923 = vmatpush1.msra.mxu0 0.0
    %4924 = vmatprep.subr.mxu0 0.0
    %4925 = vmatpush1.msra.mxu0 0.0
    %4926 = vmatprep.subr.mxu0 0.0
    %4927 = vmatpush1.msra.mxu0 0.0
    %4928 = vmatprep.subr.mxu0 0.0
    %4929 = vmatpush1.msra.mxu0 0.0
    %4930 = vmatprep.subr.mxu0 0.0
    %4931 = vmatpush1.msra.mxu0 0.0
    %4932 = vmatprep.subr.mxu0 0.0
    %4933 = vmatpush1.msra.mxu0 0.0
    %4934 = vmatprep.subr.mxu0 0.0
    %4935 = vmatpush1.msra.mxu0 0.0
    %4936 = vmatprep.subr.mxu0 0.0
    %4937 = vmatpush1.msra.mxu0 0.0
    %4938 = vmatprep.subr.mxu0 0.0
    %4939 = vmatpush1.msra.mxu0 0.0
    %4940 = vmatprep.subr.mxu0 0.0
    %4941 = vmatpush1.msra.mxu0 0.0
    %4942 = vmatprep.subr.mxu0 0.0
    %4943 = vmatpush1.msra.mxu0 0.0
    %4944 = vmatprep.subr.mxu0 0.0
    %4945 = vmatpush1.msra.mxu0 0.0
    %4946 = vmatprep.subr.mxu0 0.0
    %4947 = vmatpush1.msra.mxu0 0.0
    %4948 = vmatprep.subr.mxu0 0.0
    %4949 = vmatpush1.msra.mxu0 0.0
    %4950 = vmatprep.subr.mxu0 0.0
    %4951 = vmatpush1.msra.mxu0 0.0
    %4952 = vmatprep.subr.mxu0 0.0
    %4953 = vmatpush1.msra.mxu0 0.0
    %4954 = vmatprep.subr.mxu0 0.0
    %4955 = vmatpush1.msra.mxu0 0.0
    %4956 = vmatprep.subr.mxu0 0.0
    %4957 = vmatpush1.msra.mxu0 0.0
    %4958 = vmatprep.subr.mxu0 0.0
    %4959 = vmatpush1.msra.mxu0 0.0
    %4960 = vmatprep.subr.mxu0 0.0
    %4961 = vmatpush1.msra.mxu0 0.0
    %4962 = vmatprep.subr.mxu0 0.0
    %4963 = vmatpush1.msra.mxu0 0.0
    %4964 = vmatprep.subr.mxu0 0.0
    %4965 = vmatpush1.msra.mxu0 0.0
    %4966 = vmatprep.subr.mxu0 0.0
    %4967 = vmatpush1.msra.mxu0 0.0
    %4968 = vmatprep.subr.mxu0 0.0
    %4969 = vmatpush1.msra.mxu0 0.0
    %4970 = vmatprep.subr.mxu0 0.0
    %4971 = vmatpush1.msra.mxu0 0.0
    %4972 = vmatprep.mubr.f32.mxu0 0.0
    %4973 = vmatmul.mubr.f32.gmra.mrb[0].mxu0 %v4903
    %v4974 = vpop.f32.mrb[0].mxu0
    %v4975 = vadd.f32 0.0, %v4974
    %v4976 = vpop.f32.mrb[0].mxu0
    %4977 = vmatprep.mubr.f32.mxu0 0.0
    %4978 = vmatmul.mubr.f32.gmra.mrb[0].mxu0 %v4906
    %v4979 = vpop.f32.mrb[0].mxu0
    %v4980 = vadd.f32 0.0, %v4979
    %v4981 = vpop.f32.mrb[0].mxu0
    %4982 = vdwg.mxu0
    %v4983 = vmul.f32 %v4892, 0.03125
    %v4984 = vmul.f32 %v4897, 0.03125
    %v4985 = vmul.f32 %v4975, 0.03125
    %v4986 = vmul.f32 %v4980, 0.03125
    %v4987 = vmul.f32 %v4983, %v4983
    %v4988 = vmul.f32 %v4984, %v4984
    %v4989 = vsub.f32 %v4985, %v4987
    %v4990 = vsub.f32 %v4986, %v4988
    %v4991 = vmax.f32 %v4989, 0.0
    %v4992 = vmax.f32 %v4990, 0.0
    %4994 = vset.pattern.permute.xlu0 0
    %4995 = vperm.xlu0 %4994, %v4983
    %v4996 = vpop.permute.xlu0 %4995
    %4999 = vset.pattern.permute.xlu0 0
    %5000 = vperm.xlu0 %4999, %v4984
    %v5001 = vpop.permute.xlu0 %5000
    %v5003 = vsub.f32 %v4813, %v4996
    %v5004 = vsub.f32 %v4814, %v5001
    %v5005 = vadd.f32 %v4991, 1e-05
    %v5006 = vadd.f32 %v4992, 1e-05
    %v5007 = vrsqrt.pop %v5005
    %v5008 = vrsqrt.pop %v5006
    %5010 = vset.pattern.permute.xlu0 0
    %5011 = vperm.xlu0 %5010, %v5007
    %v5012 = vpop.permute.xlu0 %5011
    %5015 = vset.pattern.permute.xlu0 0
    %5016 = vperm.xlu0 %5015, %v5008
    %v5017 = vpop.permute.xlu0 %5016
    %v5019 = vmul.f32 %v5003, %v5012
    %v5020 = vmul.f32 %v5004, %v5017
    %v5022 = vlaneseq
    %v5023 = vshrl.u32 %v5022, 7
    %v5024 = vsub.s32 0, %v5023
    %v5025 = vrot.slane %v4816, %v5024
    %v5027 = vmul.f32 %v5019, %v5025
    %v5028 = vmul.f32 %v5020, %v5025
    %v5030 = vlaneseq
    %v5031 = vshrl.u32 %v5030, 7
    %v5032 = vsub.s32 0, %v5031
    %v5033 = vrot.slane %v4818, %v5032
    %v5035 = vadd.f32 %v5027, %v5033
    %v5036 = vadd.f32 %v5028, %v5033
    %s5037 = scalar_lea.vmem [#allocation25], 1
    %v5038 = vld [vmem:[%s5037] sm:$0x1]
    %s5039 = scalar_lea.vmem [#allocation26], 1
    %v5040 = vld [vmem:[%s5039] sm:$0x1]
    %v5042 = vsel %vm324, %v5035, 0
    %v5045 = vsel %vm324, %v5036, 0
    %5047 = vmatprep.subr.mxu0 0.0
    %5048 = vmatpush1.msra.mxu0 1.0
    %5049 = vmatprep.subr.mxu0 0.0
    %5050 = vmatpush1.msra.mxu0 1.0
    %5051 = vmatprep.subr.mxu0 0.0
    %5052 = vmatpush1.msra.mxu0 1.0
    %5053 = vmatprep.subr.mxu0 0.0
    %5054 = vmatpush1.msra.mxu0 1.0
    %5055 = vmatprep.subr.mxu0 0.0
    %5056 = vmatpush1.msra.mxu0 0.0
    %5057 = vmatprep.subr.mxu0 0.0
    %5058 = vmatpush1.msra.mxu0 0.0
    %5059 = vmatprep.subr.mxu0 0.0
    %5060 = vmatpush1.msra.mxu0 0.0
    %5061 = vmatprep.subr.mxu0 0.0
    %5062 = vmatpush1.msra.mxu0 0.0
    %5063 = vmatprep.subr.mxu0 0.0
    %5064 = vmatpush1.msra.mxu0 0.0
    %5065 = vmatprep.subr.mxu0 0.0
    %5066 = vmatpush1.msra.mxu0 0.0
    %5067 = vmatprep.subr.mxu0 0.0
    %5068 = vmatpush1.msra.mxu0 0.0
    %5069 = vmatprep.subr.mxu0 0.0
    %5070 = vmatpush1.msra.mxu0 0.0
    %5071 = vmatprep.subr.mxu0 0.0
    %5072 = vmatpush1.msra.mxu0 0.0
    %5073 = vmatprep.subr.mxu0 0.0
    %5074 = vmatpush1.msra.mxu0 0.0
    %5075 = vmatprep.subr.mxu0 0.0
    %5076 = vmatpush1.msra.mxu0 0.0
    %5077 = vmatprep.subr.mxu0 0.0
    %5078 = vmatpush1.msra.mxu0 0.0
    %5079 = vmatprep.subr.mxu0 0.0
    %5080 = vmatpush1.msra.mxu0 0.0
    %5081 = vmatprep.subr.mxu0 0.0
    %5082 = vmatpush1.msra.mxu0 0.0
    %5083 = vmatprep.subr.mxu0 0.0
    %5084 = vmatpush1.msra.mxu0 0.0
    %5085 = vmatprep.subr.mxu0 0.0
    %5086 = vmatpush1.msra.mxu0 0.0
    %5087 = vmatprep.subr.mxu0 0.0
    %5088 = vmatpush1.msra.mxu0 0.0
    %5089 = vmatprep.subr.mxu0 0.0
    %5090 = vmatpush1.msra.mxu0 0.0
    %5091 = vmatprep.subr.mxu0 0.0
    %5092 = vmatpush1.msra.mxu0 0.0
    %5093 = vmatprep.subr.mxu0 0.0
    %5094 = vmatpush1.msra.mxu0 0.0
    %5095 = vmatprep.subr.mxu0 0.0
    %5096 = vmatpush1.msra.mxu0 0.0
    %5097 = vmatprep.subr.mxu0 0.0
    %5098 = vmatpush1.msra.mxu0 0.0
    %5099 = vmatprep.subr.mxu0 0.0
    %5100 = vmatpush1.msra.mxu0 0.0
    %5101 = vmatprep.subr.mxu0 0.0
    %5102 = vmatpush1.msra.mxu0 0.0
    %5103 = vmatprep.subr.mxu0 0.0
    %5104 = vmatpush1.msra.mxu0 0.0
    %5105 = vmatprep.subr.mxu0 0.0
    %5106 = vmatpush1.msra.mxu0 0.0
    %5107 = vmatprep.subr.mxu0 0.0
    %5108 = vmatpush1.msra.mxu0 0.0
    %5109 = vmatprep.subr.mxu0 0.0
    %5110 = vmatpush1.msra.mxu0 0.0
    %5111 = vmatprep.mubr.f32.mxu0 0.0
    %5112 = vmatmul.mubr.f32.gmra.mrb[0].mxu0 %v5042
    %v5113 = vpop.f32.mrb[0].mxu0
    %v5114 = vadd.f32 0.0, %v5113
    %v5115 = vpop.f32.mrb[0].mxu0
    %5116 = vmatprep.mubr.f32.mxu0 0.0
    %5117 = vmatmul.mubr.f32.gmra.mrb[0].mxu0 %v5045
    %v5118 = vpop.f32.mrb[0].mxu0
    %v5119 = vadd.f32 0.0, %v5118
    %v5120 = vpop.f32.mrb[0].mxu0
    %5121 = vdwg.mxu0
    %v5122 = vmul.f32 %v5035, %v5035
    %v5123 = vmul.f32 %v5036, %v5036
    %v5125 = vsel %vm324, %v5122, 0
    %v5128 = vsel %vm324, %v5123, 0
    %5130 = vmatprep.subr.mxu0 0.0
    %5131 = vmatpush1.msra.mxu0 1.0
    %5132 = vmatprep.subr.mxu0 0.0
    %5133 = vmatpush1.msra.mxu0 1.0
    %5134 = vmatprep.subr.mxu0 0.0
    %5135 = vmatpush1.msra.mxu0 1.0
    %5136 = vmatprep.subr.mxu0 0.0
    %5137 = vmatpush1.msra.mxu0 1.0
    %5138 = vmatprep.subr.mxu0 0.0
    %5139 = vmatpush1.msra.mxu0 0.0
    %5140 = vmatprep.subr.mxu0 0.0
    %5141 = vmatpush1.msra.mxu0 0.0
    %5142 = vmatprep.subr.mxu0 0.0
    %5143 = vmatpush1.msra.mxu0 0.0
    %5144 = vmatprep.subr.mxu0 0.0
    %5145 = vmatpush1.msra.mxu0 0.0
    %5146 = vmatprep.subr.mxu0 0.0
    %5147 = vmatpush1.msra.mxu0 0.0
    %5148 = vmatprep.subr.mxu0 0.0
    %5149 = vmatpush1.msra.mxu0 0.0
    %5150 = vmatprep.subr.mxu0 0.0
    %5151 = vmatpush1.msra.mxu0 0.0
    %5152 = vmatprep.subr.mxu0 0.0
    %5153 = vmatpush1.msra.mxu0 0.0
    %5154 = vmatprep.subr.mxu0 0.0
    %5155 = vmatpush1.msra.mxu0 0.0
    %5156 = vmatprep.subr.mxu0 0.0
    %5157 = vmatpush1.msra.mxu0 0.0
    %5158 = vmatprep.subr.mxu0 0.0
    %5159 = vmatpush1.msra.mxu0 0.0
    %5160 = vmatprep.subr.mxu0 0.0
    %5161 = vmatpush1.msra.mxu0 0.0
    %5162 = vmatprep.subr.mxu0 0.0
    %5163 = vmatpush1.msra.mxu0 0.0
    %5164 = vmatprep.subr.mxu0 0.0
    %5165 = vmatpush1.msra.mxu0 0.0
    %5166 = vmatprep.subr.mxu0 0.0
    %5167 = vmatpush1.msra.mxu0 0.0
    %5168 = vmatprep.subr.mxu0 0.0
    %5169 = vmatpush1.msra.mxu0 0.0
    %5170 = vmatprep.subr.mxu0 0.0
    %5171 = vmatpush1.msra.mxu0 0.0
    %5172 = vmatprep.subr.mxu0 0.0
    %5173 = vmatpush1.msra.mxu0 0.0
    %5174 = vmatprep.subr.mxu0 0.0
    %5175 = vmatpush1.msra.mxu0 0.0
    %5176 = vmatprep.subr.mxu0 0.0
    %5177 = vmatpush1.msra.mxu0 0.0
    %5178 = vmatprep.subr.mxu0 0.0
    %5179 = vmatpush1.msra.mxu0 0.0
    %5180 = vmatprep.subr.mxu0 0.0
    %5181 = vmatpush1.msra.mxu0 0.0
    %5182 = vmatprep.subr.mxu0 0.0
    %5183 = vmatpush1.msra.mxu0 0.0
    %5184 = vmatprep.subr.mxu0 0.0
    %5185 = vmatpush1.msra.mxu0 0.0
    %5186 = vmatprep.subr.mxu0 0.0
    %5187 = vmatpush1.msra.mxu0 0.0
    %5188 = vmatprep.subr.mxu0 0.0
    %5189 = vmatpush1.msra.mxu0 0.0
    %5190 = vmatprep.subr.mxu0 0.0
    %5191 = vmatpush1.msra.mxu0 0.0
    %5192 = vmatprep.subr.mxu0 0.0
    %5193 = vmatpush1.msra.mxu0 0.0
    %5194 = vmatprep.mubr.f32.mxu0 0.0
    %5195 = vmatmul.mubr.f32.gmra.mrb[0].mxu0 %v5125
    %v5196 = vpop.f32.mrb[0].mxu0
    %v5197 = vadd.f32 0.0, %v5196
    %v5198 = vpop.f32.mrb[0].mxu0
    %5199 = vmatprep.mubr.f32.mxu0 0.0
    %5200 = vmatmul.mubr.f32.gmra.mrb[0].mxu0 %v5128
    %v5201 = vpop.f32.mrb[0].mxu0
    %v5202 = vadd.f32 0.0, %v5201
    %v5203 = vpop.f32.mrb[0].mxu0
    %5204 = vdwg.mxu0
    %v5205 = vmul.f32 %v5114, 0.03125
    %v5206 = vmul.f32 %v5119, 0.03125
    %v5207 = vmul.f32 %v5197, 0.03125
    %v5208 = vmul.f32 %v5202, 0.03125
    %v5209 = vmul.f32 %v5205, %v5205
    %v5210 = vmul.f32 %v5206, %v5206
    %v5211 = vsub.f32 %v5207, %v5209
    %v5212 = vsub.f32 %v5208, %v5210
    %v5213 = vmax.f32 %v5211, 0.0
    %v5214 = vmax.f32 %v5212, 0.0
    %5216 = vset.pattern.permute.xlu0 0
    %5217 = vperm.xlu0 %5216, %v5205
    %v5218 = vpop.permute.xlu0 %5217
    %5221 = vset.pattern.permute.xlu0 0
    %5222 = vperm.xlu0 %5221, %v5206
    %v5223 = vpop.permute.xlu0 %5222
    %v5225 = vsub.f32 %v5035, %v5218
    %v5226 = vsub.f32 %v5036, %v5223
    %v5227 = vadd.f32 %v5213, 1e-05
    %v5228 = vadd.f32 %v5214, 1e-05
    %v5229 = vrsqrt.pop %v5227
    %v5230 = vrsqrt.pop %v5228
    %5232 = vset.pattern.permute.xlu0 0
    %5233 = vperm.xlu0 %5232, %v5229
    %v5234 = vpop.permute.xlu0 %5233
    %5237 = vset.pattern.permute.xlu0 0
    %5238 = vperm.xlu0 %5237, %v5230
    %v5239 = vpop.permute.xlu0 %5238
    %v5241 = vmul.f32 %v5225, %v5234
    %v5242 = vmul.f32 %v5226, %v5239
    %v5244 = vlaneseq
    %v5245 = vshrl.u32 %v5244, 7
    %v5246 = vsub.s32 0, %v5245
    %v5247 = vrot.slane %v5038, %v5246
    %v5249 = vmul.f32 %v5241, %v5247
    %v5250 = vmul.f32 %v5242, %v5247
    %v5252 = vlaneseq
    %v5253 = vshrl.u32 %v5252, 7
    %v5254 = vsub.s32 0, %v5253
    %v5255 = vrot.slane %v5040, %v5254
    %v5257 = vadd.f32 %v5249, %v5255
    %v5258 = vadd.f32 %v5250, %v5255
    %v5259 = vpack.c.bf16 %v5258, %v5257
    %v5260 = vld [vmem:[%s17 + $0x10] sm:$0xf]
    %v5261 = vld [vmem:[%s17 + $0x14] sm:$0xf]
    %v5262 = vld [vmem:[%s17 + $0x18] sm:$0xf]
    %v5263 = vld [vmem:[%s17 + $0x1c] sm:$0xf]
    %v5268 = vunpack.c.l.b16 %v5260
    %v5269 = vunpack.c.l.b16 %v5261
    %v5270 = vunpack.c.l.b16 %v5262
    %v5271 = vunpack.c.l.b16 %v5263
    %v5272 = vpack.c.b16 %v5269, %v5268
    %v5273 = vpack.c.b16 %v5271, %v5270
    %v5277 = vsel %vm324, %v5259, 0
    %5279 = vmatprep.subr.bf16.mxu0 0
    %5280 = vmatpush1.bf16.msra.mxu0 %v5272
    %5281 = vmatprep.subr.bf16.mxu0 0
    %5282 = vmatpush1.bf16.msra.mxu0 %v5273
    %5283 = vmatprep.subr.bf16.mxu0 0
    %5284 = vmatpush1.bf16.msra.mxu0 0
    %5285 = vmatprep.subr.bf16.mxu0 0
    %5286 = vmatpush1.bf16.msra.mxu0 0
    %5287 = vmatprep.subr.bf16.mxu0 0
    %5288 = vmatpush1.bf16.msra.mxu0 0
    %5289 = vmatprep.subr.bf16.mxu0 0
    %5290 = vmatpush1.bf16.msra.mxu0 0
    %5291 = vmatprep.subr.bf16.mxu0 0
    %5292 = vmatpush1.bf16.msra.mxu0 0
    %5293 = vmatprep.subr.bf16.mxu0 0
    %5294 = vmatpush1.bf16.msra.mxu0 0
    %5295 = vmatprep.subr.bf16.mxu0 0
    %5296 = vmatpush1.bf16.msra.mxu0 0
    %5297 = vmatprep.subr.bf16.mxu0 0
    %5298 = vmatpush1.bf16.msra.mxu0 0
    %5299 = vmatprep.subr.bf16.mxu0 0
    %5300 = vmatpush1.bf16.msra.mxu0 0
    %5301 = vmatprep.subr.bf16.mxu0 0
    %5302 = vmatpush1.bf16.msra.mxu0 0
    %5303 = vmatprep.subr.bf16.mxu0 0
    %5304 = vmatpush1.bf16.msra.mxu0 0
    %5305 = vmatprep.subr.bf16.mxu0 0
    %5306 = vmatpush1.bf16.msra.mxu0 0
    %5307 = vmatprep.subr.bf16.mxu0 0
    %5308 = vmatpush1.bf16.msra.mxu0 0
    %5309 = vmatprep.subr.bf16.mxu0 0
    %5310 = vmatpush1.bf16.msra.mxu0 0
    %5311 = vmatprep.mubr.bf16.mxu0 0
    %5312 = vmatmul.mubr.bf16.gmra.mrb[0].mxu0 %v5277
    %v5313 = vpop.f32.mrb[0].mxu0
    %v5314 = vadd.f32 0.0, %v5313
    %v5315 = vpop.f32.mrb[0].mxu0
    %v5316 = vpop.f32.mrb[0].mxu0
    %v5317 = vadd.f32 0.0, %v5316
    %v5318 = vpop.f32.mrb[0].mxu0
    %5319 = vdwg.mxu0
    %v5324 = vunpack.c.l.b16 %v2772
    %v5325 = vunpack.c.l.b16 %v2773
    %v5326 = vunpack.c.l.b16 %v2774
    %v5327 = vunpack.c.l.b16 %v2775
    %v5328 = vpack.c.b16 %v5325, %v5324
    %v5329 = vpack.c.b16 %v5327, %v5326
    %v5333 = vsel %vm324, %v2771, 0
    %5335 = vmatprep.subr.bf16.mxu0 0
    %5336 = vmatpush1.bf16.msra.mxu0 %v5328
    %5337 = vmatprep.subr.bf16.mxu0 0
    %5338 = vmatpush1.bf16.msra.mxu0 %v5329
    %5339 = vmatprep.subr.bf16.mxu0 0
    %5340 = vmatpush1.bf16.msra.mxu0 0
    %5341 = vmatprep.subr.bf16.mxu0 0
    %5342 = vmatpush1.bf16.msra.mxu0 0
    %5343 = vmatprep.subr.bf16.mxu0 0
    %5344 = vmatpush1.bf16.msra.mxu0 0
    %5345 = vmatprep.subr.bf16.mxu0 0
    %5346 = vmatpush1.bf16.msra.mxu0 0
    %5347 = vmatprep.subr.bf16.mxu0 0
    %5348 = vmatpush1.bf16.msra.mxu0 0
    %5349 = vmatprep.subr.bf16.mxu0 0
    %5350 = vmatpush1.bf16.msra.mxu0 0
    %5351 = vmatprep.subr.bf16.mxu0 0
    %5352 = vmatpush1.bf16.msra.mxu0 0
    %5353 = vmatprep.subr.bf16.mxu0 0
    %5354 = vmatpush1.bf16.msra.mxu0 0
    %5355 = vmatprep.subr.bf16.mxu0 0
    %5356 = vmatpush1.bf16.msra.mxu0 0
    %5357 = vmatprep.subr.bf16.mxu0 0
    %5358 = vmatpush1.bf16.msra.mxu0 0
    %5359 = vmatprep.subr.bf16.mxu0 0
    %5360 = vmatpush1.bf16.msra.mxu0 0
    %5361 = vmatprep.subr.bf16.mxu0 0
    %5362 = vmatpush1.bf16.msra.mxu0 0
    %5363 = vmatprep.subr.bf16.mxu0 0
    %5364 = vmatpush1.bf16.msra.mxu0 0
    %5365 = vmatprep.subr.bf16.mxu0 0
    %5366 = vmatpush1.bf16.msra.mxu0 0
    %5367 = vmatprep.mubr.bf16.mxu0 0
    %5368 = vmatmul.mubr.bf16.gmra.mrb[0].mxu0 %v5333
    %v5369 = vpop.f32.mrb[0].mxu0
    %v5370 = vadd.f32 %v5314, %v5369
    %v5371 = vpop.f32.mrb[0].mxu0
    %v5372 = vpop.f32.mrb[0].mxu0
    %v5373 = vadd.f32 %v5317, %v5372
    %v5374 = vpop.f32.mrb[0].mxu0
    %5375 = vdwg.mxu0
    %s5376 = scalar_lea.vmem [#allocation5], 32
    %v5377 = vld [vmem:[%s5376] sm:$0xff]
    %v5378 = vld [vmem:[%s5376 + $0x8] sm:$0xff]
    %v5379 = vpack.c.bf16 %v5378, %v5377
    %s5380 = scalar_lea.vmem [#allocation8], 96
    %v5381 = vld [vmem:[%s5380] sm:$0xf]
    %v5382 = vld [vmem:[%s5380 + $0x4] sm:$0xf]
    %v5383 = vld [vmem:[%s5380 + $0x8] sm:$0xf]
    %v5384 = vld [vmem:[%s5380 + $0xc] sm:$0xf]
    %s5385 = scalar_lea.vmem [#allocation10], 6
    %v5386 = vld [vmem:[%s5385] sm:$0x1]
    %v5388 = vlaneseq
    %v5389 = vshrl.u32 %v5388, 7
    %v5390 = vsub.s32 0, %v5389
    %v5391 = vrot.slane %v5386, %v5390
    %v5397 = vunpack.c.l.b16 %v5381
    %v5398 = vunpack.c.l.b16 %v5382
    %v5399 = vunpack.c.l.b16 %v5383
    %v5400 = vunpack.c.l.b16 %v5384
    %v5401 = vpack.c.b16 %v5398, %v5397
    %v5402 = vpack.c.b16 %v5400, %v5399
    %5405 = vmatprep.subr.bf16.mxu0 0
    %5406 = vmatpush1.bf16.msra.mxu0 %v5401
    %5407 = vmatprep.subr.bf16.mxu0 0
    %5408 = vmatpush1.bf16.msra.mxu0 %v5402
    %5409 = vmatprep.subr.bf16.mxu0 0
    %5410 = vmatpush1.bf16.msra.mxu0 0
    %5411 = vmatprep.subr.bf16.mxu0 0
    %5412 = vmatpush1.bf16.msra.mxu0 0
    %5413 = vmatprep.subr.bf16.mxu0 0
    %5414 = vmatpush1.bf16.msra.mxu0 0
    %5415 = vmatprep.subr.bf16.mxu0 0
    %5416 = vmatpush1.bf16.msra.mxu0 0
    %5417 = vmatprep.subr.bf16.mxu0 0
    %5418 = vmatpush1.bf16.msra.mxu0 0
    %5419 = vmatprep.subr.bf16.mxu0 0
    %5420 = vmatpush1.bf16.msra.mxu0 0
    %5421 = vmatprep.subr.bf16.mxu0 0
    %5422 = vmatpush1.bf16.msra.mxu0 0
    %5423 = vmatprep.subr.bf16.mxu0 0
    %5424 = vmatpush1.bf16.msra.mxu0 0
    %5425 = vmatprep.subr.bf16.mxu0 0
    %5426 = vmatpush1.bf16.msra.mxu0 0
    %5427 = vmatprep.subr.bf16.mxu0 0
    %5428 = vmatpush1.bf16.msra.mxu0 0
    %5429 = vmatprep.subr.bf16.mxu0 0
    %5430 = vmatpush1.bf16.msra.mxu0 0
    %5431 = vmatprep.subr.bf16.mxu0 0
    %5432 = vmatpush1.bf16.msra.mxu0 0
    %5433 = vmatprep.subr.bf16.mxu0 0
    %5434 = vmatpush1.bf16.msra.mxu0 0
    %5435 = vmatprep.subr.bf16.mxu0 0
    %5436 = vmatpush1.bf16.msra.mxu0 0
    %5437 = vmatprep.mubr.bf16.mxu0 0
    %5438 = vmatmul.mubr.bf16.gmra.mrb[0].mxu0 %v326
    %v5439 = vpop.f32.mrb[0].mxu0
    %v5440 = vadd.f32 %v5391, %v5439
    %v5441 = vpop.f32.mrb[0].mxu0
    %v5442 = vpop.f32.mrb[0].mxu0
    %v5443 = vadd.f32 %v5391, %v5442
    %v5444 = vpop.f32.mrb[0].mxu0
    %5445 = vdwg.mxu0
    %s5446 = scalar_lea.vmem [#allocation11], 96
    %v5447 = vld [vmem:[%s5446] sm:$0xf]
    %v5448 = vld [vmem:[%s5446 + $0x4] sm:$0xf]
    %v5449 = vld [vmem:[%s5446 + $0x8] sm:$0xf]
    %v5450 = vld [vmem:[%s5446 + $0xc] sm:$0xf]
    %s5451 = scalar_lea.vmem [#allocation13], 6
    %v5452 = vld [vmem:[%s5451] sm:$0x1]
    %v5454 = vlaneseq
    %v5455 = vshrl.u32 %v5454, 7
    %v5456 = vsub.s32 0, %v5455
    %v5457 = vrot.slane %v5452, %v5456
    %v5463 = vunpack.c.l.b16 %v5447
    %v5464 = vunpack.c.l.b16 %v5448
    %v5465 = vunpack.c.l.b16 %v5449
    %v5466 = vunpack.c.l.b16 %v5450
    %v5467 = vpack.c.b16 %v5464, %v5463
    %v5468 = vpack.c.b16 %v5466, %v5465
    %v5472 = vsel %vm324, %v5379, 0
    %5474 = vmatprep.subr.bf16.mxu0 0
    %5475 = vmatpush1.bf16.msra.mxu0 %v5467
    %5476 = vmatprep.subr.bf16.mxu0 0
    %5477 = vmatpush1.bf16.msra.mxu0 %v5468
    %5478 = vmatprep.subr.bf16.mxu0 0
    %5479 = vmatpush1.bf16.msra.mxu0 0
    %5480 = vmatprep.subr.bf16.mxu0 0
    %5481 = vmatpush1.bf16.msra.mxu0 0
    %5482 = vmatprep.subr.bf16.mxu0 0
    %5483 = vmatpush1.bf16.msra.mxu0 0
    %5484 = vmatprep.subr.bf16.mxu0 0
    %5485 = vmatpush1.bf16.msra.mxu0 0
    %5486 = vmatprep.subr.bf16.mxu0 0
    %5487 = vmatpush1.bf16.msra.mxu0 0
    %5488 = vmatprep.subr.bf16.mxu0 0
    %5489 = vmatpush1.bf16.msra.mxu0 0
    %5490 = vmatprep.subr.bf16.mxu0 0
    %5491 = vmatpush1.bf16.msra.mxu0 0
    %5492 = vmatprep.subr.bf16.mxu0 0
    %5493 = vmatpush1.bf16.msra.mxu0 0
    %5494 = vmatprep.subr.bf16.mxu0 0
    %5495 = vmatpush1.bf16.msra.mxu0 0
    %5496 = vmatprep.subr.bf16.mxu0 0
    %5497 = vmatpush1.bf16.msra.mxu0 0
    %5498 = vmatprep.subr.bf16.mxu0 0
    %5499 = vmatpush1.bf16.msra.mxu0 0
    %5500 = vmatprep.subr.bf16.mxu0 0
    %5501 = vmatpush1.bf16.msra.mxu0 0
    %5502 = vmatprep.subr.bf16.mxu0 0
    %5503 = vmatpush1.bf16.msra.mxu0 0
    %5504 = vmatprep.subr.bf16.mxu0 0
    %5505 = vmatpush1.bf16.msra.mxu0 0
    %5506 = vmatprep.mubr.bf16.mxu0 0
    %5507 = vmatmul.mubr.bf16.gmra.mrb[0].mxu0 %v5472
    %v5508 = vpop.f32.mrb[0].mxu0
    %v5509 = vadd.f32 %v5457, %v5508
    %v5510 = vpop.f32.mrb[0].mxu0
    %v5511 = vpop.f32.mrb[0].mxu0
    %v5512 = vadd.f32 %v5457, %v5511
    %v5513 = vpop.f32.mrb[0].mxu0
    %5514 = vdwg.mxu0
    %s5515 = scalar_lea.vmem [#allocation14], 96
    %v5516 = vld [vmem:[%s5515] sm:$0xf]
    %v5517 = vld [vmem:[%s5515 + $0x4] sm:$0xf]
    %v5518 = vld [vmem:[%s5515 + $0x8] sm:$0xf]
    %v5519 = vld [vmem:[%s5515 + $0xc] sm:$0xf]
    %s5520 = scalar_lea.vmem [#allocation16], 6
    %v5521 = vld [vmem:[%s5520] sm:$0x1]
    %v5523 = vlaneseq
    %v5524 = vshrl.u32 %v5523, 7
    %v5525 = vsub.s32 0, %v5524
    %v5526 = vrot.slane %v5521, %v5525
    %v5532 = vunpack.c.l.b16 %v5516
    %v5533 = vunpack.c.l.b16 %v5517
    %v5534 = vunpack.c.l.b16 %v5518
    %v5535 = vunpack.c.l.b16 %v5519
    %v5536 = vpack.c.b16 %v5533, %v5532
    %v5537 = vpack.c.b16 %v5535, %v5534
    %5540 = vmatprep.subr.bf16.mxu0 0
    %5541 = vmatpush1.bf16.msra.mxu0 %v5536
    %5542 = vmatprep.subr.bf16.mxu0 0
    %5543 = vmatpush1.bf16.msra.mxu0 %v5537
    %5544 = vmatprep.subr.bf16.mxu0 0
    %5545 = vmatpush1.bf16.msra.mxu0 0
    %5546 = vmatprep.subr.bf16.mxu0 0
    %5547 = vmatpush1.bf16.msra.mxu0 0
    %5548 = vmatprep.subr.bf16.mxu0 0
    %5549 = vmatpush1.bf16.msra.mxu0 0
    %5550 = vmatprep.subr.bf16.mxu0 0
    %5551 = vmatpush1.bf16.msra.mxu0 0
    %5552 = vmatprep.subr.bf16.mxu0 0
    %5553 = vmatpush1.bf16.msra.mxu0 0
    %5554 = vmatprep.subr.bf16.mxu0 0
    %5555 = vmatpush1.bf16.msra.mxu0 0
    %5556 = vmatprep.subr.bf16.mxu0 0
    %5557 = vmatpush1.bf16.msra.mxu0 0
    %5558 = vmatprep.subr.bf16.mxu0 0
    %5559 = vmatpush1.bf16.msra.mxu0 0
    %5560 = vmatprep.subr.bf16.mxu0 0
    %5561 = vmatpush1.bf16.msra.mxu0 0
    %5562 = vmatprep.subr.bf16.mxu0 0
    %5563 = vmatpush1.bf16.msra.mxu0 0
    %5564 = vmatprep.subr.bf16.mxu0 0
    %5565 = vmatpush1.bf16.msra.mxu0 0
    %5566 = vmatprep.subr.bf16.mxu0 0
    %5567 = vmatpush1.bf16.msra.mxu0 0
    %5568 = vmatprep.subr.bf16.mxu0 0
    %5569 = vmatpush1.bf16.msra.mxu0 0
    %5570 = vmatprep.subr.bf16.mxu0 0
    %5571 = vmatpush1.bf16.msra.mxu0 0
    %5572 = vmatprep.mubr.bf16.mxu0 0
    %5573 = vmatmul.mubr.bf16.gmra.mrb[0].mxu0 %v5472
    %v5574 = vpop.f32.mrb[0].mxu0
    %v5575 = vadd.f32 %v5526, %v5574
    %v5576 = vpop.f32.mrb[0].mxu0
    %v5577 = vpop.f32.mrb[0].mxu0
    %v5578 = vadd.f32 %v5526, %v5577
    %v5579 = vpop.f32.mrb[0].mxu0
    %5580 = vdwg.mxu0
    %v5581 = vpack.c.bf16 %v5443, %v5440
    %v5582 = vpack.c.bf16 %v5512, %v5509
    %v5584 = vsel %vm324, %v5581, 0
    %v5587 = vsel %vm324, %v5582, 0
    %5589 = vmatprep.subr.bf16.mxu0 0
    %5590 = vmatpush1.bf16.xpose.msra.mxu0 %v5587
    %5591 = vmatprep.subr.bf16.mxu0 0
    %5592 = vmatpush1.bf16.xpose.msra.mxu0 0
    %5593 = vmatprep.subr.bf16.mxu0 0
    %5594 = vmatpush1.bf16.xpose.msra.mxu0 0
    %5595 = vmatprep.subr.bf16.mxu0 0
    %5596 = vmatpush1.bf16.xpose.msra.mxu0 0
    %5597 = vmatprep.subr.bf16.mxu0 0
    %5598 = vmatpush1.bf16.xpose.msra.mxu0 0
    %5599 = vmatprep.subr.bf16.mxu0 0
    %5600 = vmatpush1.bf16.xpose.msra.mxu0 0
    %5601 = vmatprep.subr.bf16.mxu0 0
    %5602 = vmatpush1.bf16.xpose.msra.mxu0 0
    %5603 = vmatprep.subr.bf16.mxu0 0
    %5604 = vmatpush1.bf16.xpose.msra.mxu0 0
    %5605 = vmatprep.subr.bf16.mxu0 0
    %5606 = vmatpush1.bf16.xpose.msra.mxu0 0
    %5607 = vmatprep.subr.bf16.mxu0 0
    %5608 = vmatpush1.bf16.xpose.msra.mxu0 0
    %5609 = vmatprep.subr.bf16.mxu0 0
    %5610 = vmatpush1.bf16.xpose.msra.mxu0 0
    %5611 = vmatprep.subr.bf16.mxu0 0
    %5612 = vmatpush1.bf16.xpose.msra.mxu0 0
    %5613 = vmatprep.subr.bf16.mxu0 0
    %5614 = vmatpush1.bf16.xpose.msra.mxu0 0
    %5615 = vmatprep.subr.bf16.mxu0 0
    %5616 = vmatpush1.bf16.xpose.msra.mxu0 0
    %5617 = vmatprep.subr.bf16.mxu0 0
    %5618 = vmatpush1.bf16.xpose.msra.mxu0 0
    %5619 = vmatprep.subr.bf16.mxu0 0
    %5620 = vmatpush1.bf16.xpose.msra.mxu0 0
    %5621 = vmatprep.mubr.bf16.mxu0 0
    %5622 = vmatmul.mubr.bf16.gmra.mrb[0].mxu0 %v5584
    %v5623 = vpop.f32.mrb[0].mxu0
    %v5624 = vadd.f32 %v295, %v5623
    %v5625 = vpop.f32.mrb[0].mxu0
    %v5626 = vpop.f32.mrb[0].mxu0
    %v5627 = vadd.f32 %v296, %v5626
    %v5628 = vpop.f32.mrb[0].mxu0
    %5629 = vdwg.mxu0
    %v5630 = vsel %vm549, %v5624, -inf
    %5631 = vmax.xlane.f32.xlu0 %v5630
    %v5632 = vpop.xlane.xlu0 %5631
    %v5633 = vsel %vm549, %v5627, -inf
    %5634 = vmax.xlane.f32.xlu0 %v5633
    %v5635 = vpop.xlane.xlu0 %5634
    %v5636 = vsub.f32 %v5624, %v5632
    %v5637 = vsub.f32 %v5627, %v5635
    %v5638 = vmul.f32 %v5636, 1.442695
    %v5639 = vpow.pop %v5638
    %v5640 = vmul.f32 %v5637, 1.442695
    %v5641 = vpow.pop %v5640
    %v5643 = vsel %vm549, %v5639, 0
    %v5646 = vsel %vm549, %v5641, 0
    %5648 = vmatprep.subr.mxu0 0.0
    %5649 = vmatpush1.msra.mxu0 1.0
    %5650 = vmatprep.subr.mxu0 0.0
    %5651 = vmatpush1.msra.mxu0 1.0
    %5652 = vmatprep.subr.mxu0 0.0
    %5653 = vmatpush1.msra.mxu0 0.0
    %5654 = vmatprep.subr.mxu0 0.0
    %5655 = vmatpush1.msra.mxu0 0.0
    %5656 = vmatprep.subr.mxu0 0.0
    %5657 = vmatpush1.msra.mxu0 0.0
    %5658 = vmatprep.subr.mxu0 0.0
    %5659 = vmatpush1.msra.mxu0 0.0
    %5660 = vmatprep.subr.mxu0 0.0
    %5661 = vmatpush1.msra.mxu0 0.0
    %5662 = vmatprep.subr.mxu0 0.0
    %5663 = vmatpush1.msra.mxu0 0.0
    %5664 = vmatprep.subr.mxu0 0.0
    %5665 = vmatpush1.msra.mxu0 0.0
    %5666 = vmatprep.subr.mxu0 0.0
    %5667 = vmatpush1.msra.mxu0 0.0
    %5668 = vmatprep.subr.mxu0 0.0
    %5669 = vmatpush1.msra.mxu0 0.0
    %5670 = vmatprep.subr.mxu0 0.0
    %5671 = vmatpush1.msra.mxu0 0.0
    %5672 = vmatprep.subr.mxu0 0.0
    %5673 = vmatpush1.msra.mxu0 0.0
    %5674 = vmatprep.subr.mxu0 0.0
    %5675 = vmatpush1.msra.mxu0 0.0
    %5676 = vmatprep.subr.mxu0 0.0
    %5677 = vmatpush1.msra.mxu0 0.0
    %5678 = vmatprep.subr.mxu0 0.0
    %5679 = vmatpush1.msra.mxu0 0.0
    %5680 = vmatprep.subr.mxu0 0.0
    %5681 = vmatpush1.msra.mxu0 0.0
    %5682 = vmatprep.subr.mxu0 0.0
    %5683 = vmatpush1.msra.mxu0 0.0
    %5684 = vmatprep.subr.mxu0 0.0
    %5685 = vmatpush1.msra.mxu0 0.0
    %5686 = vmatprep.subr.mxu0 0.0
    %5687 = vmatpush1.msra.mxu0 0.0
    %5688 = vmatprep.subr.mxu0 0.0
    %5689 = vmatpush1.msra.mxu0 0.0
    %5690 = vmatprep.subr.mxu0 0.0
    %5691 = vmatpush1.msra.mxu0 0.0
    %5692 = vmatprep.subr.mxu0 0.0
    %5693 = vmatpush1.msra.mxu0 0.0
    %5694 = vmatprep.subr.mxu0 0.0
    %5695 = vmatpush1.msra.mxu0 0.0
    %5696 = vmatprep.subr.mxu0 0.0
    %5697 = vmatpush1.msra.mxu0 0.0
    %5698 = vmatprep.subr.mxu0 0.0
    %5699 = vmatpush1.msra.mxu0 0.0
    %5700 = vmatprep.subr.mxu0 0.0
    %5701 = vmatpush1.msra.mxu0 0.0
    %5702 = vmatprep.subr.mxu0 0.0
    %5703 = vmatpush1.msra.mxu0 0.0
    %5704 = vmatprep.subr.mxu0 0.0
    %5705 = vmatpush1.msra.mxu0 0.0
    %5706 = vmatprep.subr.mxu0 0.0
    %5707 = vmatpush1.msra.mxu0 0.0
    %5708 = vmatprep.subr.mxu0 0.0
    %5709 = vmatpush1.msra.mxu0 0.0
    %5710 = vmatprep.subr.mxu0 0.0
    %5711 = vmatpush1.msra.mxu0 0.0
    %5712 = vmatprep.mubr.f32.mxu0 0.0
    %5713 = vmatmul.mubr.f32.gmra.mrb[0].mxu0 %v5643
    %v5714 = vpop.f32.mrb[0].mxu0
    %v5715 = vadd.f32 0.0, %v5714
    %v5716 = vpop.f32.mrb[0].mxu0
    %5717 = vmatprep.mubr.f32.mxu0 0.0
    %5718 = vmatmul.mubr.f32.gmra.mrb[0].mxu0 %v5646
    %v5719 = vpop.f32.mrb[0].mxu0
    %v5720 = vadd.f32 0.0, %v5719
    %v5721 = vpop.f32.mrb[0].mxu0
    %5722 = vdwg.mxu0
    %v5723 = vrcp.pop %v5715
    %v5724 = vrcp.pop %v5720
    %5726 = vset.pattern.permute.xlu0 0
    %5727 = vperm.xlu0 %5726, %v5723
    %v5728 = vpop.permute.xlu0 %5727
    %5731 = vset.pattern.permute.xlu0 0
    %5732 = vperm.xlu0 %5731, %v5724
    %v5733 = vpop.permute.xlu0 %5732
    %v5735 = vmul.f32 %v5639, %v5728
    %v5736 = vmul.f32 %v5641, %v5733
    %v5737 = vpack.c.bf16 %v5736, %v5735
    %v5738 = vpack.c.bf16 %v5578, %v5575
    %v5740 = vsel %vm549, %v5737, 0
    %5742 = vmatprep.subr.bf16.mxu0 0
    %5743 = vmatpush1.bf16.msra.mxu0 %v5738
    %5744 = vmatprep.subr.bf16.mxu0 0
    %5745 = vmatpush1.bf16.msra.mxu0 0
    %5746 = vmatprep.subr.bf16.mxu0 0
    %5747 = vmatpush1.bf16.msra.mxu0 0
    %5748 = vmatprep.subr.bf16.mxu0 0
    %5749 = vmatpush1.bf16.msra.mxu0 0
    %5750 = vmatprep.subr.bf16.mxu0 0
    %5751 = vmatpush1.bf16.msra.mxu0 0
    %5752 = vmatprep.subr.bf16.mxu0 0
    %5753 = vmatpush1.bf16.msra.mxu0 0
    %5754 = vmatprep.subr.bf16.mxu0 0
    %5755 = vmatpush1.bf16.msra.mxu0 0
    %5756 = vmatprep.subr.bf16.mxu0 0
    %5757 = vmatpush1.bf16.msra.mxu0 0
    %5758 = vmatprep.subr.bf16.mxu0 0
    %5759 = vmatpush1.bf16.msra.mxu0 0
    %5760 = vmatprep.subr.bf16.mxu0 0
    %5761 = vmatpush1.bf16.msra.mxu0 0
    %5762 = vmatprep.subr.bf16.mxu0 0
    %5763 = vmatpush1.bf16.msra.mxu0 0
    %5764 = vmatprep.subr.bf16.mxu0 0
    %5765 = vmatpush1.bf16.msra.mxu0 0
    %5766 = vmatprep.subr.bf16.mxu0 0
    %5767 = vmatpush1.bf16.msra.mxu0 0
    %5768 = vmatprep.subr.bf16.mxu0 0
    %5769 = vmatpush1.bf16.msra.mxu0 0
    %5770 = vmatprep.subr.bf16.mxu0 0
    %5771 = vmatpush1.bf16.msra.mxu0 0
    %5772 = vmatprep.subr.bf16.mxu0 0
    %5773 = vmatpush1.bf16.msra.mxu0 0
    %5774 = vmatprep.mubr.bf16.mxu0 0
    %5775 = vmatmul.mubr.bf16.gmra.mrb[0].mxu0 %v5740
    %v5776 = vpop.f32.mrb[0].mxu0
    %v5777 = vadd.f32 0.0, %v5776
    %v5778 = vpop.f32.mrb[0].mxu0
    %v5779 = vpop.f32.mrb[0].mxu0
    %v5780 = vadd.f32 0.0, %v5779
    %v5781 = vpop.f32.mrb[0].mxu0
    %5782 = vdwg.mxu0
    %v5783 = vpack.c.bf16 %v5780, %v5777
    %s5784 = scalar_lea.vmem [#allocation17], 96
    %v5785 = vld [vmem:[%s5784] sm:$0xf]
    %v5786 = vld [vmem:[%s5784 + $0x4] sm:$0xf]
    %v5787 = vld [vmem:[%s5784 + $0x8] sm:$0xf]
    %v5788 = vld [vmem:[%s5784 + $0xc] sm:$0xf]
    %s5789 = scalar_lea.vmem [#allocation19], 6
    %v5790 = vld [vmem:[%s5789] sm:$0x1]
    %v5792 = vlaneseq
    %v5793 = vshrl.u32 %v5792, 7
    %v5794 = vsub.s32 0, %v5793
    %v5795 = vrot.slane %v5790, %v5794
    %v5801 = vunpack.c.l.b16 %v5785
    %v5802 = vunpack.c.l.b16 %v5786
    %v5803 = vunpack.c.l.b16 %v5787
    %v5804 = vunpack.c.l.b16 %v5788
    %v5805 = vpack.c.b16 %v5802, %v5801
    %v5806 = vpack.c.b16 %v5804, %v5803
    %v5810 = vsel %vm324, %v5783, 0
    %5812 = vmatprep.subr.bf16.mxu0 0
    %5813 = vmatpush1.bf16.msra.mxu0 %v5805
    %5814 = vmatprep.subr.bf16.mxu0 0
    %5815 = vmatpush1.bf16.msra.mxu0 %v5806
    %5816 = vmatprep.subr.bf16.mxu0 0
    %5817 = vmatpush1.bf16.msra.mxu0 0
    %5818 = vmatprep.subr.bf16.mxu0 0
    %5819 = vmatpush1.bf16.msra.mxu0 0
    %5820 = vmatprep.subr.bf16.mxu0 0
    %5821 = vmatpush1.bf16.msra.mxu0 0
    %5822 = vmatprep.subr.bf16.mxu0 0
    %5823 = vmatpush1.bf16.msra.mxu0 0
    %5824 = vmatprep.subr.bf16.mxu0 0
    %5825 = vmatpush1.bf16.msra.mxu0 0
    %5826 = vmatprep.subr.bf16.mxu0 0
    %5827 = vmatpush1.bf16.msra.mxu0 0
    %5828 = vmatprep.subr.bf16.mxu0 0
    %5829 = vmatpush1.bf16.msra.mxu0 0
    %5830 = vmatprep.subr.bf16.mxu0 0
    %5831 = vmatpush1.bf16.msra.mxu0 0
    %5832 = vmatprep.subr.bf16.mxu0 0
    %5833 = vmatpush1.bf16.msra.mxu0 0
    %5834 = vmatprep.subr.bf16.mxu0 0
    %5835 = vmatpush1.bf16.msra.mxu0 0
    %5836 = vmatprep.subr.bf16.mxu0 0
    %5837 = vmatpush1.bf16.msra.mxu0 0
    %5838 = vmatprep.subr.bf16.mxu0 0
    %5839 = vmatpush1.bf16.msra.mxu0 0
    %5840 = vmatprep.subr.bf16.mxu0 0
    %5841 = vmatpush1.bf16.msra.mxu0 0
    %5842 = vmatprep.subr.bf16.mxu0 0
    %5843 = vmatpush1.bf16.msra.mxu0 0
    %5844 = vmatprep.mubr.bf16.mxu0 0
    %5845 = vmatmul.mubr.bf16.gmra.mrb[0].mxu0 %v5810
    %v5846 = vpop.f32.mrb[0].mxu0
    %v5847 = vadd.f32 %v5795, %v5846
    %v5848 = vpop.f32.mrb[0].mxu0
    %v5849 = vpop.f32.mrb[0].mxu0
    %v5850 = vadd.f32 %v5795, %v5849
    %v5851 = vpop.f32.mrb[0].mxu0
    %5852 = vdwg.mxu0
    %v5853 = vadd.f32 %v293, %v5847
    %v5854 = vadd.f32 %v294, %v5850
    %s5855 = scalar_lea.vmem [#allocation20], 6
    %v5856 = vld [vmem:[%s5855] sm:$0x1]
    %s5857 = scalar_lea.vmem [#allocation22], 6
    %v5858 = vld [vmem:[%s5857] sm:$0x1]
    %v5860 = vsel %vm324, %v5853, 0
    %v5863 = vsel %vm324, %v5854, 0
    %5865 = vmatprep.subr.mxu0 0.0
    %5866 = vmatpush1.msra.mxu0 1.0
    %5867 = vmatprep.subr.mxu0 0.0
    %5868 = vmatpush1.msra.mxu0 1.0
    %5869 = vmatprep.subr.mxu0 0.0
    %5870 = vmatpush1.msra.mxu0 1.0
    %5871 = vmatprep.subr.mxu0 0.0
    %5872 = vmatpush1.msra.mxu0 1.0
    %5873 = vmatprep.subr.mxu0 0.0
    %5874 = vmatpush1.msra.mxu0 0.0
    %5875 = vmatprep.subr.mxu0 0.0
    %5876 = vmatpush1.msra.mxu0 0.0
    %5877 = vmatprep.subr.mxu0 0.0
    %5878 = vmatpush1.msra.mxu0 0.0
    %5879 = vmatprep.subr.mxu0 0.0
    %5880 = vmatpush1.msra.mxu0 0.0
    %5881 = vmatprep.subr.mxu0 0.0
    %5882 = vmatpush1.msra.mxu0 0.0
    %5883 = vmatprep.subr.mxu0 0.0
    %5884 = vmatpush1.msra.mxu0 0.0
    %5885 = vmatprep.subr.mxu0 0.0
    %5886 = vmatpush1.msra.mxu0 0.0
    %5887 = vmatprep.subr.mxu0 0.0
    %5888 = vmatpush1.msra.mxu0 0.0
    %5889 = vmatprep.subr.mxu0 0.0
    %5890 = vmatpush1.msra.mxu0 0.0
    %5891 = vmatprep.subr.mxu0 0.0
    %5892 = vmatpush1.msra.mxu0 0.0
    %5893 = vmatprep.subr.mxu0 0.0
    %5894 = vmatpush1.msra.mxu0 0.0
    %5895 = vmatprep.subr.mxu0 0.0
    %5896 = vmatpush1.msra.mxu0 0.0
    %5897 = vmatprep.subr.mxu0 0.0
    %5898 = vmatpush1.msra.mxu0 0.0
    %5899 = vmatprep.subr.mxu0 0.0
    %5900 = vmatpush1.msra.mxu0 0.0
    %5901 = vmatprep.subr.mxu0 0.0
    %5902 = vmatpush1.msra.mxu0 0.0
    %5903 = vmatprep.subr.mxu0 0.0
    %5904 = vmatpush1.msra.mxu0 0.0
    %5905 = vmatprep.subr.mxu0 0.0
    %5906 = vmatpush1.msra.mxu0 0.0
    %5907 = vmatprep.subr.mxu0 0.0
    %5908 = vmatpush1.msra.mxu0 0.0
    %5909 = vmatprep.subr.mxu0 0.0
    %5910 = vmatpush1.msra.mxu0 0.0
    %5911 = vmatprep.subr.mxu0 0.0
    %5912 = vmatpush1.msra.mxu0 0.0
    %5913 = vmatprep.subr.mxu0 0.0
    %5914 = vmatpush1.msra.mxu0 0.0
    %5915 = vmatprep.subr.mxu0 0.0
    %5916 = vmatpush1.msra.mxu0 0.0
    %5917 = vmatprep.subr.mxu0 0.0
    %5918 = vmatpush1.msra.mxu0 0.0
    %5919 = vmatprep.subr.mxu0 0.0
    %5920 = vmatpush1.msra.mxu0 0.0
    %5921 = vmatprep.subr.mxu0 0.0
    %5922 = vmatpush1.msra.mxu0 0.0
    %5923 = vmatprep.subr.mxu0 0.0
    %5924 = vmatpush1.msra.mxu0 0.0
    %5925 = vmatprep.subr.mxu0 0.0
    %5926 = vmatpush1.msra.mxu0 0.0
    %5927 = vmatprep.subr.mxu0 0.0
    %5928 = vmatpush1.msra.mxu0 0.0
    %5929 = vmatprep.mubr.f32.mxu0 0.0
    %5930 = vmatmul.mubr.f32.gmra.mrb[0].mxu0 %v5860
    %v5931 = vpop.f32.mrb[0].mxu0
    %v5932 = vadd.f32 0.0, %v5931
    %v5933 = vpop.f32.mrb[0].mxu0
    %5934 = vmatprep.mubr.f32.mxu0 0.0
    %5935 = vmatmul.mubr.f32.gmra.mrb[0].mxu0 %v5863
    %v5936 = vpop.f32.mrb[0].mxu0
    %v5937 = vadd.f32 0.0, %v5936
    %v5938 = vpop.f32.mrb[0].mxu0
    %5939 = vdwg.mxu0
    %v5940 = vmul.f32 %v5853, %v5853
    %v5941 = vmul.f32 %v5854, %v5854
    %v5943 = vsel %vm324, %v5940, 0
    %v5946 = vsel %vm324, %v5941, 0
    %5948 = vmatprep.subr.mxu0 0.0
    %5949 = vmatpush1.msra.mxu0 1.0
    %5950 = vmatprep.subr.mxu0 0.0
    %5951 = vmatpush1.msra.mxu0 1.0
    %5952 = vmatprep.subr.mxu0 0.0
    %5953 = vmatpush1.msra.mxu0 1.0
    %5954 = vmatprep.subr.mxu0 0.0
    %5955 = vmatpush1.msra.mxu0 1.0
    %5956 = vmatprep.subr.mxu0 0.0
    %5957 = vmatpush1.msra.mxu0 0.0
    %5958 = vmatprep.subr.mxu0 0.0
    %5959 = vmatpush1.msra.mxu0 0.0
    %5960 = vmatprep.subr.mxu0 0.0
    %5961 = vmatpush1.msra.mxu0 0.0
    %5962 = vmatprep.subr.mxu0 0.0
    %5963 = vmatpush1.msra.mxu0 0.0
    %5964 = vmatprep.subr.mxu0 0.0
    %5965 = vmatpush1.msra.mxu0 0.0
    %5966 = vmatprep.subr.mxu0 0.0
    %5967 = vmatpush1.msra.mxu0 0.0
    %5968 = vmatprep.subr.mxu0 0.0
    %5969 = vmatpush1.msra.mxu0 0.0
    %5970 = vmatprep.subr.mxu0 0.0
    %5971 = vmatpush1.msra.mxu0 0.0
    %5972 = vmatprep.subr.mxu0 0.0
    %5973 = vmatpush1.msra.mxu0 0.0
    %5974 = vmatprep.subr.mxu0 0.0
    %5975 = vmatpush1.msra.mxu0 0.0
    %5976 = vmatprep.subr.mxu0 0.0
    %5977 = vmatpush1.msra.mxu0 0.0
    %5978 = vmatprep.subr.mxu0 0.0
    %5979 = vmatpush1.msra.mxu0 0.0
    %5980 = vmatprep.subr.mxu0 0.0
    %5981 = vmatpush1.msra.mxu0 0.0
    %5982 = vmatprep.subr.mxu0 0.0
    %5983 = vmatpush1.msra.mxu0 0.0
    %5984 = vmatprep.subr.mxu0 0.0
    %5985 = vmatpush1.msra.mxu0 0.0
    %5986 = vmatprep.subr.mxu0 0.0
    %5987 = vmatpush1.msra.mxu0 0.0
    %5988 = vmatprep.subr.mxu0 0.0
    %5989 = vmatpush1.msra.mxu0 0.0
    %5990 = vmatprep.subr.mxu0 0.0
    %5991 = vmatpush1.msra.mxu0 0.0
    %5992 = vmatprep.subr.mxu0 0.0
    %5993 = vmatpush1.msra.mxu0 0.0
    %5994 = vmatprep.subr.mxu0 0.0
    %5995 = vmatpush1.msra.mxu0 0.0
    %5996 = vmatprep.subr.mxu0 0.0
    %5997 = vmatpush1.msra.mxu0 0.0
    %5998 = vmatprep.subr.mxu0 0.0
    %5999 = vmatpush1.msra.mxu0 0.0
    %6000 = vmatprep.subr.mxu0 0.0
    %6001 = vmatpush1.msra.mxu0 0.0
    %6002 = vmatprep.subr.mxu0 0.0
    %6003 = vmatpush1.msra.mxu0 0.0
    %6004 = vmatprep.subr.mxu0 0.0
    %6005 = vmatpush1.msra.mxu0 0.0
    %6006 = vmatprep.subr.mxu0 0.0
    %6007 = vmatpush1.msra.mxu0 0.0
    %6008 = vmatprep.subr.mxu0 0.0
    %6009 = vmatpush1.msra.mxu0 0.0
    %6010 = vmatprep.subr.mxu0 0.0
    %6011 = vmatpush1.msra.mxu0 0.0
    %6012 = vmatprep.mubr.f32.mxu0 0.0
    %6013 = vmatmul.mubr.f32.gmra.mrb[0].mxu0 %v5943
    %v6014 = vpop.f32.mrb[0].mxu0
    %v6015 = vadd.f32 0.0, %v6014
    %v6016 = vpop.f32.mrb[0].mxu0
    %6017 = vmatprep.mubr.f32.mxu0 0.0
    %6018 = vmatmul.mubr.f32.gmra.mrb[0].mxu0 %v5946
    %v6019 = vpop.f32.mrb[0].mxu0
    %v6020 = vadd.f32 0.0, %v6019
    %v6021 = vpop.f32.mrb[0].mxu0
    %6022 = vdwg.mxu0
    %v6023 = vmul.f32 %v5932, 0.03125
    %v6024 = vmul.f32 %v5937, 0.03125
    %v6025 = vmul.f32 %v6015, 0.03125
    %v6026 = vmul.f32 %v6020, 0.03125
    %v6027 = vmul.f32 %v6023, %v6023
    %v6028 = vmul.f32 %v6024, %v6024
    %v6029 = vsub.f32 %v6025, %v6027
    %v6030 = vsub.f32 %v6026, %v6028
    %v6031 = vmax.f32 %v6029, 0.0
    %v6032 = vmax.f32 %v6030, 0.0
    %6034 = vset.pattern.permute.xlu0 0
    %6035 = vperm.xlu0 %6034, %v6023
    %v6036 = vpop.permute.xlu0 %6035
    %6039 = vset.pattern.permute.xlu0 0
    %6040 = vperm.xlu0 %6039, %v6024
    %v6041 = vpop.permute.xlu0 %6040
    %v6043 = vsub.f32 %v5853, %v6036
    %v6044 = vsub.f32 %v5854, %v6041
    %v6045 = vadd.f32 %v6031, 1e-05
    %v6046 = vadd.f32 %v6032, 1e-05
    %v6047 = vrsqrt.pop %v6045
    %v6048 = vrsqrt.pop %v6046
    %6050 = vset.pattern.permute.xlu0 0
    %6051 = vperm.xlu0 %6050, %v6047
    %v6052 = vpop.permute.xlu0 %6051
    %6055 = vset.pattern.permute.xlu0 0
    %6056 = vperm.xlu0 %6055, %v6048
    %v6057 = vpop.permute.xlu0 %6056
    %v6059 = vmul.f32 %v6043, %v6052
    %v6060 = vmul.f32 %v6044, %v6057
    %v6062 = vlaneseq
    %v6063 = vshrl.u32 %v6062, 7
    %v6064 = vsub.s32 0, %v6063
    %v6065 = vrot.slane %v5856, %v6064
    %v6067 = vmul.f32 %v6059, %v6065
    %v6068 = vmul.f32 %v6060, %v6065
    %v6070 = vlaneseq
    %v6071 = vshrl.u32 %v6070, 7
    %v6072 = vsub.s32 0, %v6071
    %v6073 = vrot.slane %v5858, %v6072
    %v6075 = vadd.f32 %v6067, %v6073
    %v6076 = vadd.f32 %v6068, %v6073
    %v6077 = vpack.c.bf16 %v6076, %v6075
    %s6078 = scalar_lea.vmem %s13, 64
    %v6079 = vld [vmem:[%s6078] sm:$0xf]
    %v6080 = vld [vmem:[%s6078 + $0x4] sm:$0xf]
    %v6081 = vld [vmem:[%s6078 + $0x8] sm:$0xf]
    %v6082 = vld [vmem:[%s6078 + $0xc] sm:$0xf]
    %s6083 = scalar_lea.vmem [#allocation23], 4
    %v6084 = vld [vmem:[%s6083] sm:$0x1]
    %v6086 = vlaneseq
    %v6087 = vshrl.u32 %v6086, 7
    %v6088 = vsub.s32 0, %v6087
    %v6089 = vrot.slane %v6084, %v6088
    %v6095 = vunpack.c.l.b16 %v6079
    %v6096 = vunpack.c.l.b16 %v6080
    %v6097 = vunpack.c.l.b16 %v6081
    %v6098 = vunpack.c.l.b16 %v6082
    %v6099 = vpack.c.b16 %v6096, %v6095
    %v6100 = vpack.c.b16 %v6098, %v6097
    %v6104 = vsel %vm324, %v6077, 0
    %6106 = vmatprep.subr.bf16.mxu0 0
    %6107 = vmatpush1.bf16.msra.mxu0 %v6099
    %6108 = vmatprep.subr.bf16.mxu0 0
    %6109 = vmatpush1.bf16.msra.mxu0 %v6100
    %6110 = vmatprep.subr.bf16.mxu0 0
    %6111 = vmatpush1.bf16.msra.mxu0 0
    %6112 = vmatprep.subr.bf16.mxu0 0
    %6113 = vmatpush1.bf16.msra.mxu0 0
    %6114 = vmatprep.subr.bf16.mxu0 0
    %6115 = vmatpush1.bf16.msra.mxu0 0
    %6116 = vmatprep.subr.bf16.mxu0 0
    %6117 = vmatpush1.bf16.msra.mxu0 0
    %6118 = vmatprep.subr.bf16.mxu0 0
    %6119 = vmatpush1.bf16.msra.mxu0 0
    %6120 = vmatprep.subr.bf16.mxu0 0
    %6121 = vmatpush1.bf16.msra.mxu0 0
    %6122 = vmatprep.subr.bf16.mxu0 0
    %6123 = vmatpush1.bf16.msra.mxu0 0
    %6124 = vmatprep.subr.bf16.mxu0 0
    %6125 = vmatpush1.bf16.msra.mxu0 0
    %6126 = vmatprep.subr.bf16.mxu0 0
    %6127 = vmatpush1.bf16.msra.mxu0 0
    %6128 = vmatprep.subr.bf16.mxu0 0
    %6129 = vmatpush1.bf16.msra.mxu0 0
    %6130 = vmatprep.subr.bf16.mxu0 0
    %6131 = vmatpush1.bf16.msra.mxu0 0
    %6132 = vmatprep.subr.bf16.mxu0 0
    %6133 = vmatpush1.bf16.msra.mxu0 0
    %6134 = vmatprep.subr.bf16.mxu0 0
    %6135 = vmatpush1.bf16.msra.mxu0 0
    %6136 = vmatprep.subr.bf16.mxu0 0
    %6137 = vmatpush1.bf16.msra.mxu0 0
    %6138 = vmatprep.mubr.bf16.mxu0 0
    %6139 = vmatmul.mubr.bf16.gmra.mrb[0].mxu0 %v6104
    %v6140 = vpop.f32.mrb[0].mxu0
    %v6141 = vadd.f32 %v6089, %v6140
    %v6142 = vpop.f32.mrb[0].mxu0
    %v6143 = vpop.f32.mrb[0].mxu0
    %v6144 = vadd.f32 %v6089, %v6143
    %v6145 = vpop.f32.mrb[0].mxu0
    %6146 = vdwg.mxu0
    %vm6147 = vcmp.gt.f32.partialorder %v6141, 0.0
    %vm6148 = vcmp.gt.f32.partialorder %v6144, 0.0
    %v6149 = vmin.f32 %v6141, 0.0
    %v6150 = vmin.f32 %v6144, 0.0
    %v6151 = vmul.f32 %v6149, 1.442695
    %v6152 = vpow.pop %v6151
    %v6153 = vmul.f32 %v6150, 1.442695
    %v6154 = vpow.pop %v6153
    %v6155 = vsub.f32 %v6152, 1.0
    %v6156 = vsub.f32 %v6154, 1.0
    %v6157 = vsel %vm6147, %v6141, %v6155
    %v6158 = vsel %vm6148, %v6144, %v6156
    %v6159 = vpack.c.bf16 %v6158, %v6157
    %s6160 = scalar_lea.vmem [#allocation8], 112
    %v6161 = vld [vmem:[%s6160] sm:$0xf]
    %v6162 = vld [vmem:[%s6160 + $0x4] sm:$0xf]
    %v6163 = vld [vmem:[%s6160 + $0x8] sm:$0xf]
    %v6164 = vld [vmem:[%s6160 + $0xc] sm:$0xf]
    %s6165 = scalar_lea.vmem [#allocation10], 7
    %v6166 = vld [vmem:[%s6165] sm:$0x1]
    %v6168 = vlaneseq
    %v6169 = vshrl.u32 %v6168, 7
    %v6170 = vsub.s32 0, %v6169
    %v6171 = vrot.slane %v6166, %v6170
    %v6177 = vunpack.c.l.b16 %v6161
    %v6178 = vunpack.c.l.b16 %v6162
    %v6179 = vunpack.c.l.b16 %v6163
    %v6180 = vunpack.c.l.b16 %v6164
    %v6181 = vpack.c.b16 %v6178, %v6177
    %v6182 = vpack.c.b16 %v6180, %v6179
    %v6186 = vsel %vm324, %v6159, 0
    %6188 = vmatprep.subr.bf16.mxu0 0
    %6189 = vmatpush1.bf16.msra.mxu0 %v6181
    %6190 = vmatprep.subr.bf16.mxu0 0
    %6191 = vmatpush1.bf16.msra.mxu0 %v6182
    %6192 = vmatprep.subr.bf16.mxu0 0
    %6193 = vmatpush1.bf16.msra.mxu0 0
    %6194 = vmatprep.subr.bf16.mxu0 0
    %6195 = vmatpush1.bf16.msra.mxu0 0
    %6196 = vmatprep.subr.bf16.mxu0 0
    %6197 = vmatpush1.bf16.msra.mxu0 0
    %6198 = vmatprep.subr.bf16.mxu0 0
    %6199 = vmatpush1.bf16.msra.mxu0 0
    %6200 = vmatprep.subr.bf16.mxu0 0
    %6201 = vmatpush1.bf16.msra.mxu0 0
    %6202 = vmatprep.subr.bf16.mxu0 0
    %6203 = vmatpush1.bf16.msra.mxu0 0
    %6204 = vmatprep.subr.bf16.mxu0 0
    %6205 = vmatpush1.bf16.msra.mxu0 0
    %6206 = vmatprep.subr.bf16.mxu0 0
    %6207 = vmatpush1.bf16.msra.mxu0 0
    %6208 = vmatprep.subr.bf16.mxu0 0
    %6209 = vmatpush1.bf16.msra.mxu0 0
    %6210 = vmatprep.subr.bf16.mxu0 0
    %6211 = vmatpush1.bf16.msra.mxu0 0
    %6212 = vmatprep.subr.bf16.mxu0 0
    %6213 = vmatpush1.bf16.msra.mxu0 0
    %6214 = vmatprep.subr.bf16.mxu0 0
    %6215 = vmatpush1.bf16.msra.mxu0 0
    %6216 = vmatprep.subr.bf16.mxu0 0
    %6217 = vmatpush1.bf16.msra.mxu0 0
    %6218 = vmatprep.subr.bf16.mxu0 0
    %6219 = vmatpush1.bf16.msra.mxu0 0
    %6220 = vmatprep.mubr.bf16.mxu0 0
    %6221 = vmatmul.mubr.bf16.gmra.mrb[0].mxu0 %v6186
    %v6222 = vpop.f32.mrb[0].mxu0
    %v6223 = vadd.f32 %v6171, %v6222
    %v6224 = vpop.f32.mrb[0].mxu0
    %v6225 = vpop.f32.mrb[0].mxu0
    %v6226 = vadd.f32 %v6171, %v6225
    %v6227 = vpop.f32.mrb[0].mxu0
    %6228 = vdwg.mxu0
    %s6229 = scalar_lea.vmem [#allocation11], 112
    %v6230 = vld [vmem:[%s6229] sm:$0xf]
    %v6231 = vld [vmem:[%s6229 + $0x4] sm:$0xf]
    %v6232 = vld [vmem:[%s6229 + $0x8] sm:$0xf]
    %v6233 = vld [vmem:[%s6229 + $0xc] sm:$0xf]
    %s6234 = scalar_lea.vmem [#allocation13], 7
    %v6235 = vld [vmem:[%s6234] sm:$0x1]
    %v6237 = vlaneseq
    %v6238 = vshrl.u32 %v6237, 7
    %v6239 = vsub.s32 0, %v6238
    %v6240 = vrot.slane %v6235, %v6239
    %v6246 = vunpack.c.l.b16 %v6230
    %v6247 = vunpack.c.l.b16 %v6231
    %v6248 = vunpack.c.l.b16 %v6232
    %v6249 = vunpack.c.l.b16 %v6233
    %v6250 = vpack.c.b16 %v6247, %v6246
    %v6251 = vpack.c.b16 %v6249, %v6248
    %6254 = vmatprep.subr.bf16.mxu0 0
    %6255 = vmatpush1.bf16.msra.mxu0 %v6250
    %6256 = vmatprep.subr.bf16.mxu0 0
    %6257 = vmatpush1.bf16.msra.mxu0 %v6251
    %6258 = vmatprep.subr.bf16.mxu0 0
    %6259 = vmatpush1.bf16.msra.mxu0 0
    %6260 = vmatprep.subr.bf16.mxu0 0
    %6261 = vmatpush1.bf16.msra.mxu0 0
    %6262 = vmatprep.subr.bf16.mxu0 0
    %6263 = vmatpush1.bf16.msra.mxu0 0
    %6264 = vmatprep.subr.bf16.mxu0 0
    %6265 = vmatpush1.bf16.msra.mxu0 0
    %6266 = vmatprep.subr.bf16.mxu0 0
    %6267 = vmatpush1.bf16.msra.mxu0 0
    %6268 = vmatprep.subr.bf16.mxu0 0
    %6269 = vmatpush1.bf16.msra.mxu0 0
    %6270 = vmatprep.subr.bf16.mxu0 0
    %6271 = vmatpush1.bf16.msra.mxu0 0
    %6272 = vmatprep.subr.bf16.mxu0 0
    %6273 = vmatpush1.bf16.msra.mxu0 0
    %6274 = vmatprep.subr.bf16.mxu0 0
    %6275 = vmatpush1.bf16.msra.mxu0 0
    %6276 = vmatprep.subr.bf16.mxu0 0
    %6277 = vmatpush1.bf16.msra.mxu0 0
    %6278 = vmatprep.subr.bf16.mxu0 0
    %6279 = vmatpush1.bf16.msra.mxu0 0
    %6280 = vmatprep.subr.bf16.mxu0 0
    %6281 = vmatpush1.bf16.msra.mxu0 0
    %6282 = vmatprep.subr.bf16.mxu0 0
    %6283 = vmatpush1.bf16.msra.mxu0 0
    %6284 = vmatprep.subr.bf16.mxu0 0
    %6285 = vmatpush1.bf16.msra.mxu0 0
    %6286 = vmatprep.mubr.bf16.mxu0 0
    %6287 = vmatmul.mubr.bf16.gmra.mrb[0].mxu0 %v5472
    %v6288 = vpop.f32.mrb[0].mxu0
    %v6289 = vadd.f32 %v6240, %v6288
    %v6290 = vpop.f32.mrb[0].mxu0
    %v6291 = vpop.f32.mrb[0].mxu0
    %v6292 = vadd.f32 %v6240, %v6291
    %v6293 = vpop.f32.mrb[0].mxu0
    %6294 = vdwg.mxu0
    %s6295 = scalar_lea.vmem [#allocation14], 112
    %v6296 = vld [vmem:[%s6295] sm:$0xf]
    %v6297 = vld [vmem:[%s6295 + $0x4] sm:$0xf]
    %v6298 = vld [vmem:[%s6295 + $0x8] sm:$0xf]
    %v6299 = vld [vmem:[%s6295 + $0xc] sm:$0xf]
    %s6300 = scalar_lea.vmem [#allocation16], 7
    %v6301 = vld [vmem:[%s6300] sm:$0x1]
    %v6303 = vlaneseq
    %v6304 = vshrl.u32 %v6303, 7
    %v6305 = vsub.s32 0, %v6304
    %v6306 = vrot.slane %v6301, %v6305
    %v6312 = vunpack.c.l.b16 %v6296
    %v6313 = vunpack.c.l.b16 %v6297
    %v6314 = vunpack.c.l.b16 %v6298
    %v6315 = vunpack.c.l.b16 %v6299
    %v6316 = vpack.c.b16 %v6313, %v6312
    %v6317 = vpack.c.b16 %v6315, %v6314
    %6320 = vmatprep.subr.bf16.mxu0 0
    %6321 = vmatpush1.bf16.msra.mxu0 %v6316
    %6322 = vmatprep.subr.bf16.mxu0 0
    %6323 = vmatpush1.bf16.msra.mxu0 %v6317
    %6324 = vmatprep.subr.bf16.mxu0 0
    %6325 = vmatpush1.bf16.msra.mxu0 0
    %6326 = vmatprep.subr.bf16.mxu0 0
    %6327 = vmatpush1.bf16.msra.mxu0 0
    %6328 = vmatprep.subr.bf16.mxu0 0
    %6329 = vmatpush1.bf16.msra.mxu0 0
    %6330 = vmatprep.subr.bf16.mxu0 0
    %6331 = vmatpush1.bf16.msra.mxu0 0
    %6332 = vmatprep.subr.bf16.mxu0 0
    %6333 = vmatpush1.bf16.msra.mxu0 0
    %6334 = vmatprep.subr.bf16.mxu0 0
    %6335 = vmatpush1.bf16.msra.mxu0 0
    %6336 = vmatprep.subr.bf16.mxu0 0
    %6337 = vmatpush1.bf16.msra.mxu0 0
    %6338 = vmatprep.subr.bf16.mxu0 0
    %6339 = vmatpush1.bf16.msra.mxu0 0
    %6340 = vmatprep.subr.bf16.mxu0 0
    %6341 = vmatpush1.bf16.msra.mxu0 0
    %6342 = vmatprep.subr.bf16.mxu0 0
    %6343 = vmatpush1.bf16.msra.mxu0 0
    %6344 = vmatprep.subr.bf16.mxu0 0
    %6345 = vmatpush1.bf16.msra.mxu0 0
    %6346 = vmatprep.subr.bf16.mxu0 0
    %6347 = vmatpush1.bf16.msra.mxu0 0
    %6348 = vmatprep.subr.bf16.mxu0 0
    %6349 = vmatpush1.bf16.msra.mxu0 0
    %6350 = vmatprep.subr.bf16.mxu0 0
    %6351 = vmatpush1.bf16.msra.mxu0 0
    %6352 = vmatprep.mubr.bf16.mxu0 0
    %6353 = vmatmul.mubr.bf16.gmra.mrb[0].mxu0 %v5472
    %v6354 = vpop.f32.mrb[0].mxu0
    %v6355 = vadd.f32 %v6306, %v6354
    %v6356 = vpop.f32.mrb[0].mxu0
    %v6357 = vpop.f32.mrb[0].mxu0
    %v6358 = vadd.f32 %v6306, %v6357
    %v6359 = vpop.f32.mrb[0].mxu0
    %6360 = vdwg.mxu0
    %v6361 = vpack.c.bf16 %v6226, %v6223
    %v6362 = vpack.c.bf16 %v6292, %v6289
    %v6364 = vsel %vm324, %v6361, 0
    %v6367 = vsel %vm324, %v6362, 0
    %6369 = vmatprep.subr.bf16.mxu0 0
    %6370 = vmatpush1.bf16.xpose.msra.mxu0 %v6367
    %6371 = vmatprep.subr.bf16.mxu0 0
    %6372 = vmatpush1.bf16.xpose.msra.mxu0 0
    %6373 = vmatprep.subr.bf16.mxu0 0
    %6374 = vmatpush1.bf16.xpose.msra.mxu0 0
    %6375 = vmatprep.subr.bf16.mxu0 0
    %6376 = vmatpush1.bf16.xpose.msra.mxu0 0
    %6377 = vmatprep.subr.bf16.mxu0 0
    %6378 = vmatpush1.bf16.xpose.msra.mxu0 0
    %6379 = vmatprep.subr.bf16.mxu0 0
    %6380 = vmatpush1.bf16.xpose.msra.mxu0 0
    %6381 = vmatprep.subr.bf16.mxu0 0
    %6382 = vmatpush1.bf16.xpose.msra.mxu0 0
    %6383 = vmatprep.subr.bf16.mxu0 0
    %6384 = vmatpush1.bf16.xpose.msra.mxu0 0
    %6385 = vmatprep.subr.bf16.mxu0 0
    %6386 = vmatpush1.bf16.xpose.msra.mxu0 0
    %6387 = vmatprep.subr.bf16.mxu0 0
    %6388 = vmatpush1.bf16.xpose.msra.mxu0 0
    %6389 = vmatprep.subr.bf16.mxu0 0
    %6390 = vmatpush1.bf16.xpose.msra.mxu0 0
    %6391 = vmatprep.subr.bf16.mxu0 0
    %6392 = vmatpush1.bf16.xpose.msra.mxu0 0
    %6393 = vmatprep.subr.bf16.mxu0 0
    %6394 = vmatpush1.bf16.xpose.msra.mxu0 0
    %6395 = vmatprep.subr.bf16.mxu0 0
    %6396 = vmatpush1.bf16.xpose.msra.mxu0 0
    %6397 = vmatprep.subr.bf16.mxu0 0
    %6398 = vmatpush1.bf16.xpose.msra.mxu0 0
    %6399 = vmatprep.subr.bf16.mxu0 0
    %6400 = vmatpush1.bf16.xpose.msra.mxu0 0
    %6401 = vmatprep.mubr.bf16.mxu0 0
    %6402 = vmatmul.mubr.bf16.gmra.mrb[0].mxu0 %v6364
    %v6403 = vpop.f32.mrb[0].mxu0
    %v6404 = vadd.f32 %v295, %v6403
    %v6405 = vpop.f32.mrb[0].mxu0
    %v6406 = vpop.f32.mrb[0].mxu0
    %v6407 = vadd.f32 %v296, %v6406
    %v6408 = vpop.f32.mrb[0].mxu0
    %6409 = vdwg.mxu0
    %v6410 = vsel %vm549, %v6404, -inf
    %6411 = vmax.xlane.f32.xlu0 %v6410
    %v6412 = vpop.xlane.xlu0 %6411
    %v6413 = vsel %vm549, %v6407, -inf
    %6414 = vmax.xlane.f32.xlu0 %v6413
    %v6415 = vpop.xlane.xlu0 %6414
    %v6416 = vsub.f32 %v6404, %v6412
    %v6417 = vsub.f32 %v6407, %v6415
    %v6418 = vmul.f32 %v6416, 1.442695
    %v6419 = vpow.pop %v6418
    %v6420 = vmul.f32 %v6417, 1.442695
    %v6421 = vpow.pop %v6420
    %v6423 = vsel %vm549, %v6419, 0
    %v6426 = vsel %vm549, %v6421, 0
    %6428 = vmatprep.subr.mxu0 0.0
    %6429 = vmatpush1.msra.mxu0 1.0
    %6430 = vmatprep.subr.mxu0 0.0
    %6431 = vmatpush1.msra.mxu0 1.0
    %6432 = vmatprep.subr.mxu0 0.0
    %6433 = vmatpush1.msra.mxu0 0.0
    %6434 = vmatprep.subr.mxu0 0.0
    %6435 = vmatpush1.msra.mxu0 0.0
    %6436 = vmatprep.subr.mxu0 0.0
    %6437 = vmatpush1.msra.mxu0 0.0
    %6438 = vmatprep.subr.mxu0 0.0
    %6439 = vmatpush1.msra.mxu0 0.0
    %6440 = vmatprep.subr.mxu0 0.0
    %6441 = vmatpush1.msra.mxu0 0.0
    %6442 = vmatprep.subr.mxu0 0.0
    %6443 = vmatpush1.msra.mxu0 0.0
    %6444 = vmatprep.subr.mxu0 0.0
    %6445 = vmatpush1.msra.mxu0 0.0
    %6446 = vmatprep.subr.mxu0 0.0
    %6447 = vmatpush1.msra.mxu0 0.0
    %6448 = vmatprep.subr.mxu0 0.0
    %6449 = vmatpush1.msra.mxu0 0.0
    %6450 = vmatprep.subr.mxu0 0.0
    %6451 = vmatpush1.msra.mxu0 0.0
    %6452 = vmatprep.subr.mxu0 0.0
    %6453 = vmatpush1.msra.mxu0 0.0
    %6454 = vmatprep.subr.mxu0 0.0
    %6455 = vmatpush1.msra.mxu0 0.0
    %6456 = vmatprep.subr.mxu0 0.0
    %6457 = vmatpush1.msra.mxu0 0.0
    %6458 = vmatprep.subr.mxu0 0.0
    %6459 = vmatpush1.msra.mxu0 0.0
    %6460 = vmatprep.subr.mxu0 0.0
    %6461 = vmatpush1.msra.mxu0 0.0
    %6462 = vmatprep.subr.mxu0 0.0
    %6463 = vmatpush1.msra.mxu0 0.0
    %6464 = vmatprep.subr.mxu0 0.0
    %6465 = vmatpush1.msra.mxu0 0.0
    %6466 = vmatprep.subr.mxu0 0.0
    %6467 = vmatpush1.msra.mxu0 0.0
    %6468 = vmatprep.subr.mxu0 0.0
    %6469 = vmatpush1.msra.mxu0 0.0
    %6470 = vmatprep.subr.mxu0 0.0
    %6471 = vmatpush1.msra.mxu0 0.0
    %6472 = vmatprep.subr.mxu0 0.0
    %6473 = vmatpush1.msra.mxu0 0.0
    %6474 = vmatprep.subr.mxu0 0.0
    %6475 = vmatpush1.msra.mxu0 0.0
    %6476 = vmatprep.subr.mxu0 0.0
    %6477 = vmatpush1.msra.mxu0 0.0
    %6478 = vmatprep.subr.mxu0 0.0
    %6479 = vmatpush1.msra.mxu0 0.0
    %6480 = vmatprep.subr.mxu0 0.0
    %6481 = vmatpush1.msra.mxu0 0.0
    %6482 = vmatprep.subr.mxu0 0.0
    %6483 = vmatpush1.msra.mxu0 0.0
    %6484 = vmatprep.subr.mxu0 0.0
    %6485 = vmatpush1.msra.mxu0 0.0
    %6486 = vmatprep.subr.mxu0 0.0
    %6487 = vmatpush1.msra.mxu0 0.0
    %6488 = vmatprep.subr.mxu0 0.0
    %6489 = vmatpush1.msra.mxu0 0.0
    %6490 = vmatprep.subr.mxu0 0.0
    %6491 = vmatpush1.msra.mxu0 0.0
    %6492 = vmatprep.mubr.f32.mxu0 0.0
    %6493 = vmatmul.mubr.f32.gmra.mrb[0].mxu0 %v6423
    %v6494 = vpop.f32.mrb[0].mxu0
    %v6495 = vadd.f32 0.0, %v6494
    %v6496 = vpop.f32.mrb[0].mxu0
    %6497 = vmatprep.mubr.f32.mxu0 0.0
    %6498 = vmatmul.mubr.f32.gmra.mrb[0].mxu0 %v6426
    %v6499 = vpop.f32.mrb[0].mxu0
    %v6500 = vadd.f32 0.0, %v6499
    %v6501 = vpop.f32.mrb[0].mxu0
    %6502 = vdwg.mxu0
    %v6503 = vrcp.pop %v6495
    %v6504 = vrcp.pop %v6500
    %6506 = vset.pattern.permute.xlu0 0
    %6507 = vperm.xlu0 %6506, %v6503
    %v6508 = vpop.permute.xlu0 %6507
    %6511 = vset.pattern.permute.xlu0 0
    %6512 = vperm.xlu0 %6511, %v6504
    %v6513 = vpop.permute.xlu0 %6512
    %v6515 = vmul.f32 %v6419, %v6508
    %v6516 = vmul.f32 %v6421, %v6513
    %v6517 = vpack.c.bf16 %v6516, %v6515
    %v6518 = vpack.c.bf16 %v6358, %v6355
    %v6520 = vsel %vm549, %v6517, 0
    %6522 = vmatprep.subr.bf16.mxu0 0
    %6523 = vmatpush1.bf16.msra.mxu0 %v6518
    %6524 = vmatprep.subr.bf16.mxu0 0
    %6525 = vmatpush1.bf16.msra.mxu0 0
    %6526 = vmatprep.subr.bf16.mxu0 0
    %6527 = vmatpush1.bf16.msra.mxu0 0
    %6528 = vmatprep.subr.bf16.mxu0 0
    %6529 = vmatpush1.bf16.msra.mxu0 0
    %6530 = vmatprep.subr.bf16.mxu0 0
    %6531 = vmatpush1.bf16.msra.mxu0 0
    %6532 = vmatprep.subr.bf16.mxu0 0
    %6533 = vmatpush1.bf16.msra.mxu0 0
    %6534 = vmatprep.subr.bf16.mxu0 0
    %6535 = vmatpush1.bf16.msra.mxu0 0
    %6536 = vmatprep.subr.bf16.mxu0 0
    %6537 = vmatpush1.bf16.msra.mxu0 0
    %6538 = vmatprep.subr.bf16.mxu0 0
    %6539 = vmatpush1.bf16.msra.mxu0 0
    %6540 = vmatprep.subr.bf16.mxu0 0
    %6541 = vmatpush1.bf16.msra.mxu0 0
    %6542 = vmatprep.subr.bf16.mxu0 0
    %6543 = vmatpush1.bf16.msra.mxu0 0
    %6544 = vmatprep.subr.bf16.mxu0 0
    %6545 = vmatpush1.bf16.msra.mxu0 0
    %6546 = vmatprep.subr.bf16.mxu0 0
    %6547 = vmatpush1.bf16.msra.mxu0 0
    %6548 = vmatprep.subr.bf16.mxu0 0
    %6549 = vmatpush1.bf16.msra.mxu0 0
    %6550 = vmatprep.subr.bf16.mxu0 0
    %6551 = vmatpush1.bf16.msra.mxu0 0
    %6552 = vmatprep.subr.bf16.mxu0 0
    %6553 = vmatpush1.bf16.msra.mxu0 0
    %6554 = vmatprep.mubr.bf16.mxu0 0
    %6555 = vmatmul.mubr.bf16.gmra.mrb[0].mxu0 %v6520
    %v6556 = vpop.f32.mrb[0].mxu0
    %v6557 = vadd.f32 0.0, %v6556
    %v6558 = vpop.f32.mrb[0].mxu0
    %v6559 = vpop.f32.mrb[0].mxu0
    %v6560 = vadd.f32 0.0, %v6559
    %v6561 = vpop.f32.mrb[0].mxu0
    %6562 = vdwg.mxu0
    %v6563 = vpack.c.bf16 %v6560, %v6557
    %s6564 = scalar_lea.vmem [#allocation17], 112
    %v6565 = vld [vmem:[%s6564] sm:$0xf]
    %v6566 = vld [vmem:[%s6564 + $0x4] sm:$0xf]
    %v6567 = vld [vmem:[%s6564 + $0x8] sm:$0xf]
    %v6568 = vld [vmem:[%s6564 + $0xc] sm:$0xf]
    %s6569 = scalar_lea.vmem [#allocation19], 7
    %v6570 = vld [vmem:[%s6569] sm:$0x1]
    %v6572 = vlaneseq
    %v6573 = vshrl.u32 %v6572, 7
    %v6574 = vsub.s32 0, %v6573
    %v6575 = vrot.slane %v6570, %v6574
    %v6581 = vunpack.c.l.b16 %v6565
    %v6582 = vunpack.c.l.b16 %v6566
    %v6583 = vunpack.c.l.b16 %v6567
    %v6584 = vunpack.c.l.b16 %v6568
    %v6585 = vpack.c.b16 %v6582, %v6581
    %v6586 = vpack.c.b16 %v6584, %v6583
    %v6590 = vsel %vm324, %v6563, 0
    %6592 = vmatprep.subr.bf16.mxu0 0
    %6593 = vmatpush1.bf16.msra.mxu0 %v6585
    %6594 = vmatprep.subr.bf16.mxu0 0
    %6595 = vmatpush1.bf16.msra.mxu0 %v6586
    %6596 = vmatprep.subr.bf16.mxu0 0
    %6597 = vmatpush1.bf16.msra.mxu0 0
    %6598 = vmatprep.subr.bf16.mxu0 0
    %6599 = vmatpush1.bf16.msra.mxu0 0
    %6600 = vmatprep.subr.bf16.mxu0 0
    %6601 = vmatpush1.bf16.msra.mxu0 0
    %6602 = vmatprep.subr.bf16.mxu0 0
    %6603 = vmatpush1.bf16.msra.mxu0 0
    %6604 = vmatprep.subr.bf16.mxu0 0
    %6605 = vmatpush1.bf16.msra.mxu0 0
    %6606 = vmatprep.subr.bf16.mxu0 0
    %6607 = vmatpush1.bf16.msra.mxu0 0
    %6608 = vmatprep.subr.bf16.mxu0 0
    %6609 = vmatpush1.bf16.msra.mxu0 0
    %6610 = vmatprep.subr.bf16.mxu0 0
    %6611 = vmatpush1.bf16.msra.mxu0 0
    %6612 = vmatprep.subr.bf16.mxu0 0
    %6613 = vmatpush1.bf16.msra.mxu0 0
    %6614 = vmatprep.subr.bf16.mxu0 0
    %6615 = vmatpush1.bf16.msra.mxu0 0
    %6616 = vmatprep.subr.bf16.mxu0 0
    %6617 = vmatpush1.bf16.msra.mxu0 0
    %6618 = vmatprep.subr.bf16.mxu0 0
    %6619 = vmatpush1.bf16.msra.mxu0 0
    %6620 = vmatprep.subr.bf16.mxu0 0
    %6621 = vmatpush1.bf16.msra.mxu0 0
    %6622 = vmatprep.subr.bf16.mxu0 0
    %6623 = vmatpush1.bf16.msra.mxu0 0
    %6624 = vmatprep.mubr.bf16.mxu0 0
    %6625 = vmatmul.mubr.bf16.gmra.mrb[0].mxu0 %v6590
    %v6626 = vpop.f32.mrb[0].mxu0
    %v6627 = vadd.f32 %v6575, %v6626
    %v6628 = vpop.f32.mrb[0].mxu0
    %v6629 = vpop.f32.mrb[0].mxu0
    %v6630 = vadd.f32 %v6575, %v6629
    %v6631 = vpop.f32.mrb[0].mxu0
    %6632 = vdwg.mxu0
    %v6633 = vadd.f32 %v6157, %v6627
    %v6634 = vadd.f32 %v6158, %v6630
    %s6635 = scalar_lea.vmem [#allocation20], 7
    %v6636 = vld [vmem:[%s6635] sm:$0x1]
    %s6637 = scalar_lea.vmem [#allocation22], 7
    %v6638 = vld [vmem:[%s6637] sm:$0x1]
    %v6640 = vsel %vm324, %v6633, 0
    %v6643 = vsel %vm324, %v6634, 0
    %6645 = vmatprep.subr.mxu0 0.0
    %6646 = vmatpush1.msra.mxu0 1.0
    %6647 = vmatprep.subr.mxu0 0.0
    %6648 = vmatpush1.msra.mxu0 1.0
    %6649 = vmatprep.subr.mxu0 0.0
    %6650 = vmatpush1.msra.mxu0 1.0
    %6651 = vmatprep.subr.mxu0 0.0
    %6652 = vmatpush1.msra.mxu0 1.0
    %6653 = vmatprep.subr.mxu0 0.0
    %6654 = vmatpush1.msra.mxu0 0.0
    %6655 = vmatprep.subr.mxu0 0.0
    %6656 = vmatpush1.msra.mxu0 0.0
    %6657 = vmatprep.subr.mxu0 0.0
    %6658 = vmatpush1.msra.mxu0 0.0
    %6659 = vmatprep.subr.mxu0 0.0
    %6660 = vmatpush1.msra.mxu0 0.0
    %6661 = vmatprep.subr.mxu0 0.0
    %6662 = vmatpush1.msra.mxu0 0.0
    %6663 = vmatprep.subr.mxu0 0.0
    %6664 = vmatpush1.msra.mxu0 0.0
    %6665 = vmatprep.subr.mxu0 0.0
    %6666 = vmatpush1.msra.mxu0 0.0
    %6667 = vmatprep.subr.mxu0 0.0
    %6668 = vmatpush1.msra.mxu0 0.0
    %6669 = vmatprep.subr.mxu0 0.0
    %6670 = vmatpush1.msra.mxu0 0.0
    %6671 = vmatprep.subr.mxu0 0.0
    %6672 = vmatpush1.msra.mxu0 0.0
    %6673 = vmatprep.subr.mxu0 0.0
    %6674 = vmatpush1.msra.mxu0 0.0
    %6675 = vmatprep.subr.mxu0 0.0
    %6676 = vmatpush1.msra.mxu0 0.0
    %6677 = vmatprep.subr.mxu0 0.0
    %6678 = vmatpush1.msra.mxu0 0.0
    %6679 = vmatprep.subr.mxu0 0.0
    %6680 = vmatpush1.msra.mxu0 0.0
    %6681 = vmatprep.subr.mxu0 0.0
    %6682 = vmatpush1.msra.mxu0 0.0
    %6683 = vmatprep.subr.mxu0 0.0
    %6684 = vmatpush1.msra.mxu0 0.0
    %6685 = vmatprep.subr.mxu0 0.0
    %6686 = vmatpush1.msra.mxu0 0.0
    %6687 = vmatprep.subr.mxu0 0.0
    %6688 = vmatpush1.msra.mxu0 0.0
    %6689 = vmatprep.subr.mxu0 0.0
    %6690 = vmatpush1.msra.mxu0 0.0
    %6691 = vmatprep.subr.mxu0 0.0
    %6692 = vmatpush1.msra.mxu0 0.0
    %6693 = vmatprep.subr.mxu0 0.0
    %6694 = vmatpush1.msra.mxu0 0.0
    %6695 = vmatprep.subr.mxu0 0.0
    %6696 = vmatpush1.msra.mxu0 0.0
    %6697 = vmatprep.subr.mxu0 0.0
    %6698 = vmatpush1.msra.mxu0 0.0
    %6699 = vmatprep.subr.mxu0 0.0
    %6700 = vmatpush1.msra.mxu0 0.0
    %6701 = vmatprep.subr.mxu0 0.0
    %6702 = vmatpush1.msra.mxu0 0.0
    %6703 = vmatprep.subr.mxu0 0.0
    %6704 = vmatpush1.msra.mxu0 0.0
    %6705 = vmatprep.subr.mxu0 0.0
    %6706 = vmatpush1.msra.mxu0 0.0
    %6707 = vmatprep.subr.mxu0 0.0
    %6708 = vmatpush1.msra.mxu0 0.0
    %6709 = vmatprep.mubr.f32.mxu0 0.0
    %6710 = vmatmul.mubr.f32.gmra.mrb[0].mxu0 %v6640
    %v6711 = vpop.f32.mrb[0].mxu0
    %v6712 = vadd.f32 0.0, %v6711
    %v6713 = vpop.f32.mrb[0].mxu0
    %6714 = vmatprep.mubr.f32.mxu0 0.0
    %6715 = vmatmul.mubr.f32.gmra.mrb[0].mxu0 %v6643
    %v6716 = vpop.f32.mrb[0].mxu0
    %v6717 = vadd.f32 0.0, %v6716
    %v6718 = vpop.f32.mrb[0].mxu0
    %6719 = vdwg.mxu0
    %v6720 = vmul.f32 %v6633, %v6633
    %v6721 = vmul.f32 %v6634, %v6634
    %v6723 = vsel %vm324, %v6720, 0
    %v6726 = vsel %vm324, %v6721, 0
    %6728 = vmatprep.subr.mxu0 0.0
    %6729 = vmatpush1.msra.mxu0 1.0
    %6730 = vmatprep.subr.mxu0 0.0
    %6731 = vmatpush1.msra.mxu0 1.0
    %6732 = vmatprep.subr.mxu0 0.0
    %6733 = vmatpush1.msra.mxu0 1.0
    %6734 = vmatprep.subr.mxu0 0.0
    %6735 = vmatpush1.msra.mxu0 1.0
    %6736 = vmatprep.subr.mxu0 0.0
    %6737 = vmatpush1.msra.mxu0 0.0
    %6738 = vmatprep.subr.mxu0 0.0
    %6739 = vmatpush1.msra.mxu0 0.0
    %6740 = vmatprep.subr.mxu0 0.0
    %6741 = vmatpush1.msra.mxu0 0.0
    %6742 = vmatprep.subr.mxu0 0.0
    %6743 = vmatpush1.msra.mxu0 0.0
    %6744 = vmatprep.subr.mxu0 0.0
    %6745 = vmatpush1.msra.mxu0 0.0
    %6746 = vmatprep.subr.mxu0 0.0
    %6747 = vmatpush1.msra.mxu0 0.0
    %6748 = vmatprep.subr.mxu0 0.0
    %6749 = vmatpush1.msra.mxu0 0.0
    %6750 = vmatprep.subr.mxu0 0.0
    %6751 = vmatpush1.msra.mxu0 0.0
    %6752 = vmatprep.subr.mxu0 0.0
    %6753 = vmatpush1.msra.mxu0 0.0
    %6754 = vmatprep.subr.mxu0 0.0
    %6755 = vmatpush1.msra.mxu0 0.0
    %6756 = vmatprep.subr.mxu0 0.0
    %6757 = vmatpush1.msra.mxu0 0.0
    %6758 = vmatprep.subr.mxu0 0.0
    %6759 = vmatpush1.msra.mxu0 0.0
    %6760 = vmatprep.subr.mxu0 0.0
    %6761 = vmatpush1.msra.mxu0 0.0
    %6762 = vmatprep.subr.mxu0 0.0
    %6763 = vmatpush1.msra.mxu0 0.0
    %6764 = vmatprep.subr.mxu0 0.0
    %6765 = vmatpush1.msra.mxu0 0.0
    %6766 = vmatprep.subr.mxu0 0.0
    %6767 = vmatpush1.msra.mxu0 0.0
    %6768 = vmatprep.subr.mxu0 0.0
    %6769 = vmatpush1.msra.mxu0 0.0
    %6770 = vmatprep.subr.mxu0 0.0
    %6771 = vmatpush1.msra.mxu0 0.0
    %6772 = vmatprep.subr.mxu0 0.0
    %6773 = vmatpush1.msra.mxu0 0.0
    %6774 = vmatprep.subr.mxu0 0.0
    %6775 = vmatpush1.msra.mxu0 0.0
    %6776 = vmatprep.subr.mxu0 0.0
    %6777 = vmatpush1.msra.mxu0 0.0
    %6778 = vmatprep.subr.mxu0 0.0
    %6779 = vmatpush1.msra.mxu0 0.0
    %6780 = vmatprep.subr.mxu0 0.0
    %6781 = vmatpush1.msra.mxu0 0.0
    %6782 = vmatprep.subr.mxu0 0.0
    %6783 = vmatpush1.msra.mxu0 0.0
    %6784 = vmatprep.subr.mxu0 0.0
    %6785 = vmatpush1.msra.mxu0 0.0
    %6786 = vmatprep.subr.mxu0 0.0
    %6787 = vmatpush1.msra.mxu0 0.0
    %6788 = vmatprep.subr.mxu0 0.0
    %6789 = vmatpush1.msra.mxu0 0.0
    %6790 = vmatprep.subr.mxu0 0.0
    %6791 = vmatpush1.msra.mxu0 0.0
    %6792 = vmatprep.mubr.f32.mxu0 0.0
    %6793 = vmatmul.mubr.f32.gmra.mrb[0].mxu0 %v6723
    %v6794 = vpop.f32.mrb[0].mxu0
    %v6795 = vadd.f32 0.0, %v6794
    %v6796 = vpop.f32.mrb[0].mxu0
    %6797 = vmatprep.mubr.f32.mxu0 0.0
    %6798 = vmatmul.mubr.f32.gmra.mrb[0].mxu0 %v6726
    %v6799 = vpop.f32.mrb[0].mxu0
    %v6800 = vadd.f32 0.0, %v6799
    %v6801 = vpop.f32.mrb[0].mxu0
    %6802 = vdwg.mxu0
    %v6803 = vmul.f32 %v6712, 0.03125
    %v6804 = vmul.f32 %v6717, 0.03125
    %v6805 = vmul.f32 %v6795, 0.03125
    %v6806 = vmul.f32 %v6800, 0.03125
    %v6807 = vmul.f32 %v6803, %v6803
    %v6808 = vmul.f32 %v6804, %v6804
    %v6809 = vsub.f32 %v6805, %v6807
    %v6810 = vsub.f32 %v6806, %v6808
    %v6811 = vmax.f32 %v6809, 0.0
    %v6812 = vmax.f32 %v6810, 0.0
    %6814 = vset.pattern.permute.xlu0 0
    %6815 = vperm.xlu0 %6814, %v6803
    %v6816 = vpop.permute.xlu0 %6815
    %6819 = vset.pattern.permute.xlu0 0
    %6820 = vperm.xlu0 %6819, %v6804
    %v6821 = vpop.permute.xlu0 %6820
    %v6823 = vsub.f32 %v6633, %v6816
    %v6824 = vsub.f32 %v6634, %v6821
    %v6825 = vadd.f32 %v6811, 1e-05
    %v6826 = vadd.f32 %v6812, 1e-05
    %v6827 = vrsqrt.pop %v6825
    %v6828 = vrsqrt.pop %v6826
    %6830 = vset.pattern.permute.xlu0 0
    %6831 = vperm.xlu0 %6830, %v6827
    %v6832 = vpop.permute.xlu0 %6831
    %6835 = vset.pattern.permute.xlu0 0
    %6836 = vperm.xlu0 %6835, %v6828
    %v6837 = vpop.permute.xlu0 %6836
    %v6839 = vmul.f32 %v6823, %v6832
    %v6840 = vmul.f32 %v6824, %v6837
    %v6842 = vlaneseq
    %v6843 = vshrl.u32 %v6842, 7
    %v6844 = vsub.s32 0, %v6843
    %v6845 = vrot.slane %v6636, %v6844
    %v6847 = vmul.f32 %v6839, %v6845
    %v6848 = vmul.f32 %v6840, %v6845
    %v6850 = vlaneseq
    %v6851 = vshrl.u32 %v6850, 7
    %v6852 = vsub.s32 0, %v6851
    %v6853 = vrot.slane %v6638, %v6852
    %v6855 = vadd.f32 %v6847, %v6853
    %v6856 = vadd.f32 %v6848, %v6853
    %v6857 = vpack.c.bf16 %v6856, %v6855
    %s6858 = scalar_lea.vmem %s13, 80
    %v6859 = vld [vmem:[%s6858] sm:$0xf]
    %v6860 = vld [vmem:[%s6858 + $0x4] sm:$0xf]
    %v6861 = vld [vmem:[%s6858 + $0x8] sm:$0xf]
    %v6862 = vld [vmem:[%s6858 + $0xc] sm:$0xf]
    %s6863 = scalar_lea.vmem [#allocation23], 5
    %v6864 = vld [vmem:[%s6863] sm:$0x1]
    %v6866 = vlaneseq
    %v6867 = vshrl.u32 %v6866, 7
    %v6868 = vsub.s32 0, %v6867
    %v6869 = vrot.slane %v6864, %v6868
    %v6875 = vunpack.c.l.b16 %v6859
    %v6876 = vunpack.c.l.b16 %v6860
    %v6877 = vunpack.c.l.b16 %v6861
    %v6878 = vunpack.c.l.b16 %v6862
    %v6879 = vpack.c.b16 %v6876, %v6875
    %v6880 = vpack.c.b16 %v6878, %v6877
    %v6884 = vsel %vm324, %v6857, 0
    %6886 = vmatprep.subr.bf16.mxu0 0
    %6887 = vmatpush1.bf16.msra.mxu0 %v6879
    %6888 = vmatprep.subr.bf16.mxu0 0
    %6889 = vmatpush1.bf16.msra.mxu0 %v6880
    %6890 = vmatprep.subr.bf16.mxu0 0
    %6891 = vmatpush1.bf16.msra.mxu0 0
    %6892 = vmatprep.subr.bf16.mxu0 0
    %6893 = vmatpush1.bf16.msra.mxu0 0
    %6894 = vmatprep.subr.bf16.mxu0 0
    %6895 = vmatpush1.bf16.msra.mxu0 0
    %6896 = vmatprep.subr.bf16.mxu0 0
    %6897 = vmatpush1.bf16.msra.mxu0 0
    %6898 = vmatprep.subr.bf16.mxu0 0
    %6899 = vmatpush1.bf16.msra.mxu0 0
    %6900 = vmatprep.subr.bf16.mxu0 0
    %6901 = vmatpush1.bf16.msra.mxu0 0
    %6902 = vmatprep.subr.bf16.mxu0 0
    %6903 = vmatpush1.bf16.msra.mxu0 0
    %6904 = vmatprep.subr.bf16.mxu0 0
    %6905 = vmatpush1.bf16.msra.mxu0 0
    %6906 = vmatprep.subr.bf16.mxu0 0
    %6907 = vmatpush1.bf16.msra.mxu0 0
    %6908 = vmatprep.subr.bf16.mxu0 0
    %6909 = vmatpush1.bf16.msra.mxu0 0
    %6910 = vmatprep.subr.bf16.mxu0 0
    %6911 = vmatpush1.bf16.msra.mxu0 0
    %6912 = vmatprep.subr.bf16.mxu0 0
    %6913 = vmatpush1.bf16.msra.mxu0 0
    %6914 = vmatprep.subr.bf16.mxu0 0
    %6915 = vmatpush1.bf16.msra.mxu0 0
    %6916 = vmatprep.subr.bf16.mxu0 0
    %6917 = vmatpush1.bf16.msra.mxu0 0
    %6918 = vmatprep.mubr.bf16.mxu0 0
    %6919 = vmatmul.mubr.bf16.gmra.mrb[0].mxu0 %v6884
    %v6920 = vpop.f32.mrb[0].mxu0
    %v6921 = vadd.f32 %v6869, %v6920
    %v6922 = vpop.f32.mrb[0].mxu0
    %v6923 = vpop.f32.mrb[0].mxu0
    %v6924 = vadd.f32 %v6869, %v6923
    %v6925 = vpop.f32.mrb[0].mxu0
    %6926 = vdwg.mxu0
    %vm6927 = vcmp.gt.f32.partialorder %v6921, 0.0
    %vm6928 = vcmp.gt.f32.partialorder %v6924, 0.0
    %v6929 = vmin.f32 %v6921, 0.0
    %v6930 = vmin.f32 %v6924, 0.0
    %v6931 = vmul.f32 %v6929, 1.442695
    %v6932 = vpow.pop %v6931
    %v6933 = vmul.f32 %v6930, 1.442695
    %v6934 = vpow.pop %v6933
    %v6935 = vsub.f32 %v6932, 1.0
    %v6936 = vsub.f32 %v6934, 1.0
    %v6937 = vsel %vm6927, %v6921, %v6935
    %v6938 = vsel %vm6928, %v6924, %v6936
    %v6939 = vpack.c.bf16 %v6938, %v6937
    %s6940 = scalar_lea.vmem [#allocation8], 128
    %v6941 = vld [vmem:[%s6940] sm:$0xf]
    %v6942 = vld [vmem:[%s6940 + $0x4] sm:$0xf]
    %v6943 = vld [vmem:[%s6940 + $0x8] sm:$0xf]
    %v6944 = vld [vmem:[%s6940 + $0xc] sm:$0xf]
    %s6945 = scalar_lea.vmem [#allocation10], 8
    %v6946 = vld [vmem:[%s6945] sm:$0x1]
    %v6948 = vlaneseq
    %v6949 = vshrl.u32 %v6948, 7
    %v6950 = vsub.s32 0, %v6949
    %v6951 = vrot.slane %v6946, %v6950
    %v6957 = vunpack.c.l.b16 %v6941
    %v6958 = vunpack.c.l.b16 %v6942
    %v6959 = vunpack.c.l.b16 %v6943
    %v6960 = vunpack.c.l.b16 %v6944
    %v6961 = vpack.c.b16 %v6958, %v6957
    %v6962 = vpack.c.b16 %v6960, %v6959
    %v6966 = vsel %vm324, %v6939, 0
    %6968 = vmatprep.subr.bf16.mxu0 0
    %6969 = vmatpush1.bf16.msra.mxu0 %v6961
    %6970 = vmatprep.subr.bf16.mxu0 0
    %6971 = vmatpush1.bf16.msra.mxu0 %v6962
    %6972 = vmatprep.subr.bf16.mxu0 0
    %6973 = vmatpush1.bf16.msra.mxu0 0
    %6974 = vmatprep.subr.bf16.mxu0 0
    %6975 = vmatpush1.bf16.msra.mxu0 0
    %6976 = vmatprep.subr.bf16.mxu0 0
    %6977 = vmatpush1.bf16.msra.mxu0 0
    %6978 = vmatprep.subr.bf16.mxu0 0
    %6979 = vmatpush1.bf16.msra.mxu0 0
    %6980 = vmatprep.subr.bf16.mxu0 0
    %6981 = vmatpush1.bf16.msra.mxu0 0
    %6982 = vmatprep.subr.bf16.mxu0 0
    %6983 = vmatpush1.bf16.msra.mxu0 0
    %6984 = vmatprep.subr.bf16.mxu0 0
    %6985 = vmatpush1.bf16.msra.mxu0 0
    %6986 = vmatprep.subr.bf16.mxu0 0
    %6987 = vmatpush1.bf16.msra.mxu0 0
    %6988 = vmatprep.subr.bf16.mxu0 0
    %6989 = vmatpush1.bf16.msra.mxu0 0
    %6990 = vmatprep.subr.bf16.mxu0 0
    %6991 = vmatpush1.bf16.msra.mxu0 0
    %6992 = vmatprep.subr.bf16.mxu0 0
    %6993 = vmatpush1.bf16.msra.mxu0 0
    %6994 = vmatprep.subr.bf16.mxu0 0
    %6995 = vmatpush1.bf16.msra.mxu0 0
    %6996 = vmatprep.subr.bf16.mxu0 0
    %6997 = vmatpush1.bf16.msra.mxu0 0
    %6998 = vmatprep.subr.bf16.mxu0 0
    %6999 = vmatpush1.bf16.msra.mxu0 0
    %7000 = vmatprep.mubr.bf16.mxu0 0
    %7001 = vmatmul.mubr.bf16.gmra.mrb[0].mxu0 %v6966
    %v7002 = vpop.f32.mrb[0].mxu0
    %v7003 = vadd.f32 %v6951, %v7002
    %v7004 = vpop.f32.mrb[0].mxu0
    %v7005 = vpop.f32.mrb[0].mxu0
    %v7006 = vadd.f32 %v6951, %v7005
    %v7007 = vpop.f32.mrb[0].mxu0
    %7008 = vdwg.mxu0
    %s7009 = scalar_lea.vmem [#allocation11], 128
    %v7010 = vld [vmem:[%s7009] sm:$0xf]
    %v7011 = vld [vmem:[%s7009 + $0x4] sm:$0xf]
    %v7012 = vld [vmem:[%s7009 + $0x8] sm:$0xf]
    %v7013 = vld [vmem:[%s7009 + $0xc] sm:$0xf]
    %s7014 = scalar_lea.vmem [#allocation13], 8
    %v7015 = vld [vmem:[%s7014] sm:$0x1]
    %v7017 = vlaneseq
    %v7018 = vshrl.u32 %v7017, 7
    %v7019 = vsub.s32 0, %v7018
    %v7020 = vrot.slane %v7015, %v7019
    %v7026 = vunpack.c.l.b16 %v7010
    %v7027 = vunpack.c.l.b16 %v7011
    %v7028 = vunpack.c.l.b16 %v7012
    %v7029 = vunpack.c.l.b16 %v7013
    %v7030 = vpack.c.b16 %v7027, %v7026
    %v7031 = vpack.c.b16 %v7029, %v7028
    %7034 = vmatprep.subr.bf16.mxu0 0
    %7035 = vmatpush1.bf16.msra.mxu0 %v7030
    %7036 = vmatprep.subr.bf16.mxu0 0
    %7037 = vmatpush1.bf16.msra.mxu0 %v7031
    %7038 = vmatprep.subr.bf16.mxu0 0
    %7039 = vmatpush1.bf16.msra.mxu0 0
    %7040 = vmatprep.subr.bf16.mxu0 0
    %7041 = vmatpush1.bf16.msra.mxu0 0
    %7042 = vmatprep.subr.bf16.mxu0 0
    %7043 = vmatpush1.bf16.msra.mxu0 0
    %7044 = vmatprep.subr.bf16.mxu0 0
    %7045 = vmatpush1.bf16.msra.mxu0 0
    %7046 = vmatprep.subr.bf16.mxu0 0
    %7047 = vmatpush1.bf16.msra.mxu0 0
    %7048 = vmatprep.subr.bf16.mxu0 0
    %7049 = vmatpush1.bf16.msra.mxu0 0
    %7050 = vmatprep.subr.bf16.mxu0 0
    %7051 = vmatpush1.bf16.msra.mxu0 0
    %7052 = vmatprep.subr.bf16.mxu0 0
    %7053 = vmatpush1.bf16.msra.mxu0 0
    %7054 = vmatprep.subr.bf16.mxu0 0
    %7055 = vmatpush1.bf16.msra.mxu0 0
    %7056 = vmatprep.subr.bf16.mxu0 0
    %7057 = vmatpush1.bf16.msra.mxu0 0
    %7058 = vmatprep.subr.bf16.mxu0 0
    %7059 = vmatpush1.bf16.msra.mxu0 0
    %7060 = vmatprep.subr.bf16.mxu0 0
    %7061 = vmatpush1.bf16.msra.mxu0 0
    %7062 = vmatprep.subr.bf16.mxu0 0
    %7063 = vmatpush1.bf16.msra.mxu0 0
    %7064 = vmatprep.subr.bf16.mxu0 0
    %7065 = vmatpush1.bf16.msra.mxu0 0
    %7066 = vmatprep.mubr.bf16.mxu0 0
    %7067 = vmatmul.mubr.bf16.gmra.mrb[0].mxu0 %v5472
    %v7068 = vpop.f32.mrb[0].mxu0
    %v7069 = vadd.f32 %v7020, %v7068
    %v7070 = vpop.f32.mrb[0].mxu0
    %v7071 = vpop.f32.mrb[0].mxu0
    %v7072 = vadd.f32 %v7020, %v7071
    %v7073 = vpop.f32.mrb[0].mxu0
    %7074 = vdwg.mxu0
    %s7075 = scalar_lea.vmem [#allocation14], 128
    %v7076 = vld [vmem:[%s7075] sm:$0xf]
    %v7077 = vld [vmem:[%s7075 + $0x4] sm:$0xf]
    %v7078 = vld [vmem:[%s7075 + $0x8] sm:$0xf]
    %v7079 = vld [vmem:[%s7075 + $0xc] sm:$0xf]
    %s7080 = scalar_lea.vmem [#allocation16], 8
    %v7081 = vld [vmem:[%s7080] sm:$0x1]
    %v7083 = vlaneseq
    %v7084 = vshrl.u32 %v7083, 7
    %v7085 = vsub.s32 0, %v7084
    %v7086 = vrot.slane %v7081, %v7085
    %v7092 = vunpack.c.l.b16 %v7076
    %v7093 = vunpack.c.l.b16 %v7077
    %v7094 = vunpack.c.l.b16 %v7078
    %v7095 = vunpack.c.l.b16 %v7079
    %v7096 = vpack.c.b16 %v7093, %v7092
    %v7097 = vpack.c.b16 %v7095, %v7094
    %7100 = vmatprep.subr.bf16.mxu0 0
    %7101 = vmatpush1.bf16.msra.mxu0 %v7096
    %7102 = vmatprep.subr.bf16.mxu0 0
    %7103 = vmatpush1.bf16.msra.mxu0 %v7097
    %7104 = vmatprep.subr.bf16.mxu0 0
    %7105 = vmatpush1.bf16.msra.mxu0 0
    %7106 = vmatprep.subr.bf16.mxu0 0
    %7107 = vmatpush1.bf16.msra.mxu0 0
    %7108 = vmatprep.subr.bf16.mxu0 0
    %7109 = vmatpush1.bf16.msra.mxu0 0
    %7110 = vmatprep.subr.bf16.mxu0 0
    %7111 = vmatpush1.bf16.msra.mxu0 0
    %7112 = vmatprep.subr.bf16.mxu0 0
    %7113 = vmatpush1.bf16.msra.mxu0 0
    %7114 = vmatprep.subr.bf16.mxu0 0
    %7115 = vmatpush1.bf16.msra.mxu0 0
    %7116 = vmatprep.subr.bf16.mxu0 0
    %7117 = vmatpush1.bf16.msra.mxu0 0
    %7118 = vmatprep.subr.bf16.mxu0 0
    %7119 = vmatpush1.bf16.msra.mxu0 0
    %7120 = vmatprep.subr.bf16.mxu0 0
    %7121 = vmatpush1.bf16.msra.mxu0 0
    %7122 = vmatprep.subr.bf16.mxu0 0
    %7123 = vmatpush1.bf16.msra.mxu0 0
    %7124 = vmatprep.subr.bf16.mxu0 0
    %7125 = vmatpush1.bf16.msra.mxu0 0
    %7126 = vmatprep.subr.bf16.mxu0 0
    %7127 = vmatpush1.bf16.msra.mxu0 0
    %7128 = vmatprep.subr.bf16.mxu0 0
    %7129 = vmatpush1.bf16.msra.mxu0 0
    %7130 = vmatprep.subr.bf16.mxu0 0
    %7131 = vmatpush1.bf16.msra.mxu0 0
    %7132 = vmatprep.mubr.bf16.mxu0 0
    %7133 = vmatmul.mubr.bf16.gmra.mrb[0].mxu0 %v5472
    %v7134 = vpop.f32.mrb[0].mxu0
    %v7135 = vadd.f32 %v7086, %v7134
    %v7136 = vpop.f32.mrb[0].mxu0
    %v7137 = vpop.f32.mrb[0].mxu0
    %v7138 = vadd.f32 %v7086, %v7137
    %v7139 = vpop.f32.mrb[0].mxu0
    %7140 = vdwg.mxu0
    %v7141 = vpack.c.bf16 %v7006, %v7003
    %v7142 = vpack.c.bf16 %v7072, %v7069
    %v7144 = vsel %vm324, %v7141, 0
    %v7147 = vsel %vm324, %v7142, 0
    %7149 = vmatprep.subr.bf16.mxu0 0
    %7150 = vmatpush1.bf16.xpose.msra.mxu0 %v7147
    %7151 = vmatprep.subr.bf16.mxu0 0
    %7152 = vmatpush1.bf16.xpose.msra.mxu0 0
    %7153 = vmatprep.subr.bf16.mxu0 0
    %7154 = vmatpush1.bf16.xpose.msra.mxu0 0
    %7155 = vmatprep.subr.bf16.mxu0 0
    %7156 = vmatpush1.bf16.xpose.msra.mxu0 0
    %7157 = vmatprep.subr.bf16.mxu0 0
    %7158 = vmatpush1.bf16.xpose.msra.mxu0 0
    %7159 = vmatprep.subr.bf16.mxu0 0
    %7160 = vmatpush1.bf16.xpose.msra.mxu0 0
    %7161 = vmatprep.subr.bf16.mxu0 0
    %7162 = vmatpush1.bf16.xpose.msra.mxu0 0
    %7163 = vmatprep.subr.bf16.mxu0 0
    %7164 = vmatpush1.bf16.xpose.msra.mxu0 0
    %7165 = vmatprep.subr.bf16.mxu0 0
    %7166 = vmatpush1.bf16.xpose.msra.mxu0 0
    %7167 = vmatprep.subr.bf16.mxu0 0
    %7168 = vmatpush1.bf16.xpose.msra.mxu0 0
    %7169 = vmatprep.subr.bf16.mxu0 0
    %7170 = vmatpush1.bf16.xpose.msra.mxu0 0
    %7171 = vmatprep.subr.bf16.mxu0 0
    %7172 = vmatpush1.bf16.xpose.msra.mxu0 0
    %7173 = vmatprep.subr.bf16.mxu0 0
    %7174 = vmatpush1.bf16.xpose.msra.mxu0 0
    %7175 = vmatprep.subr.bf16.mxu0 0
    %7176 = vmatpush1.bf16.xpose.msra.mxu0 0
    %7177 = vmatprep.subr.bf16.mxu0 0
    %7178 = vmatpush1.bf16.xpose.msra.mxu0 0
    %7179 = vmatprep.subr.bf16.mxu0 0
    %7180 = vmatpush1.bf16.xpose.msra.mxu0 0
    %7181 = vmatprep.mubr.bf16.mxu0 0
    %7182 = vmatmul.mubr.bf16.gmra.mrb[0].mxu0 %v7144
    %v7183 = vpop.f32.mrb[0].mxu0
    %v7184 = vadd.f32 %v295, %v7183
    %v7185 = vpop.f32.mrb[0].mxu0
    %v7186 = vpop.f32.mrb[0].mxu0
    %v7187 = vadd.f32 %v296, %v7186
    %v7188 = vpop.f32.mrb[0].mxu0
    %7189 = vdwg.mxu0
    %v7190 = vsel %vm549, %v7184, -inf
    %7191 = vmax.xlane.f32.xlu0 %v7190
    %v7192 = vpop.xlane.xlu0 %7191
    %v7193 = vsel %vm549, %v7187, -inf
    %7194 = vmax.xlane.f32.xlu0 %v7193
    %v7195 = vpop.xlane.xlu0 %7194
    %v7196 = vsub.f32 %v7184, %v7192
    %v7197 = vsub.f32 %v7187, %v7195
    %v7198 = vmul.f32 %v7196, 1.442695
    %v7199 = vpow.pop %v7198
    %v7200 = vmul.f32 %v7197, 1.442695
    %v7201 = vpow.pop %v7200
    %v7203 = vsel %vm549, %v7199, 0
    %v7206 = vsel %vm549, %v7201, 0
    %7208 = vmatprep.subr.mxu0 0.0
    %7209 = vmatpush1.msra.mxu0 1.0
    %7210 = vmatprep.subr.mxu0 0.0
    %7211 = vmatpush1.msra.mxu0 1.0
    %7212 = vmatprep.subr.mxu0 0.0
    %7213 = vmatpush1.msra.mxu0 0.0
    %7214 = vmatprep.subr.mxu0 0.0
    %7215 = vmatpush1.msra.mxu0 0.0
    %7216 = vmatprep.subr.mxu0 0.0
    %7217 = vmatpush1.msra.mxu0 0.0
    %7218 = vmatprep.subr.mxu0 0.0
    %7219 = vmatpush1.msra.mxu0 0.0
    %7220 = vmatprep.subr.mxu0 0.0
    %7221 = vmatpush1.msra.mxu0 0.0
    %7222 = vmatprep.subr.mxu0 0.0
    %7223 = vmatpush1.msra.mxu0 0.0
    %7224 = vmatprep.subr.mxu0 0.0
    %7225 = vmatpush1.msra.mxu0 0.0
    %7226 = vmatprep.subr.mxu0 0.0
    %7227 = vmatpush1.msra.mxu0 0.0
    %7228 = vmatprep.subr.mxu0 0.0
    %7229 = vmatpush1.msra.mxu0 0.0
    %7230 = vmatprep.subr.mxu0 0.0
    %7231 = vmatpush1.msra.mxu0 0.0
    %7232 = vmatprep.subr.mxu0 0.0
    %7233 = vmatpush1.msra.mxu0 0.0
    %7234 = vmatprep.subr.mxu0 0.0
    %7235 = vmatpush1.msra.mxu0 0.0
    %7236 = vmatprep.subr.mxu0 0.0
    %7237 = vmatpush1.msra.mxu0 0.0
    %7238 = vmatprep.subr.mxu0 0.0
    %7239 = vmatpush1.msra.mxu0 0.0
    %7240 = vmatprep.subr.mxu0 0.0
    %7241 = vmatpush1.msra.mxu0 0.0
    %7242 = vmatprep.subr.mxu0 0.0
    %7243 = vmatpush1.msra.mxu0 0.0
    %7244 = vmatprep.subr.mxu0 0.0
    %7245 = vmatpush1.msra.mxu0 0.0
    %7246 = vmatprep.subr.mxu0 0.0
    %7247 = vmatpush1.msra.mxu0 0.0
    %7248 = vmatprep.subr.mxu0 0.0
    %7249 = vmatpush1.msra.mxu0 0.0
    %7250 = vmatprep.subr.mxu0 0.0
    %7251 = vmatpush1.msra.mxu0 0.0
    %7252 = vmatprep.subr.mxu0 0.0
    %7253 = vmatpush1.msra.mxu0 0.0
    %7254 = vmatprep.subr.mxu0 0.0
    %7255 = vmatpush1.msra.mxu0 0.0
    %7256 = vmatprep.subr.mxu0 0.0
    %7257 = vmatpush1.msra.mxu0 0.0
    %7258 = vmatprep.subr.mxu0 0.0
    %7259 = vmatpush1.msra.mxu0 0.0
    %7260 = vmatprep.subr.mxu0 0.0
    %7261 = vmatpush1.msra.mxu0 0.0
    %7262 = vmatprep.subr.mxu0 0.0
    %7263 = vmatpush1.msra.mxu0 0.0
    %7264 = vmatprep.subr.mxu0 0.0
    %7265 = vmatpush1.msra.mxu0 0.0
    %7266 = vmatprep.subr.mxu0 0.0
    %7267 = vmatpush1.msra.mxu0 0.0
    %7268 = vmatprep.subr.mxu0 0.0
    %7269 = vmatpush1.msra.mxu0 0.0
    %7270 = vmatprep.subr.mxu0 0.0
    %7271 = vmatpush1.msra.mxu0 0.0
    %7272 = vmatprep.mubr.f32.mxu0 0.0
    %7273 = vmatmul.mubr.f32.gmra.mrb[0].mxu0 %v7203
    %v7274 = vpop.f32.mrb[0].mxu0
    %v7275 = vadd.f32 0.0, %v7274
    %v7276 = vpop.f32.mrb[0].mxu0
    %7277 = vmatprep.mubr.f32.mxu0 0.0
    %7278 = vmatmul.mubr.f32.gmra.mrb[0].mxu0 %v7206
    %v7279 = vpop.f32.mrb[0].mxu0
    %v7280 = vadd.f32 0.0, %v7279
    %v7281 = vpop.f32.mrb[0].mxu0
    %7282 = vdwg.mxu0
    %v7283 = vrcp.pop %v7275
    %v7284 = vrcp.pop %v7280
    %7286 = vset.pattern.permute.xlu0 0
    %7287 = vperm.xlu0 %7286, %v7283
    %v7288 = vpop.permute.xlu0 %7287
    %7291 = vset.pattern.permute.xlu0 0
    %7292 = vperm.xlu0 %7291, %v7284
    %v7293 = vpop.permute.xlu0 %7292
    %v7295 = vmul.f32 %v7199, %v7288
    %v7296 = vmul.f32 %v7201, %v7293
    %v7297 = vpack.c.bf16 %v7296, %v7295
    %v7298 = vpack.c.bf16 %v7138, %v7135
    %v7300 = vsel %vm549, %v7297, 0
    %7302 = vmatprep.subr.bf16.mxu0 0
    %7303 = vmatpush1.bf16.msra.mxu0 %v7298
    %7304 = vmatprep.subr.bf16.mxu0 0
    %7305 = vmatpush1.bf16.msra.mxu0 0
    %7306 = vmatprep.subr.bf16.mxu0 0
    %7307 = vmatpush1.bf16.msra.mxu0 0
    %7308 = vmatprep.subr.bf16.mxu0 0
    %7309 = vmatpush1.bf16.msra.mxu0 0
    %7310 = vmatprep.subr.bf16.mxu0 0
    %7311 = vmatpush1.bf16.msra.mxu0 0
    %7312 = vmatprep.subr.bf16.mxu0 0
    %7313 = vmatpush1.bf16.msra.mxu0 0
    %7314 = vmatprep.subr.bf16.mxu0 0
    %7315 = vmatpush1.bf16.msra.mxu0 0
    %7316 = vmatprep.subr.bf16.mxu0 0
    %7317 = vmatpush1.bf16.msra.mxu0 0
    %7318 = vmatprep.subr.bf16.mxu0 0
    %7319 = vmatpush1.bf16.msra.mxu0 0
    %7320 = vmatprep.subr.bf16.mxu0 0
    %7321 = vmatpush1.bf16.msra.mxu0 0
    %7322 = vmatprep.subr.bf16.mxu0 0
    %7323 = vmatpush1.bf16.msra.mxu0 0
    %7324 = vmatprep.subr.bf16.mxu0 0
    %7325 = vmatpush1.bf16.msra.mxu0 0
    %7326 = vmatprep.subr.bf16.mxu0 0
    %7327 = vmatpush1.bf16.msra.mxu0 0
    %7328 = vmatprep.subr.bf16.mxu0 0
    %7329 = vmatpush1.bf16.msra.mxu0 0
    %7330 = vmatprep.subr.bf16.mxu0 0
    %7331 = vmatpush1.bf16.msra.mxu0 0
    %7332 = vmatprep.subr.bf16.mxu0 0
    %7333 = vmatpush1.bf16.msra.mxu0 0
    %7334 = vmatprep.mubr.bf16.mxu0 0
    %7335 = vmatmul.mubr.bf16.gmra.mrb[0].mxu0 %v7300
    %v7336 = vpop.f32.mrb[0].mxu0
    %v7337 = vadd.f32 0.0, %v7336
    %v7338 = vpop.f32.mrb[0].mxu0
    %v7339 = vpop.f32.mrb[0].mxu0
    %v7340 = vadd.f32 0.0, %v7339
    %v7341 = vpop.f32.mrb[0].mxu0
    %7342 = vdwg.mxu0
    %v7343 = vpack.c.bf16 %v7340, %v7337
    %s7344 = scalar_lea.vmem [#allocation17], 128
    %v7345 = vld [vmem:[%s7344] sm:$0xf]
    %v7346 = vld [vmem:[%s7344 + $0x4] sm:$0xf]
    %v7347 = vld [vmem:[%s7344 + $0x8] sm:$0xf]
    %v7348 = vld [vmem:[%s7344 + $0xc] sm:$0xf]
    %s7349 = scalar_lea.vmem [#allocation19], 8
    %v7350 = vld [vmem:[%s7349] sm:$0x1]
    %v7352 = vlaneseq
    %v7353 = vshrl.u32 %v7352, 7
    %v7354 = vsub.s32 0, %v7353
    %v7355 = vrot.slane %v7350, %v7354
    %v7361 = vunpack.c.l.b16 %v7345
    %v7362 = vunpack.c.l.b16 %v7346
    %v7363 = vunpack.c.l.b16 %v7347
    %v7364 = vunpack.c.l.b16 %v7348
    %v7365 = vpack.c.b16 %v7362, %v7361
    %v7366 = vpack.c.b16 %v7364, %v7363
    %v7370 = vsel %vm324, %v7343, 0
    %7372 = vmatprep.subr.bf16.mxu0 0
    %7373 = vmatpush1.bf16.msra.mxu0 %v7365
    %7374 = vmatprep.subr.bf16.mxu0 0
    %7375 = vmatpush1.bf16.msra.mxu0 %v7366
    %7376 = vmatprep.subr.bf16.mxu0 0
    %7377 = vmatpush1.bf16.msra.mxu0 0
    %7378 = vmatprep.subr.bf16.mxu0 0
    %7379 = vmatpush1.bf16.msra.mxu0 0
    %7380 = vmatprep.subr.bf16.mxu0 0
    %7381 = vmatpush1.bf16.msra.mxu0 0
    %7382 = vmatprep.subr.bf16.mxu0 0
    %7383 = vmatpush1.bf16.msra.mxu0 0
    %7384 = vmatprep.subr.bf16.mxu0 0
    %7385 = vmatpush1.bf16.msra.mxu0 0
    %7386 = vmatprep.subr.bf16.mxu0 0
    %7387 = vmatpush1.bf16.msra.mxu0 0
    %7388 = vmatprep.subr.bf16.mxu0 0
    %7389 = vmatpush1.bf16.msra.mxu0 0
    %7390 = vmatprep.subr.bf16.mxu0 0
    %7391 = vmatpush1.bf16.msra.mxu0 0
    %7392 = vmatprep.subr.bf16.mxu0 0
    %7393 = vmatpush1.bf16.msra.mxu0 0
    %7394 = vmatprep.subr.bf16.mxu0 0
    %7395 = vmatpush1.bf16.msra.mxu0 0
    %7396 = vmatprep.subr.bf16.mxu0 0
    %7397 = vmatpush1.bf16.msra.mxu0 0
    %7398 = vmatprep.subr.bf16.mxu0 0
    %7399 = vmatpush1.bf16.msra.mxu0 0
    %7400 = vmatprep.subr.bf16.mxu0 0
    %7401 = vmatpush1.bf16.msra.mxu0 0
    %7402 = vmatprep.subr.bf16.mxu0 0
    %7403 = vmatpush1.bf16.msra.mxu0 0
    %7404 = vmatprep.mubr.bf16.mxu0 0
    %7405 = vmatmul.mubr.bf16.gmra.mrb[0].mxu0 %v7370
    %v7406 = vpop.f32.mrb[0].mxu0
    %v7407 = vadd.f32 %v7355, %v7406
    %v7408 = vpop.f32.mrb[0].mxu0
    %v7409 = vpop.f32.mrb[0].mxu0
    %v7410 = vadd.f32 %v7355, %v7409
    %v7411 = vpop.f32.mrb[0].mxu0
    %7412 = vdwg.mxu0
    %v7413 = vadd.f32 %v6937, %v7407
    %v7414 = vadd.f32 %v6938, %v7410
    %s7415 = scalar_lea.vmem [#allocation20], 8
    %v7416 = vld [vmem:[%s7415] sm:$0x1]
    %s7417 = scalar_lea.vmem [#allocation22], 8
    %v7418 = vld [vmem:[%s7417] sm:$0x1]
    %v7420 = vsel %vm324, %v7413, 0
    %v7423 = vsel %vm324, %v7414, 0
    %7425 = vmatprep.subr.mxu0 0.0
    %7426 = vmatpush1.msra.mxu0 1.0
    %7427 = vmatprep.subr.mxu0 0.0
    %7428 = vmatpush1.msra.mxu0 1.0
    %7429 = vmatprep.subr.mxu0 0.0
    %7430 = vmatpush1.msra.mxu0 1.0
    %7431 = vmatprep.subr.mxu0 0.0
    %7432 = vmatpush1.msra.mxu0 1.0
    %7433 = vmatprep.subr.mxu0 0.0
    %7434 = vmatpush1.msra.mxu0 0.0
    %7435 = vmatprep.subr.mxu0 0.0
    %7436 = vmatpush1.msra.mxu0 0.0
    %7437 = vmatprep.subr.mxu0 0.0
    %7438 = vmatpush1.msra.mxu0 0.0
    %7439 = vmatprep.subr.mxu0 0.0
    %7440 = vmatpush1.msra.mxu0 0.0
    %7441 = vmatprep.subr.mxu0 0.0
    %7442 = vmatpush1.msra.mxu0 0.0
    %7443 = vmatprep.subr.mxu0 0.0
    %7444 = vmatpush1.msra.mxu0 0.0
    %7445 = vmatprep.subr.mxu0 0.0
    %7446 = vmatpush1.msra.mxu0 0.0
    %7447 = vmatprep.subr.mxu0 0.0
    %7448 = vmatpush1.msra.mxu0 0.0
    %7449 = vmatprep.subr.mxu0 0.0
    %7450 = vmatpush1.msra.mxu0 0.0
    %7451 = vmatprep.subr.mxu0 0.0
    %7452 = vmatpush1.msra.mxu0 0.0
    %7453 = vmatprep.subr.mxu0 0.0
    %7454 = vmatpush1.msra.mxu0 0.0
    %7455 = vmatprep.subr.mxu0 0.0
    %7456 = vmatpush1.msra.mxu0 0.0
    %7457 = vmatprep.subr.mxu0 0.0
    %7458 = vmatpush1.msra.mxu0 0.0
    %7459 = vmatprep.subr.mxu0 0.0
    %7460 = vmatpush1.msra.mxu0 0.0
    %7461 = vmatprep.subr.mxu0 0.0
    %7462 = vmatpush1.msra.mxu0 0.0
    %7463 = vmatprep.subr.mxu0 0.0
    %7464 = vmatpush1.msra.mxu0 0.0
    %7465 = vmatprep.subr.mxu0 0.0
    %7466 = vmatpush1.msra.mxu0 0.0
    %7467 = vmatprep.subr.mxu0 0.0
    %7468 = vmatpush1.msra.mxu0 0.0
    %7469 = vmatprep.subr.mxu0 0.0
    %7470 = vmatpush1.msra.mxu0 0.0
    %7471 = vmatprep.subr.mxu0 0.0
    %7472 = vmatpush1.msra.mxu0 0.0
    %7473 = vmatprep.subr.mxu0 0.0
    %7474 = vmatpush1.msra.mxu0 0.0
    %7475 = vmatprep.subr.mxu0 0.0
    %7476 = vmatpush1.msra.mxu0 0.0
    %7477 = vmatprep.subr.mxu0 0.0
    %7478 = vmatpush1.msra.mxu0 0.0
    %7479 = vmatprep.subr.mxu0 0.0
    %7480 = vmatpush1.msra.mxu0 0.0
    %7481 = vmatprep.subr.mxu0 0.0
    %7482 = vmatpush1.msra.mxu0 0.0
    %7483 = vmatprep.subr.mxu0 0.0
    %7484 = vmatpush1.msra.mxu0 0.0
    %7485 = vmatprep.subr.mxu0 0.0
    %7486 = vmatpush1.msra.mxu0 0.0
    %7487 = vmatprep.subr.mxu0 0.0
    %7488 = vmatpush1.msra.mxu0 0.0
    %7489 = vmatprep.mubr.f32.mxu0 0.0
    %7490 = vmatmul.mubr.f32.gmra.mrb[0].mxu0 %v7420
    %v7491 = vpop.f32.mrb[0].mxu0
    %v7492 = vadd.f32 0.0, %v7491
    %v7493 = vpop.f32.mrb[0].mxu0
    %7494 = vmatprep.mubr.f32.mxu0 0.0
    %7495 = vmatmul.mubr.f32.gmra.mrb[0].mxu0 %v7423
    %v7496 = vpop.f32.mrb[0].mxu0
    %v7497 = vadd.f32 0.0, %v7496
    %v7498 = vpop.f32.mrb[0].mxu0
    %7499 = vdwg.mxu0
    %v7500 = vmul.f32 %v7413, %v7413
    %v7501 = vmul.f32 %v7414, %v7414
    %v7503 = vsel %vm324, %v7500, 0
    %v7506 = vsel %vm324, %v7501, 0
    %7508 = vmatprep.subr.mxu0 0.0
    %7509 = vmatpush1.msra.mxu0 1.0
    %7510 = vmatprep.subr.mxu0 0.0
    %7511 = vmatpush1.msra.mxu0 1.0
    %7512 = vmatprep.subr.mxu0 0.0
    %7513 = vmatpush1.msra.mxu0 1.0
    %7514 = vmatprep.subr.mxu0 0.0
    %7515 = vmatpush1.msra.mxu0 1.0
    %7516 = vmatprep.subr.mxu0 0.0
    %7517 = vmatpush1.msra.mxu0 0.0
    %7518 = vmatprep.subr.mxu0 0.0
    %7519 = vmatpush1.msra.mxu0 0.0
    %7520 = vmatprep.subr.mxu0 0.0
    %7521 = vmatpush1.msra.mxu0 0.0
    %7522 = vmatprep.subr.mxu0 0.0
    %7523 = vmatpush1.msra.mxu0 0.0
    %7524 = vmatprep.subr.mxu0 0.0
    %7525 = vmatpush1.msra.mxu0 0.0
    %7526 = vmatprep.subr.mxu0 0.0
    %7527 = vmatpush1.msra.mxu0 0.0
    %7528 = vmatprep.subr.mxu0 0.0
    %7529 = vmatpush1.msra.mxu0 0.0
    %7530 = vmatprep.subr.mxu0 0.0
    %7531 = vmatpush1.msra.mxu0 0.0
    %7532 = vmatprep.subr.mxu0 0.0
    %7533 = vmatpush1.msra.mxu0 0.0
    %7534 = vmatprep.subr.mxu0 0.0
    %7535 = vmatpush1.msra.mxu0 0.0
    %7536 = vmatprep.subr.mxu0 0.0
    %7537 = vmatpush1.msra.mxu0 0.0
    %7538 = vmatprep.subr.mxu0 0.0
    %7539 = vmatpush1.msra.mxu0 0.0
    %7540 = vmatprep.subr.mxu0 0.0
    %7541 = vmatpush1.msra.mxu0 0.0
    %7542 = vmatprep.subr.mxu0 0.0
    %7543 = vmatpush1.msra.mxu0 0.0
    %7544 = vmatprep.subr.mxu0 0.0
    %7545 = vmatpush1.msra.mxu0 0.0
    %7546 = vmatprep.subr.mxu0 0.0
    %7547 = vmatpush1.msra.mxu0 0.0
    %7548 = vmatprep.subr.mxu0 0.0
    %7549 = vmatpush1.msra.mxu0 0.0
    %7550 = vmatprep.subr.mxu0 0.0
    %7551 = vmatpush1.msra.mxu0 0.0
    %7552 = vmatprep.subr.mxu0 0.0
    %7553 = vmatpush1.msra.mxu0 0.0
    %7554 = vmatprep.subr.mxu0 0.0
    %7555 = vmatpush1.msra.mxu0 0.0
    %7556 = vmatprep.subr.mxu0 0.0
    %7557 = vmatpush1.msra.mxu0 0.0
    %7558 = vmatprep.subr.mxu0 0.0
    %7559 = vmatpush1.msra.mxu0 0.0
    %7560 = vmatprep.subr.mxu0 0.0
    %7561 = vmatpush1.msra.mxu0 0.0
    %7562 = vmatprep.subr.mxu0 0.0
    %7563 = vmatpush1.msra.mxu0 0.0
    %7564 = vmatprep.subr.mxu0 0.0
    %7565 = vmatpush1.msra.mxu0 0.0
    %7566 = vmatprep.subr.mxu0 0.0
    %7567 = vmatpush1.msra.mxu0 0.0
    %7568 = vmatprep.subr.mxu0 0.0
    %7569 = vmatpush1.msra.mxu0 0.0
    %7570 = vmatprep.subr.mxu0 0.0
    %7571 = vmatpush1.msra.mxu0 0.0
    %7572 = vmatprep.mubr.f32.mxu0 0.0
    %7573 = vmatmul.mubr.f32.gmra.mrb[0].mxu0 %v7503
    %v7574 = vpop.f32.mrb[0].mxu0
    %v7575 = vadd.f32 0.0, %v7574
    %v7576 = vpop.f32.mrb[0].mxu0
    %7577 = vmatprep.mubr.f32.mxu0 0.0
    %7578 = vmatmul.mubr.f32.gmra.mrb[0].mxu0 %v7506
    %v7579 = vpop.f32.mrb[0].mxu0
    %v7580 = vadd.f32 0.0, %v7579
    %v7581 = vpop.f32.mrb[0].mxu0
    %7582 = vdwg.mxu0
    %v7583 = vmul.f32 %v7492, 0.03125
    %v7584 = vmul.f32 %v7497, 0.03125
    %v7585 = vmul.f32 %v7575, 0.03125
    %v7586 = vmul.f32 %v7580, 0.03125
    %v7587 = vmul.f32 %v7583, %v7583
    %v7588 = vmul.f32 %v7584, %v7584
    %v7589 = vsub.f32 %v7585, %v7587
    %v7590 = vsub.f32 %v7586, %v7588
    %v7591 = vmax.f32 %v7589, 0.0
    %v7592 = vmax.f32 %v7590, 0.0
    %7594 = vset.pattern.permute.xlu0 0
    %7595 = vperm.xlu0 %7594, %v7583
    %v7596 = vpop.permute.xlu0 %7595
    %7599 = vset.pattern.permute.xlu0 0
    %7600 = vperm.xlu0 %7599, %v7584
    %v7601 = vpop.permute.xlu0 %7600
    %v7603 = vsub.f32 %v7413, %v7596
    %v7604 = vsub.f32 %v7414, %v7601
    %v7605 = vadd.f32 %v7591, 1e-05
    %v7606 = vadd.f32 %v7592, 1e-05
    %v7607 = vrsqrt.pop %v7605
    %v7608 = vrsqrt.pop %v7606
    %7610 = vset.pattern.permute.xlu0 0
    %7611 = vperm.xlu0 %7610, %v7607
    %v7612 = vpop.permute.xlu0 %7611
    %7615 = vset.pattern.permute.xlu0 0
    %7616 = vperm.xlu0 %7615, %v7608
    %v7617 = vpop.permute.xlu0 %7616
    %v7619 = vmul.f32 %v7603, %v7612
    %v7620 = vmul.f32 %v7604, %v7617
    %v7622 = vlaneseq
    %v7623 = vshrl.u32 %v7622, 7
    %v7624 = vsub.s32 0, %v7623
    %v7625 = vrot.slane %v7416, %v7624
    %v7627 = vmul.f32 %v7619, %v7625
    %v7628 = vmul.f32 %v7620, %v7625
    %v7630 = vlaneseq
    %v7631 = vshrl.u32 %v7630, 7
    %v7632 = vsub.s32 0, %v7631
    %v7633 = vrot.slane %v7418, %v7632
    %v7635 = vadd.f32 %v7627, %v7633
    %v7636 = vadd.f32 %v7628, %v7633
    %s7637 = scalar_lea.vmem [#allocation25], 2
    %v7638 = vld [vmem:[%s7637] sm:$0x1]
    %s7639 = scalar_lea.vmem [#allocation26], 2
    %v7640 = vld [vmem:[%s7639] sm:$0x1]
    %v7642 = vsel %vm324, %v7635, 0
    %v7645 = vsel %vm324, %v7636, 0
    %7647 = vmatprep.subr.mxu0 0.0
    %7648 = vmatpush1.msra.mxu0 1.0
    %7649 = vmatprep.subr.mxu0 0.0
    %7650 = vmatpush1.msra.mxu0 1.0
    %7651 = vmatprep.subr.mxu0 0.0
    %7652 = vmatpush1.msra.mxu0 1.0
    %7653 = vmatprep.subr.mxu0 0.0
    %7654 = vmatpush1.msra.mxu0 1.0
    %7655 = vmatprep.subr.mxu0 0.0
    %7656 = vmatpush1.msra.mxu0 0.0
    %7657 = vmatprep.subr.mxu0 0.0
    %7658 = vmatpush1.msra.mxu0 0.0
    %7659 = vmatprep.subr.mxu0 0.0
    %7660 = vmatpush1.msra.mxu0 0.0
    %7661 = vmatprep.subr.mxu0 0.0
    %7662 = vmatpush1.msra.mxu0 0.0
    %7663 = vmatprep.subr.mxu0 0.0
    %7664 = vmatpush1.msra.mxu0 0.0
    %7665 = vmatprep.subr.mxu0 0.0
    %7666 = vmatpush1.msra.mxu0 0.0
    %7667 = vmatprep.subr.mxu0 0.0
    %7668 = vmatpush1.msra.mxu0 0.0
    %7669 = vmatprep.subr.mxu0 0.0
    %7670 = vmatpush1.msra.mxu0 0.0
    %7671 = vmatprep.subr.mxu0 0.0
    %7672 = vmatpush1.msra.mxu0 0.0
    %7673 = vmatprep.subr.mxu0 0.0
    %7674 = vmatpush1.msra.mxu0 0.0
    %7675 = vmatprep.subr.mxu0 0.0
    %7676 = vmatpush1.msra.mxu0 0.0
    %7677 = vmatprep.subr.mxu0 0.0
    %7678 = vmatpush1.msra.mxu0 0.0
    %7679 = vmatprep.subr.mxu0 0.0
    %7680 = vmatpush1.msra.mxu0 0.0
    %7681 = vmatprep.subr.mxu0 0.0
    %7682 = vmatpush1.msra.mxu0 0.0
    %7683 = vmatprep.subr.mxu0 0.0
    %7684 = vmatpush1.msra.mxu0 0.0
    %7685 = vmatprep.subr.mxu0 0.0
    %7686 = vmatpush1.msra.mxu0 0.0
    %7687 = vmatprep.subr.mxu0 0.0
    %7688 = vmatpush1.msra.mxu0 0.0
    %7689 = vmatprep.subr.mxu0 0.0
    %7690 = vmatpush1.msra.mxu0 0.0
    %7691 = vmatprep.subr.mxu0 0.0
    %7692 = vmatpush1.msra.mxu0 0.0
    %7693 = vmatprep.subr.mxu0 0.0
    %7694 = vmatpush1.msra.mxu0 0.0
    %7695 = vmatprep.subr.mxu0 0.0
    %7696 = vmatpush1.msra.mxu0 0.0
    %7697 = vmatprep.subr.mxu0 0.0
    %7698 = vmatpush1.msra.mxu0 0.0
    %7699 = vmatprep.subr.mxu0 0.0
    %7700 = vmatpush1.msra.mxu0 0.0
    %7701 = vmatprep.subr.mxu0 0.0
    %7702 = vmatpush1.msra.mxu0 0.0
    %7703 = vmatprep.subr.mxu0 0.0
    %7704 = vmatpush1.msra.mxu0 0.0
    %7705 = vmatprep.subr.mxu0 0.0
    %7706 = vmatpush1.msra.mxu0 0.0
    %7707 = vmatprep.subr.mxu0 0.0
    %7708 = vmatpush1.msra.mxu0 0.0
    %7709 = vmatprep.subr.mxu0 0.0
    %7710 = vmatpush1.msra.mxu0 0.0
    %7711 = vmatprep.mubr.f32.mxu0 0.0
    %7712 = vmatmul.mubr.f32.gmra.mrb[0].mxu0 %v7642
    %v7713 = vpop.f32.mrb[0].mxu0
    %v7714 = vadd.f32 0.0, %v7713
    %v7715 = vpop.f32.mrb[0].mxu0
    %7716 = vmatprep.mubr.f32.mxu0 0.0
    %7717 = vmatmul.mubr.f32.gmra.mrb[0].mxu0 %v7645
    %v7718 = vpop.f32.mrb[0].mxu0
    %v7719 = vadd.f32 0.0, %v7718
    %v7720 = vpop.f32.mrb[0].mxu0
    %7721 = vdwg.mxu0
    %v7722 = vmul.f32 %v7635, %v7635
    %v7723 = vmul.f32 %v7636, %v7636
    %v7725 = vsel %vm324, %v7722, 0
    %v7728 = vsel %vm324, %v7723, 0
    %7730 = vmatprep.subr.mxu0 0.0
    %7731 = vmatpush1.msra.mxu0 1.0
    %7732 = vmatprep.subr.mxu0 0.0
    %7733 = vmatpush1.msra.mxu0 1.0
    %7734 = vmatprep.subr.mxu0 0.0
    %7735 = vmatpush1.msra.mxu0 1.0
    %7736 = vmatprep.subr.mxu0 0.0
    %7737 = vmatpush1.msra.mxu0 1.0
    %7738 = vmatprep.subr.mxu0 0.0
    %7739 = vmatpush1.msra.mxu0 0.0
    %7740 = vmatprep.subr.mxu0 0.0
    %7741 = vmatpush1.msra.mxu0 0.0
    %7742 = vmatprep.subr.mxu0 0.0
    %7743 = vmatpush1.msra.mxu0 0.0
    %7744 = vmatprep.subr.mxu0 0.0
    %7745 = vmatpush1.msra.mxu0 0.0
    %7746 = vmatprep.subr.mxu0 0.0
    %7747 = vmatpush1.msra.mxu0 0.0
    %7748 = vmatprep.subr.mxu0 0.0
    %7749 = vmatpush1.msra.mxu0 0.0
    %7750 = vmatprep.subr.mxu0 0.0
    %7751 = vmatpush1.msra.mxu0 0.0
    %7752 = vmatprep.subr.mxu0 0.0
    %7753 = vmatpush1.msra.mxu0 0.0
    %7754 = vmatprep.subr.mxu0 0.0
    %7755 = vmatpush1.msra.mxu0 0.0
    %7756 = vmatprep.subr.mxu0 0.0
    %7757 = vmatpush1.msra.mxu0 0.0
    %7758 = vmatprep.subr.mxu0 0.0
    %7759 = vmatpush1.msra.mxu0 0.0
    %7760 = vmatprep.subr.mxu0 0.0
    %7761 = vmatpush1.msra.mxu0 0.0
    %7762 = vmatprep.subr.mxu0 0.0
    %7763 = vmatpush1.msra.mxu0 0.0
    %7764 = vmatprep.subr.mxu0 0.0
    %7765 = vmatpush1.msra.mxu0 0.0
    %7766 = vmatprep.subr.mxu0 0.0
    %7767 = vmatpush1.msra.mxu0 0.0
    %7768 = vmatprep.subr.mxu0 0.0
    %7769 = vmatpush1.msra.mxu0 0.0
    %7770 = vmatprep.subr.mxu0 0.0
    %7771 = vmatpush1.msra.mxu0 0.0
    %7772 = vmatprep.subr.mxu0 0.0
    %7773 = vmatpush1.msra.mxu0 0.0
    %7774 = vmatprep.subr.mxu0 0.0
    %7775 = vmatpush1.msra.mxu0 0.0
    %7776 = vmatprep.subr.mxu0 0.0
    %7777 = vmatpush1.msra.mxu0 0.0
    %7778 = vmatprep.subr.mxu0 0.0
    %7779 = vmatpush1.msra.mxu0 0.0
    %7780 = vmatprep.subr.mxu0 0.0
    %7781 = vmatpush1.msra.mxu0 0.0
    %7782 = vmatprep.subr.mxu0 0.0
    %7783 = vmatpush1.msra.mxu0 0.0
    %7784 = vmatprep.subr.mxu0 0.0
    %7785 = vmatpush1.msra.mxu0 0.0
    %7786 = vmatprep.subr.mxu0 0.0
    %7787 = vmatpush1.msra.mxu0 0.0
    %7788 = vmatprep.subr.mxu0 0.0
    %7789 = vmatpush1.msra.mxu0 0.0
    %7790 = vmatprep.subr.mxu0 0.0
    %7791 = vmatpush1.msra.mxu0 0.0
    %7792 = vmatprep.subr.mxu0 0.0
    %7793 = vmatpush1.msra.mxu0 0.0
    %7794 = vmatprep.mubr.f32.mxu0 0.0
    %7795 = vmatmul.mubr.f32.gmra.mrb[0].mxu0 %v7725
    %v7796 = vpop.f32.mrb[0].mxu0
    %v7797 = vadd.f32 0.0, %v7796
    %v7798 = vpop.f32.mrb[0].mxu0
    %7799 = vmatprep.mubr.f32.mxu0 0.0
    %7800 = vmatmul.mubr.f32.gmra.mrb[0].mxu0 %v7728
    %v7801 = vpop.f32.mrb[0].mxu0
    %v7802 = vadd.f32 0.0, %v7801
    %v7803 = vpop.f32.mrb[0].mxu0
    %7804 = vdwg.mxu0
    %v7805 = vmul.f32 %v7714, 0.03125
    %v7806 = vmul.f32 %v7719, 0.03125
    %v7807 = vmul.f32 %v7797, 0.03125
    %v7808 = vmul.f32 %v7802, 0.03125
    %v7809 = vmul.f32 %v7805, %v7805
    %v7810 = vmul.f32 %v7806, %v7806
    %v7811 = vsub.f32 %v7807, %v7809
    %v7812 = vsub.f32 %v7808, %v7810
    %v7813 = vmax.f32 %v7811, 0.0
    %v7814 = vmax.f32 %v7812, 0.0
    %7816 = vset.pattern.permute.xlu0 0
    %7817 = vperm.xlu0 %7816, %v7805
    %v7818 = vpop.permute.xlu0 %7817
    %7821 = vset.pattern.permute.xlu0 0
    %7822 = vperm.xlu0 %7821, %v7806
    %v7823 = vpop.permute.xlu0 %7822
    %v7825 = vsub.f32 %v7635, %v7818
    %v7826 = vsub.f32 %v7636, %v7823
    %v7827 = vadd.f32 %v7813, 1e-05
    %v7828 = vadd.f32 %v7814, 1e-05
    %v7829 = vrsqrt.pop %v7827
    %v7830 = vrsqrt.pop %v7828
    %7832 = vset.pattern.permute.xlu0 0
    %7833 = vperm.xlu0 %7832, %v7829
    %v7834 = vpop.permute.xlu0 %7833
    %7837 = vset.pattern.permute.xlu0 0
    %7838 = vperm.xlu0 %7837, %v7830
    %v7839 = vpop.permute.xlu0 %7838
    %v7841 = vmul.f32 %v7825, %v7834
    %v7842 = vmul.f32 %v7826, %v7839
    %v7844 = vlaneseq
    %v7845 = vshrl.u32 %v7844, 7
    %v7846 = vsub.s32 0, %v7845
    %v7847 = vrot.slane %v7638, %v7846
    %v7849 = vmul.f32 %v7841, %v7847
    %v7850 = vmul.f32 %v7842, %v7847
    %v7852 = vlaneseq
    %v7853 = vshrl.u32 %v7852, 7
    %v7854 = vsub.s32 0, %v7853
    %v7855 = vrot.slane %v7640, %v7854
    %v7857 = vadd.f32 %v7849, %v7855
    %v7858 = vadd.f32 %v7850, %v7855
    %v7859 = vpack.c.bf16 %v7858, %v7857
    %v7860 = vld [vmem:[%s17 + $0x20] sm:$0xf]
    %v7861 = vld [vmem:[%s17 + $0x24] sm:$0xf]
    %v7862 = vld [vmem:[%s17 + $0x28] sm:$0xf]
    %v7863 = vld [vmem:[%s17 + $0x2c] sm:$0xf]
    %v7868 = vunpack.c.l.b16 %v7860
    %v7869 = vunpack.c.l.b16 %v7861
    %v7870 = vunpack.c.l.b16 %v7862
    %v7871 = vunpack.c.l.b16 %v7863
    %v7872 = vpack.c.b16 %v7869, %v7868
    %v7873 = vpack.c.b16 %v7871, %v7870
    %v7877 = vsel %vm324, %v7859, 0
    %7879 = vmatprep.subr.bf16.mxu0 0
    %7880 = vmatpush1.bf16.msra.mxu0 %v7872
    %7881 = vmatprep.subr.bf16.mxu0 0
    %7882 = vmatpush1.bf16.msra.mxu0 %v7873
    %7883 = vmatprep.subr.bf16.mxu0 0
    %7884 = vmatpush1.bf16.msra.mxu0 0
    %7885 = vmatprep.subr.bf16.mxu0 0
    %7886 = vmatpush1.bf16.msra.mxu0 0
    %7887 = vmatprep.subr.bf16.mxu0 0
    %7888 = vmatpush1.bf16.msra.mxu0 0
    %7889 = vmatprep.subr.bf16.mxu0 0
    %7890 = vmatpush1.bf16.msra.mxu0 0
    %7891 = vmatprep.subr.bf16.mxu0 0
    %7892 = vmatpush1.bf16.msra.mxu0 0
    %7893 = vmatprep.subr.bf16.mxu0 0
    %7894 = vmatpush1.bf16.msra.mxu0 0
    %7895 = vmatprep.subr.bf16.mxu0 0
    %7896 = vmatpush1.bf16.msra.mxu0 0
    %7897 = vmatprep.subr.bf16.mxu0 0
    %7898 = vmatpush1.bf16.msra.mxu0 0
    %7899 = vmatprep.subr.bf16.mxu0 0
    %7900 = vmatpush1.bf16.msra.mxu0 0
    %7901 = vmatprep.subr.bf16.mxu0 0
    %7902 = vmatpush1.bf16.msra.mxu0 0
    %7903 = vmatprep.subr.bf16.mxu0 0
    %7904 = vmatpush1.bf16.msra.mxu0 0
    %7905 = vmatprep.subr.bf16.mxu0 0
    %7906 = vmatpush1.bf16.msra.mxu0 0
    %7907 = vmatprep.subr.bf16.mxu0 0
    %7908 = vmatpush1.bf16.msra.mxu0 0
    %7909 = vmatprep.subr.bf16.mxu0 0
    %7910 = vmatpush1.bf16.msra.mxu0 0
    %7911 = vmatprep.mubr.bf16.mxu0 0
    %7912 = vmatmul.mubr.bf16.gmra.mrb[0].mxu0 %v7877
    %v7913 = vpop.f32.mrb[0].mxu0
    %v7914 = vadd.f32 0.0, %v7913
    %v7915 = vpop.f32.mrb[0].mxu0
    %v7916 = vpop.f32.mrb[0].mxu0
    %v7917 = vadd.f32 0.0, %v7916
    %v7918 = vpop.f32.mrb[0].mxu0
    %7919 = vdwg.mxu0
    %v7920 = vadd.f32 %v5370, %v7914
    %v7921 = vadd.f32 %v5373, %v7917
    %v7922 = vld [vmem:[%s18] sm:$0x1]
    %v7924 = vlaneseq
    %v7925 = vshrl.u32 %v7924, 7
    %v7926 = vsub.s32 0, %v7925
    %v7927 = vrot.slane %v7922, %v7926
    %v7929 = vadd.f32 %v7920, %v7927
    %v7930 = vadd.f32 %v7921, %v7927
    %vm7931 = vcmp.gt.f32.partialorder %v7929, 0.0
    %vm7932 = vcmp.gt.f32.partialorder %v7930, 0.0
    %v7933 = vmin.f32 %v7929, 0.0
    %v7934 = vmin.f32 %v7930, 0.0
    %v7935 = vmul.f32 %v7933, 1.442695
    %v7936 = vpow.pop %v7935
    %v7937 = vmul.f32 %v7934, 1.442695
    %v7938 = vpow.pop %v7937
    %v7939 = vsub.f32 %v7936, 1.0
    %v7940 = vsub.f32 %v7938, 1.0
    %v7941 = vsel %vm7931, %v7929, %v7939
    %v7942 = vsel %vm7932, %v7930, %v7940
    %v7943 = vpack.c.bf16 %v7942, %v7941
    %v7944 = vld [vmem:[%s19] sm:$0xf]
    %v7945 = vld [vmem:[%s19 + $0x4] sm:$0xf]
    %v7946 = vld [vmem:[%s19 + $0x8] sm:$0xf]
    %v7947 = vld [vmem:[%s19 + $0xc] sm:$0xf]
    %v7948 = vld [vmem:[%s19 + $0x10] sm:$0xf]
    %v7949 = vld [vmem:[%s19 + $0x14] sm:$0xf]
    %v7950 = vld [vmem:[%s19 + $0x18] sm:$0xf]
    %v7951 = vld [vmem:[%s19 + $0x1c] sm:$0xf]
    %v7952 = vld [vmem:[%s19 + $0x20] sm:$0xf]
    %v7953 = vld [vmem:[%s19 + $0x24] sm:$0xf]
    %v7954 = vld [vmem:[%s19 + $0x28] sm:$0xf]
    %v7955 = vld [vmem:[%s19 + $0x2c] sm:$0xf]
    %v7956 = vld [vmem:[%s19 + $0x30] sm:$0xf]
    %v7957 = vld [vmem:[%s19 + $0x34] sm:$0xf]
    %v7958 = vld [vmem:[%s19 + $0x38] sm:$0xf]
    %v7959 = vld [vmem:[%s19 + $0x3c] sm:$0xf]
    %v7960 = vld [vmem:[%s20] sm:$0x1]
    %v7962 = vlaneseq
    %v7963 = vshrl.u32 %v7962, 7
    %v7964 = vsub.s32 0, %v7963
    %v7965 = vrot.slane %v7960, %v7964
    %v7983 = vunpack.c.l.b16 %v7944
    %v7984 = vunpack.c.l.b16 %v7945
    %v7985 = vunpack.c.l.b16 %v7946
    %v7986 = vunpack.c.l.b16 %v7947
    %v7987 = vunpack.c.l.b16 %v7948
    %v7988 = vunpack.c.l.b16 %v7949
    %v7989 = vunpack.c.l.b16 %v7950
    %v7990 = vunpack.c.l.b16 %v7951
    %v7991 = vunpack.c.l.b16 %v7952
    %v7992 = vunpack.c.l.b16 %v7953
    %v7993 = vunpack.c.l.b16 %v7954
    %v7994 = vunpack.c.l.b16 %v7955
    %v7995 = vunpack.c.l.b16 %v7956
    %v7996 = vunpack.c.l.b16 %v7957
    %v7997 = vunpack.c.l.b16 %v7958
    %v7998 = vunpack.c.l.b16 %v7959
    %v7999 = vpack.c.b16 %v7984, %v7983
    %v8000 = vpack.c.b16 %v7986, %v7985
    %v8001 = vpack.c.b16 %v7988, %v7987
    %v8002 = vpack.c.b16 %v7990, %v7989
    %v8003 = vpack.c.b16 %v7992, %v7991
    %v8004 = vpack.c.b16 %v7994, %v7993
    %v8005 = vpack.c.b16 %v7996, %v7995
    %v8006 = vpack.c.b16 %v7998, %v7997
    %8015 = vmatprep.subr.bf16.mxu0 0
    %8016 = vmatpush1.bf16.msra.mxu0 %v7999
    %8017 = vmatprep.subr.bf16.mxu0 0
    %8018 = vmatpush1.bf16.msra.mxu0 %v8000
    %8019 = vmatprep.subr.bf16.mxu0 0
    %8020 = vmatpush1.bf16.msra.mxu0 %v8001
    %8021 = vmatprep.subr.bf16.mxu0 0
    %8022 = vmatpush1.bf16.msra.mxu0 %v8002
    %8023 = vmatprep.subr.bf16.mxu0 0
    %8024 = vmatpush1.bf16.msra.mxu0 %v8003
    %8025 = vmatprep.subr.bf16.mxu0 0
    %8026 = vmatpush1.bf16.msra.mxu0 %v8004
    %8027 = vmatprep.subr.bf16.mxu0 0
    %8028 = vmatpush1.bf16.msra.mxu0 %v8005
    %8029 = vmatprep.subr.bf16.mxu0 0
    %8030 = vmatpush1.bf16.msra.mxu0 %v8006
    %8031 = vmatprep.subr.bf16.mxu0 0
    %8032 = vmatpush1.bf16.msra.mxu0 0
    %8033 = vmatprep.subr.bf16.mxu0 0
    %8034 = vmatpush1.bf16.msra.mxu0 0
    %8035 = vmatprep.subr.bf16.mxu0 0
    %8036 = vmatpush1.bf16.msra.mxu0 0
    %8037 = vmatprep.subr.bf16.mxu0 0
    %8038 = vmatpush1.bf16.msra.mxu0 0
    %8039 = vmatprep.subr.bf16.mxu0 0
    %8040 = vmatpush1.bf16.msra.mxu0 0
    %8041 = vmatprep.subr.bf16.mxu0 0
    %8042 = vmatpush1.bf16.msra.mxu0 0
    %8043 = vmatprep.subr.bf16.mxu0 0
    %8044 = vmatpush1.bf16.msra.mxu0 0
    %8045 = vmatprep.subr.bf16.mxu0 0
    %8046 = vmatpush1.bf16.msra.mxu0 0
    %8047 = vmatprep.mubr.bf16.mxu0 0
    %8048 = vmatmul.mubr.bf16.gmra.mrb[0].mxu0 %v7943
    %v8049 = vpop.f32.mrb[0].mxu0
    %v8050 = vadd.f32 %v7965, %v8049
    %v8051 = vpop.f32.mrb[0].mxu0
    %v8052 = vpop.f32.mrb[0].mxu0
    %v8053 = vadd.f32 %v7965, %v8052
    %v8054 = vpop.f32.mrb[0].mxu0
    %8055 = vdwg.mxu0
    %v8056 = vld [vmem:[%s21] sm:$0x1]
    %v8057 = vld [vmem:[%s22] sm:$0x1]
    %v8059 = vsel %vm324, %v8050, 0
    %v8062 = vsel %vm324, %v8053, 0
    %8064 = vmatprep.subr.mxu0 0.0
    %8065 = vmatpush1.msra.mxu0 1.0
    %8066 = vmatprep.subr.mxu0 0.0
    %8067 = vmatpush1.msra.mxu0 1.0
    %8068 = vmatprep.subr.mxu0 0.0
    %8069 = vmatpush1.msra.mxu0 1.0
    %8070 = vmatprep.subr.mxu0 0.0
    %8071 = vmatpush1.msra.mxu0 1.0
    %8072 = vmatprep.subr.mxu0 0.0
    %8073 = vmatpush1.msra.mxu0 0.0
    %8074 = vmatprep.subr.mxu0 0.0
    %8075 = vmatpush1.msra.mxu0 0.0
    %8076 = vmatprep.subr.mxu0 0.0
    %8077 = vmatpush1.msra.mxu0 0.0
    %8078 = vmatprep.subr.mxu0 0.0
    %8079 = vmatpush1.msra.mxu0 0.0
    %8080 = vmatprep.subr.mxu0 0.0
    %8081 = vmatpush1.msra.mxu0 0.0
    %8082 = vmatprep.subr.mxu0 0.0
    %8083 = vmatpush1.msra.mxu0 0.0
    %8084 = vmatprep.subr.mxu0 0.0
    %8085 = vmatpush1.msra.mxu0 0.0
    %8086 = vmatprep.subr.mxu0 0.0
    %8087 = vmatpush1.msra.mxu0 0.0
    %8088 = vmatprep.subr.mxu0 0.0
    %8089 = vmatpush1.msra.mxu0 0.0
    %8090 = vmatprep.subr.mxu0 0.0
    %8091 = vmatpush1.msra.mxu0 0.0
    %8092 = vmatprep.subr.mxu0 0.0
    %8093 = vmatpush1.msra.mxu0 0.0
    %8094 = vmatprep.subr.mxu0 0.0
    %8095 = vmatpush1.msra.mxu0 0.0
    %8096 = vmatprep.subr.mxu0 0.0
    %8097 = vmatpush1.msra.mxu0 0.0
    %8098 = vmatprep.subr.mxu0 0.0
    %8099 = vmatpush1.msra.mxu0 0.0
    %8100 = vmatprep.subr.mxu0 0.0
    %8101 = vmatpush1.msra.mxu0 0.0
    %8102 = vmatprep.subr.mxu0 0.0
    %8103 = vmatpush1.msra.mxu0 0.0
    %8104 = vmatprep.subr.mxu0 0.0
    %8105 = vmatpush1.msra.mxu0 0.0
    %8106 = vmatprep.subr.mxu0 0.0
    %8107 = vmatpush1.msra.mxu0 0.0
    %8108 = vmatprep.subr.mxu0 0.0
    %8109 = vmatpush1.msra.mxu0 0.0
    %8110 = vmatprep.subr.mxu0 0.0
    %8111 = vmatpush1.msra.mxu0 0.0
    %8112 = vmatprep.subr.mxu0 0.0
    %8113 = vmatpush1.msra.mxu0 0.0
    %8114 = vmatprep.subr.mxu0 0.0
    %8115 = vmatpush1.msra.mxu0 0.0
    %8116 = vmatprep.subr.mxu0 0.0
    %8117 = vmatpush1.msra.mxu0 0.0
    %8118 = vmatprep.subr.mxu0 0.0
    %8119 = vmatpush1.msra.mxu0 0.0
    %8120 = vmatprep.subr.mxu0 0.0
    %8121 = vmatpush1.msra.mxu0 0.0
    %8122 = vmatprep.subr.mxu0 0.0
    %8123 = vmatpush1.msra.mxu0 0.0
    %8124 = vmatprep.subr.mxu0 0.0
    %8125 = vmatpush1.msra.mxu0 0.0
    %8126 = vmatprep.subr.mxu0 0.0
    %8127 = vmatpush1.msra.mxu0 0.0
    %8128 = vmatprep.mubr.f32.mxu0 0.0
    %8129 = vmatmul.mubr.f32.gmra.mrb[0].mxu0 %v8059
    %v8130 = vpop.f32.mrb[0].mxu0
    %v8131 = vadd.f32 0.0, %v8130
    %v8132 = vpop.f32.mrb[0].mxu0
    %8133 = vmatprep.mubr.f32.mxu0 0.0
    %8134 = vmatmul.mubr.f32.gmra.mrb[0].mxu0 %v8062
    %v8135 = vpop.f32.mrb[0].mxu0
    %v8136 = vadd.f32 0.0, %v8135
    %v8137 = vpop.f32.mrb[0].mxu0
    %8138 = vdwg.mxu0
    %v8139 = vmul.f32 %v8050, %v8050
    %v8140 = vmul.f32 %v8053, %v8053
    %v8142 = vsel %vm324, %v8139, 0
    %v8145 = vsel %vm324, %v8140, 0
    %8147 = vmatprep.subr.mxu0 0.0
    %8148 = vmatpush1.msra.mxu0 1.0
    %8149 = vmatprep.subr.mxu0 0.0
    %8150 = vmatpush1.msra.mxu0 1.0
    %8151 = vmatprep.subr.mxu0 0.0
    %8152 = vmatpush1.msra.mxu0 1.0
    %8153 = vmatprep.subr.mxu0 0.0
    %8154 = vmatpush1.msra.mxu0 1.0
    %8155 = vmatprep.subr.mxu0 0.0
    %8156 = vmatpush1.msra.mxu0 0.0
    %8157 = vmatprep.subr.mxu0 0.0
    %8158 = vmatpush1.msra.mxu0 0.0
    %8159 = vmatprep.subr.mxu0 0.0
    %8160 = vmatpush1.msra.mxu0 0.0
    %8161 = vmatprep.subr.mxu0 0.0
    %8162 = vmatpush1.msra.mxu0 0.0
    %8163 = vmatprep.subr.mxu0 0.0
    %8164 = vmatpush1.msra.mxu0 0.0
    %8165 = vmatprep.subr.mxu0 0.0
    %8166 = vmatpush1.msra.mxu0 0.0
    %8167 = vmatprep.subr.mxu0 0.0
    %8168 = vmatpush1.msra.mxu0 0.0
    %8169 = vmatprep.subr.mxu0 0.0
    %8170 = vmatpush1.msra.mxu0 0.0
    %8171 = vmatprep.subr.mxu0 0.0
    %8172 = vmatpush1.msra.mxu0 0.0
    %8173 = vmatprep.subr.mxu0 0.0
    %8174 = vmatpush1.msra.mxu0 0.0
    %8175 = vmatprep.subr.mxu0 0.0
    %8176 = vmatpush1.msra.mxu0 0.0
    %8177 = vmatprep.subr.mxu0 0.0
    %8178 = vmatpush1.msra.mxu0 0.0
    %8179 = vmatprep.subr.mxu0 0.0
    %8180 = vmatpush1.msra.mxu0 0.0
    %8181 = vmatprep.subr.mxu0 0.0
    %8182 = vmatpush1.msra.mxu0 0.0
    %8183 = vmatprep.subr.mxu0 0.0
    %8184 = vmatpush1.msra.mxu0 0.0
    %8185 = vmatprep.subr.mxu0 0.0
    %8186 = vmatpush1.msra.mxu0 0.0
    %8187 = vmatprep.subr.mxu0 0.0
    %8188 = vmatpush1.msra.mxu0 0.0
    %8189 = vmatprep.subr.mxu0 0.0
    %8190 = vmatpush1.msra.mxu0 0.0
    %8191 = vmatprep.subr.mxu0 0.0
    %8192 = vmatpush1.msra.mxu0 0.0
    %8193 = vmatprep.subr.mxu0 0.0
    %8194 = vmatpush1.msra.mxu0 0.0
    %8195 = vmatprep.subr.mxu0 0.0
    %8196 = vmatpush1.msra.mxu0 0.0
    %8197 = vmatprep.subr.mxu0 0.0
    %8198 = vmatpush1.msra.mxu0 0.0
    %8199 = vmatprep.subr.mxu0 0.0
    %8200 = vmatpush1.msra.mxu0 0.0
    %8201 = vmatprep.subr.mxu0 0.0
    %8202 = vmatpush1.msra.mxu0 0.0
    %8203 = vmatprep.subr.mxu0 0.0
    %8204 = vmatpush1.msra.mxu0 0.0
    %8205 = vmatprep.subr.mxu0 0.0
    %8206 = vmatpush1.msra.mxu0 0.0
    %8207 = vmatprep.subr.mxu0 0.0
    %8208 = vmatpush1.msra.mxu0 0.0
    %8209 = vmatprep.subr.mxu0 0.0
    %8210 = vmatpush1.msra.mxu0 0.0
    %8211 = vmatprep.mubr.f32.mxu0 0.0
    %8212 = vmatmul.mubr.f32.gmra.mrb[0].mxu0 %v8142
    %v8213 = vpop.f32.mrb[0].mxu0
    %v8214 = vadd.f32 0.0, %v8213
    %v8215 = vpop.f32.mrb[0].mxu0
    %8216 = vmatprep.mubr.f32.mxu0 0.0
    %8217 = vmatmul.mubr.f32.gmra.mrb[0].mxu0 %v8145
    %v8218 = vpop.f32.mrb[0].mxu0
    %v8219 = vadd.f32 0.0, %v8218
    %v8220 = vpop.f32.mrb[0].mxu0
    %8221 = vdwg.mxu0
    %v8222 = vmul.f32 %v8131, 0.03125
    %v8223 = vmul.f32 %v8136, 0.03125
    %v8224 = vmul.f32 %v8214, 0.03125
    %v8225 = vmul.f32 %v8219, 0.03125
    %v8226 = vmul.f32 %v8222, %v8222
    %v8227 = vmul.f32 %v8223, %v8223
    %v8228 = vsub.f32 %v8224, %v8226
    %v8229 = vsub.f32 %v8225, %v8227
    %v8230 = vmax.f32 %v8228, 0.0
    %v8231 = vmax.f32 %v8229, 0.0
    %8233 = vset.pattern.permute.xlu0 0
    %8234 = vperm.xlu0 %8233, %v8222
    %v8235 = vpop.permute.xlu0 %8234
    %8238 = vset.pattern.permute.xlu0 0
    %8239 = vperm.xlu0 %8238, %v8223
    %v8240 = vpop.permute.xlu0 %8239
    %v8242 = vsub.f32 %v8050, %v8235
    %v8243 = vsub.f32 %v8053, %v8240
    %v8244 = vadd.f32 %v8230, 1e-05
    %v8245 = vadd.f32 %v8231, 1e-05
    %v8246 = vrsqrt.pop %v8244
    %v8247 = vrsqrt.pop %v8245
    %8249 = vset.pattern.permute.xlu0 0
    %8250 = vperm.xlu0 %8249, %v8246
    %v8251 = vpop.permute.xlu0 %8250
    %8254 = vset.pattern.permute.xlu0 0
    %8255 = vperm.xlu0 %8254, %v8247
    %v8256 = vpop.permute.xlu0 %8255
    %v8258 = vmul.f32 %v8242, %v8251
    %v8259 = vmul.f32 %v8243, %v8256
    %v8261 = vlaneseq
    %v8262 = vshrl.u32 %v8261, 7
    %v8263 = vsub.s32 0, %v8262
    %v8264 = vrot.slane %v8056, %v8263
    %v8266 = vmul.f32 %v8258, %v8264
    %v8267 = vmul.f32 %v8259, %v8264
    %v8269 = vlaneseq
    %v8270 = vshrl.u32 %v8269, 7
    %v8271 = vsub.s32 0, %v8270
    %v8272 = vrot.slane %v8057, %v8271
    %v8274 = vadd.f32 %v8266, %v8272
    %v8275 = vadd.f32 %v8267, %v8272
    %8276 = vst.msk [vmem:[#allocation28] sm:$0xff] %vm324, %v8274
    %8277 = vst.msk [vmem:[#allocation28 + $0x8] sm:$0xff] %vm324, %v8275
    // Predicated region
    $region158: #{tpu_custom_call.1} parent=1 // pred_check
      _
    $region159: #{tpu_custom_call.1} parent=1 // pred_check_branch
      %8279 = sbr.rel (0) target = $region161
    $region160: #{tpu_custom_call.1} parent=1 // pred_region
      %s8281 = ssub.s32 256, 256
      %8282 = vsyncadd [#allocation4], %s8281
      %s8283 = sshll.u32 [#allocation28], 4
      %s8284 = int_to_ptr.vmem [resolvable:$true] %s8283
      %8289 = dma.vmem_to_hbm [thread:$0]  %s8284, 256, %s23, [#allocation4], 128, 128, 8
    $region161: #{tpu_custom_call.1} parent=1 // pred_fallthru
      _
    // Predicated region
    $region162: #{tpu_custom_call.1} parent=1 // pred_check
      _
    $region163: #{tpu_custom_call.1} parent=1 // pred_check_branch
      %8291 = sbr.rel (0) target = $region165
    $region164: #{tpu_custom_call.1} parent=1 // pred_region
      %8292 = dma.done [#allocation4], 256
    $region165: #{tpu_custom_call.1} parent=1 // pred_fallthru
      _
    %8293 = vsyncpa [#allocation3], 1
    %8294 = vsyncpa [#allocation6], 1
    %8295 = vsyncpa [#allocation9], 1
    %8296 = vsyncpa [#allocation12], 1
    %8297 = vsyncpa [#allocation15], 1
    %8298 = vsyncpa [#allocation18], 1
    %8299 = vsyncpa [#allocation21], 1
    %8300 = vsyncpa [#allocation24], 1
    %8301 = vsyncpa [#allocation27], 1
    %8302 = vsyncpa [#allocation4], 1

</llo_original>
